<compile_context>
chip_gen: v7x
topology: tpu7x:2x2x1
jax: 0.10.0
libtpu: 0.0.40
codegen_flags: <defaults>
</compile_context>

<pallas_src>
import jax
import jax.numpy as jnp
from jax.experimental import pallas as pl
from jax.experimental.pallas import tpu as pltpu

HIDDEN_SIZE = 3
BN_EPS = 1e-5

_VMEM = pl.BlockSpec(memory_space=pltpu.MemorySpace.VMEM)


# ----------------------------------------------------------------------------
# Pallas kernels
# ----------------------------------------------------------------------------
def _conv_bn_relu_kernel(cols_ref, w_ref, b_ref, g_ref, beta_ref, o_ref):
    """Fused: (im2col'd) conv matmul + bias + train-mode BatchNorm + ReLU."""
    acc = jnp.dot(cols_ref[...], w_ref[...], preferred_element_type=jnp.float32)
    acc = acc + b_ref[...]
    # Batch statistics over rows (= N*OH*OW), biased variance like PyTorch train BN.
    mean = jnp.mean(acc, axis=0, keepdims=True)
    var = jnp.mean(jnp.square(acc - mean), axis=0, keepdims=True)
    scale = g_ref[...] * jax.lax.rsqrt(var + BN_EPS)       # EUP rsqrt
    shift = beta_ref[...] - mean * scale
    o_ref[...] = jnp.maximum(acc * scale + shift, 0.0)


def conv_bn_relu_fused(cols, w2d, b_row, g_row, beta_row):
    M, K = cols.shape
    K2, C = w2d.shape
    assert K == K2
    return pl.pallas_call(
        _conv_bn_relu_kernel,
        out_shape=jax.ShapeDtypeStruct((M, C), jnp.float32),
        in_specs=[_VMEM] * 5,
        out_specs=_VMEM,
    )(cols, w2d, b_row, g_row, beta_row)


def _bottleneck_kernel(flat_ref, w1_ref, b1_ref, w2_ref, b2_ref, eps_ref,
                       wd_ref, bd_ref, mean_ref, std_ref, code_ref, dec_ref):
    """Fused fc_encode1 + fc_encode2 + sampler + fc_decode."""
    flat = flat_ref[...]
    mean = jnp.dot(flat, w1_ref[...], preferred_element_type=jnp.float32) + b1_ref[...]
    # NOTE: `std` is really the log-variance (matches the reference PyTorch VAE).
    std = jnp.dot(flat, w2_ref[...], preferred_element_type=jnp.float32) + b2_ref[...]
    code = eps_ref[...] * jnp.exp(0.5 * std) + mean
    dec = jnp.dot(code, wd_ref[...], preferred_element_type=jnp.float32) + bd_ref[...]
    mean_ref[...] = mean
    std_ref[...] = std
    code_ref[...] = code
    dec_ref[...] = dec


def bottleneck_fused(flat, w1, b1, w2, b2, eps, wd, bd):
    N = flat.shape[0]
    H = w1.shape[1]
    D = wd.shape[1]
    return pl.pallas_call(
        _bottleneck_kernel,
        out_shape=(jax.ShapeDtypeStruct((N, H), jnp.float32),
                   jax.ShapeDtypeStruct((N, H), jnp.float32),
                   jax.ShapeDtypeStruct((N, H), jnp.float32),
                   jax.ShapeDtypeStruct((N, D), jnp.float32)),
        in_specs=[_VMEM] * 8,
        out_specs=(_VMEM, _VMEM, _VMEM, _VMEM),
    )(flat, w1, b1, w2, b2, eps, wd, bd)


def _deconv_sigmoid_kernel(cols_ref, w_ref, b_ref, o_ref):
    """Cout=1 transposed conv: VPU multiply + lane reduction + sigmoid (no MXU)."""
    prod = cols_ref[...] * w_ref[...]                      # (M,K) * (1,K) on the VPU
    y = jnp.sum(prod, axis=-1, keepdims=True) + b_ref[...]  # XLU lane reduce -> (M,1)
    o_ref[...] = jax.nn.sigmoid(y)                         # EUP


def deconv_sigmoid_fused(cols, w_row, b_scalar):
    M, K = cols.shape
    return pl.pallas_call(
        _deconv_sigmoid_kernel,
        out_shape=jax.ShapeDtypeStruct((M, 1), jnp.float32),
        in_specs=[_VMEM] * 3,
        out_specs=_VMEM,
    )(cols, w_row, b_scalar)


# ----------------------------------------------------------------------------
# JAX glue: im2col (static slices) and interior-padded upsample (no scatter)
# ----------------------------------------------------------------------------
def _im2col(x_nhwc, kh, kw, stride, pad):
    N, H, W, C = x_nhwc.shape
    if pad:
        x_nhwc = jnp.pad(x_nhwc, ((0, 0), (pad, pad), (pad, pad), (0, 0)))
    Hp, Wp = H + 2 * pad, W + 2 * pad
    OH = (Hp - kh) // stride + 1
    OW = (Wp - kw) // stride + 1
    cols = []
    for i in range(kh):
        for j in range(kw):
            cols.append(x_nhwc[:, i:i + stride * OH:stride, j:j + stride * OW:stride, :])
    patches = jnp.stack(cols, axis=3)                     # (N, OH, OW, kh*kw, C)
    return patches.reshape(N * OH * OW, kh * kw * C), (N, OH, OW)


def _upsample_pad(x_nhwc, stride, eff_pad):
    """Zero-stuff (interior pad) + edge pad in one lax.pad; no HBM scatter."""
    return jax.lax.pad(
        x_nhwc, jnp.float32(0.0),
        ((0, 0, 0),
         (eff_pad, eff_pad, stride - 1),
         (eff_pad, eff_pad, stride - 1),
         (0, 0, 0)))


# ----------------------------------------------------------------------------
# Forward pass (operates on pre-packed params; no weight transposes in here)
# ----------------------------------------------------------------------------
def vae_forward(qp, x_nchw, eps):
    N = x_nchw.shape[0]
    x = x_nchw.reshape(N, 28, 28, 1)                      # NCHW->NHWC is a reshape for C==1

    # encoder
    cols, (_, OH, OW) = _im2col(x, 4, 4, 2, 1)
    h = conv_bn_relu_fused(cols, qp["conv1_w"], qp["conv1_b"],
                           qp["bn1_g"], qp["bn1_b"]).reshape(N, OH, OW, 16)   # (N,14,14,16)
    cols, (_, OH, OW) = _im2col(h, 4, 4, 2, 1)
    h = conv_bn_relu_fused(cols, qp["conv2_w"], qp["conv2_b"],
                           qp["bn2_g"], qp["bn2_b"]).reshape(N, OH, OW, 32)   # (N, 7, 7,32)
    cols, (_, OH, OW) = _im2col(h, 3, 3, 1, 1)
    h = conv_bn_relu_fused(cols, qp["conv3_w"], qp["conv3_b"],
                           qp["bn3_g"], qp["bn3_b"]).reshape(N, OH, OW, 16)   # (N, 7, 7,16)

    # bottleneck: fc1 + fc2 + sampler + fc_decode in one kernel.
    # fc weights were row/col-permuted at prepare time so the NHWC flatten matches
    # PyTorch's channel-major .view() without any activation transpose here.
    flat = h.reshape(N, 16 * 7 * 7)
    mean, std, code, dec = bottleneck_fused(flat, qp["fc1_w"], qp["fc1_b"],
                                            qp["fc2_w"], qp["fc2_b"],
                                            eps, qp["fcd_w"], qp["fcd_b"])
    d = dec.reshape(N, 7, 7, 16)                          # already NHWC order

    # decoder
    up = _upsample_pad(d, 2, 4 - 1 - 1)                   # ConvTranspose2d(16,16,4,2,1)
    cols, (_, OH, OW) = _im2col(up, 4, 4, 1, 0)
    y = conv_bn_relu_fused(cols, qp["dc1_w"], qp["dc1_b"],
                           qp["bnd1_g"], qp["bnd1_b"]).reshape(N, OH, OW, 16)  # (N,14,14,16)

    up = _upsample_pad(y, 2, 4 - 1 - 1)                   # ConvTranspose2d(16,1,4,2,1)
    cols, (_, OH, OW) = _im2col(up, 4, 4, 1, 0)
    o = deconv_sigmoid_fused(cols, qp["dc2_w_row"], qp["dc2_b"])               # (N*28*28, 1)
    out = o.reshape(N, OH, OW, 1).reshape(N, 1, OH, OW)   # NHWC->NCHW is a reshape for C==1
    return out, code, mean, std


# ----------------------------------------------------------------------------
# One-time parameter repacking (PyTorch layouts -> matmul-ready layouts)
# ----------------------------------------------------------------------------
def prepare_params(p):
    """Run once outside the jitted forward; hoists all weight transposes/flips."""
    def conv_pack(w_oihw):            # Conv2d (Cout,Cin,KH,KW) -> (KH*KW*Cin, Cout)
        cout, cin, kh, kw = w_oihw.shape
        return jnp.transpose(w_oihw, (2, 3, 1, 0)).reshape(kh * kw * cin, cout)

    def deconv_pack(w_iohw):          # ConvTranspose2d (Cin,Cout,KH,KW): flip spatial
        cin, cout, kh, kw = w_iohw.shape
        return jnp.transpose(w_iohw, (2, 3, 0, 1))[::-1, ::-1, :, :].reshape(kh * kw * cin, cout)

    def enc_pack(w_in_out):           # permute rows (c,h,w)->(h,w,c) to match NHWC flatten
        return w_in_out.reshape(16, 7, 7, -1).transpose(1, 2, 0, 3).reshape(16 * 7 * 7, -1)

    def dec_pack_w(w):                # permute cols (c,h,w)->(h,w,c)
        return w.reshape(-1, 16, 7, 7).transpose(0, 2, 3, 1).reshape(-1, 16 * 7 * 7)

    def dec_pack_b(b):
        return b.reshape(16, 7, 7).transpose(1, 2, 0).reshape(1, 16 * 7 * 7)

    row = lambda v: v.reshape(1, -1).astype(jnp.float32)

    q = {
        "conv1_w": conv_pack(p["conv1_w"]), "conv1_b": row(p["conv1_b"]),
        "bn1_g": row(p["bn1_g"]), "bn1_b": row(p["bn1_b"]),
        "conv2_w": conv_pack(p["conv2_w"]), "conv2_b": row(p["conv2_b"]),
        "bn2_g": row(p["bn2_g"]), "bn2_b": row(p["bn2_b"]),
        "conv3_w": conv_pack(p["conv3_w"]), "conv3_b": row(p["conv3_b"]),
        "bn3_g": row(p["bn3_g"]), "bn3_b": row(p["bn3_b"]),
        "fc1_w": enc_pack(p["fc1_w"]), "fc1_b": row(p["fc1_b"]),
        "fc2_w": enc_pack(p["fc2_w"]), "fc2_b": row(p["fc2_b"]),
        "fcd_w": dec_pack_w(p["fcd_w"]), "fcd_b": dec_pack_b(p["fcd_b"]),
        "dc1_w": deconv_pack(p["dc1_w"]), "dc1_b": row(p["dc1_b"]),
        "bnd1_g": row(p["bnd1_g"]), "bnd1_b": row(p["bnd1_b"]),
        "dc2_w_row": deconv_pack(p["dc2_w"]).T,            # (1, 256) broadcast row
        "dc2_b": p["dc2_b"].reshape(1, 1).astype(jnp.float32),
    }
    return jax.tree_util.tree_map(lambda a: jnp.asarray(a, jnp.float32), q)


# ----------------------------------------------------------------------------
# Deterministic synthetic parameter init (PyTorch layouts)
# ----------------------------------------------------------------------------
def init_params(key):
    ks = jax.random.split(key, 16)

    def rnd(k, shape, fan_in):
        return jax.random.normal(k, shape, jnp.float32) / jnp.sqrt(float(fan_in))

    p = {}
    p["conv1_w"] = rnd(ks[0], (16, 1, 4, 4), 1 * 4 * 4)        # Conv2d: (Cout,Cin,KH,KW)
    p["conv1_b"] = rnd(ks[1], (16,), 16)
    p["bn1_g"], p["bn1_b"] = jnp.ones((16,), jnp.float32), jnp.zeros((16,), jnp.float32)

    p["conv2_w"] = rnd(ks[2], (32, 16, 4, 4), 16 * 4 * 4)
    p["conv2_b"] = rnd(ks[3], (32,), 32)
    p["bn2_g"], p["bn2_b"] = jnp.ones((32,), jnp.float32), jnp.zeros((32,), jnp.float32)

    p["conv3_w"] = rnd(ks[4], (16, 32, 3, 3), 32 * 3 * 3)
    p["conv3_b"] = rnd(ks[5], (16,), 16)
    p["bn3_g"], p["bn3_b"] = jnp.ones((16,), jnp.float32), jnp.zeros((16,), jnp.float32)

    p["fc1_w"] = rnd(ks[6], (16 * 7 * 7, HIDDEN_SIZE), 16 * 7 * 7)   # stored (in, out)
    p["fc1_b"] = rnd(ks[7], (HIDDEN_SIZE,), HIDDEN_SIZE)
    p["fc2_w"] = rnd(ks[8], (16 * 7 * 7, HIDDEN_SIZE), 16 * 7 * 7)
    p["fc2_b"] = rnd(ks[9], (HIDDEN_SIZE,), HIDDEN_SIZE)
    p["fcd_w"] = rnd(ks[10], (HIDDEN_SIZE, 16 * 7 * 7), HIDDEN_SIZE)
    p["fcd_b"] = rnd(ks[11], (16 * 7 * 7,), 16 * 7 * 7)

    p["dc1_w"] = rnd(ks[12], (16, 16, 4, 4), 16 * 4 * 4)       # ConvTranspose2d: (Cin,Cout,KH,KW)
    p["dc1_b"] = rnd(ks[13], (16,), 16)
    p["bnd1_g"], p["bnd1_b"] = jnp.ones((16,), jnp.float32), jnp.zeros((16,), jnp.float32)

    p["dc2_w"] = rnd(ks[14], (16, 1, 4, 4), 16 * 4 * 4)
    p["dc2_b"] = rnd(ks[15], (1,), 1)
    return p


if __name__ == "__main__":
    key = jax.random.PRNGKey(0)
    k_param, k_x, k_eps = jax.random.split(key, 3)

    torch_layout_params = init_params(k_param)
    packed_params = prepare_params(torch_layout_params)      # one-time repacking

    # MNIST-shaped input, NCHW (batch=2, 1 channel, 28x28) — required by the 16*7*7 FC.
    x = jax.random.uniform(k_x, (2, 1, 28, 28), jnp.float32)
    # torch.FloatTensor(...).normal_() equivalent: standard normal noise for the sampler.
    eps = jax.random.normal(k_eps, (2, HIDDEN_SIZE), jnp.float32)

    fwd = jax.jit(vae_forward)
    out, code, mean, std = fwd(packed_params, x, eps)
    jax.block_until_ready((out, code, mean, std))

    assert out.shape == (2, 1, 28, 28)
    assert code.shape == (2, HIDDEN_SIZE)
    assert mean.shape == (2, HIDDEN_SIZE)
    assert std.shape == (2, HIDDEN_SIZE)
    assert bool(jnp.all(jnp.isfinite(out)))
    print("KERNEL_OK")
</pallas_src>

<mosaic_0001>
module attributes {stable_mosaic.version = 11 : i64} {
  func.func @_conv_bn_relu_kernel(%arg0: memref<392x16xf32, #tpu.memory_space<vmem>>, %arg1: memref<16x16xf32, #tpu.memory_space<vmem>>, %arg2: memref<1x16xf32, #tpu.memory_space<vmem>>, %arg3: memref<1x16xf32, #tpu.memory_space<vmem>>, %arg4: memref<1x16xf32, #tpu.memory_space<vmem>>, %arg5: memref<392x16xf32, #tpu.memory_space<vmem>>) attributes {dimension_semantics = [], scalar_prefetch = 0 : i64, scratch_operands = 0 : i64, tpu.core_type = #tpu.core_type<tc>} {
    %c0 = arith.constant 0 : index
    %c0_0 = arith.constant 0 : index
    %0 = vector.load %arg0[%c0, %c0_0] : memref<392x16xf32, #tpu.memory_space<vmem>>, vector<392x16xf32>
    %c0_1 = arith.constant 0 : index
    %c0_2 = arith.constant 0 : index
    %1 = vector.load %arg1[%c0_1, %c0_2] : memref<16x16xf32, #tpu.memory_space<vmem>>, vector<16x16xf32>
    %cst = arith.constant dense<0.000000e+00> : vector<392x16xf32>
    %2 = tpu.matmul %0, %1, %cst {dimension_numbers = #tpu.dot_dimension_numbers<[1], [0], [0], [1], [0, 0, 1, 1], [], []>} : vector<392x16xf32>, vector<16x16xf32>, vector<392x16xf32> -> vector<392x16xf32>
    %c0_3 = arith.constant 0 : index
    %c0_4 = arith.constant 0 : index
    %3 = vector.load %arg2[%c0_3, %c0_4] : memref<1x16xf32, #tpu.memory_space<vmem>>, vector<1x16xf32>
    %4 = vector.broadcast %3 : vector<1x16xf32> to vector<392x16xf32>
    %5 = arith.addf %2, %4 : vector<392x16xf32>
    %cst_5 = arith.constant dense<0.000000e+00> : vector<16xf32>
    %6 = vector.multi_reduction <add>, %5, %cst_5 [0] : vector<392x16xf32> to vector<16xf32>
    %7 = vector.shape_cast %6 : vector<16xf32> to vector<1x16xf32>
    %cst_6 = arith.constant 3.920000e+02 : f32
    %8 = vector.broadcast %cst_6 : f32 to vector<1x16xf32>
    %9 = arith.divf %7, %8 : vector<1x16xf32>
    %10 = vector.broadcast %9 : vector<1x16xf32> to vector<392x16xf32>
    %11 = arith.subf %5, %10 : vector<392x16xf32>
    %12 = arith.mulf %11, %11 : vector<392x16xf32>
    %cst_7 = arith.constant dense<0.000000e+00> : vector<16xf32>
    %13 = vector.multi_reduction <add>, %12, %cst_7 [0] : vector<392x16xf32> to vector<16xf32>
    %14 = vector.shape_cast %13 : vector<16xf32> to vector<1x16xf32>
    %cst_8 = arith.constant 3.920000e+02 : f32
    %15 = vector.broadcast %cst_8 : f32 to vector<1x16xf32>
    %16 = arith.divf %14, %15 : vector<1x16xf32>
    %c0_9 = arith.constant 0 : index
    %c0_10 = arith.constant 0 : index
    %17 = vector.load %arg3[%c0_9, %c0_10] : memref<1x16xf32, #tpu.memory_space<vmem>>, vector<1x16xf32>
    %cst_11 = arith.constant 9.99999974E-6 : f32
    %18 = vector.broadcast %cst_11 : f32 to vector<1x16xf32>
    %19 = arith.addf %16, %18 : vector<1x16xf32>
    %20 = math.rsqrt %19 : vector<1x16xf32>
    %21 = arith.mulf %17, %20 : vector<1x16xf32>
    %c0_12 = arith.constant 0 : index
    %c0_13 = arith.constant 0 : index
    %22 = vector.load %arg4[%c0_12, %c0_13] : memref<1x16xf32, #tpu.memory_space<vmem>>, vector<1x16xf32>
    %23 = arith.mulf %9, %21 : vector<1x16xf32>
    %24 = arith.subf %22, %23 : vector<1x16xf32>
    %25 = vector.broadcast %21 : vector<1x16xf32> to vector<392x16xf32>
    %26 = arith.mulf %5, %25 : vector<392x16xf32>
    %27 = vector.broadcast %24 : vector<1x16xf32> to vector<392x16xf32>
    %28 = arith.addf %26, %27 : vector<392x16xf32>
    %cst_14 = arith.constant 0.000000e+00 : f32
    %29 = vector.broadcast %cst_14 : f32 to vector<392x16xf32>
    %30 = arith.maximumf %28, %29 : vector<392x16xf32>
    %c0_15 = arith.constant 0 : index
    %c0_16 = arith.constant 0 : index
    %31 = vector.load %arg5[%c0_15, %c0_16] : memref<392x16xf32, #tpu.memory_space<vmem>>, vector<392x16xf32>
    tpu.vector_store %arg5[%c0_15, %c0_16], %30 {strides = array<i32>} : memref<392x16xf32, #tpu.memory_space<vmem>>, vector<392x16xf32>,
    return
  }
}

module attributes {stable_mosaic.version = 11 : i64} {
  func.func @_conv_bn_relu_kernel(%arg0: memref<98x256xf32, #tpu.memory_space<vmem>>, %arg1: memref<256x32xf32, #tpu.memory_space<vmem>>, %arg2: memref<1x32xf32, #tpu.memory_space<vmem>>, %arg3: memref<1x32xf32, #tpu.memory_space<vmem>>, %arg4: memref<1x32xf32, #tpu.memory_space<vmem>>, %arg5: memref<98x32xf32, #tpu.memory_space<vmem>>) attributes {dimension_semantics = [], scalar_prefetch = 0 : i64, scratch_operands = 0 : i64, tpu.core_type = #tpu.core_type<tc>} {
    %c0 = arith.constant 0 : index
    %c0_0 = arith.constant 0 : index
    %0 = vector.load %arg0[%c0, %c0_0] : memref<98x256xf32, #tpu.memory_space<vmem>>, vector<98x256xf32>
    %c0_1 = arith.constant 0 : index
    %c0_2 = arith.constant 0 : index
    %1 = vector.load %arg1[%c0_1, %c0_2] : memref<256x32xf32, #tpu.memory_space<vmem>>, vector<256x32xf32>
    %cst = arith.constant dense<0.000000e+00> : vector<98x32xf32>
    %2 = tpu.matmul %0, %1, %cst {dimension_numbers = #tpu.dot_dimension_numbers<[1], [0], [0], [1], [0, 0, 1, 1], [], []>} : vector<98x256xf32>, vector<256x32xf32>, vector<98x32xf32> -> vector<98x32xf32>
    %c0_3 = arith.constant 0 : index
    %c0_4 = arith.constant 0 : index
    %3 = vector.load %arg2[%c0_3, %c0_4] : memref<1x32xf32, #tpu.memory_space<vmem>>, vector<1x32xf32>
    %4 = vector.broadcast %3 : vector<1x32xf32> to vector<98x32xf32>
    %5 = arith.addf %2, %4 : vector<98x32xf32>
    %cst_5 = arith.constant dense<0.000000e+00> : vector<32xf32>
    %6 = vector.multi_reduction <add>, %5, %cst_5 [0] : vector<98x32xf32> to vector<32xf32>
    %7 = vector.shape_cast %6 : vector<32xf32> to vector<1x32xf32>
    %cst_6 = arith.constant 9.800000e+01 : f32
    %8 = vector.broadcast %cst_6 : f32 to vector<1x32xf32>
    %9 = arith.divf %7, %8 : vector<1x32xf32>
    %10 = vector.broadcast %9 : vector<1x32xf32> to vector<98x32xf32>
    %11 = arith.subf %5, %10 : vector<98x32xf32>
    %12 = arith.mulf %11, %11 : vector<98x32xf32>
    %cst_7 = arith.constant dense<0.000000e+00> : vector<32xf32>
    %13 = vector.multi_reduction <add>, %12, %cst_7 [0] : vector<98x32xf32> to vector<32xf32>
    %14 = vector.shape_cast %13 : vector<32xf32> to vector<1x32xf32>
    %cst_8 = arith.constant 9.800000e+01 : f32
    %15 = vector.broadcast %cst_8 : f32 to vector<1x32xf32>
    %16 = arith.divf %14, %15 : vector<1x32xf32>
    %c0_9 = arith.constant 0 : index
    %c0_10 = arith.constant 0 : index
    %17 = vector.load %arg3[%c0_9, %c0_10] : memref<1x32xf32, #tpu.memory_space<vmem>>, vector<1x32xf32>
    %cst_11 = arith.constant 9.99999974E-6 : f32
    %18 = vector.broadcast %cst_11 : f32 to vector<1x32xf32>
    %19 = arith.addf %16, %18 : vector<1x32xf32>
    %20 = math.rsqrt %19 : vector<1x32xf32>
    %21 = arith.mulf %17, %20 : vector<1x32xf32>
    %c0_12 = arith.constant 0 : index
    %c0_13 = arith.constant 0 : index
    %22 = vector.load %arg4[%c0_12, %c0_13] : memref<1x32xf32, #tpu.memory_space<vmem>>, vector<1x32xf32>
    %23 = arith.mulf %9, %21 : vector<1x32xf32>
    %24 = arith.subf %22, %23 : vector<1x32xf32>
    %25 = vector.broadcast %21 : vector<1x32xf32> to vector<98x32xf32>
    %26 = arith.mulf %5, %25 : vector<98x32xf32>
    %27 = vector.broadcast %24 : vector<1x32xf32> to vector<98x32xf32>
    %28 = arith.addf %26, %27 : vector<98x32xf32>
    %cst_14 = arith.constant 0.000000e+00 : f32
    %29 = vector.broadcast %cst_14 : f32 to vector<98x32xf32>
    %30 = arith.maximumf %28, %29 : vector<98x32xf32>
    %c0_15 = arith.constant 0 : index
    %c0_16 = arith.constant 0 : index
    %31 = vector.load %arg5[%c0_15, %c0_16] : memref<98x32xf32, #tpu.memory_space<vmem>>, vector<98x32xf32>
    tpu.vector_store %arg5[%c0_15, %c0_16], %30 {strides = array<i32>} : memref<98x32xf32, #tpu.memory_space<vmem>>, vector<98x32xf32>,
    return
  }
}

module attributes {stable_mosaic.version = 11 : i64} {
  func.func @_conv_bn_relu_kernel(%arg0: memref<98x288xf32, #tpu.memory_space<vmem>>, %arg1: memref<288x16xf32, #tpu.memory_space<vmem>>, %arg2: memref<1x16xf32, #tpu.memory_space<vmem>>, %arg3: memref<1x16xf32, #tpu.memory_space<vmem>>, %arg4: memref<1x16xf32, #tpu.memory_space<vmem>>, %arg5: memref<98x16xf32, #tpu.memory_space<vmem>>) attributes {dimension_semantics = [], scalar_prefetch = 0 : i64, scratch_operands = 0 : i64, tpu.core_type = #tpu.core_type<tc>} {
    %c0 = arith.constant 0 : index
    %c0_0 = arith.constant 0 : index
    %0 = vector.load %arg0[%c0, %c0_0] : memref<98x288xf32, #tpu.memory_space<vmem>>, vector<98x288xf32>
    %c0_1 = arith.constant 0 : index
    %c0_2 = arith.constant 0 : index
    %1 = vector.load %arg1[%c0_1, %c0_2] : memref<288x16xf32, #tpu.memory_space<vmem>>, vector<288x16xf32>
    %cst = arith.constant dense<0.000000e+00> : vector<98x16xf32>
    %2 = tpu.matmul %0, %1, %cst {dimension_numbers = #tpu.dot_dimension_numbers<[1], [0], [0], [1], [0, 0, 1, 1], [], []>} : vector<98x288xf32>, vector<288x16xf32>, vector<98x16xf32> -> vector<98x16xf32>
    %c0_3 = arith.constant 0 : index
    %c0_4 = arith.constant 0 : index
    %3 = vector.load %arg2[%c0_3, %c0_4] : memref<1x16xf32, #tpu.memory_space<vmem>>, vector<1x16xf32>
    %4 = vector.broadcast %3 : vector<1x16xf32> to vector<98x16xf32>
    %5 = arith.addf %2, %4 : vector<98x16xf32>
    %cst_5 = arith.constant dense<0.000000e+00> : vector<16xf32>
    %6 = vector.multi_reduction <add>, %5, %cst_5 [0] : vector<98x16xf32> to vector<16xf32>
    %7 = vector.shape_cast %6 : vector<16xf32> to vector<1x16xf32>
    %cst_6 = arith.constant 9.800000e+01 : f32
    %8 = vector.broadcast %cst_6 : f32 to vector<1x16xf32>
    %9 = arith.divf %7, %8 : vector<1x16xf32>
    %10 = vector.broadcast %9 : vector<1x16xf32> to vector<98x16xf32>
    %11 = arith.subf %5, %10 : vector<98x16xf32>
    %12 = arith.mulf %11, %11 : vector<98x16xf32>
    %cst_7 = arith.constant dense<0.000000e+00> : vector<16xf32>
    %13 = vector.multi_reduction <add>, %12, %cst_7 [0] : vector<98x16xf32> to vector<16xf32>
    %14 = vector.shape_cast %13 : vector<16xf32> to vector<1x16xf32>
    %cst_8 = arith.constant 9.800000e+01 : f32
    %15 = vector.broadcast %cst_8 : f32 to vector<1x16xf32>
    %16 = arith.divf %14, %15 : vector<1x16xf32>
    %c0_9 = arith.constant 0 : index
    %c0_10 = arith.constant 0 : index
    %17 = vector.load %arg3[%c0_9, %c0_10] : memref<1x16xf32, #tpu.memory_space<vmem>>, vector<1x16xf32>
    %cst_11 = arith.constant 9.99999974E-6 : f32
    %18 = vector.broadcast %cst_11 : f32 to vector<1x16xf32>
    %19 = arith.addf %16, %18 : vector<1x16xf32>
    %20 = math.rsqrt %19 : vector<1x16xf32>
    %21 = arith.mulf %17, %20 : vector<1x16xf32>
    %c0_12 = arith.constant 0 : index
    %c0_13 = arith.constant 0 : index
    %22 = vector.load %arg4[%c0_12, %c0_13] : memref<1x16xf32, #tpu.memory_space<vmem>>, vector<1x16xf32>
    %23 = arith.mulf %9, %21 : vector<1x16xf32>
    %24 = arith.subf %22, %23 : vector<1x16xf32>
    %25 = vector.broadcast %21 : vector<1x16xf32> to vector<98x16xf32>
    %26 = arith.mulf %5, %25 : vector<98x16xf32>
    %27 = vector.broadcast %24 : vector<1x16xf32> to vector<98x16xf32>
    %28 = arith.addf %26, %27 : vector<98x16xf32>
    %cst_14 = arith.constant 0.000000e+00 : f32
    %29 = vector.broadcast %cst_14 : f32 to vector<98x16xf32>
    %30 = arith.maximumf %28, %29 : vector<98x16xf32>
    %c0_15 = arith.constant 0 : index
    %c0_16 = arith.constant 0 : index
    %31 = vector.load %arg5[%c0_15, %c0_16] : memref<98x16xf32, #tpu.memory_space<vmem>>, vector<98x16xf32>
    tpu.vector_store %arg5[%c0_15, %c0_16], %30 {strides = array<i32>} : memref<98x16xf32, #tpu.memory_space<vmem>>, vector<98x16xf32>,
    return
  }
}

module attributes {stable_mosaic.version = 11 : i64} {
  func.func @_bottleneck_kernel(%arg0: memref<2x784xf32, #tpu.memory_space<vmem>>, %arg1: memref<784x3xf32, #tpu.memory_space<vmem>>, %arg2: memref<1x3xf32, #tpu.memory_space<vmem>>, %arg3: memref<784x3xf32, #tpu.memory_space<vmem>>, %arg4: memref<1x3xf32, #tpu.memory_space<vmem>>, %arg5: memref<2x3xf32, #tpu.memory_space<vmem>>, %arg6: memref<3x784xf32, #tpu.memory_space<vmem>>, %arg7: memref<1x784xf32, #tpu.memory_space<vmem>>, %arg8: memref<2x3xf32, #tpu.memory_space<vmem>>, %arg9: memref<2x3xf32, #tpu.memory_space<vmem>>, %arg10: memref<2x3xf32, #tpu.memory_space<vmem>>, %arg11: memref<2x784xf32, #tpu.memory_space<vmem>>) attributes {dimension_semantics = [], scalar_prefetch = 0 : i64, scratch_operands = 0 : i64, tpu.core_type = #tpu.core_type<tc>} {
    %c0 = arith.constant 0 : index
    %c0_0 = arith.constant 0 : index
    %0 = vector.load %arg0[%c0, %c0_0] : memref<2x784xf32, #tpu.memory_space<vmem>>, vector<2x784xf32>
    %c0_1 = arith.constant 0 : index
    %c0_2 = arith.constant 0 : index
    %1 = vector.load %arg1[%c0_1, %c0_2] : memref<784x3xf32, #tpu.memory_space<vmem>>, vector<784x3xf32>
    %cst = arith.constant dense<0.000000e+00> : vector<2x3xf32>
    %2 = tpu.matmul %0, %1, %cst {dimension_numbers = #tpu.dot_dimension_numbers<[1], [0], [0], [1], [0, 0, 1, 1], [], []>} : vector<2x784xf32>, vector<784x3xf32>, vector<2x3xf32> -> vector<2x3xf32>
    %c0_3 = arith.constant 0 : index
    %c0_4 = arith.constant 0 : index
    %3 = vector.load %arg2[%c0_3, %c0_4] : memref<1x3xf32, #tpu.memory_space<vmem>>, vector<1x3xf32>
    %4 = vector.broadcast %3 : vector<1x3xf32> to vector<2x3xf32>
    %5 = arith.addf %2, %4 : vector<2x3xf32>
    %c0_5 = arith.constant 0 : index
    %c0_6 = arith.constant 0 : index
    %6 = vector.load %arg3[%c0_5, %c0_6] : memref<784x3xf32, #tpu.memory_space<vmem>>, vector<784x3xf32>
    %cst_7 = arith.constant dense<0.000000e+00> : vector<2x3xf32>
    %7 = tpu.matmul %0, %6, %cst_7 {dimension_numbers = #tpu.dot_dimension_numbers<[1], [0], [0], [1], [0, 0, 1, 1], [], []>} : vector<2x784xf32>, vector<784x3xf32>, vector<2x3xf32> -> vector<2x3xf32>
    %c0_8 = arith.constant 0 : index
    %c0_9 = arith.constant 0 : index
    %8 = vector.load %arg4[%c0_8, %c0_9] : memref<1x3xf32, #tpu.memory_space<vmem>>, vector<1x3xf32>
    %9 = vector.broadcast %8 : vector<1x3xf32> to vector<2x3xf32>
    %10 = arith.addf %7, %9 : vector<2x3xf32>
    %c0_10 = arith.constant 0 : index
    %c0_11 = arith.constant 0 : index
    %11 = vector.load %arg5[%c0_10, %c0_11] : memref<2x3xf32, #tpu.memory_space<vmem>>, vector<2x3xf32>
    %cst_12 = arith.constant 5.000000e-01 : f32
    %12 = vector.broadcast %cst_12 : f32 to vector<2x3xf32>
    %13 = arith.mulf %12, %10 : vector<2x3xf32>
    %14 = math.exp %13 : vector<2x3xf32>
    %15 = arith.mulf %11, %14 : vector<2x3xf32>
    %16 = arith.addf %15, %5 : vector<2x3xf32>
    %c0_13 = arith.constant 0 : index
    %c0_14 = arith.constant 0 : index
    %17 = vector.load %arg6[%c0_13, %c0_14] : memref<3x784xf32, #tpu.memory_space<vmem>>, vector<3x784xf32>
    %cst_15 = arith.constant dense<0.000000e+00> : vector<2x784xf32>
    %18 = tpu.matmul %16, %17, %cst_15 {dimension_numbers = #tpu.dot_dimension_numbers<[1], [0], [0], [1], [0, 0, 1, 1], [], []>} : vector<2x3xf32>, vector<3x784xf32>, vector<2x784xf32> -> vector<2x784xf32>
    %c0_16 = arith.constant 0 : index
    %c0_17 = arith.constant 0 : index
    %19 = vector.load %arg7[%c0_16, %c0_17] : memref<1x784xf32, #tpu.memory_space<vmem>>, vector<1x784xf32>
    %20 = vector.broadcast %19 : vector<1x784xf32> to vector<2x784xf32>
    %21 = arith.addf %18, %20 : vector<2x784xf32>
    %c0_18 = arith.constant 0 : index
    %c0_19 = arith.constant 0 : index
    %22 = vector.load %arg8[%c0_18, %c0_19] : memref<2x3xf32, #tpu.memory_space<vmem>>, vector<2x3xf32>
    tpu.vector_store %arg8[%c0_18, %c0_19], %5 {strides = array<i32>} : memref<2x3xf32, #tpu.memory_space<vmem>>, vector<2x3xf32>,
    %c0_20 = arith.constant 0 : index
    %c0_21 = arith.constant 0 : index
    %23 = vector.load %arg9[%c0_20, %c0_21] : memref<2x3xf32, #tpu.memory_space<vmem>>, vector<2x3xf32>
    tpu.vector_store %arg9[%c0_20, %c0_21], %10 {strides = array<i32>} : memref<2x3xf32, #tpu.memory_space<vmem>>, vector<2x3xf32>,
    %c0_22 = arith.constant 0 : index
    %c0_23 = arith.constant 0 : index
    %24 = vector.load %arg10[%c0_22, %c0_23] : memref<2x3xf32, #tpu.memory_space<vmem>>, vector<2x3xf32>
    tpu.vector_store %arg10[%c0_22, %c0_23], %16 {strides = array<i32>} : memref<2x3xf32, #tpu.memory_space<vmem>>, vector<2x3xf32>,
    %c0_24 = arith.constant 0 : index
    %c0_25 = arith.constant 0 : index
    %25 = vector.load %arg11[%c0_24, %c0_25] : memref<2x784xf32, #tpu.memory_space<vmem>>, vector<2x784xf32>
    tpu.vector_store %arg11[%c0_24, %c0_25], %21 {strides = array<i32>} : memref<2x784xf32, #tpu.memory_space<vmem>>, vector<2x784xf32>,
    return
  }
}

module attributes {stable_mosaic.version = 11 : i64} {
  func.func @_conv_bn_relu_kernel(%arg0: memref<392x256xf32, #tpu.memory_space<vmem>>, %arg1: memref<256x16xf32, #tpu.memory_space<vmem>>, %arg2: memref<1x16xf32, #tpu.memory_space<vmem>>, %arg3: memref<1x16xf32, #tpu.memory_space<vmem>>, %arg4: memref<1x16xf32, #tpu.memory_space<vmem>>, %arg5: memref<392x16xf32, #tpu.memory_space<vmem>>) attributes {dimension_semantics = [], scalar_prefetch = 0 : i64, scratch_operands = 0 : i64, tpu.core_type = #tpu.core_type<tc>} {
    %c0 = arith.constant 0 : index
    %c0_0 = arith.constant 0 : index
    %0 = vector.load %arg0[%c0, %c0_0] : memref<392x256xf32, #tpu.memory_space<vmem>>, vector<392x256xf32>
    %c0_1 = arith.constant 0 : index
    %c0_2 = arith.constant 0 : index
    %1 = vector.load %arg1[%c0_1, %c0_2] : memref<256x16xf32, #tpu.memory_space<vmem>>, vector<256x16xf32>
    %cst = arith.constant dense<0.000000e+00> : vector<392x16xf32>
    %2 = tpu.matmul %0, %1, %cst {dimension_numbers = #tpu.dot_dimension_numbers<[1], [0], [0], [1], [0, 0, 1, 1], [], []>} : vector<392x256xf32>, vector<256x16xf32>, vector<392x16xf32> -> vector<392x16xf32>
    %c0_3 = arith.constant 0 : index
    %c0_4 = arith.constant 0 : index
    %3 = vector.load %arg2[%c0_3, %c0_4] : memref<1x16xf32, #tpu.memory_space<vmem>>, vector<1x16xf32>
    %4 = vector.broadcast %3 : vector<1x16xf32> to vector<392x16xf32>
    %5 = arith.addf %2, %4 : vector<392x16xf32>
    %cst_5 = arith.constant dense<0.000000e+00> : vector<16xf32>
    %6 = vector.multi_reduction <add>, %5, %cst_5 [0] : vector<392x16xf32> to vector<16xf32>
    %7 = vector.shape_cast %6 : vector<16xf32> to vector<1x16xf32>
    %cst_6 = arith.constant 3.920000e+02 : f32
    %8 = vector.broadcast %cst_6 : f32 to vector<1x16xf32>
    %9 = arith.divf %7, %8 : vector<1x16xf32>
    %10 = vector.broadcast %9 : vector<1x16xf32> to vector<392x16xf32>
    %11 = arith.subf %5, %10 : vector<392x16xf32>
    %12 = arith.mulf %11, %11 : vector<392x16xf32>
    %cst_7 = arith.constant dense<0.000000e+00> : vector<16xf32>
    %13 = vector.multi_reduction <add>, %12, %cst_7 [0] : vector<392x16xf32> to vector<16xf32>
    %14 = vector.shape_cast %13 : vector<16xf32> to vector<1x16xf32>
    %cst_8 = arith.constant 3.920000e+02 : f32
    %15 = vector.broadcast %cst_8 : f32 to vector<1x16xf32>
    %16 = arith.divf %14, %15 : vector<1x16xf32>
    %c0_9 = arith.constant 0 : index
    %c0_10 = arith.constant 0 : index
    %17 = vector.load %arg3[%c0_9, %c0_10] : memref<1x16xf32, #tpu.memory_space<vmem>>, vector<1x16xf32>
    %cst_11 = arith.constant 9.99999974E-6 : f32
    %18 = vector.broadcast %cst_11 : f32 to vector<1x16xf32>
    %19 = arith.addf %16, %18 : vector<1x16xf32>
    %20 = math.rsqrt %19 : vector<1x16xf32>
    %21 = arith.mulf %17, %20 : vector<1x16xf32>
    %c0_12 = arith.constant 0 : index
    %c0_13 = arith.constant 0 : index
    %22 = vector.load %arg4[%c0_12, %c0_13] : memref<1x16xf32, #tpu.memory_space<vmem>>, vector<1x16xf32>
    %23 = arith.mulf %9, %21 : vector<1x16xf32>
    %24 = arith.subf %22, %23 : vector<1x16xf32>
    %25 = vector.broadcast %21 : vector<1x16xf32> to vector<392x16xf32>
    %26 = arith.mulf %5, %25 : vector<392x16xf32>
    %27 = vector.broadcast %24 : vector<1x16xf32> to vector<392x16xf32>
    %28 = arith.addf %26, %27 : vector<392x16xf32>
    %cst_14 = arith.constant 0.000000e+00 : f32
    %29 = vector.broadcast %cst_14 : f32 to vector<392x16xf32>
    %30 = arith.maximumf %28, %29 : vector<392x16xf32>
    %c0_15 = arith.constant 0 : index
    %c0_16 = arith.constant 0 : index
    %31 = vector.load %arg5[%c0_15, %c0_16] : memref<392x16xf32, #tpu.memory_space<vmem>>, vector<392x16xf32>
    tpu.vector_store %arg5[%c0_15, %c0_16], %30 {strides = array<i32>} : memref<392x16xf32, #tpu.memory_space<vmem>>, vector<392x16xf32>,
    return
  }
}

module attributes {stable_mosaic.version = 11 : i64} {
  func.func @_deconv_sigmoid_kernel(%arg0: memref<1568x256xf32, #tpu.memory_space<vmem>>, %arg1: memref<1x256xf32, #tpu.memory_space<vmem>>, %arg2: memref<1x1xf32, #tpu.memory_space<vmem>>, %arg3: memref<1568x1xf32, #tpu.memory_space<vmem>>) attributes {dimension_semantics = [], scalar_prefetch = 0 : i64, scratch_operands = 0 : i64, tpu.core_type = #tpu.core_type<tc>} {
    %c0 = arith.constant 0 : index
    %c0_0 = arith.constant 0 : index
    %0 = vector.load %arg0[%c0, %c0_0] : memref<1568x256xf32, #tpu.memory_space<vmem>>, vector<1568x256xf32>
    %c0_1 = arith.constant 0 : index
    %c0_2 = arith.constant 0 : index
    %1 = vector.load %arg1[%c0_1, %c0_2] : memref<1x256xf32, #tpu.memory_space<vmem>>, vector<1x256xf32>
    %2 = vector.broadcast %1 : vector<1x256xf32> to vector<1568x256xf32>
    %3 = arith.mulf %0, %2 : vector<1568x256xf32>
    %cst = arith.constant dense<0.000000e+00> : vector<1568xf32>
    %4 = vector.multi_reduction <add>, %3, %cst [1] : vector<1568x256xf32> to vector<1568xf32>
    %5 = vector.shape_cast %4 : vector<1568xf32> to vector<1568x1xf32>
    %c0_3 = arith.constant 0 : index
    %c0_4 = arith.constant 0 : index
    %6 = vector.load %arg2[%c0_3, %c0_4] : memref<1x1xf32, #tpu.memory_space<vmem>>, vector<1x1xf32>
    %7 = vector.broadcast %6 : vector<1x1xf32> to vector<1568x1xf32>
    %8 = arith.addf %5, %7 : vector<1568x1xf32>
    %9 = arith.negf %8 : vector<1568x1xf32>
    %10 = math.exp %9 : vector<1568x1xf32>
    %cst_5 = arith.constant 1.000000e+00 : f32
    %11 = vector.broadcast %cst_5 : f32 to vector<1568x1xf32>
    %12 = arith.addf %11, %10 : vector<1568x1xf32>
    %13 = arith.divf %11, %12 : vector<1568x1xf32>
    %c0_6 = arith.constant 0 : index
    %c0_7 = arith.constant 0 : index
    %14 = vector.load %arg3[%c0_6, %c0_7] : memref<1568x1xf32, #tpu.memory_space<vmem>>, vector<1568x1xf32>
    tpu.vector_store %arg3[%c0_6, %c0_7], %13 {strides = array<i32>} : memref<1568x1xf32, #tpu.memory_space<vmem>>, vector<1568x1xf32>,
    return
  }
}

</mosaic_0001>

<llo_original>
// kernel: vae_forward.6
$region0: #{vae_forward.6}
  #allocation0 [shape = 'u32[]', space=smem, size = 0x4, offset = 0x4, fixed_abs, tag = 'smem constant byte address 0x4 - core index']
  #allocation1 [shape = 'u32[144,128]{1,0:T(1,128)}', space=vmem, size = 0x12000, scoped, tag = 'internal scratch']
  %s0 = inlined_call_operand.vmem [shape: f32[392,16], index: 0, kind: input, shape index: {}]
  %s1 = inlined_call_operand.hbm [shape: f32[16,16], index: 1, kind: input, shape index: {}]
  %s2 = inlined_call_operand.hbm [shape: f32[1,16], index: 2, kind: input, shape index: {}]
  %s3 = inlined_call_operand.hbm [shape: f32[1,16], index: 3, kind: input, shape index: {}]
  %s4 = inlined_call_operand.hbm [shape: f32[1,16], index: 4, kind: input, shape index: {}]
  %s5 = inlined_call_operand.vmem [shape: f32[392,16], index: 5, kind: output, shape index: {}]
  %s6 = sld [smem:[#allocation0]]
  $region46: #{vae_forward.6} parent=0
    _
  %s8 = ssub.s32 1, %s6
  %s9 = scalar_select 0, %s8, %s6
  $region1: #{vae_forward.6} parent=0
    #allocation2 [shape = 'u8[8192]{0}', space=vmem, size = 0x2000, scoped, tag = 'input window, operand 1, single buffered']
    #allocation3 [shape = 's32[1]{0}', space=sflag, size = 0x4, scoped, tag = 'scoped memory for vae_forward.6']
    #allocation4 [shape = 'u8[512]{0}', space=vmem, size = 0x400, scoped, tag = 'input window, operand 2, single buffered']
    #allocation5 [shape = 's32[1]{0}', space=sflag, size = 0x4, scoped, tag = 'scoped memory for vae_forward.6']
    #allocation6 [shape = 'u8[512]{0}', space=vmem, size = 0x400, scoped, tag = 'input window, operand 3, single buffered']
    #allocation7 [shape = 'u8[512]{0}', space=vmem, size = 0x400, scoped, tag = 'input window, operand 4, single buffered']
    #allocation8 [shape = 's32[1]{0}', space=sflag, size = 0x4, scoped, tag = 'scoped memory for vae_forward.6']
    %10 = vsyncpa [#allocation3], 0
    %11 = vsyncpa [#allocation5], 0
    %12 = vsyncpa [#allocation8], 0
    // Predicated region
    $region2: #{vae_forward.6} parent=1 // pred_check
      _
    $region3: #{vae_forward.6} parent=1 // pred_check_branch
      %14 = sbr.rel (0) target = $region5
    $region4: #{vae_forward.6} parent=1 // pred_region
      _
    $region5: #{vae_forward.6} parent=1 // pred_fallthru
      _
    // Predicated region
    $region6: #{vae_forward.6} parent=1 // pred_check
      _
    $region7: #{vae_forward.6} parent=1 // pred_check_branch
      %16 = sbr.rel (0) target = $region9
    $region8: #{vae_forward.6} parent=1 // pred_region
      %s18 = ssub.s32 256, 256
      %19 = vsyncadd [#allocation3], %s18
      %s20 = sshll.u32 [#allocation2], 4
      %s21 = int_to_ptr.vmem [resolvable:$true] %s20
      %26 = dma.hbm_to_vmem [thread:$0]  %s1, 256, %s21, [#allocation3], 128, 128, 8
    $region9: #{vae_forward.6} parent=1 // pred_fallthru
      _
    // Predicated region
    $region10: #{vae_forward.6} parent=1 // pred_check
      _
    $region11: #{vae_forward.6} parent=1 // pred_check_branch
      %28 = sbr.rel (0) target = $region13
    $region12: #{vae_forward.6} parent=1 // pred_region
      %s30 = ssub.s32 16, 16
      %31 = vsyncadd [#allocation5], %s30
      %s33 = sshll.u32 [#allocation4], 4
      %s34 = int_to_ptr.vmem [resolvable:$true] %s33
      %36 = dma.hbm_to_vmem [thread:$0]  %s2, 16, %s34, [#allocation5]
    $region13: #{vae_forward.6} parent=1 // pred_fallthru
      _
    // Predicated region
    $region14: #{vae_forward.6} parent=1 // pred_check
      _
    $region15: #{vae_forward.6} parent=1 // pred_check_branch
      %38 = sbr.rel (0) target = $region17
    $region16: #{vae_forward.6} parent=1 // pred_region
      %s40 = ssub.s32 16, 16
      %41 = vsyncadd [#allocation5], %s40
      %s43 = sshll.u32 [#allocation6], 4
      %s44 = int_to_ptr.vmem [resolvable:$true] %s43
      %46 = dma.hbm_to_vmem [thread:$0]  %s3, 16, %s44, [#allocation5]
    $region17: #{vae_forward.6} parent=1 // pred_fallthru
      _
    // Predicated region
    $region18: #{vae_forward.6} parent=1 // pred_check
      _
    $region19: #{vae_forward.6} parent=1 // pred_check_branch
      %48 = sbr.rel (0) target = $region21
    $region20: #{vae_forward.6} parent=1 // pred_region
      %s50 = ssub.s32 16, 16
      %51 = vsyncadd [#allocation8], %s50
      %s53 = sshll.u32 [#allocation7], 4
      %s54 = int_to_ptr.vmem [resolvable:$true] %s53
      %56 = dma.hbm_to_vmem [thread:$0]  %s4, 16, %s54, [#allocation8]
    $region21: #{vae_forward.6} parent=1 // pred_fallthru
      _
    // Predicated region
    $region22: #{vae_forward.6} parent=1 // pred_check
      _
    $region23: #{vae_forward.6} parent=1 // pred_check_branch
      %58 = sbr.rel (0) target = $region25
    $region24: #{vae_forward.6} parent=1 // pred_region
      %59 = dma.done [#allocation3], 256
    $region25: #{vae_forward.6} parent=1 // pred_fallthru
      _
    // Predicated region
    $region26: #{vae_forward.6} parent=1 // pred_check
      _
    $region27: #{vae_forward.6} parent=1 // pred_check_branch
      %61 = sbr.rel (0) target = $region29
    $region28: #{vae_forward.6} parent=1 // pred_region
      %62 = dma.done [#allocation5], 16
    $region29: #{vae_forward.6} parent=1 // pred_fallthru
      _
    // Predicated region
    $region30: #{vae_forward.6} parent=1 // pred_check
      _
    $region31: #{vae_forward.6} parent=1 // pred_check_branch
      %64 = sbr.rel (0) target = $region33
    $region32: #{vae_forward.6} parent=1 // pred_region
      %65 = dma.done [#allocation5], 16
    $region33: #{vae_forward.6} parent=1 // pred_fallthru
      _
    // Predicated region
    $region34: #{vae_forward.6} parent=1 // pred_check
      _
    $region35: #{vae_forward.6} parent=1 // pred_check_branch
      %67 = sbr.rel (0) target = $region37
    $region36: #{vae_forward.6} parent=1 // pred_region
      %68 = dma.done [#allocation8], 16
    $region37: #{vae_forward.6} parent=1 // pred_fallthru
      _
    %v69 = vld [vmem:[%s0] sm:$0xff]
    %v70 = vld [vmem:[%s0 + $0x8] sm:$0xff]
    %v71 = vld [vmem:[%s0 + $0x10] sm:$0xff]
    %v72 = vld [vmem:[%s0 + $0x18] sm:$0xff]
    %v73 = vld [vmem:[%s0 + $0x20] sm:$0xff]
    %v74 = vld [vmem:[%s0 + $0x28] sm:$0xff]
    %v75 = vld [vmem:[%s0 + $0x30] sm:$0xff]
    %v76 = vld [vmem:[%s0 + $0x38] sm:$0xff]
    %v77 = vld [vmem:[%s0 + $0x40] sm:$0xff]
    %v78 = vld [vmem:[%s0 + $0x48] sm:$0xff]
    %v79 = vld [vmem:[%s0 + $0x50] sm:$0xff]
    %v80 = vld [vmem:[%s0 + $0x58] sm:$0xff]
    %v81 = vld [vmem:[%s0 + $0x60] sm:$0xff]
    %v82 = vld [vmem:[%s0 + $0x68] sm:$0xff]
    %v83 = vld [vmem:[%s0 + $0x70] sm:$0xff]
    %v84 = vld [vmem:[%s0 + $0x78] sm:$0xff]
    %v85 = vld [vmem:[%s0 + $0x80] sm:$0xff]
    %v86 = vld [vmem:[%s0 + $0x88] sm:$0xff]
    %v87 = vld [vmem:[%s0 + $0x90] sm:$0xff]
    %v88 = vld [vmem:[%s0 + $0x98] sm:$0xff]
    %v89 = vld [vmem:[%s0 + $0xa0] sm:$0xff]
    %v90 = vld [vmem:[%s0 + $0xa8] sm:$0xff]
    %v91 = vld [vmem:[%s0 + $0xb0] sm:$0xff]
    %v92 = vld [vmem:[%s0 + $0xb8] sm:$0xff]
    %v93 = vld [vmem:[%s0 + $0xc0] sm:$0xff]
    %v94 = vld [vmem:[%s0 + $0xc8] sm:$0xff]
    %v95 = vld [vmem:[%s0 + $0xd0] sm:$0xff]
    %v96 = vld [vmem:[%s0 + $0xd8] sm:$0xff]
    %v97 = vld [vmem:[%s0 + $0xe0] sm:$0xff]
    %v98 = vld [vmem:[%s0 + $0xe8] sm:$0xff]
    %v99 = vld [vmem:[%s0 + $0xf0] sm:$0xff]
    %v100 = vld [vmem:[%s0 + $0xf8] sm:$0xff]
    %v101 = vld [vmem:[%s0 + $0x100] sm:$0xff]
    %v102 = vld [vmem:[%s0 + $0x108] sm:$0xff]
    %v103 = vld [vmem:[%s0 + $0x110] sm:$0xff]
    %v104 = vld [vmem:[%s0 + $0x118] sm:$0xff]
    %v105 = vld [vmem:[%s0 + $0x120] sm:$0xff]
    %v106 = vld [vmem:[%s0 + $0x128] sm:$0xff]
    %v107 = vld [vmem:[%s0 + $0x130] sm:$0xff]
    %v108 = vld [vmem:[%s0 + $0x138] sm:$0xff]
    %v109 = vld [vmem:[%s0 + $0x140] sm:$0xff]
    %v110 = vld [vmem:[%s0 + $0x148] sm:$0xff]
    %v111 = vld [vmem:[%s0 + $0x150] sm:$0xff]
    %v112 = vld [vmem:[%s0 + $0x158] sm:$0xff]
    %v113 = vld [vmem:[%s0 + $0x160] sm:$0xff]
    %v114 = vld [vmem:[%s0 + $0x168] sm:$0xff]
    %v115 = vld [vmem:[%s0 + $0x170] sm:$0xff]
    %v116 = vld [vmem:[%s0 + $0x178] sm:$0xff]
    %v117 = vld [vmem:[%s0 + $0x180] sm:$0xff]
    %v118 = vld [vmem:[#allocation2] sm:$0xff]
    %v119 = vld [vmem:[#allocation2 + $0x8] sm:$0xff]
    %v120 = vld [vmem:[#allocation4] sm:$0x1]
    %v122 = vlaneseq
    %v123 = vshrl.u32 %v122, 7
    %v124 = vsub.s32 0, %v123
    %v125 = vrot.slane %v120, %v124
    %vm127 = vcmask 130048
    %v129 = vsel %vm127, %v69, 0
    %v132 = vsel %vm127, %v70, 0
    %v135 = vsel %vm127, %v71, 0
    %v138 = vsel %vm127, %v72, 0
    %v141 = vsel %vm127, %v73, 0
    %v144 = vsel %vm127, %v74, 0
    %v147 = vsel %vm127, %v75, 0
    %v150 = vsel %vm127, %v76, 0
    %v153 = vsel %vm127, %v77, 0
    %v156 = vsel %vm127, %v78, 0
    %v159 = vsel %vm127, %v79, 0
    %v162 = vsel %vm127, %v80, 0
    %v165 = vsel %vm127, %v81, 0
    %v168 = vsel %vm127, %v82, 0
    %v171 = vsel %vm127, %v83, 0
    %v174 = vsel %vm127, %v84, 0
    %v177 = vsel %vm127, %v85, 0
    %v180 = vsel %vm127, %v86, 0
    %v183 = vsel %vm127, %v87, 0
    %v186 = vsel %vm127, %v88, 0
    %v189 = vsel %vm127, %v89, 0
    %v192 = vsel %vm127, %v90, 0
    %v195 = vsel %vm127, %v91, 0
    %v198 = vsel %vm127, %v92, 0
    %v201 = vsel %vm127, %v93, 0
    %v204 = vsel %vm127, %v94, 0
    %v207 = vsel %vm127, %v95, 0
    %v210 = vsel %vm127, %v96, 0
    %v213 = vsel %vm127, %v97, 0
    %v216 = vsel %vm127, %v98, 0
    %v219 = vsel %vm127, %v99, 0
    %v222 = vsel %vm127, %v100, 0
    %v225 = vsel %vm127, %v101, 0
    %v228 = vsel %vm127, %v102, 0
    %v231 = vsel %vm127, %v103, 0
    %v234 = vsel %vm127, %v104, 0
    %v237 = vsel %vm127, %v105, 0
    %v240 = vsel %vm127, %v106, 0
    %v243 = vsel %vm127, %v107, 0
    %v246 = vsel %vm127, %v108, 0
    %v249 = vsel %vm127, %v109, 0
    %v252 = vsel %vm127, %v110, 0
    %v255 = vsel %vm127, %v111, 0
    %v258 = vsel %vm127, %v112, 0
    %v261 = vsel %vm127, %v113, 0
    %v264 = vsel %vm127, %v114, 0
    %v267 = vsel %vm127, %v115, 0
    %v270 = vsel %vm127, %v116, 0
    %v273 = vsel %vm127, %v117, 0
    %275 = vmatprep.subr.mxu0 0.0
    %276 = vmatpush1.msra.mxu0 %v118
    %277 = vmatprep.subr.mxu0 0.0
    %278 = vmatpush1.msra.mxu0 %v119
    %279 = vmatprep.subr.mxu0 0.0
    %280 = vmatpush1.msra.mxu0 0.0
    %281 = vmatprep.subr.mxu0 0.0
    %282 = vmatpush1.msra.mxu0 0.0
    %283 = vmatprep.subr.mxu0 0.0
    %284 = vmatpush1.msra.mxu0 0.0
    %285 = vmatprep.subr.mxu0 0.0
    %286 = vmatpush1.msra.mxu0 0.0
    %287 = vmatprep.subr.mxu0 0.0
    %288 = vmatpush1.msra.mxu0 0.0
    %289 = vmatprep.subr.mxu0 0.0
    %290 = vmatpush1.msra.mxu0 0.0
    %291 = vmatprep.subr.mxu0 0.0
    %292 = vmatpush1.msra.mxu0 0.0
    %293 = vmatprep.subr.mxu0 0.0
    %294 = vmatpush1.msra.mxu0 0.0
    %295 = vmatprep.subr.mxu0 0.0
    %296 = vmatpush1.msra.mxu0 0.0
    %297 = vmatprep.subr.mxu0 0.0
    %298 = vmatpush1.msra.mxu0 0.0
    %299 = vmatprep.subr.mxu0 0.0
    %300 = vmatpush1.msra.mxu0 0.0
    %301 = vmatprep.subr.mxu0 0.0
    %302 = vmatpush1.msra.mxu0 0.0
    %303 = vmatprep.subr.mxu0 0.0
    %304 = vmatpush1.msra.mxu0 0.0
    %305 = vmatprep.subr.mxu0 0.0
    %306 = vmatpush1.msra.mxu0 0.0
    %307 = vmatprep.subr.mxu0 0.0
    %308 = vmatpush1.msra.mxu0 0.0
    %309 = vmatprep.subr.mxu0 0.0
    %310 = vmatpush1.msra.mxu0 0.0
    %311 = vmatprep.subr.mxu0 0.0
    %312 = vmatpush1.msra.mxu0 0.0
    %313 = vmatprep.subr.mxu0 0.0
    %314 = vmatpush1.msra.mxu0 0.0
    %315 = vmatprep.subr.mxu0 0.0
    %316 = vmatpush1.msra.mxu0 0.0
    %317 = vmatprep.subr.mxu0 0.0
    %318 = vmatpush1.msra.mxu0 0.0
    %319 = vmatprep.subr.mxu0 0.0
    %320 = vmatpush1.msra.mxu0 0.0
    %321 = vmatprep.subr.mxu0 0.0
    %322 = vmatpush1.msra.mxu0 0.0
    %323 = vmatprep.subr.mxu0 0.0
    %324 = vmatpush1.msra.mxu0 0.0
    %325 = vmatprep.subr.mxu0 0.0
    %326 = vmatpush1.msra.mxu0 0.0
    %327 = vmatprep.subr.mxu0 0.0
    %328 = vmatpush1.msra.mxu0 0.0
    %329 = vmatprep.subr.mxu0 0.0
    %330 = vmatpush1.msra.mxu0 0.0
    %331 = vmatprep.subr.mxu0 0.0
    %332 = vmatpush1.msra.mxu0 0.0
    %333 = vmatprep.subr.mxu0 0.0
    %334 = vmatpush1.msra.mxu0 0.0
    %335 = vmatprep.subr.mxu0 0.0
    %336 = vmatpush1.msra.mxu0 0.0
    %337 = vmatprep.subr.mxu0 0.0
    %338 = vmatpush1.msra.mxu0 0.0
    %339 = vmatprep.mubr.f32.mxu0 0.0
    %340 = vmatmul.mubr.f32.gmra.mrb[0].mxu0 %v129
    %v341 = vpop.f32.mrb[0].mxu0
    %v342 = vadd.f32 %v125, %v341
    %v343 = vpop.f32.mrb[0].mxu0
    %344 = vmatprep.mubr.f32.mxu0 0.0
    %345 = vmatmul.mubr.f32.gmra.mrb[0].mxu0 %v132
    %v346 = vpop.f32.mrb[0].mxu0
    %v347 = vadd.f32 %v125, %v346
    %v348 = vpop.f32.mrb[0].mxu0
    %349 = vmatprep.mubr.f32.mxu0 0.0
    %350 = vmatmul.mubr.f32.gmra.mrb[0].mxu0 %v135
    %v351 = vpop.f32.mrb[0].mxu0
    %v352 = vadd.f32 %v125, %v351
    %v353 = vpop.f32.mrb[0].mxu0
    %354 = vmatprep.mubr.f32.mxu0 0.0
    %355 = vmatmul.mubr.f32.gmra.mrb[0].mxu0 %v138
    %v356 = vpop.f32.mrb[0].mxu0
    %v357 = vadd.f32 %v125, %v356
    %v358 = vpop.f32.mrb[0].mxu0
    %359 = vmatprep.mubr.f32.mxu0 0.0
    %360 = vmatmul.mubr.f32.gmra.mrb[0].mxu0 %v141
    %v361 = vpop.f32.mrb[0].mxu0
    %v362 = vadd.f32 %v125, %v361
    %v363 = vpop.f32.mrb[0].mxu0
    %364 = vmatprep.mubr.f32.mxu0 0.0
    %365 = vmatmul.mubr.f32.gmra.mrb[0].mxu0 %v144
    %v366 = vpop.f32.mrb[0].mxu0
    %v367 = vadd.f32 %v125, %v366
    %v368 = vpop.f32.mrb[0].mxu0
    %369 = vmatprep.mubr.f32.mxu0 0.0
    %370 = vmatmul.mubr.f32.gmra.mrb[0].mxu0 %v147
    %v371 = vpop.f32.mrb[0].mxu0
    %v372 = vadd.f32 %v125, %v371
    %v373 = vpop.f32.mrb[0].mxu0
    %374 = vmatprep.mubr.f32.mxu0 0.0
    %375 = vmatmul.mubr.f32.gmra.mrb[0].mxu0 %v150
    %v376 = vpop.f32.mrb[0].mxu0
    %v377 = vadd.f32 %v125, %v376
    %v378 = vpop.f32.mrb[0].mxu0
    %379 = vmatprep.mubr.f32.mxu0 0.0
    %380 = vmatmul.mubr.f32.gmra.mrb[0].mxu0 %v153
    %v381 = vpop.f32.mrb[0].mxu0
    %v382 = vadd.f32 %v125, %v381
    %v383 = vpop.f32.mrb[0].mxu0
    %384 = vmatprep.mubr.f32.mxu0 0.0
    %385 = vmatmul.mubr.f32.gmra.mrb[0].mxu0 %v156
    %v386 = vpop.f32.mrb[0].mxu0
    %v387 = vadd.f32 %v125, %v386
    %v388 = vpop.f32.mrb[0].mxu0
    %389 = vmatprep.mubr.f32.mxu0 0.0
    %390 = vmatmul.mubr.f32.gmra.mrb[0].mxu0 %v159
    %v391 = vpop.f32.mrb[0].mxu0
    %v392 = vadd.f32 %v125, %v391
    %v393 = vpop.f32.mrb[0].mxu0
    %394 = vmatprep.mubr.f32.mxu0 0.0
    %395 = vmatmul.mubr.f32.gmra.mrb[0].mxu0 %v162
    %v396 = vpop.f32.mrb[0].mxu0
    %v397 = vadd.f32 %v125, %v396
    %v398 = vpop.f32.mrb[0].mxu0
    %399 = vmatprep.mubr.f32.mxu0 0.0
    %400 = vmatmul.mubr.f32.gmra.mrb[0].mxu0 %v165
    %v401 = vpop.f32.mrb[0].mxu0
    %v402 = vadd.f32 %v125, %v401
    %v403 = vpop.f32.mrb[0].mxu0
    %404 = vmatprep.mubr.f32.mxu0 0.0
    %405 = vmatmul.mubr.f32.gmra.mrb[0].mxu0 %v168
    %v406 = vpop.f32.mrb[0].mxu0
    %v407 = vadd.f32 %v125, %v406
    %v408 = vpop.f32.mrb[0].mxu0
    %409 = vmatprep.mubr.f32.mxu0 0.0
    %410 = vmatmul.mubr.f32.gmra.mrb[0].mxu0 %v171
    %v411 = vpop.f32.mrb[0].mxu0
    %v412 = vadd.f32 %v125, %v411
    %v413 = vpop.f32.mrb[0].mxu0
    %414 = vmatprep.mubr.f32.mxu0 0.0
    %415 = vmatmul.mubr.f32.gmra.mrb[0].mxu0 %v174
    %v416 = vpop.f32.mrb[0].mxu0
    %v417 = vadd.f32 %v125, %v416
    %v418 = vpop.f32.mrb[0].mxu0
    %419 = vmatprep.mubr.f32.mxu0 0.0
    %420 = vmatmul.mubr.f32.gmra.mrb[0].mxu0 %v177
    %v421 = vpop.f32.mrb[0].mxu0
    %v422 = vadd.f32 %v125, %v421
    %v423 = vpop.f32.mrb[0].mxu0
    %424 = vmatprep.mubr.f32.mxu0 0.0
    %425 = vmatmul.mubr.f32.gmra.mrb[0].mxu0 %v180
    %v426 = vpop.f32.mrb[0].mxu0
    %v427 = vadd.f32 %v125, %v426
    %v428 = vpop.f32.mrb[0].mxu0
    %429 = vmatprep.mubr.f32.mxu0 0.0
    %430 = vmatmul.mubr.f32.gmra.mrb[0].mxu0 %v183
    %v431 = vpop.f32.mrb[0].mxu0
    %v432 = vadd.f32 %v125, %v431
    %v433 = vpop.f32.mrb[0].mxu0
    %434 = vmatprep.mubr.f32.mxu0 0.0
    %435 = vmatmul.mubr.f32.gmra.mrb[0].mxu0 %v186
    %v436 = vpop.f32.mrb[0].mxu0
    %v437 = vadd.f32 %v125, %v436
    %v438 = vpop.f32.mrb[0].mxu0
    %439 = vmatprep.mubr.f32.mxu0 0.0
    %440 = vmatmul.mubr.f32.gmra.mrb[0].mxu0 %v189
    %v441 = vpop.f32.mrb[0].mxu0
    %v442 = vadd.f32 %v125, %v441
    %v443 = vpop.f32.mrb[0].mxu0
    %444 = vmatprep.mubr.f32.mxu0 0.0
    %445 = vmatmul.mubr.f32.gmra.mrb[0].mxu0 %v192
    %v446 = vpop.f32.mrb[0].mxu0
    %v447 = vadd.f32 %v125, %v446
    %v448 = vpop.f32.mrb[0].mxu0
    %449 = vmatprep.mubr.f32.mxu0 0.0
    %450 = vmatmul.mubr.f32.gmra.mrb[0].mxu0 %v195
    %v451 = vpop.f32.mrb[0].mxu0
    %v452 = vadd.f32 %v125, %v451
    %v453 = vpop.f32.mrb[0].mxu0
    %454 = vmatprep.mubr.f32.mxu0 0.0
    %455 = vmatmul.mubr.f32.gmra.mrb[0].mxu0 %v198
    %v456 = vpop.f32.mrb[0].mxu0
    %v457 = vadd.f32 %v125, %v456
    %v458 = vpop.f32.mrb[0].mxu0
    %459 = vmatprep.mubr.f32.mxu0 0.0
    %460 = vmatmul.mubr.f32.gmra.mrb[0].mxu0 %v201
    %v461 = vpop.f32.mrb[0].mxu0
    %v462 = vadd.f32 %v125, %v461
    %v463 = vpop.f32.mrb[0].mxu0
    %464 = vmatprep.mubr.f32.mxu0 0.0
    %465 = vmatmul.mubr.f32.gmra.mrb[0].mxu0 %v204
    %v466 = vpop.f32.mrb[0].mxu0
    %v467 = vadd.f32 %v125, %v466
    %v468 = vpop.f32.mrb[0].mxu0
    %469 = vmatprep.mubr.f32.mxu0 0.0
    %470 = vmatmul.mubr.f32.gmra.mrb[0].mxu0 %v207
    %v471 = vpop.f32.mrb[0].mxu0
    %v472 = vadd.f32 %v125, %v471
    %v473 = vpop.f32.mrb[0].mxu0
    %474 = vmatprep.mubr.f32.mxu0 0.0
    %475 = vmatmul.mubr.f32.gmra.mrb[0].mxu0 %v210
    %v476 = vpop.f32.mrb[0].mxu0
    %v477 = vadd.f32 %v125, %v476
    %v478 = vpop.f32.mrb[0].mxu0
    %479 = vmatprep.mubr.f32.mxu0 0.0
    %480 = vmatmul.mubr.f32.gmra.mrb[0].mxu0 %v213
    %v481 = vpop.f32.mrb[0].mxu0
    %v482 = vadd.f32 %v125, %v481
    %v483 = vpop.f32.mrb[0].mxu0
    %484 = vmatprep.mubr.f32.mxu0 0.0
    %485 = vmatmul.mubr.f32.gmra.mrb[0].mxu0 %v216
    %v486 = vpop.f32.mrb[0].mxu0
    %v487 = vadd.f32 %v125, %v486
    %v488 = vpop.f32.mrb[0].mxu0
    %489 = vmatprep.mubr.f32.mxu0 0.0
    %490 = vmatmul.mubr.f32.gmra.mrb[0].mxu0 %v219
    %v491 = vpop.f32.mrb[0].mxu0
    %v492 = vadd.f32 %v125, %v491
    %v493 = vpop.f32.mrb[0].mxu0
    %494 = vmatprep.mubr.f32.mxu0 0.0
    %495 = vmatmul.mubr.f32.gmra.mrb[0].mxu0 %v222
    %v496 = vpop.f32.mrb[0].mxu0
    %v497 = vadd.f32 %v125, %v496
    %v498 = vpop.f32.mrb[0].mxu0
    %499 = vmatprep.mubr.f32.mxu0 0.0
    %500 = vmatmul.mubr.f32.gmra.mrb[0].mxu0 %v225
    %v501 = vpop.f32.mrb[0].mxu0
    %v502 = vadd.f32 %v125, %v501
    %v503 = vpop.f32.mrb[0].mxu0
    %504 = vmatprep.mubr.f32.mxu0 0.0
    %505 = vmatmul.mubr.f32.gmra.mrb[0].mxu0 %v228
    %v506 = vpop.f32.mrb[0].mxu0
    %v507 = vadd.f32 %v125, %v506
    %v508 = vpop.f32.mrb[0].mxu0
    %509 = vmatprep.mubr.f32.mxu0 0.0
    %510 = vmatmul.mubr.f32.gmra.mrb[0].mxu0 %v231
    %v511 = vpop.f32.mrb[0].mxu0
    %v512 = vadd.f32 %v125, %v511
    %v513 = vpop.f32.mrb[0].mxu0
    %514 = vmatprep.mubr.f32.mxu0 0.0
    %515 = vmatmul.mubr.f32.gmra.mrb[0].mxu0 %v234
    %v516 = vpop.f32.mrb[0].mxu0
    %v517 = vadd.f32 %v125, %v516
    %v518 = vpop.f32.mrb[0].mxu0
    %519 = vmatprep.mubr.f32.mxu0 0.0
    %520 = vmatmul.mubr.f32.gmra.mrb[0].mxu0 %v237
    %v521 = vpop.f32.mrb[0].mxu0
    %v522 = vadd.f32 %v125, %v521
    %v523 = vpop.f32.mrb[0].mxu0
    %524 = vmatprep.mubr.f32.mxu0 0.0
    %525 = vmatmul.mubr.f32.gmra.mrb[0].mxu0 %v240
    %v526 = vpop.f32.mrb[0].mxu0
    %v527 = vadd.f32 %v125, %v526
    %v528 = vpop.f32.mrb[0].mxu0
    %529 = vmatprep.mubr.f32.mxu0 0.0
    %530 = vmatmul.mubr.f32.gmra.mrb[0].mxu0 %v243
    %v531 = vpop.f32.mrb[0].mxu0
    %v532 = vadd.f32 %v125, %v531
    %v533 = vpop.f32.mrb[0].mxu0
    %534 = vmatprep.mubr.f32.mxu0 0.0
    %535 = vmatmul.mubr.f32.gmra.mrb[0].mxu0 %v246
    %v536 = vpop.f32.mrb[0].mxu0
    %v537 = vadd.f32 %v125, %v536
    %v538 = vpop.f32.mrb[0].mxu0
    %539 = vmatprep.mubr.f32.mxu0 0.0
    %540 = vmatmul.mubr.f32.gmra.mrb[0].mxu0 %v249
    %v541 = vpop.f32.mrb[0].mxu0
    %v542 = vadd.f32 %v125, %v541
    %v543 = vpop.f32.mrb[0].mxu0
    %544 = vmatprep.mubr.f32.mxu0 0.0
    %545 = vmatmul.mubr.f32.gmra.mrb[0].mxu0 %v252
    %v546 = vpop.f32.mrb[0].mxu0
    %v547 = vadd.f32 %v125, %v546
    %v548 = vpop.f32.mrb[0].mxu0
    %549 = vmatprep.mubr.f32.mxu0 0.0
    %550 = vmatmul.mubr.f32.gmra.mrb[0].mxu0 %v255
    %v551 = vpop.f32.mrb[0].mxu0
    %v552 = vadd.f32 %v125, %v551
    %v553 = vpop.f32.mrb[0].mxu0
    %554 = vmatprep.mubr.f32.mxu0 0.0
    %555 = vmatmul.mubr.f32.gmra.mrb[0].mxu0 %v258
    %v556 = vpop.f32.mrb[0].mxu0
    %v557 = vadd.f32 %v125, %v556
    %v558 = vpop.f32.mrb[0].mxu0
    %559 = vmatprep.mubr.f32.mxu0 0.0
    %560 = vmatmul.mubr.f32.gmra.mrb[0].mxu0 %v261
    %v561 = vpop.f32.mrb[0].mxu0
    %v562 = vadd.f32 %v125, %v561
    %v563 = vpop.f32.mrb[0].mxu0
    %564 = vmatprep.mubr.f32.mxu0 0.0
    %565 = vmatmul.mubr.f32.gmra.mrb[0].mxu0 %v264
    %v566 = vpop.f32.mrb[0].mxu0
    %v567 = vadd.f32 %v125, %v566
    %v568 = vpop.f32.mrb[0].mxu0
    %569 = vmatprep.mubr.f32.mxu0 0.0
    %570 = vmatmul.mubr.f32.gmra.mrb[0].mxu0 %v267
    %v571 = vpop.f32.mrb[0].mxu0
    %v572 = vadd.f32 %v125, %v571
    %v573 = vpop.f32.mrb[0].mxu0
    %574 = vmatprep.mubr.f32.mxu0 0.0
    %575 = vmatmul.mubr.f32.gmra.mrb[0].mxu0 %v270
    %v576 = vpop.f32.mrb[0].mxu0
    %v577 = vadd.f32 %v125, %v576
    %v578 = vpop.f32.mrb[0].mxu0
    %579 = vmatprep.mubr.f32.mxu0 0.0
    %580 = vmatmul.mubr.f32.gmra.mrb[0].mxu0 %v273
    %v581 = vpop.f32.mrb[0].mxu0
    %v582 = vadd.f32 %v125, %v581
    %v583 = vpop.f32.mrb[0].mxu0
    %584 = vdwg.mxu0
    %v585 = vsel %vm127, %v342, 0.0
    %v586 = vsel %vm127, %v347, 0.0
    %v587 = vadd.f32 %v585, %v586
    %v588 = vsel %vm127, %v352, 0.0
    %v589 = vadd.f32 %v587, %v588
    %v590 = vsel %vm127, %v357, 0.0
    %v591 = vadd.f32 %v589, %v590
    %v592 = vsel %vm127, %v362, 0.0
    %v593 = vadd.f32 %v591, %v592
    %v594 = vsel %vm127, %v367, 0.0
    %v595 = vadd.f32 %v593, %v594
    %v596 = vsel %vm127, %v372, 0.0
    %v597 = vadd.f32 %v595, %v596
    %v598 = vsel %vm127, %v377, 0.0
    %v599 = vadd.f32 %v597, %v598
    %v600 = vsel %vm127, %v382, 0.0
    %v601 = vadd.f32 %v599, %v600
    %v602 = vsel %vm127, %v387, 0.0
    %v603 = vadd.f32 %v601, %v602
    %v604 = vsel %vm127, %v392, 0.0
    %v605 = vadd.f32 %v603, %v604
    %v606 = vsel %vm127, %v397, 0.0
    %v607 = vadd.f32 %v605, %v606
    %v608 = vsel %vm127, %v402, 0.0
    %v609 = vadd.f32 %v607, %v608
    %v610 = vsel %vm127, %v407, 0.0
    %v611 = vadd.f32 %v609, %v610
    %v612 = vsel %vm127, %v412, 0.0
    %v613 = vadd.f32 %v611, %v612
    %v614 = vsel %vm127, %v417, 0.0
    %v615 = vadd.f32 %v613, %v614
    %v616 = vsel %vm127, %v422, 0.0
    %v617 = vadd.f32 %v615, %v616
    %v618 = vsel %vm127, %v427, 0.0
    %v619 = vadd.f32 %v617, %v618
    %v620 = vsel %vm127, %v432, 0.0
    %v621 = vadd.f32 %v619, %v620
    %v622 = vsel %vm127, %v437, 0.0
    %v623 = vadd.f32 %v621, %v622
    %v624 = vsel %vm127, %v442, 0.0
    %v625 = vadd.f32 %v623, %v624
    %v626 = vsel %vm127, %v447, 0.0
    %v627 = vadd.f32 %v625, %v626
    %v628 = vsel %vm127, %v452, 0.0
    %v629 = vadd.f32 %v627, %v628
    %v630 = vsel %vm127, %v457, 0.0
    %v631 = vadd.f32 %v629, %v630
    %v632 = vsel %vm127, %v462, 0.0
    %v633 = vadd.f32 %v631, %v632
    %v634 = vsel %vm127, %v467, 0.0
    %v635 = vadd.f32 %v633, %v634
    %v636 = vsel %vm127, %v472, 0.0
    %v637 = vadd.f32 %v635, %v636
    %v638 = vsel %vm127, %v477, 0.0
    %v639 = vadd.f32 %v637, %v638
    %v640 = vsel %vm127, %v482, 0.0
    %v641 = vadd.f32 %v639, %v640
    %v642 = vsel %vm127, %v487, 0.0
    %v643 = vadd.f32 %v641, %v642
    %v644 = vsel %vm127, %v492, 0.0
    %v645 = vadd.f32 %v643, %v644
    %v646 = vsel %vm127, %v497, 0.0
    %v647 = vadd.f32 %v645, %v646
    %v648 = vsel %vm127, %v502, 0.0
    %v649 = vadd.f32 %v647, %v648
    %v650 = vsel %vm127, %v507, 0.0
    %v651 = vadd.f32 %v649, %v650
    %v652 = vsel %vm127, %v512, 0.0
    %v653 = vadd.f32 %v651, %v652
    %v654 = vsel %vm127, %v517, 0.0
    %v655 = vadd.f32 %v653, %v654
    %v656 = vsel %vm127, %v522, 0.0
    %v657 = vadd.f32 %v655, %v656
    %v658 = vsel %vm127, %v527, 0.0
    %v659 = vadd.f32 %v657, %v658
    %v660 = vsel %vm127, %v532, 0.0
    %v661 = vadd.f32 %v659, %v660
    %v662 = vsel %vm127, %v537, 0.0
    %v663 = vadd.f32 %v661, %v662
    %v664 = vsel %vm127, %v542, 0.0
    %v665 = vadd.f32 %v663, %v664
    %v666 = vsel %vm127, %v547, 0.0
    %v667 = vadd.f32 %v665, %v666
    %v668 = vsel %vm127, %v552, 0.0
    %v669 = vadd.f32 %v667, %v668
    %v670 = vsel %vm127, %v557, 0.0
    %v671 = vadd.f32 %v669, %v670
    %v672 = vsel %vm127, %v562, 0.0
    %v673 = vadd.f32 %v671, %v672
    %v674 = vsel %vm127, %v567, 0.0
    %v675 = vadd.f32 %v673, %v674
    %v676 = vsel %vm127, %v572, 0.0
    %v677 = vadd.f32 %v675, %v676
    %v678 = vsel %vm127, %v577, 0.0
    %v679 = vadd.f32 %v677, %v678
    %v680 = vsel %vm127, %v582, 0.0
    %v681 = vadd.f32 %v679, %v680
    %v682 = vrot.slane %v681, 4
    %v683 = vadd.f32 %v681, %v682
    %v684 = vrot.slane %v683, 2
    %v685 = vadd.f32 %v683, %v684
    %v686 = vrot.slane %v685, 1
    %v687 = vadd.f32 %v685, %v686
    %v688 = vrcp.pop 392.0
    %v689 = vmul.f32 %v687, %v688
    %v690 = vsub.f32 %v342, %v689
    %v691 = vsub.f32 %v347, %v689
    %v692 = vsub.f32 %v352, %v689
    %v693 = vsub.f32 %v357, %v689
    %v694 = vsub.f32 %v362, %v689
    %v695 = vsub.f32 %v367, %v689
    %v696 = vsub.f32 %v372, %v689
    %v697 = vsub.f32 %v377, %v689
    %v698 = vsub.f32 %v382, %v689
    %v699 = vsub.f32 %v387, %v689
    %v700 = vsub.f32 %v392, %v689
    %v701 = vsub.f32 %v397, %v689
    %v702 = vsub.f32 %v402, %v689
    %v703 = vsub.f32 %v407, %v689
    %v704 = vsub.f32 %v412, %v689
    %v705 = vsub.f32 %v417, %v689
    %v706 = vsub.f32 %v422, %v689
    %v707 = vsub.f32 %v427, %v689
    %v708 = vsub.f32 %v432, %v689
    %v709 = vsub.f32 %v437, %v689
    %v710 = vsub.f32 %v442, %v689
    %v711 = vsub.f32 %v447, %v689
    %v712 = vsub.f32 %v452, %v689
    %v713 = vsub.f32 %v457, %v689
    %v714 = vsub.f32 %v462, %v689
    %v715 = vsub.f32 %v467, %v689
    %v716 = vsub.f32 %v472, %v689
    %v717 = vsub.f32 %v477, %v689
    %v718 = vsub.f32 %v482, %v689
    %v719 = vsub.f32 %v487, %v689
    %v720 = vsub.f32 %v492, %v689
    %v721 = vsub.f32 %v497, %v689
    %v722 = vsub.f32 %v502, %v689
    %v723 = vsub.f32 %v507, %v689
    %v724 = vsub.f32 %v512, %v689
    %v725 = vsub.f32 %v517, %v689
    %v726 = vsub.f32 %v522, %v689
    %v727 = vsub.f32 %v527, %v689
    %v728 = vsub.f32 %v532, %v689
    %v729 = vsub.f32 %v537, %v689
    %v730 = vsub.f32 %v542, %v689
    %v731 = vsub.f32 %v547, %v689
    %v732 = vsub.f32 %v552, %v689
    %v733 = vsub.f32 %v557, %v689
    %v734 = vsub.f32 %v562, %v689
    %v735 = vsub.f32 %v567, %v689
    %v736 = vsub.f32 %v572, %v689
    %v737 = vsub.f32 %v577, %v689
    %v738 = vsub.f32 %v582, %v689
    %v739 = vmul.f32 %v690, %v690
    %v740 = vmul.f32 %v691, %v691
    %v741 = vmul.f32 %v692, %v692
    %v742 = vmul.f32 %v693, %v693
    %v743 = vmul.f32 %v694, %v694
    %v744 = vmul.f32 %v695, %v695
    %v745 = vmul.f32 %v696, %v696
    %v746 = vmul.f32 %v697, %v697
    %v747 = vmul.f32 %v698, %v698
    %v748 = vmul.f32 %v699, %v699
    %v749 = vmul.f32 %v700, %v700
    %v750 = vmul.f32 %v701, %v701
    %v751 = vmul.f32 %v702, %v702
    %v752 = vmul.f32 %v703, %v703
    %v753 = vmul.f32 %v704, %v704
    %v754 = vmul.f32 %v705, %v705
    %v755 = vmul.f32 %v706, %v706
    %v756 = vmul.f32 %v707, %v707
    %v757 = vmul.f32 %v708, %v708
    %v758 = vmul.f32 %v709, %v709
    %v759 = vmul.f32 %v710, %v710
    %v760 = vmul.f32 %v711, %v711
    %v761 = vmul.f32 %v712, %v712
    %v762 = vmul.f32 %v713, %v713
    %v763 = vmul.f32 %v714, %v714
    %v764 = vmul.f32 %v715, %v715
    %v765 = vmul.f32 %v716, %v716
    %v766 = vmul.f32 %v717, %v717
    %v767 = vmul.f32 %v718, %v718
    %v768 = vmul.f32 %v719, %v719
    %v769 = vmul.f32 %v720, %v720
    %v770 = vmul.f32 %v721, %v721
    %v771 = vmul.f32 %v722, %v722
    %v772 = vmul.f32 %v723, %v723
    %v773 = vmul.f32 %v724, %v724
    %v774 = vmul.f32 %v725, %v725
    %v775 = vmul.f32 %v726, %v726
    %v776 = vmul.f32 %v727, %v727
    %v777 = vmul.f32 %v728, %v728
    %v778 = vmul.f32 %v729, %v729
    %v779 = vmul.f32 %v730, %v730
    %v780 = vmul.f32 %v731, %v731
    %v781 = vmul.f32 %v732, %v732
    %v782 = vmul.f32 %v733, %v733
    %v783 = vmul.f32 %v734, %v734
    %v784 = vmul.f32 %v735, %v735
    %v785 = vmul.f32 %v736, %v736
    %v786 = vmul.f32 %v737, %v737
    %v787 = vmul.f32 %v738, %v738
    %v788 = vsel %vm127, %v739, 0.0
    %v789 = vsel %vm127, %v740, 0.0
    %v790 = vadd.f32 %v788, %v789
    %v791 = vsel %vm127, %v741, 0.0
    %v792 = vadd.f32 %v790, %v791
    %v793 = vsel %vm127, %v742, 0.0
    %v794 = vadd.f32 %v792, %v793
    %v795 = vsel %vm127, %v743, 0.0
    %v796 = vadd.f32 %v794, %v795
    %v797 = vsel %vm127, %v744, 0.0
    %v798 = vadd.f32 %v796, %v797
    %v799 = vsel %vm127, %v745, 0.0
    %v800 = vadd.f32 %v798, %v799
    %v801 = vsel %vm127, %v746, 0.0
    %v802 = vadd.f32 %v800, %v801
    %v803 = vsel %vm127, %v747, 0.0
    %v804 = vadd.f32 %v802, %v803
    %v805 = vsel %vm127, %v748, 0.0
    %v806 = vadd.f32 %v804, %v805
    %v807 = vsel %vm127, %v749, 0.0
    %v808 = vadd.f32 %v806, %v807
    %v809 = vsel %vm127, %v750, 0.0
    %v810 = vadd.f32 %v808, %v809
    %v811 = vsel %vm127, %v751, 0.0
    %v812 = vadd.f32 %v810, %v811
    %v813 = vsel %vm127, %v752, 0.0
    %v814 = vadd.f32 %v812, %v813
    %v815 = vsel %vm127, %v753, 0.0
    %v816 = vadd.f32 %v814, %v815
    %v817 = vsel %vm127, %v754, 0.0
    %v818 = vadd.f32 %v816, %v817
    %v819 = vsel %vm127, %v755, 0.0
    %v820 = vadd.f32 %v818, %v819
    %v821 = vsel %vm127, %v756, 0.0
    %v822 = vadd.f32 %v820, %v821
    %v823 = vsel %vm127, %v757, 0.0
    %v824 = vadd.f32 %v822, %v823
    %v825 = vsel %vm127, %v758, 0.0
    %v826 = vadd.f32 %v824, %v825
    %v827 = vsel %vm127, %v759, 0.0
    %v828 = vadd.f32 %v826, %v827
    %v829 = vsel %vm127, %v760, 0.0
    %v830 = vadd.f32 %v828, %v829
    %v831 = vsel %vm127, %v761, 0.0
    %v832 = vadd.f32 %v830, %v831
    %v833 = vsel %vm127, %v762, 0.0
    %v834 = vadd.f32 %v832, %v833
    %v835 = vsel %vm127, %v763, 0.0
    %v836 = vadd.f32 %v834, %v835
    %v837 = vsel %vm127, %v764, 0.0
    %v838 = vadd.f32 %v836, %v837
    %v839 = vsel %vm127, %v765, 0.0
    %v840 = vadd.f32 %v838, %v839
    %v841 = vsel %vm127, %v766, 0.0
    %v842 = vadd.f32 %v840, %v841
    %v843 = vsel %vm127, %v767, 0.0
    %v844 = vadd.f32 %v842, %v843
    %v845 = vsel %vm127, %v768, 0.0
    %v846 = vadd.f32 %v844, %v845
    %v847 = vsel %vm127, %v769, 0.0
    %v848 = vadd.f32 %v846, %v847
    %v849 = vsel %vm127, %v770, 0.0
    %v850 = vadd.f32 %v848, %v849
    %v851 = vsel %vm127, %v771, 0.0
    %v852 = vadd.f32 %v850, %v851
    %v853 = vsel %vm127, %v772, 0.0
    %v854 = vadd.f32 %v852, %v853
    %v855 = vsel %vm127, %v773, 0.0
    %v856 = vadd.f32 %v854, %v855
    %v857 = vsel %vm127, %v774, 0.0
    %v858 = vadd.f32 %v856, %v857
    %v859 = vsel %vm127, %v775, 0.0
    %v860 = vadd.f32 %v858, %v859
    %v861 = vsel %vm127, %v776, 0.0
    %v862 = vadd.f32 %v860, %v861
    %v863 = vsel %vm127, %v777, 0.0
    %v864 = vadd.f32 %v862, %v863
    %v865 = vsel %vm127, %v778, 0.0
    %v866 = vadd.f32 %v864, %v865
    %v867 = vsel %vm127, %v779, 0.0
    %v868 = vadd.f32 %v866, %v867
    %v869 = vsel %vm127, %v780, 0.0
    %v870 = vadd.f32 %v868, %v869
    %v871 = vsel %vm127, %v781, 0.0
    %v872 = vadd.f32 %v870, %v871
    %v873 = vsel %vm127, %v782, 0.0
    %v874 = vadd.f32 %v872, %v873
    %v875 = vsel %vm127, %v783, 0.0
    %v876 = vadd.f32 %v874, %v875
    %v877 = vsel %vm127, %v784, 0.0
    %v878 = vadd.f32 %v876, %v877
    %v879 = vsel %vm127, %v785, 0.0
    %v880 = vadd.f32 %v878, %v879
    %v881 = vsel %vm127, %v786, 0.0
    %v882 = vadd.f32 %v880, %v881
    %v883 = vsel %vm127, %v787, 0.0
    %v884 = vadd.f32 %v882, %v883
    %v885 = vrot.slane %v884, 4
    %v886 = vadd.f32 %v884, %v885
    %v887 = vrot.slane %v886, 2
    %v888 = vadd.f32 %v886, %v887
    %v889 = vrot.slane %v888, 1
    %v890 = vadd.f32 %v888, %v889
    %v891 = vmul.f32 %v890, %v688
    %v892 = vld [vmem:[#allocation6] sm:$0x1]
    %v893 = vadd.f32 %v891, 1e-05
    %v894 = vrsqrt.pop %v893
    %v895 = vmul.f32 %v892, %v894
    %v896 = vld [vmem:[#allocation7] sm:$0x1]
    %v897 = vmul.f32 %v689, %v895
    %v898 = vsub.f32 %v896, %v897
    %v900 = vlaneseq
    %v901 = vshrl.u32 %v900, 7
    %v902 = vsub.s32 0, %v901
    %v903 = vrot.slane %v895, %v902
    %v905 = vmul.f32 %v342, %v903
    %v906 = vmul.f32 %v347, %v903
    %v907 = vmul.f32 %v352, %v903
    %v908 = vmul.f32 %v357, %v903
    %v909 = vmul.f32 %v362, %v903
    %v910 = vmul.f32 %v367, %v903
    %v911 = vmul.f32 %v372, %v903
    %v912 = vmul.f32 %v377, %v903
    %v913 = vmul.f32 %v382, %v903
    %v914 = vmul.f32 %v387, %v903
    %v915 = vmul.f32 %v392, %v903
    %v916 = vmul.f32 %v397, %v903
    %v917 = vmul.f32 %v402, %v903
    %v918 = vmul.f32 %v407, %v903
    %v919 = vmul.f32 %v412, %v903
    %v920 = vmul.f32 %v417, %v903
    %v921 = vmul.f32 %v422, %v903
    %v922 = vmul.f32 %v427, %v903
    %v923 = vmul.f32 %v432, %v903
    %v924 = vmul.f32 %v437, %v903
    %v925 = vmul.f32 %v442, %v903
    %v926 = vmul.f32 %v447, %v903
    %v927 = vmul.f32 %v452, %v903
    %v928 = vmul.f32 %v457, %v903
    %v929 = vmul.f32 %v462, %v903
    %v930 = vmul.f32 %v467, %v903
    %v931 = vmul.f32 %v472, %v903
    %v932 = vmul.f32 %v477, %v903
    %v933 = vmul.f32 %v482, %v903
    %v934 = vmul.f32 %v487, %v903
    %v935 = vmul.f32 %v492, %v903
    %v936 = vmul.f32 %v497, %v903
    %v937 = vmul.f32 %v502, %v903
    %v938 = vmul.f32 %v507, %v903
    %v939 = vmul.f32 %v512, %v903
    %v940 = vmul.f32 %v517, %v903
    %v941 = vmul.f32 %v522, %v903
    %v942 = vmul.f32 %v527, %v903
    %v943 = vmul.f32 %v532, %v903
    %v944 = vmul.f32 %v537, %v903
    %v945 = vmul.f32 %v542, %v903
    %v946 = vmul.f32 %v547, %v903
    %v947 = vmul.f32 %v552, %v903
    %v948 = vmul.f32 %v557, %v903
    %v949 = vmul.f32 %v562, %v903
    %v950 = vmul.f32 %v567, %v903
    %v951 = vmul.f32 %v572, %v903
    %v952 = vmul.f32 %v577, %v903
    %v953 = vmul.f32 %v582, %v903
    %v955 = vlaneseq
    %v956 = vshrl.u32 %v955, 7
    %v957 = vsub.s32 0, %v956
    %v958 = vrot.slane %v898, %v957
    %v960 = vadd.f32 %v905, %v958
    %v961 = vadd.f32 %v906, %v958
    %v962 = vadd.f32 %v907, %v958
    %v963 = vadd.f32 %v908, %v958
    %v964 = vadd.f32 %v909, %v958
    %v965 = vadd.f32 %v910, %v958
    %v966 = vadd.f32 %v911, %v958
    %v967 = vadd.f32 %v912, %v958
    %v968 = vadd.f32 %v913, %v958
    %v969 = vadd.f32 %v914, %v958
    %v970 = vadd.f32 %v915, %v958
    %v971 = vadd.f32 %v916, %v958
    %v972 = vadd.f32 %v917, %v958
    %v973 = vadd.f32 %v918, %v958
    %v974 = vadd.f32 %v919, %v958
    %v975 = vadd.f32 %v920, %v958
    %v976 = vadd.f32 %v921, %v958
    %v977 = vadd.f32 %v922, %v958
    %v978 = vadd.f32 %v923, %v958
    %v979 = vadd.f32 %v924, %v958
    %v980 = vadd.f32 %v925, %v958
    %v981 = vadd.f32 %v926, %v958
    %v982 = vadd.f32 %v927, %v958
    %v983 = vadd.f32 %v928, %v958
    %v984 = vadd.f32 %v929, %v958
    %v985 = vadd.f32 %v930, %v958
    %v986 = vadd.f32 %v931, %v958
    %v987 = vadd.f32 %v932, %v958
    %v988 = vadd.f32 %v933, %v958
    %v989 = vadd.f32 %v934, %v958
    %v990 = vadd.f32 %v935, %v958
    %v991 = vadd.f32 %v936, %v958
    %v992 = vadd.f32 %v937, %v958
    %v993 = vadd.f32 %v938, %v958
    %v994 = vadd.f32 %v939, %v958
    %v995 = vadd.f32 %v940, %v958
    %v996 = vadd.f32 %v941, %v958
    %v997 = vadd.f32 %v942, %v958
    %v998 = vadd.f32 %v943, %v958
    %v999 = vadd.f32 %v944, %v958
    %v1000 = vadd.f32 %v945, %v958
    %v1001 = vadd.f32 %v946, %v958
    %v1002 = vadd.f32 %v947, %v958
    %v1003 = vadd.f32 %v948, %v958
    %v1004 = vadd.f32 %v949, %v958
    %v1005 = vadd.f32 %v950, %v958
    %v1006 = vadd.f32 %v951, %v958
    %v1007 = vadd.f32 %v952, %v958
    %v1008 = vadd.f32 %v953, %v958
    %v1009 = vmax.f32 %v960, 0.0
    %v1010 = vmax.f32 %v961, 0.0
    %v1011 = vmax.f32 %v962, 0.0
    %v1012 = vmax.f32 %v963, 0.0
    %v1013 = vmax.f32 %v964, 0.0
    %v1014 = vmax.f32 %v965, 0.0
    %v1015 = vmax.f32 %v966, 0.0
    %v1016 = vmax.f32 %v967, 0.0
    %v1017 = vmax.f32 %v968, 0.0
    %v1018 = vmax.f32 %v969, 0.0
    %v1019 = vmax.f32 %v970, 0.0
    %v1020 = vmax.f32 %v971, 0.0
    %v1021 = vmax.f32 %v972, 0.0
    %v1022 = vmax.f32 %v973, 0.0
    %v1023 = vmax.f32 %v974, 0.0
    %v1024 = vmax.f32 %v975, 0.0
    %v1025 = vmax.f32 %v976, 0.0
    %v1026 = vmax.f32 %v977, 0.0
    %v1027 = vmax.f32 %v978, 0.0
    %v1028 = vmax.f32 %v979, 0.0
    %v1029 = vmax.f32 %v980, 0.0
    %v1030 = vmax.f32 %v981, 0.0
    %v1031 = vmax.f32 %v982, 0.0
    %v1032 = vmax.f32 %v983, 0.0
    %v1033 = vmax.f32 %v984, 0.0
    %v1034 = vmax.f32 %v985, 0.0
    %v1035 = vmax.f32 %v986, 0.0
    %v1036 = vmax.f32 %v987, 0.0
    %v1037 = vmax.f32 %v988, 0.0
    %v1038 = vmax.f32 %v989, 0.0
    %v1039 = vmax.f32 %v990, 0.0
    %v1040 = vmax.f32 %v991, 0.0
    %v1041 = vmax.f32 %v992, 0.0
    %v1042 = vmax.f32 %v993, 0.0
    %v1043 = vmax.f32 %v994, 0.0
    %v1044 = vmax.f32 %v995, 0.0
    %v1045 = vmax.f32 %v996, 0.0
    %v1046 = vmax.f32 %v997, 0.0
    %v1047 = vmax.f32 %v998, 0.0
    %v1048 = vmax.f32 %v999, 0.0
    %v1049 = vmax.f32 %v1000, 0.0
    %v1050 = vmax.f32 %v1001, 0.0
    %v1051 = vmax.f32 %v1002, 0.0
    %v1052 = vmax.f32 %v1003, 0.0
    %v1053 = vmax.f32 %v1004, 0.0
    %v1054 = vmax.f32 %v1005, 0.0
    %v1055 = vmax.f32 %v1006, 0.0
    %v1056 = vmax.f32 %v1007, 0.0
    %v1057 = vmax.f32 %v1008, 0.0
    %1058 = vst.msk [vmem:[%s5] sm:$0xff] %vm127, %v1009
    %1059 = vst.msk [vmem:[%s5 + $0x8] sm:$0xff] %vm127, %v1010
    %1060 = vst.msk [vmem:[%s5 + $0x10] sm:$0xff] %vm127, %v1011
    %1061 = vst.msk [vmem:[%s5 + $0x18] sm:$0xff] %vm127, %v1012
    %1062 = vst.msk [vmem:[%s5 + $0x20] sm:$0xff] %vm127, %v1013
    %1063 = vst.msk [vmem:[%s5 + $0x28] sm:$0xff] %vm127, %v1014
    %1064 = vst.msk [vmem:[%s5 + $0x30] sm:$0xff] %vm127, %v1015
    %1065 = vst.msk [vmem:[%s5 + $0x38] sm:$0xff] %vm127, %v1016
    %1066 = vst.msk [vmem:[%s5 + $0x40] sm:$0xff] %vm127, %v1017
    %1067 = vst.msk [vmem:[%s5 + $0x48] sm:$0xff] %vm127, %v1018
    %1068 = vst.msk [vmem:[%s5 + $0x50] sm:$0xff] %vm127, %v1019
    %1069 = vst.msk [vmem:[%s5 + $0x58] sm:$0xff] %vm127, %v1020
    %1070 = vst.msk [vmem:[%s5 + $0x60] sm:$0xff] %vm127, %v1021
    %1071 = vst.msk [vmem:[%s5 + $0x68] sm:$0xff] %vm127, %v1022
    %1072 = vst.msk [vmem:[%s5 + $0x70] sm:$0xff] %vm127, %v1023
    %1073 = vst.msk [vmem:[%s5 + $0x78] sm:$0xff] %vm127, %v1024
    %1074 = vst.msk [vmem:[%s5 + $0x80] sm:$0xff] %vm127, %v1025
    %1075 = vst.msk [vmem:[%s5 + $0x88] sm:$0xff] %vm127, %v1026
    %1076 = vst.msk [vmem:[%s5 + $0x90] sm:$0xff] %vm127, %v1027
    %1077 = vst.msk [vmem:[%s5 + $0x98] sm:$0xff] %vm127, %v1028
    %1078 = vst.msk [vmem:[%s5 + $0xa0] sm:$0xff] %vm127, %v1029
    %1079 = vst.msk [vmem:[%s5 + $0xa8] sm:$0xff] %vm127, %v1030
    %1080 = vst.msk [vmem:[%s5 + $0xb0] sm:$0xff] %vm127, %v1031
    %1081 = vst.msk [vmem:[%s5 + $0xb8] sm:$0xff] %vm127, %v1032
    %1082 = vst.msk [vmem:[%s5 + $0xc0] sm:$0xff] %vm127, %v1033
    %1083 = vst.msk [vmem:[%s5 + $0xc8] sm:$0xff] %vm127, %v1034
    %1084 = vst.msk [vmem:[%s5 + $0xd0] sm:$0xff] %vm127, %v1035
    %1085 = vst.msk [vmem:[%s5 + $0xd8] sm:$0xff] %vm127, %v1036
    %1086 = vst.msk [vmem:[%s5 + $0xe0] sm:$0xff] %vm127, %v1037
    %1087 = vst.msk [vmem:[%s5 + $0xe8] sm:$0xff] %vm127, %v1038
    %1088 = vst.msk [vmem:[%s5 + $0xf0] sm:$0xff] %vm127, %v1039
    %1089 = vst.msk [vmem:[%s5 + $0xf8] sm:$0xff] %vm127, %v1040
    %1090 = vst.msk [vmem:[%s5 + $0x100] sm:$0xff] %vm127, %v1041
    %1091 = vst.msk [vmem:[%s5 + $0x108] sm:$0xff] %vm127, %v1042
    %1092 = vst.msk [vmem:[%s5 + $0x110] sm:$0xff] %vm127, %v1043
    %1093 = vst.msk [vmem:[%s5 + $0x118] sm:$0xff] %vm127, %v1044
    %1094 = vst.msk [vmem:[%s5 + $0x120] sm:$0xff] %vm127, %v1045
    %1095 = vst.msk [vmem:[%s5 + $0x128] sm:$0xff] %vm127, %v1046
    %1096 = vst.msk [vmem:[%s5 + $0x130] sm:$0xff] %vm127, %v1047
    %1097 = vst.msk [vmem:[%s5 + $0x138] sm:$0xff] %vm127, %v1048
    %1098 = vst.msk [vmem:[%s5 + $0x140] sm:$0xff] %vm127, %v1049
    %1099 = vst.msk [vmem:[%s5 + $0x148] sm:$0xff] %vm127, %v1050
    %1100 = vst.msk [vmem:[%s5 + $0x150] sm:$0xff] %vm127, %v1051
    %1101 = vst.msk [vmem:[%s5 + $0x158] sm:$0xff] %vm127, %v1052
    %1102 = vst.msk [vmem:[%s5 + $0x160] sm:$0xff] %vm127, %v1053
    %1103 = vst.msk [vmem:[%s5 + $0x168] sm:$0xff] %vm127, %v1054
    %1104 = vst.msk [vmem:[%s5 + $0x170] sm:$0xff] %vm127, %v1055
    %1105 = vst.msk [vmem:[%s5 + $0x178] sm:$0xff] %vm127, %v1056
    %1106 = vst.msk [vmem:[%s5 + $0x180] sm:$0xff] %vm127, %v1057
    // Predicated region
    $region38: #{vae_forward.6} parent=1 // pred_check
      _
    $region39: #{vae_forward.6} parent=1 // pred_check_branch
      %1108 = sbr.rel (0) target = $region41
    $region40: #{vae_forward.6} parent=1 // pred_region
      _
    $region41: #{vae_forward.6} parent=1 // pred_fallthru
      _
    // Predicated region
    $region42: #{vae_forward.6} parent=1 // pred_check
      _
    $region43: #{vae_forward.6} parent=1 // pred_check_branch
      %1110 = sbr.rel (0) target = $region45
    $region44: #{vae_forward.6} parent=1 // pred_region
      _
    $region45: #{vae_forward.6} parent=1 // pred_fallthru
      _
    %1111 = vsyncpa [#allocation3], 1
    %1112 = vsyncpa [#allocation5], 1
    %1113 = vsyncpa [#allocation8], 1

// kernel: vae_forward.7
$region0: #{vae_forward.7}
  #allocation0 [shape = 'u32[]', space=smem, size = 0x4, offset = 0x4, fixed_abs, tag = 'smem constant byte address 0x4 - core index']
  #allocation1 [shape = 'u32[144,128]{1,0:T(1,128)}', space=vmem, size = 0x12000, scoped, tag = 'internal scratch']
  %s0 = inlined_call_operand.vmem [shape: f32[98,256], index: 0, kind: input, shape index: {}]
  %s1 = inlined_call_operand.vmem [shape: f32[256,32], index: 1, kind: input, shape index: {}]
  %s2 = inlined_call_operand.vmem [shape: f32[1,32], index: 2, kind: input, shape index: {}]
  %s3 = inlined_call_operand.vmem [shape: f32[1,32], index: 3, kind: input, shape index: {}]
  %s4 = inlined_call_operand.vmem [shape: f32[1,32], index: 4, kind: input, shape index: {}]
  %s5 = inlined_call_operand.vmem [shape: f32[98,32], index: 5, kind: output, shape index: {}]
  %s6 = sld [smem:[#allocation0]]
  $region30: #{vae_forward.7} parent=0
    _
  %s8 = ssub.s32 1, %s6
  %s9 = scalar_select 0, %s8, %s6
  // Predicated region
  $region2: #{vae_forward.7} parent=0 // pred_check
    _
  $region3: #{vae_forward.7} parent=0 // pred_check_branch
    %11 = sbr.rel (0) target = $region5
  $region4: #{vae_forward.7} parent=0 // pred_region
    _
  $region5: #{vae_forward.7} parent=0 // pred_fallthru
    _
  // Predicated region
  $region6: #{vae_forward.7} parent=0 // pred_check
    _
  $region7: #{vae_forward.7} parent=0 // pred_check_branch
    %13 = sbr.rel (0) target = $region9
  $region8: #{vae_forward.7} parent=0 // pred_region
    _
  $region9: #{vae_forward.7} parent=0 // pred_fallthru
    _
  // Predicated region
  $region10: #{vae_forward.7} parent=0 // pred_check
    _
  $region11: #{vae_forward.7} parent=0 // pred_check_branch
    %15 = sbr.rel (0) target = $region13
  $region12: #{vae_forward.7} parent=0 // pred_region
    _
  $region13: #{vae_forward.7} parent=0 // pred_fallthru
    _
  // Predicated region
  $region14: #{vae_forward.7} parent=0 // pred_check
    _
  $region15: #{vae_forward.7} parent=0 // pred_check_branch
    %17 = sbr.rel (0) target = $region17
  $region16: #{vae_forward.7} parent=0 // pred_region
    _
  $region17: #{vae_forward.7} parent=0 // pred_fallthru
    _
  // Predicated region
  $region18: #{vae_forward.7} parent=0 // pred_check
    _
  $region19: #{vae_forward.7} parent=0 // pred_check_branch
    %19 = sbr.rel (0) target = $region21
  $region20: #{vae_forward.7} parent=0 // pred_region
    _
  $region21: #{vae_forward.7} parent=0 // pred_fallthru
    _
  %v20 = vld [vmem:[%s0] sm:$0xff]
  %v21 = vld [vmem:[%s0 + $0x8] sm:$0xff]
  %v22 = vld [vmem:[%s0 + $0x10] sm:$0xff]
  %v23 = vld [vmem:[%s0 + $0x18] sm:$0xff]
  %v24 = vld [vmem:[%s0 + $0x20] sm:$0xff]
  %v25 = vld [vmem:[%s0 + $0x28] sm:$0xff]
  %v26 = vld [vmem:[%s0 + $0x30] sm:$0xff]
  %v27 = vld [vmem:[%s0 + $0x38] sm:$0xff]
  %v28 = vld [vmem:[%s0 + $0x40] sm:$0xff]
  %v29 = vld [vmem:[%s0 + $0x48] sm:$0xff]
  %v30 = vld [vmem:[%s0 + $0x50] sm:$0xff]
  %v31 = vld [vmem:[%s0 + $0x58] sm:$0xff]
  %v32 = vld [vmem:[%s0 + $0x60] sm:$0xff]
  %v33 = vld [vmem:[%s0 + $0x68] sm:$0xff]
  %v34 = vld [vmem:[%s0 + $0x70] sm:$0xff]
  %v35 = vld [vmem:[%s0 + $0x78] sm:$0xff]
  %v36 = vld [vmem:[%s0 + $0x80] sm:$0xff]
  %v37 = vld [vmem:[%s0 + $0x88] sm:$0xff]
  %v38 = vld [vmem:[%s0 + $0x90] sm:$0xff]
  %v39 = vld [vmem:[%s0 + $0x98] sm:$0xff]
  %v40 = vld [vmem:[%s0 + $0xa0] sm:$0xff]
  %v41 = vld [vmem:[%s0 + $0xa8] sm:$0xff]
  %v42 = vld [vmem:[%s0 + $0xb0] sm:$0xff]
  %v43 = vld [vmem:[%s0 + $0xb8] sm:$0xff]
  %v44 = vld [vmem:[%s0 + $0xc0] sm:$0x3]
  %v45 = vld [vmem:[%s0 + $0xc8] sm:$0x3]
  %v46 = vld [vmem:[%s1] sm:$0xff]
  %v47 = vld [vmem:[%s1 + $0x8] sm:$0xff]
  %v48 = vld [vmem:[%s1 + $0x10] sm:$0xff]
  %v49 = vld [vmem:[%s1 + $0x18] sm:$0xff]
  %v50 = vld [vmem:[%s1 + $0x20] sm:$0xff]
  %v51 = vld [vmem:[%s1 + $0x28] sm:$0xff]
  %v52 = vld [vmem:[%s1 + $0x30] sm:$0xff]
  %v53 = vld [vmem:[%s1 + $0x38] sm:$0xff]
  %v54 = vld [vmem:[%s1 + $0x40] sm:$0xff]
  %v55 = vld [vmem:[%s1 + $0x48] sm:$0xff]
  %v56 = vld [vmem:[%s1 + $0x50] sm:$0xff]
  %v57 = vld [vmem:[%s1 + $0x58] sm:$0xff]
  %v58 = vld [vmem:[%s1 + $0x60] sm:$0xff]
  %v59 = vld [vmem:[%s1 + $0x68] sm:$0xff]
  %v60 = vld [vmem:[%s1 + $0x70] sm:$0xff]
  %v61 = vld [vmem:[%s1 + $0x78] sm:$0xff]
  %v62 = vld [vmem:[%s1 + $0x80] sm:$0xff]
  %v63 = vld [vmem:[%s1 + $0x88] sm:$0xff]
  %v64 = vld [vmem:[%s1 + $0x90] sm:$0xff]
  %v65 = vld [vmem:[%s1 + $0x98] sm:$0xff]
  %v66 = vld [vmem:[%s1 + $0xa0] sm:$0xff]
  %v67 = vld [vmem:[%s1 + $0xa8] sm:$0xff]
  %v68 = vld [vmem:[%s1 + $0xb0] sm:$0xff]
  %v69 = vld [vmem:[%s1 + $0xb8] sm:$0xff]
  %v70 = vld [vmem:[%s1 + $0xc0] sm:$0xff]
  %v71 = vld [vmem:[%s1 + $0xc8] sm:$0xff]
  %v72 = vld [vmem:[%s1 + $0xd0] sm:$0xff]
  %v73 = vld [vmem:[%s1 + $0xd8] sm:$0xff]
  %v74 = vld [vmem:[%s1 + $0xe0] sm:$0xff]
  %v75 = vld [vmem:[%s1 + $0xe8] sm:$0xff]
  %v76 = vld [vmem:[%s1 + $0xf0] sm:$0xff]
  %v77 = vld [vmem:[%s1 + $0xf8] sm:$0xff]
  %v78 = vld [vmem:[%s2] sm:$0x1]
  %v80 = vlaneseq
  %v81 = vshrl.u32 %v80, 7
  %v82 = vsub.s32 0, %v81
  %v83 = vrot.slane %v78, %v82
  %85 = vmatprep.subr.mxu0 0.0
  %86 = vmatpush1.msra.mxu0 %v46
  %87 = vmatprep.subr.mxu0 0.0
  %88 = vmatpush1.msra.mxu0 %v47
  %89 = vmatprep.subr.mxu0 0.0
  %90 = vmatpush1.msra.mxu0 %v48
  %91 = vmatprep.subr.mxu0 0.0
  %92 = vmatpush1.msra.mxu0 %v49
  %93 = vmatprep.subr.mxu0 0.0
  %94 = vmatpush1.msra.mxu0 %v50
  %95 = vmatprep.subr.mxu0 0.0
  %96 = vmatpush1.msra.mxu0 %v51
  %97 = vmatprep.subr.mxu0 0.0
  %98 = vmatpush1.msra.mxu0 %v52
  %99 = vmatprep.subr.mxu0 0.0
  %100 = vmatpush1.msra.mxu0 %v53
  %101 = vmatprep.subr.mxu0 0.0
  %102 = vmatpush1.msra.mxu0 %v54
  %103 = vmatprep.subr.mxu0 0.0
  %104 = vmatpush1.msra.mxu0 %v55
  %105 = vmatprep.subr.mxu0 0.0
  %106 = vmatpush1.msra.mxu0 %v56
  %107 = vmatprep.subr.mxu0 0.0
  %108 = vmatpush1.msra.mxu0 %v57
  %109 = vmatprep.subr.mxu0 0.0
  %110 = vmatpush1.msra.mxu0 %v58
  %111 = vmatprep.subr.mxu0 0.0
  %112 = vmatpush1.msra.mxu0 %v59
  %113 = vmatprep.subr.mxu0 0.0
  %114 = vmatpush1.msra.mxu0 %v60
  %115 = vmatprep.subr.mxu0 0.0
  %116 = vmatpush1.msra.mxu0 %v61
  %117 = vmatprep.subr.mxu0 0.0
  %118 = vmatpush1.msra.mxu0 %v62
  %119 = vmatprep.subr.mxu0 0.0
  %120 = vmatpush1.msra.mxu0 %v63
  %121 = vmatprep.subr.mxu0 0.0
  %122 = vmatpush1.msra.mxu0 %v64
  %123 = vmatprep.subr.mxu0 0.0
  %124 = vmatpush1.msra.mxu0 %v65
  %125 = vmatprep.subr.mxu0 0.0
  %126 = vmatpush1.msra.mxu0 %v66
  %127 = vmatprep.subr.mxu0 0.0
  %128 = vmatpush1.msra.mxu0 %v67
  %129 = vmatprep.subr.mxu0 0.0
  %130 = vmatpush1.msra.mxu0 %v68
  %131 = vmatprep.subr.mxu0 0.0
  %132 = vmatpush1.msra.mxu0 %v69
  %133 = vmatprep.subr.mxu0 0.0
  %134 = vmatpush1.msra.mxu0 %v70
  %135 = vmatprep.subr.mxu0 0.0
  %136 = vmatpush1.msra.mxu0 %v71
  %137 = vmatprep.subr.mxu0 0.0
  %138 = vmatpush1.msra.mxu0 %v72
  %139 = vmatprep.subr.mxu0 0.0
  %140 = vmatpush1.msra.mxu0 %v73
  %141 = vmatprep.subr.mxu0 0.0
  %142 = vmatpush1.msra.mxu0 %v74
  %143 = vmatprep.subr.mxu0 0.0
  %144 = vmatpush1.msra.mxu0 %v75
  %145 = vmatprep.subr.mxu0 0.0
  %146 = vmatpush1.msra.mxu0 %v76
  %147 = vmatprep.subr.mxu0 0.0
  %148 = vmatpush1.msra.mxu0 %v77
  %149 = vmatprep.mubr.f32.mxu0 %v21
  %150 = vmatmul.mubr.f32.gmra.mrb[0].mxu0 %v20
  %v151 = vpop.f32.mrb[0].mxu0
  %v152 = vadd.f32 %v83, %v151
  %v153 = vpop.f32.mrb[0].mxu0
  %154 = vmatprep.mubr.f32.mxu0 %v23
  %155 = vmatmul.mubr.f32.gmra.mrb[0].mxu0 %v22
  %v156 = vpop.f32.mrb[0].mxu0
  %v157 = vadd.f32 %v83, %v156
  %v158 = vpop.f32.mrb[0].mxu0
  %159 = vmatprep.mubr.f32.mxu0 %v25
  %160 = vmatmul.mubr.f32.gmra.mrb[0].mxu0 %v24
  %v161 = vpop.f32.mrb[0].mxu0
  %v162 = vadd.f32 %v83, %v161
  %v163 = vpop.f32.mrb[0].mxu0
  %164 = vmatprep.mubr.f32.mxu0 %v27
  %165 = vmatmul.mubr.f32.gmra.mrb[0].mxu0 %v26
  %v166 = vpop.f32.mrb[0].mxu0
  %v167 = vadd.f32 %v83, %v166
  %v168 = vpop.f32.mrb[0].mxu0
  %169 = vmatprep.mubr.f32.mxu0 %v29
  %170 = vmatmul.mubr.f32.gmra.mrb[0].mxu0 %v28
  %v171 = vpop.f32.mrb[0].mxu0
  %v172 = vadd.f32 %v83, %v171
  %v173 = vpop.f32.mrb[0].mxu0
  %174 = vmatprep.mubr.f32.mxu0 %v31
  %175 = vmatmul.mubr.f32.gmra.mrb[0].mxu0 %v30
  %v176 = vpop.f32.mrb[0].mxu0
  %v177 = vadd.f32 %v83, %v176
  %v178 = vpop.f32.mrb[0].mxu0
  %179 = vmatprep.mubr.f32.mxu0 %v33
  %180 = vmatmul.mubr.f32.gmra.mrb[0].mxu0 %v32
  %v181 = vpop.f32.mrb[0].mxu0
  %v182 = vadd.f32 %v83, %v181
  %v183 = vpop.f32.mrb[0].mxu0
  %184 = vmatprep.mubr.f32.mxu0 %v35
  %185 = vmatmul.mubr.f32.gmra.mrb[0].mxu0 %v34
  %v186 = vpop.f32.mrb[0].mxu0
  %v187 = vadd.f32 %v83, %v186
  %v188 = vpop.f32.mrb[0].mxu0
  %189 = vmatprep.mubr.f32.mxu0 %v37
  %190 = vmatmul.mubr.f32.gmra.mrb[0].mxu0 %v36
  %v191 = vpop.f32.mrb[0].mxu0
  %v192 = vadd.f32 %v83, %v191
  %v193 = vpop.f32.mrb[0].mxu0
  %194 = vmatprep.mubr.f32.mxu0 %v39
  %195 = vmatmul.mubr.f32.gmra.mrb[0].mxu0 %v38
  %v196 = vpop.f32.mrb[0].mxu0
  %v197 = vadd.f32 %v83, %v196
  %v198 = vpop.f32.mrb[0].mxu0
  %199 = vmatprep.mubr.f32.mxu0 %v41
  %200 = vmatmul.mubr.f32.gmra.mrb[0].mxu0 %v40
  %v201 = vpop.f32.mrb[0].mxu0
  %v202 = vadd.f32 %v83, %v201
  %v203 = vpop.f32.mrb[0].mxu0
  %204 = vmatprep.mubr.f32.mxu0 %v43
  %205 = vmatmul.mubr.f32.gmra.mrb[0].mxu0 %v42
  %v206 = vpop.f32.mrb[0].mxu0
  %v207 = vadd.f32 %v83, %v206
  %v208 = vpop.f32.mrb[0].mxu0
  %209 = vmatprep.mubr.f32.mxu0 %v45
  %210 = vmatmul.mubr.f32.gmra.mrb[0].mxu0 %v44
  %v211 = vpop.f32.mrb[0].mxu0
  %v212 = vadd.f32 %v83, %v211
  %v213 = vpop.f32.mrb[0].mxu0
  %214 = vdwg.mxu0
  %vm215 = vcmask 261120
  %v216 = vsel %vm215, %v152, 0.0
  %v217 = vsel %vm215, %v157, 0.0
  %v218 = vadd.f32 %v216, %v217
  %v219 = vsel %vm215, %v162, 0.0
  %v220 = vadd.f32 %v218, %v219
  %v221 = vsel %vm215, %v167, 0.0
  %v222 = vadd.f32 %v220, %v221
  %v223 = vsel %vm215, %v172, 0.0
  %v224 = vadd.f32 %v222, %v223
  %v225 = vsel %vm215, %v177, 0.0
  %v226 = vadd.f32 %v224, %v225
  %v227 = vsel %vm215, %v182, 0.0
  %v228 = vadd.f32 %v226, %v227
  %v229 = vsel %vm215, %v187, 0.0
  %v230 = vadd.f32 %v228, %v229
  %v231 = vsel %vm215, %v192, 0.0
  %v232 = vadd.f32 %v230, %v231
  %v233 = vsel %vm215, %v197, 0.0
  %v234 = vadd.f32 %v232, %v233
  %v235 = vsel %vm215, %v202, 0.0
  %v236 = vadd.f32 %v234, %v235
  %v237 = vsel %vm215, %v207, 0.0
  %v238 = vadd.f32 %v236, %v237
  %vm239 = vcmask 254976
  %v240 = vsel %vm239, %v212, 0.0
  %v241 = vadd.f32 %v238, %v240
  %v242 = vrot.slane %v241, 4
  %v243 = vadd.f32 %v241, %v242
  %v244 = vrot.slane %v243, 2
  %v245 = vadd.f32 %v243, %v244
  %v246 = vrot.slane %v245, 1
  %v247 = vadd.f32 %v245, %v246
  %v248 = vrcp.pop 98.0
  %v249 = vmul.f32 %v247, %v248
  %v250 = vsub.f32 %v152, %v249
  %v251 = vsub.f32 %v157, %v249
  %v252 = vsub.f32 %v162, %v249
  %v253 = vsub.f32 %v167, %v249
  %v254 = vsub.f32 %v172, %v249
  %v255 = vsub.f32 %v177, %v249
  %v256 = vsub.f32 %v182, %v249
  %v257 = vsub.f32 %v187, %v249
  %v258 = vsub.f32 %v192, %v249
  %v259 = vsub.f32 %v197, %v249
  %v260 = vsub.f32 %v202, %v249
  %v261 = vsub.f32 %v207, %v249
  %v262 = vsub.f32 %v212, %v249
  %v263 = vmul.f32 %v250, %v250
  %v264 = vmul.f32 %v251, %v251
  %v265 = vmul.f32 %v252, %v252
  %v266 = vmul.f32 %v253, %v253
  %v267 = vmul.f32 %v254, %v254
  %v268 = vmul.f32 %v255, %v255
  %v269 = vmul.f32 %v256, %v256
  %v270 = vmul.f32 %v257, %v257
  %v271 = vmul.f32 %v258, %v258
  %v272 = vmul.f32 %v259, %v259
  %v273 = vmul.f32 %v260, %v260
  %v274 = vmul.f32 %v261, %v261
  %v275 = vmul.f32 %v262, %v262
  %v276 = vsel %vm215, %v263, 0.0
  %v277 = vsel %vm215, %v264, 0.0
  %v278 = vadd.f32 %v276, %v277
  %v279 = vsel %vm215, %v265, 0.0
  %v280 = vadd.f32 %v278, %v279
  %v281 = vsel %vm215, %v266, 0.0
  %v282 = vadd.f32 %v280, %v281
  %v283 = vsel %vm215, %v267, 0.0
  %v284 = vadd.f32 %v282, %v283
  %v285 = vsel %vm215, %v268, 0.0
  %v286 = vadd.f32 %v284, %v285
  %v287 = vsel %vm215, %v269, 0.0
  %v288 = vadd.f32 %v286, %v287
  %v289 = vsel %vm215, %v270, 0.0
  %v290 = vadd.f32 %v288, %v289
  %v291 = vsel %vm215, %v271, 0.0
  %v292 = vadd.f32 %v290, %v291
  %v293 = vsel %vm215, %v272, 0.0
  %v294 = vadd.f32 %v292, %v293
  %v295 = vsel %vm215, %v273, 0.0
  %v296 = vadd.f32 %v294, %v295
  %v297 = vsel %vm215, %v274, 0.0
  %v298 = vadd.f32 %v296, %v297
  %v299 = vsel %vm239, %v275, 0.0
  %v300 = vadd.f32 %v298, %v299
  %v301 = vrot.slane %v300, 4
  %v302 = vadd.f32 %v300, %v301
  %v303 = vrot.slane %v302, 2
  %v304 = vadd.f32 %v302, %v303
  %v305 = vrot.slane %v304, 1
  %v306 = vadd.f32 %v304, %v305
  %v307 = vmul.f32 %v306, %v248
  %v308 = vld [vmem:[%s3] sm:$0x1]
  %v309 = vadd.f32 %v307, 1e-05
  %v310 = vrsqrt.pop %v309
  %v311 = vmul.f32 %v308, %v310
  %v312 = vld [vmem:[%s4] sm:$0x1]
  %v313 = vmul.f32 %v249, %v311
  %v314 = vsub.f32 %v312, %v313
  %v316 = vlaneseq
  %v317 = vshrl.u32 %v316, 7
  %v318 = vsub.s32 0, %v317
  %v319 = vrot.slane %v311, %v318
  %v321 = vmul.f32 %v152, %v319
  %v322 = vmul.f32 %v157, %v319
  %v323 = vmul.f32 %v162, %v319
  %v324 = vmul.f32 %v167, %v319
  %v325 = vmul.f32 %v172, %v319
  %v326 = vmul.f32 %v177, %v319
  %v327 = vmul.f32 %v182, %v319
  %v328 = vmul.f32 %v187, %v319
  %v329 = vmul.f32 %v192, %v319
  %v330 = vmul.f32 %v197, %v319
  %v331 = vmul.f32 %v202, %v319
  %v332 = vmul.f32 %v207, %v319
  %v333 = vmul.f32 %v212, %v319
  %v335 = vlaneseq
  %v336 = vshrl.u32 %v335, 7
  %v337 = vsub.s32 0, %v336
  %v338 = vrot.slane %v314, %v337
  %v340 = vadd.f32 %v321, %v338
  %v341 = vadd.f32 %v322, %v338
  %v342 = vadd.f32 %v323, %v338
  %v343 = vadd.f32 %v324, %v338
  %v344 = vadd.f32 %v325, %v338
  %v345 = vadd.f32 %v326, %v338
  %v346 = vadd.f32 %v327, %v338
  %v347 = vadd.f32 %v328, %v338
  %v348 = vadd.f32 %v329, %v338
  %v349 = vadd.f32 %v330, %v338
  %v350 = vadd.f32 %v331, %v338
  %v351 = vadd.f32 %v332, %v338
  %v352 = vadd.f32 %v333, %v338
  %v353 = vmax.f32 %v340, 0.0
  %v354 = vmax.f32 %v341, 0.0
  %v355 = vmax.f32 %v342, 0.0
  %v356 = vmax.f32 %v343, 0.0
  %v357 = vmax.f32 %v344, 0.0
  %v358 = vmax.f32 %v345, 0.0
  %v359 = vmax.f32 %v346, 0.0
  %v360 = vmax.f32 %v347, 0.0
  %v361 = vmax.f32 %v348, 0.0
  %v362 = vmax.f32 %v349, 0.0
  %v363 = vmax.f32 %v350, 0.0
  %v364 = vmax.f32 %v351, 0.0
  %v365 = vmax.f32 %v352, 0.0
  %366 = vst.msk [vmem:[%s5] sm:$0xff] %vm215, %v353
  %367 = vst.msk [vmem:[%s5 + $0x8] sm:$0xff] %vm215, %v354
  %368 = vst.msk [vmem:[%s5 + $0x10] sm:$0xff] %vm215, %v355
  %369 = vst.msk [vmem:[%s5 + $0x18] sm:$0xff] %vm215, %v356
  %370 = vst.msk [vmem:[%s5 + $0x20] sm:$0xff] %vm215, %v357
  %371 = vst.msk [vmem:[%s5 + $0x28] sm:$0xff] %vm215, %v358
  %372 = vst.msk [vmem:[%s5 + $0x30] sm:$0xff] %vm215, %v359
  %373 = vst.msk [vmem:[%s5 + $0x38] sm:$0xff] %vm215, %v360
  %374 = vst.msk [vmem:[%s5 + $0x40] sm:$0xff] %vm215, %v361
  %375 = vst.msk [vmem:[%s5 + $0x48] sm:$0xff] %vm215, %v362
  %376 = vst.msk [vmem:[%s5 + $0x50] sm:$0xff] %vm215, %v363
  %377 = vst.msk [vmem:[%s5 + $0x58] sm:$0xff] %vm215, %v364
  %378 = vst.msk [vmem:[%s5 + $0x60] sm:$0x3] %vm239, %v365
  // Predicated region
  $region22: #{vae_forward.7} parent=0 // pred_check
    _
  $region23: #{vae_forward.7} parent=0 // pred_check_branch
    %380 = sbr.rel (0) target = $region25
  $region24: #{vae_forward.7} parent=0 // pred_region
    _
  $region25: #{vae_forward.7} parent=0 // pred_fallthru
    _
  // Predicated region
  $region26: #{vae_forward.7} parent=0 // pred_check
    _
  $region27: #{vae_forward.7} parent=0 // pred_check_branch
    %382 = sbr.rel (0) target = $region29
  $region28: #{vae_forward.7} parent=0 // pred_region
    _
  $region29: #{vae_forward.7} parent=0 // pred_fallthru
    _

// kernel: vae_forward.8
$region0: #{vae_forward.8}
  #allocation0 [shape = 'u32[]', space=smem, size = 0x4, offset = 0x4, fixed_abs, tag = 'smem constant byte address 0x4 - core index']
  #allocation1 [shape = 'u32[144,128]{1,0:T(1,128)}', space=vmem, size = 0x12000, scoped, tag = 'internal scratch']
  %s0 = inlined_call_operand.vmem [shape: f32[98,288], index: 0, kind: input, shape index: {}]
  %s1 = inlined_call_operand.vmem [shape: f32[288,16], index: 1, kind: input, shape index: {}]
  %s2 = inlined_call_operand.vmem [shape: f32[1,16], index: 2, kind: input, shape index: {}]
  %s3 = inlined_call_operand.vmem [shape: f32[1,16], index: 3, kind: input, shape index: {}]
  %s4 = inlined_call_operand.vmem [shape: f32[1,16], index: 4, kind: input, shape index: {}]
  %s5 = inlined_call_operand.vmem [shape: f32[98,16], index: 5, kind: output, shape index: {}]
  %s6 = sld [smem:[#allocation0]]
  $region30: #{vae_forward.8} parent=0
    _
  %s8 = ssub.s32 1, %s6
  %s9 = scalar_select 0, %s8, %s6
  // Predicated region
  $region2: #{vae_forward.8} parent=0 // pred_check
    _
  $region3: #{vae_forward.8} parent=0 // pred_check_branch
    %11 = sbr.rel (0) target = $region5
  $region4: #{vae_forward.8} parent=0 // pred_region
    _
  $region5: #{vae_forward.8} parent=0 // pred_fallthru
    _
  // Predicated region
  $region6: #{vae_forward.8} parent=0 // pred_check
    _
  $region7: #{vae_forward.8} parent=0 // pred_check_branch
    %13 = sbr.rel (0) target = $region9
  $region8: #{vae_forward.8} parent=0 // pred_region
    _
  $region9: #{vae_forward.8} parent=0 // pred_fallthru
    _
  // Predicated region
  $region10: #{vae_forward.8} parent=0 // pred_check
    _
  $region11: #{vae_forward.8} parent=0 // pred_check_branch
    %15 = sbr.rel (0) target = $region13
  $region12: #{vae_forward.8} parent=0 // pred_region
    _
  $region13: #{vae_forward.8} parent=0 // pred_fallthru
    _
  // Predicated region
  $region14: #{vae_forward.8} parent=0 // pred_check
    _
  $region15: #{vae_forward.8} parent=0 // pred_check_branch
    %17 = sbr.rel (0) target = $region17
  $region16: #{vae_forward.8} parent=0 // pred_region
    _
  $region17: #{vae_forward.8} parent=0 // pred_fallthru
    _
  // Predicated region
  $region18: #{vae_forward.8} parent=0 // pred_check
    _
  $region19: #{vae_forward.8} parent=0 // pred_check_branch
    %19 = sbr.rel (0) target = $region21
  $region20: #{vae_forward.8} parent=0 // pred_region
    _
  $region21: #{vae_forward.8} parent=0 // pred_fallthru
    _
  %v20 = vld [vmem:[%s0] sm:$0xff]
  %v21 = vld [vmem:[%s0 + $0x8] sm:$0xff]
  %v22 = vld [vmem:[%s0 + $0x10] sm:$0xff]
  %v23 = vld [vmem:[%s0 + $0x18] sm:$0xff]
  %v24 = vld [vmem:[%s0 + $0x20] sm:$0xff]
  %v25 = vld [vmem:[%s0 + $0x28] sm:$0xff]
  %v26 = vld [vmem:[%s0 + $0x30] sm:$0xff]
  %v27 = vld [vmem:[%s0 + $0x38] sm:$0xff]
  %v28 = vld [vmem:[%s0 + $0x40] sm:$0xff]
  %v29 = vld [vmem:[%s0 + $0x48] sm:$0xff]
  %v30 = vld [vmem:[%s0 + $0x50] sm:$0xff]
  %v31 = vld [vmem:[%s0 + $0x58] sm:$0xff]
  %v32 = vld [vmem:[%s0 + $0x60] sm:$0xff]
  %v33 = vld [vmem:[%s0 + $0x68] sm:$0xff]
  %v34 = vld [vmem:[%s0 + $0x70] sm:$0xff]
  %v35 = vld [vmem:[%s0 + $0x78] sm:$0xff]
  %v36 = vld [vmem:[%s0 + $0x80] sm:$0xff]
  %v37 = vld [vmem:[%s0 + $0x88] sm:$0xff]
  %v38 = vld [vmem:[%s0 + $0x90] sm:$0xff]
  %v39 = vld [vmem:[%s0 + $0x98] sm:$0xff]
  %v40 = vld [vmem:[%s0 + $0xa0] sm:$0xff]
  %v41 = vld [vmem:[%s0 + $0xa8] sm:$0xff]
  %v42 = vld [vmem:[%s0 + $0xb0] sm:$0xff]
  %v43 = vld [vmem:[%s0 + $0xb8] sm:$0xff]
  %v44 = vld [vmem:[%s0 + $0xc0] sm:$0xff]
  %v45 = vld [vmem:[%s0 + $0xc8] sm:$0xff]
  %v46 = vld [vmem:[%s0 + $0xd0] sm:$0xff]
  %v47 = vld [vmem:[%s0 + $0xd8] sm:$0xff]
  %v48 = vld [vmem:[%s0 + $0xe0] sm:$0xff]
  %v49 = vld [vmem:[%s0 + $0xe8] sm:$0xff]
  %v50 = vld [vmem:[%s0 + $0xf0] sm:$0xff]
  %v51 = vld [vmem:[%s0 + $0xf8] sm:$0xff]
  %v52 = vld [vmem:[%s0 + $0x100] sm:$0xff]
  %v53 = vld [vmem:[%s0 + $0x108] sm:$0xff]
  %v54 = vld [vmem:[%s0 + $0x110] sm:$0xff]
  %v55 = vld [vmem:[%s0 + $0x118] sm:$0xff]
  %v56 = vld [vmem:[%s0 + $0x120] sm:$0x3]
  %v57 = vld [vmem:[%s0 + $0x128] sm:$0x3]
  %v58 = vld [vmem:[%s0 + $0x130] sm:$0x3]
  %v59 = vld [vmem:[%s1] sm:$0xff]
  %v60 = vld [vmem:[%s1 + $0x8] sm:$0xff]
  %v61 = vld [vmem:[%s1 + $0x10] sm:$0xff]
  %v62 = vld [vmem:[%s1 + $0x18] sm:$0xff]
  %v63 = vld [vmem:[%s1 + $0x20] sm:$0xff]
  %v64 = vld [vmem:[%s1 + $0x28] sm:$0xff]
  %v65 = vld [vmem:[%s1 + $0x30] sm:$0xff]
  %v66 = vld [vmem:[%s1 + $0x38] sm:$0xff]
  %v67 = vld [vmem:[%s1 + $0x40] sm:$0xff]
  %v68 = vld [vmem:[%s1 + $0x48] sm:$0xff]
  %v69 = vld [vmem:[%s1 + $0x50] sm:$0xff]
  %v70 = vld [vmem:[%s1 + $0x58] sm:$0xff]
  %v71 = vld [vmem:[%s1 + $0x60] sm:$0xff]
  %v72 = vld [vmem:[%s1 + $0x68] sm:$0xff]
  %v73 = vld [vmem:[%s1 + $0x70] sm:$0xff]
  %v74 = vld [vmem:[%s1 + $0x78] sm:$0xff]
  %v75 = vld [vmem:[%s1 + $0x80] sm:$0xff]
  %v76 = vld [vmem:[%s1 + $0x88] sm:$0xff]
  %v77 = vld [vmem:[%s1 + $0x90] sm:$0xff]
  %v78 = vld [vmem:[%s1 + $0x98] sm:$0xff]
  %v79 = vld [vmem:[%s1 + $0xa0] sm:$0xff]
  %v80 = vld [vmem:[%s1 + $0xa8] sm:$0xff]
  %v81 = vld [vmem:[%s1 + $0xb0] sm:$0xff]
  %v82 = vld [vmem:[%s1 + $0xb8] sm:$0xff]
  %v83 = vld [vmem:[%s1 + $0xc0] sm:$0xff]
  %v84 = vld [vmem:[%s1 + $0xc8] sm:$0xff]
  %v85 = vld [vmem:[%s1 + $0xd0] sm:$0xff]
  %v86 = vld [vmem:[%s1 + $0xd8] sm:$0xff]
  %v87 = vld [vmem:[%s1 + $0xe0] sm:$0xff]
  %v88 = vld [vmem:[%s1 + $0xe8] sm:$0xff]
  %v89 = vld [vmem:[%s1 + $0xf0] sm:$0xff]
  %v90 = vld [vmem:[%s1 + $0xf8] sm:$0xff]
  %v91 = vld [vmem:[%s1 + $0x100] sm:$0xff]
  %v92 = vld [vmem:[%s1 + $0x108] sm:$0xff]
  %v93 = vld [vmem:[%s1 + $0x110] sm:$0xff]
  %v94 = vld [vmem:[%s1 + $0x118] sm:$0xff]
  %v95 = vld [vmem:[%s2] sm:$0x1]
  %v97 = vlaneseq
  %v98 = vshrl.u32 %v97, 7
  %v99 = vsub.s32 0, %v98
  %v100 = vrot.slane %v95, %v99
  %vm102 = vcmask 261120
  %v104 = vsel %vm102, %v22, 0
  %v107 = vsel %vm102, %v25, 0
  %v110 = vsel %vm102, %v28, 0
  %v113 = vsel %vm102, %v31, 0
  %v116 = vsel %vm102, %v34, 0
  %v119 = vsel %vm102, %v37, 0
  %v122 = vsel %vm102, %v40, 0
  %v125 = vsel %vm102, %v43, 0
  %v128 = vsel %vm102, %v46, 0
  %v131 = vsel %vm102, %v49, 0
  %v134 = vsel %vm102, %v52, 0
  %v137 = vsel %vm102, %v55, 0
  %v140 = vsel %vm102, %v58, 0
  %142 = vmatprep.subr.mxu0 0.0
  %143 = vmatpush1.msra.mxu0 %v59
  %144 = vmatprep.subr.mxu0 0.0
  %145 = vmatpush1.msra.mxu0 %v60
  %146 = vmatprep.subr.mxu0 0.0
  %147 = vmatpush1.msra.mxu0 %v61
  %148 = vmatprep.subr.mxu0 0.0
  %149 = vmatpush1.msra.mxu0 %v62
  %150 = vmatprep.subr.mxu0 0.0
  %151 = vmatpush1.msra.mxu0 %v63
  %152 = vmatprep.subr.mxu0 0.0
  %153 = vmatpush1.msra.mxu0 %v64
  %154 = vmatprep.subr.mxu0 0.0
  %155 = vmatpush1.msra.mxu0 %v65
  %156 = vmatprep.subr.mxu0 0.0
  %157 = vmatpush1.msra.mxu0 %v66
  %158 = vmatprep.subr.mxu0 0.0
  %159 = vmatpush1.msra.mxu0 %v67
  %160 = vmatprep.subr.mxu0 0.0
  %161 = vmatpush1.msra.mxu0 %v68
  %162 = vmatprep.subr.mxu0 0.0
  %163 = vmatpush1.msra.mxu0 %v69
  %164 = vmatprep.subr.mxu0 0.0
  %165 = vmatpush1.msra.mxu0 %v70
  %166 = vmatprep.subr.mxu0 0.0
  %167 = vmatpush1.msra.mxu0 %v71
  %168 = vmatprep.subr.mxu0 0.0
  %169 = vmatpush1.msra.mxu0 %v72
  %170 = vmatprep.subr.mxu0 0.0
  %171 = vmatpush1.msra.mxu0 %v73
  %172 = vmatprep.subr.mxu0 0.0
  %173 = vmatpush1.msra.mxu0 %v74
  %174 = vmatprep.subr.mxu0 0.0
  %175 = vmatpush1.msra.mxu0 %v75
  %176 = vmatprep.subr.mxu0 0.0
  %177 = vmatpush1.msra.mxu0 %v76
  %178 = vmatprep.subr.mxu0 0.0
  %179 = vmatpush1.msra.mxu0 %v77
  %180 = vmatprep.subr.mxu0 0.0
  %181 = vmatpush1.msra.mxu0 %v78
  %182 = vmatprep.subr.mxu0 0.0
  %183 = vmatpush1.msra.mxu0 %v79
  %184 = vmatprep.subr.mxu0 0.0
  %185 = vmatpush1.msra.mxu0 %v80
  %186 = vmatprep.subr.mxu0 0.0
  %187 = vmatpush1.msra.mxu0 %v81
  %188 = vmatprep.subr.mxu0 0.0
  %189 = vmatpush1.msra.mxu0 %v82
  %190 = vmatprep.subr.mxu0 0.0
  %191 = vmatpush1.msra.mxu0 %v83
  %192 = vmatprep.subr.mxu0 0.0
  %193 = vmatpush1.msra.mxu0 %v84
  %194 = vmatprep.subr.mxu0 0.0
  %195 = vmatpush1.msra.mxu0 %v85
  %196 = vmatprep.subr.mxu0 0.0
  %197 = vmatpush1.msra.mxu0 %v86
  %198 = vmatprep.subr.mxu0 0.0
  %199 = vmatpush1.msra.mxu0 %v87
  %200 = vmatprep.subr.mxu0 0.0
  %201 = vmatpush1.msra.mxu0 %v88
  %202 = vmatprep.subr.mxu0 0.0
  %203 = vmatpush1.msra.mxu0 %v89
  %204 = vmatprep.subr.mxu0 0.0
  %205 = vmatpush1.msra.mxu0 %v90
  %206 = vmatprep.mubr.f32.mxu0 %v21
  %207 = vmatmul.mubr.f32.gmra.mrb[0].mxu0 %v20
  %v208 = vpop.f32.mrb[0].mxu0
  %v209 = vadd.f32 %v100, %v208
  %v210 = vpop.f32.mrb[0].mxu0
  %211 = vmatprep.mubr.f32.mxu0 %v24
  %212 = vmatmul.mubr.f32.gmra.mrb[0].mxu0 %v23
  %v213 = vpop.f32.mrb[0].mxu0
  %v214 = vadd.f32 %v100, %v213
  %v215 = vpop.f32.mrb[0].mxu0
  %216 = vmatprep.mubr.f32.mxu0 %v27
  %217 = vmatmul.mubr.f32.gmra.mrb[0].mxu0 %v26
  %v218 = vpop.f32.mrb[0].mxu0
  %v219 = vadd.f32 %v100, %v218
  %v220 = vpop.f32.mrb[0].mxu0
  %221 = vmatprep.mubr.f32.mxu0 %v30
  %222 = vmatmul.mubr.f32.gmra.mrb[0].mxu0 %v29
  %v223 = vpop.f32.mrb[0].mxu0
  %v224 = vadd.f32 %v100, %v223
  %v225 = vpop.f32.mrb[0].mxu0
  %226 = vmatprep.mubr.f32.mxu0 %v33
  %227 = vmatmul.mubr.f32.gmra.mrb[0].mxu0 %v32
  %v228 = vpop.f32.mrb[0].mxu0
  %v229 = vadd.f32 %v100, %v228
  %v230 = vpop.f32.mrb[0].mxu0
  %231 = vmatprep.mubr.f32.mxu0 %v36
  %232 = vmatmul.mubr.f32.gmra.mrb[0].mxu0 %v35
  %v233 = vpop.f32.mrb[0].mxu0
  %v234 = vadd.f32 %v100, %v233
  %v235 = vpop.f32.mrb[0].mxu0
  %236 = vmatprep.mubr.f32.mxu0 %v39
  %237 = vmatmul.mubr.f32.gmra.mrb[0].mxu0 %v38
  %v238 = vpop.f32.mrb[0].mxu0
  %v239 = vadd.f32 %v100, %v238
  %v240 = vpop.f32.mrb[0].mxu0
  %241 = vmatprep.mubr.f32.mxu0 %v42
  %242 = vmatmul.mubr.f32.gmra.mrb[0].mxu0 %v41
  %v243 = vpop.f32.mrb[0].mxu0
  %v244 = vadd.f32 %v100, %v243
  %v245 = vpop.f32.mrb[0].mxu0
  %246 = vmatprep.mubr.f32.mxu0 %v45
  %247 = vmatmul.mubr.f32.gmra.mrb[0].mxu0 %v44
  %v248 = vpop.f32.mrb[0].mxu0
  %v249 = vadd.f32 %v100, %v248
  %v250 = vpop.f32.mrb[0].mxu0
  %251 = vmatprep.mubr.f32.mxu0 %v48
  %252 = vmatmul.mubr.f32.gmra.mrb[0].mxu0 %v47
  %v253 = vpop.f32.mrb[0].mxu0
  %v254 = vadd.f32 %v100, %v253
  %v255 = vpop.f32.mrb[0].mxu0
  %256 = vmatprep.mubr.f32.mxu0 %v51
  %257 = vmatmul.mubr.f32.gmra.mrb[0].mxu0 %v50
  %v258 = vpop.f32.mrb[0].mxu0
  %v259 = vadd.f32 %v100, %v258
  %v260 = vpop.f32.mrb[0].mxu0
  %261 = vmatprep.mubr.f32.mxu0 %v54
  %262 = vmatmul.mubr.f32.gmra.mrb[0].mxu0 %v53
  %v263 = vpop.f32.mrb[0].mxu0
  %v264 = vadd.f32 %v100, %v263
  %v265 = vpop.f32.mrb[0].mxu0
  %266 = vmatprep.mubr.f32.mxu0 %v57
  %267 = vmatmul.mubr.f32.gmra.mrb[0].mxu0 %v56
  %v268 = vpop.f32.mrb[0].mxu0
  %v269 = vadd.f32 %v100, %v268
  %v270 = vpop.f32.mrb[0].mxu0
  %271 = vdwg.mxu0
  %272 = vmatprep.subr.mxu0 0.0
  %273 = vmatpush1.msra.mxu0 %v91
  %274 = vmatprep.subr.mxu0 0.0
  %275 = vmatpush1.msra.mxu0 %v92
  %276 = vmatprep.subr.mxu0 0.0
  %277 = vmatpush1.msra.mxu0 %v93
  %278 = vmatprep.subr.mxu0 0.0
  %279 = vmatpush1.msra.mxu0 %v94
  %280 = vmatprep.subr.mxu0 0.0
  %281 = vmatpush1.msra.mxu0 0.0
  %282 = vmatprep.subr.mxu0 0.0
  %283 = vmatpush1.msra.mxu0 0.0
  %284 = vmatprep.subr.mxu0 0.0
  %285 = vmatpush1.msra.mxu0 0.0
  %286 = vmatprep.subr.mxu0 0.0
  %287 = vmatpush1.msra.mxu0 0.0
  %288 = vmatprep.subr.mxu0 0.0
  %289 = vmatpush1.msra.mxu0 0.0
  %290 = vmatprep.subr.mxu0 0.0
  %291 = vmatpush1.msra.mxu0 0.0
  %292 = vmatprep.subr.mxu0 0.0
  %293 = vmatpush1.msra.mxu0 0.0
  %294 = vmatprep.subr.mxu0 0.0
  %295 = vmatpush1.msra.mxu0 0.0
  %296 = vmatprep.subr.mxu0 0.0
  %297 = vmatpush1.msra.mxu0 0.0
  %298 = vmatprep.subr.mxu0 0.0
  %299 = vmatpush1.msra.mxu0 0.0
  %300 = vmatprep.subr.mxu0 0.0
  %301 = vmatpush1.msra.mxu0 0.0
  %302 = vmatprep.subr.mxu0 0.0
  %303 = vmatpush1.msra.mxu0 0.0
  %304 = vmatprep.subr.mxu0 0.0
  %305 = vmatpush1.msra.mxu0 0.0
  %306 = vmatprep.subr.mxu0 0.0
  %307 = vmatpush1.msra.mxu0 0.0
  %308 = vmatprep.subr.mxu0 0.0
  %309 = vmatpush1.msra.mxu0 0.0
  %310 = vmatprep.subr.mxu0 0.0
  %311 = vmatpush1.msra.mxu0 0.0
  %312 = vmatprep.subr.mxu0 0.0
  %313 = vmatpush1.msra.mxu0 0.0
  %314 = vmatprep.subr.mxu0 0.0
  %315 = vmatpush1.msra.mxu0 0.0
  %316 = vmatprep.subr.mxu0 0.0
  %317 = vmatpush1.msra.mxu0 0.0
  %318 = vmatprep.subr.mxu0 0.0
  %319 = vmatpush1.msra.mxu0 0.0
  %320 = vmatprep.subr.mxu0 0.0
  %321 = vmatpush1.msra.mxu0 0.0
  %322 = vmatprep.subr.mxu0 0.0
  %323 = vmatpush1.msra.mxu0 0.0
  %324 = vmatprep.subr.mxu0 0.0
  %325 = vmatpush1.msra.mxu0 0.0
  %326 = vmatprep.subr.mxu0 0.0
  %327 = vmatpush1.msra.mxu0 0.0
  %328 = vmatprep.subr.mxu0 0.0
  %329 = vmatpush1.msra.mxu0 0.0
  %330 = vmatprep.subr.mxu0 0.0
  %331 = vmatpush1.msra.mxu0 0.0
  %332 = vmatprep.subr.mxu0 0.0
  %333 = vmatpush1.msra.mxu0 0.0
  %334 = vmatprep.subr.mxu0 0.0
  %335 = vmatpush1.msra.mxu0 0.0
  %336 = vmatprep.mubr.f32.mxu0 0.0
  %337 = vmatmul.mubr.f32.gmra.mrb[0].mxu0 %v104
  %v338 = vpop.f32.mrb[0].mxu0
  %v339 = vadd.f32 %v209, %v338
  %v340 = vpop.f32.mrb[0].mxu0
  %341 = vmatprep.mubr.f32.mxu0 0.0
  %342 = vmatmul.mubr.f32.gmra.mrb[0].mxu0 %v107
  %v343 = vpop.f32.mrb[0].mxu0
  %v344 = vadd.f32 %v214, %v343
  %v345 = vpop.f32.mrb[0].mxu0
  %346 = vmatprep.mubr.f32.mxu0 0.0
  %347 = vmatmul.mubr.f32.gmra.mrb[0].mxu0 %v110
  %v348 = vpop.f32.mrb[0].mxu0
  %v349 = vadd.f32 %v219, %v348
  %v350 = vpop.f32.mrb[0].mxu0
  %351 = vmatprep.mubr.f32.mxu0 0.0
  %352 = vmatmul.mubr.f32.gmra.mrb[0].mxu0 %v113
  %v353 = vpop.f32.mrb[0].mxu0
  %v354 = vadd.f32 %v224, %v353
  %v355 = vpop.f32.mrb[0].mxu0
  %356 = vmatprep.mubr.f32.mxu0 0.0
  %357 = vmatmul.mubr.f32.gmra.mrb[0].mxu0 %v116
  %v358 = vpop.f32.mrb[0].mxu0
  %v359 = vadd.f32 %v229, %v358
  %v360 = vpop.f32.mrb[0].mxu0
  %361 = vmatprep.mubr.f32.mxu0 0.0
  %362 = vmatmul.mubr.f32.gmra.mrb[0].mxu0 %v119
  %v363 = vpop.f32.mrb[0].mxu0
  %v364 = vadd.f32 %v234, %v363
  %v365 = vpop.f32.mrb[0].mxu0
  %366 = vmatprep.mubr.f32.mxu0 0.0
  %367 = vmatmul.mubr.f32.gmra.mrb[0].mxu0 %v122
  %v368 = vpop.f32.mrb[0].mxu0
  %v369 = vadd.f32 %v239, %v368
  %v370 = vpop.f32.mrb[0].mxu0
  %371 = vmatprep.mubr.f32.mxu0 0.0
  %372 = vmatmul.mubr.f32.gmra.mrb[0].mxu0 %v125
  %v373 = vpop.f32.mrb[0].mxu0
  %v374 = vadd.f32 %v244, %v373
  %v375 = vpop.f32.mrb[0].mxu0
  %376 = vmatprep.mubr.f32.mxu0 0.0
  %377 = vmatmul.mubr.f32.gmra.mrb[0].mxu0 %v128
  %v378 = vpop.f32.mrb[0].mxu0
  %v379 = vadd.f32 %v249, %v378
  %v380 = vpop.f32.mrb[0].mxu0
  %381 = vmatprep.mubr.f32.mxu0 0.0
  %382 = vmatmul.mubr.f32.gmra.mrb[0].mxu0 %v131
  %v383 = vpop.f32.mrb[0].mxu0
  %v384 = vadd.f32 %v254, %v383
  %v385 = vpop.f32.mrb[0].mxu0
  %386 = vmatprep.mubr.f32.mxu0 0.0
  %387 = vmatmul.mubr.f32.gmra.mrb[0].mxu0 %v134
  %v388 = vpop.f32.mrb[0].mxu0
  %v389 = vadd.f32 %v259, %v388
  %v390 = vpop.f32.mrb[0].mxu0
  %391 = vmatprep.mubr.f32.mxu0 0.0
  %392 = vmatmul.mubr.f32.gmra.mrb[0].mxu0 %v137
  %v393 = vpop.f32.mrb[0].mxu0
  %v394 = vadd.f32 %v264, %v393
  %v395 = vpop.f32.mrb[0].mxu0
  %396 = vmatprep.mubr.f32.mxu0 0.0
  %397 = vmatmul.mubr.f32.gmra.mrb[0].mxu0 %v140
  %v398 = vpop.f32.mrb[0].mxu0
  %v399 = vadd.f32 %v269, %v398
  %v400 = vpop.f32.mrb[0].mxu0
  %401 = vdwg.mxu0
  %vm402 = vcmask 130048
  %v403 = vsel %vm402, %v339, 0.0
  %v404 = vsel %vm402, %v344, 0.0
  %v405 = vadd.f32 %v403, %v404
  %v406 = vsel %vm402, %v349, 0.0
  %v407 = vadd.f32 %v405, %v406
  %v408 = vsel %vm402, %v354, 0.0
  %v409 = vadd.f32 %v407, %v408
  %v410 = vsel %vm402, %v359, 0.0
  %v411 = vadd.f32 %v409, %v410
  %v412 = vsel %vm402, %v364, 0.0
  %v413 = vadd.f32 %v411, %v412
  %v414 = vsel %vm402, %v369, 0.0
  %v415 = vadd.f32 %v413, %v414
  %v416 = vsel %vm402, %v374, 0.0
  %v417 = vadd.f32 %v415, %v416
  %v418 = vsel %vm402, %v379, 0.0
  %v419 = vadd.f32 %v417, %v418
  %v420 = vsel %vm402, %v384, 0.0
  %v421 = vadd.f32 %v419, %v420
  %v422 = vsel %vm402, %v389, 0.0
  %v423 = vadd.f32 %v421, %v422
  %v424 = vsel %vm402, %v394, 0.0
  %v425 = vadd.f32 %v423, %v424
  %vm426 = vcmask 123904
  %v427 = vsel %vm426, %v399, 0.0
  %v428 = vadd.f32 %v425, %v427
  %v429 = vrot.slane %v428, 4
  %v430 = vadd.f32 %v428, %v429
  %v431 = vrot.slane %v430, 2
  %v432 = vadd.f32 %v430, %v431
  %v433 = vrot.slane %v432, 1
  %v434 = vadd.f32 %v432, %v433
  %v435 = vrcp.pop 98.0
  %v436 = vmul.f32 %v434, %v435
  %v437 = vsub.f32 %v339, %v436
  %v438 = vsub.f32 %v344, %v436
  %v439 = vsub.f32 %v349, %v436
  %v440 = vsub.f32 %v354, %v436
  %v441 = vsub.f32 %v359, %v436
  %v442 = vsub.f32 %v364, %v436
  %v443 = vsub.f32 %v369, %v436
  %v444 = vsub.f32 %v374, %v436
  %v445 = vsub.f32 %v379, %v436
  %v446 = vsub.f32 %v384, %v436
  %v447 = vsub.f32 %v389, %v436
  %v448 = vsub.f32 %v394, %v436
  %v449 = vsub.f32 %v399, %v436
  %v450 = vmul.f32 %v437, %v437
  %v451 = vmul.f32 %v438, %v438
  %v452 = vmul.f32 %v439, %v439
  %v453 = vmul.f32 %v440, %v440
  %v454 = vmul.f32 %v441, %v441
  %v455 = vmul.f32 %v442, %v442
  %v456 = vmul.f32 %v443, %v443
  %v457 = vmul.f32 %v444, %v444
  %v458 = vmul.f32 %v445, %v445
  %v459 = vmul.f32 %v446, %v446
  %v460 = vmul.f32 %v447, %v447
  %v461 = vmul.f32 %v448, %v448
  %v462 = vmul.f32 %v449, %v449
  %v463 = vsel %vm402, %v450, 0.0
  %v464 = vsel %vm402, %v451, 0.0
  %v465 = vadd.f32 %v463, %v464
  %v466 = vsel %vm402, %v452, 0.0
  %v467 = vadd.f32 %v465, %v466
  %v468 = vsel %vm402, %v453, 0.0
  %v469 = vadd.f32 %v467, %v468
  %v470 = vsel %vm402, %v454, 0.0
  %v471 = vadd.f32 %v469, %v470
  %v472 = vsel %vm402, %v455, 0.0
  %v473 = vadd.f32 %v471, %v472
  %v474 = vsel %vm402, %v456, 0.0
  %v475 = vadd.f32 %v473, %v474
  %v476 = vsel %vm402, %v457, 0.0
  %v477 = vadd.f32 %v475, %v476
  %v478 = vsel %vm402, %v458, 0.0
  %v479 = vadd.f32 %v477, %v478
  %v480 = vsel %vm402, %v459, 0.0
  %v481 = vadd.f32 %v479, %v480
  %v482 = vsel %vm402, %v460, 0.0
  %v483 = vadd.f32 %v481, %v482
  %v484 = vsel %vm402, %v461, 0.0
  %v485 = vadd.f32 %v483, %v484
  %v486 = vsel %vm426, %v462, 0.0
  %v487 = vadd.f32 %v485, %v486
  %v488 = vrot.slane %v487, 4
  %v489 = vadd.f32 %v487, %v488
  %v490 = vrot.slane %v489, 2
  %v491 = vadd.f32 %v489, %v490
  %v492 = vrot.slane %v491, 1
  %v493 = vadd.f32 %v491, %v492
  %v494 = vmul.f32 %v493, %v435
  %v495 = vld [vmem:[%s3] sm:$0x1]
  %v496 = vadd.f32 %v494, 1e-05
  %v497 = vrsqrt.pop %v496
  %v498 = vmul.f32 %v495, %v497
  %v499 = vld [vmem:[%s4] sm:$0x1]
  %v500 = vmul.f32 %v436, %v498
  %v501 = vsub.f32 %v499, %v500
  %v503 = vlaneseq
  %v504 = vshrl.u32 %v503, 7
  %v505 = vsub.s32 0, %v504
  %v506 = vrot.slane %v498, %v505
  %v508 = vmul.f32 %v339, %v506
  %v509 = vmul.f32 %v344, %v506
  %v510 = vmul.f32 %v349, %v506
  %v511 = vmul.f32 %v354, %v506
  %v512 = vmul.f32 %v359, %v506
  %v513 = vmul.f32 %v364, %v506
  %v514 = vmul.f32 %v369, %v506
  %v515 = vmul.f32 %v374, %v506
  %v516 = vmul.f32 %v379, %v506
  %v517 = vmul.f32 %v384, %v506
  %v518 = vmul.f32 %v389, %v506
  %v519 = vmul.f32 %v394, %v506
  %v520 = vmul.f32 %v399, %v506
  %v522 = vlaneseq
  %v523 = vshrl.u32 %v522, 7
  %v524 = vsub.s32 0, %v523
  %v525 = vrot.slane %v501, %v524
  %v527 = vadd.f32 %v508, %v525
  %v528 = vadd.f32 %v509, %v525
  %v529 = vadd.f32 %v510, %v525
  %v530 = vadd.f32 %v511, %v525
  %v531 = vadd.f32 %v512, %v525
  %v532 = vadd.f32 %v513, %v525
  %v533 = vadd.f32 %v514, %v525
  %v534 = vadd.f32 %v515, %v525
  %v535 = vadd.f32 %v516, %v525
  %v536 = vadd.f32 %v517, %v525
  %v537 = vadd.f32 %v518, %v525
  %v538 = vadd.f32 %v519, %v525
  %v539 = vadd.f32 %v520, %v525
  %v540 = vmax.f32 %v527, 0.0
  %v541 = vmax.f32 %v528, 0.0
  %v542 = vmax.f32 %v529, 0.0
  %v543 = vmax.f32 %v530, 0.0
  %v544 = vmax.f32 %v531, 0.0
  %v545 = vmax.f32 %v532, 0.0
  %v546 = vmax.f32 %v533, 0.0
  %v547 = vmax.f32 %v534, 0.0
  %v548 = vmax.f32 %v535, 0.0
  %v549 = vmax.f32 %v536, 0.0
  %v550 = vmax.f32 %v537, 0.0
  %v551 = vmax.f32 %v538, 0.0
  %v552 = vmax.f32 %v539, 0.0
  %553 = vst.msk [vmem:[%s5] sm:$0xff] %vm402, %v540
  %554 = vst.msk [vmem:[%s5 + $0x8] sm:$0xff] %vm402, %v541
  %555 = vst.msk [vmem:[%s5 + $0x10] sm:$0xff] %vm402, %v542
  %556 = vst.msk [vmem:[%s5 + $0x18] sm:$0xff] %vm402, %v543
  %557 = vst.msk [vmem:[%s5 + $0x20] sm:$0xff] %vm402, %v544
  %558 = vst.msk [vmem:[%s5 + $0x28] sm:$0xff] %vm402, %v545
  %559 = vst.msk [vmem:[%s5 + $0x30] sm:$0xff] %vm402, %v546
  %560 = vst.msk [vmem:[%s5 + $0x38] sm:$0xff] %vm402, %v547
  %561 = vst.msk [vmem:[%s5 + $0x40] sm:$0xff] %vm402, %v548
  %562 = vst.msk [vmem:[%s5 + $0x48] sm:$0xff] %vm402, %v549
  %563 = vst.msk [vmem:[%s5 + $0x50] sm:$0xff] %vm402, %v550
  %564 = vst.msk [vmem:[%s5 + $0x58] sm:$0xff] %vm402, %v551
  %565 = vst.msk [vmem:[%s5 + $0x60] sm:$0x3] %vm426, %v552
  // Predicated region
  $region22: #{vae_forward.8} parent=0 // pred_check
    _
  $region23: #{vae_forward.8} parent=0 // pred_check_branch
    %567 = sbr.rel (0) target = $region25
  $region24: #{vae_forward.8} parent=0 // pred_region
    _
  $region25: #{vae_forward.8} parent=0 // pred_fallthru
    _
  // Predicated region
  $region26: #{vae_forward.8} parent=0 // pred_check
    _
  $region27: #{vae_forward.8} parent=0 // pred_check_branch
    %569 = sbr.rel (0) target = $region29
  $region28: #{vae_forward.8} parent=0 // pred_region
    _
  $region29: #{vae_forward.8} parent=0 // pred_fallthru
    _

// kernel: vae_forward.9
$region0: #{vae_forward.9}
  #allocation0 [shape = 'u32[]', space=smem, size = 0x4, offset = 0x4, fixed_abs, tag = 'smem constant byte address 0x4 - core index']
  #allocation1 [shape = 'u32[144,128]{1,0:T(1,128)}', space=vmem, size = 0x12000, scoped, tag = 'internal scratch']
  %s0 = inlined_call_operand.vmem [shape: f32[2,784], index: 0, kind: input, shape index: {}]
  %s1 = inlined_call_operand.vmem [shape: f32[784,3], index: 1, kind: input, shape index: {}]
  %s2 = inlined_call_operand.vmem [shape: f32[1,3], index: 2, kind: input, shape index: {}]
  %s3 = inlined_call_operand.vmem [shape: f32[784,3], index: 3, kind: input, shape index: {}]
  %s4 = inlined_call_operand.vmem [shape: f32[1,3], index: 4, kind: input, shape index: {}]
  %s5 = inlined_call_operand.vmem [shape: f32[2,3], index: 5, kind: input, shape index: {}]
  %s6 = inlined_call_operand.vmem [shape: f32[3,784], index: 6, kind: input, shape index: {}]
  %s7 = inlined_call_operand.vmem [shape: f32[1,784], index: 7, kind: input, shape index: {}]
  %s8 = inlined_call_operand.hbm [shape: f32[2,3], index: 8, kind: output, shape index: {0}]
  %s9 = inlined_call_operand.hbm [shape: f32[2,3], index: 9, kind: output, shape index: {1}]
  %s10 = inlined_call_operand.hbm [shape: f32[2,3], index: 10, kind: output, shape index: {2}]
  %s11 = inlined_call_operand.vmem [shape: f32[2,784], index: 11, kind: output, shape index: {3}]
  %12 = xla_tuple %s8, %s9, %s10, %s11
  %s13 = sld [smem:[#allocation0]]
  $region66: #{vae_forward.9} parent=0
    _
  %s15 = ssub.s32 1, %s13
  %s16 = scalar_select 0, %s15, %s13
  $region1: #{vae_forward.9} parent=0
    #allocation2 [shape = 'u8[1024]{0}', space=vmem, size = 0x400, scoped, tag = 'output window, operand 0, single buffered']
    #allocation3 [shape = 's32[1]{0}', space=sflag, size = 0x4, scoped, tag = 'scoped memory for vae_forward.9']
    #allocation4 [shape = 'u8[1024]{0}', space=vmem, size = 0x400, scoped, tag = 'output window, operand 1, single buffered']
    #allocation5 [shape = 's32[1]{0}', space=sflag, size = 0x4, scoped, tag = 'scoped memory for vae_forward.9']
    #allocation6 [shape = 'u8[1024]{0}', space=vmem, size = 0x400, scoped, tag = 'output window, operand 2, single buffered']
    %17 = vsyncpa [#allocation3], 0
    %18 = vsyncpa [#allocation5], 0
    // Predicated region
    $region2: #{vae_forward.9} parent=1 // pred_check
      _
    $region3: #{vae_forward.9} parent=1 // pred_check_branch
      %20 = sbr.rel (0) target = $region5
    $region4: #{vae_forward.9} parent=1 // pred_region
      _
    $region5: #{vae_forward.9} parent=1 // pred_fallthru
      _
    // Predicated region
    $region6: #{vae_forward.9} parent=1 // pred_check
      _
    $region7: #{vae_forward.9} parent=1 // pred_check_branch
      %22 = sbr.rel (0) target = $region9
    $region8: #{vae_forward.9} parent=1 // pred_region
      _
    $region9: #{vae_forward.9} parent=1 // pred_fallthru
      _
    // Predicated region
    $region10: #{vae_forward.9} parent=1 // pred_check
      _
    $region11: #{vae_forward.9} parent=1 // pred_check_branch
      %24 = sbr.rel (0) target = $region13
    $region12: #{vae_forward.9} parent=1 // pred_region
      _
    $region13: #{vae_forward.9} parent=1 // pred_fallthru
      _
    // Predicated region
    $region14: #{vae_forward.9} parent=1 // pred_check
      _
    $region15: #{vae_forward.9} parent=1 // pred_check_branch
      %26 = sbr.rel (0) target = $region17
    $region16: #{vae_forward.9} parent=1 // pred_region
      _
    $region17: #{vae_forward.9} parent=1 // pred_fallthru
      _
    // Predicated region
    $region18: #{vae_forward.9} parent=1 // pred_check
      _
    $region19: #{vae_forward.9} parent=1 // pred_check_branch
      %28 = sbr.rel (0) target = $region21
    $region20: #{vae_forward.9} parent=1 // pred_region
      _
    $region21: #{vae_forward.9} parent=1 // pred_fallthru
      _
    // Predicated region
    $region22: #{vae_forward.9} parent=1 // pred_check
      _
    $region23: #{vae_forward.9} parent=1 // pred_check_branch
      %30 = sbr.rel (0) target = $region25
    $region24: #{vae_forward.9} parent=1 // pred_region
      _
    $region25: #{vae_forward.9} parent=1 // pred_fallthru
      _
    // Predicated region
    $region26: #{vae_forward.9} parent=1 // pred_check
      _
    $region27: #{vae_forward.9} parent=1 // pred_check_branch
      %32 = sbr.rel (0) target = $region29
    $region28: #{vae_forward.9} parent=1 // pred_region
      _
    $region29: #{vae_forward.9} parent=1 // pred_fallthru
      _
    // Predicated region
    $region30: #{vae_forward.9} parent=1 // pred_check
      _
    $region31: #{vae_forward.9} parent=1 // pred_check_branch
      %34 = sbr.rel (0) target = $region33
    $region32: #{vae_forward.9} parent=1 // pred_region
      _
    $region33: #{vae_forward.9} parent=1 // pred_fallthru
      _
    %v35 = vld [vmem:[%s0] sm:$0xff]
    %v36 = vld [vmem:[%s0 + $0x8] sm:$0x3f]
    %v37 = vld [vmem:[%s1] sm:$0xff]
    %v38 = vld [vmem:[%s1 + $0x8] sm:$0xff]
    %v39 = vld [vmem:[%s1 + $0x10] sm:$0xff]
    %v40 = vld [vmem:[%s1 + $0x18] sm:$0xff]
    %v41 = vld [vmem:[%s1 + $0x20] sm:$0xff]
    %v42 = vld [vmem:[%s1 + $0x28] sm:$0xff]
    %v43 = vld [vmem:[%s1 + $0x30] sm:$0xff]
    %v44 = vld [vmem:[%s1 + $0x38] sm:$0xff]
    %v45 = vld [vmem:[%s1 + $0x40] sm:$0xff]
    %v46 = vld [vmem:[%s1 + $0x48] sm:$0xff]
    %v47 = vld [vmem:[%s1 + $0x50] sm:$0xff]
    %v48 = vld [vmem:[%s1 + $0x58] sm:$0xff]
    %v49 = vld [vmem:[%s1 + $0x60] sm:$0xff]
    %v50 = vld [vmem:[%s1 + $0x68] sm:$0xff]
    %v51 = vld [vmem:[%s1 + $0x70] sm:$0xff]
    %v52 = vld [vmem:[%s1 + $0x78] sm:$0xff]
    %v53 = vld [vmem:[%s1 + $0x80] sm:$0xff]
    %v54 = vld [vmem:[%s1 + $0x88] sm:$0xff]
    %v55 = vld [vmem:[%s1 + $0x90] sm:$0xff]
    %v56 = vld [vmem:[%s1 + $0x98] sm:$0xff]
    %v57 = vld [vmem:[%s1 + $0xa0] sm:$0xff]
    %v58 = vld [vmem:[%s1 + $0xa8] sm:$0xff]
    %v59 = vld [vmem:[%s1 + $0xb0] sm:$0xff]
    %v60 = vld [vmem:[%s1 + $0xb8] sm:$0xff]
    %v61 = vld [vmem:[%s1 + $0xc0] sm:$0xff]
    %v62 = vld [vmem:[%s1 + $0xc8] sm:$0xff]
    %v63 = vld [vmem:[%s1 + $0xd0] sm:$0xff]
    %v64 = vld [vmem:[%s1 + $0xd8] sm:$0xff]
    %v65 = vld [vmem:[%s1 + $0xe0] sm:$0xff]
    %v66 = vld [vmem:[%s1 + $0xe8] sm:$0xff]
    %v67 = vld [vmem:[%s1 + $0xf0] sm:$0xff]
    %v68 = vld [vmem:[%s1 + $0xf8] sm:$0xff]
    %v69 = vld [vmem:[%s1 + $0x100] sm:$0xff]
    %v70 = vld [vmem:[%s1 + $0x108] sm:$0xff]
    %v71 = vld [vmem:[%s1 + $0x110] sm:$0xff]
    %v72 = vld [vmem:[%s1 + $0x118] sm:$0xff]
    %v73 = vld [vmem:[%s1 + $0x120] sm:$0xff]
    %v74 = vld [vmem:[%s1 + $0x128] sm:$0xff]
    %v75 = vld [vmem:[%s1 + $0x130] sm:$0xff]
    %v76 = vld [vmem:[%s1 + $0x138] sm:$0xff]
    %v77 = vld [vmem:[%s1 + $0x140] sm:$0xff]
    %v78 = vld [vmem:[%s1 + $0x148] sm:$0xff]
    %v79 = vld [vmem:[%s1 + $0x150] sm:$0xff]
    %v80 = vld [vmem:[%s1 + $0x158] sm:$0xff]
    %v81 = vld [vmem:[%s1 + $0x160] sm:$0xff]
    %v82 = vld [vmem:[%s1 + $0x168] sm:$0xff]
    %v83 = vld [vmem:[%s1 + $0x170] sm:$0xff]
    %v84 = vld [vmem:[%s1 + $0x178] sm:$0xff]
    %v85 = vld [vmem:[%s1 + $0x180] sm:$0xff]
    %v86 = vld [vmem:[%s1 + $0x188] sm:$0xff]
    %v87 = vld [vmem:[%s1 + $0x190] sm:$0xff]
    %v88 = vld [vmem:[%s1 + $0x198] sm:$0xff]
    %v89 = vld [vmem:[%s1 + $0x1a0] sm:$0xff]
    %v90 = vld [vmem:[%s1 + $0x1a8] sm:$0xff]
    %v91 = vld [vmem:[%s1 + $0x1b0] sm:$0xff]
    %v92 = vld [vmem:[%s1 + $0x1b8] sm:$0xff]
    %v93 = vld [vmem:[%s1 + $0x1c0] sm:$0xff]
    %v94 = vld [vmem:[%s1 + $0x1c8] sm:$0xff]
    %v95 = vld [vmem:[%s1 + $0x1d0] sm:$0xff]
    %v96 = vld [vmem:[%s1 + $0x1d8] sm:$0xff]
    %v97 = vld [vmem:[%s1 + $0x1e0] sm:$0xff]
    %v98 = vld [vmem:[%s1 + $0x1e8] sm:$0xff]
    %v99 = vld [vmem:[%s1 + $0x1f0] sm:$0xff]
    %v100 = vld [vmem:[%s1 + $0x1f8] sm:$0xff]
    %v101 = vld [vmem:[%s1 + $0x200] sm:$0xff]
    %v102 = vld [vmem:[%s1 + $0x208] sm:$0xff]
    %v103 = vld [vmem:[%s1 + $0x210] sm:$0xff]
    %v104 = vld [vmem:[%s1 + $0x218] sm:$0xff]
    %v105 = vld [vmem:[%s1 + $0x220] sm:$0xff]
    %v106 = vld [vmem:[%s1 + $0x228] sm:$0xff]
    %v107 = vld [vmem:[%s1 + $0x230] sm:$0xff]
    %v108 = vld [vmem:[%s1 + $0x238] sm:$0xff]
    %v109 = vld [vmem:[%s1 + $0x240] sm:$0xff]
    %v110 = vld [vmem:[%s1 + $0x248] sm:$0xff]
    %v111 = vld [vmem:[%s1 + $0x250] sm:$0xff]
    %v112 = vld [vmem:[%s1 + $0x258] sm:$0xff]
    %v113 = vld [vmem:[%s1 + $0x260] sm:$0xff]
    %v114 = vld [vmem:[%s1 + $0x268] sm:$0xff]
    %v115 = vld [vmem:[%s1 + $0x270] sm:$0xff]
    %v116 = vld [vmem:[%s1 + $0x278] sm:$0xff]
    %v117 = vld [vmem:[%s1 + $0x280] sm:$0xff]
    %v118 = vld [vmem:[%s1 + $0x288] sm:$0xff]
    %v119 = vld [vmem:[%s1 + $0x290] sm:$0xff]
    %v120 = vld [vmem:[%s1 + $0x298] sm:$0xff]
    %v121 = vld [vmem:[%s1 + $0x2a0] sm:$0xff]
    %v122 = vld [vmem:[%s1 + $0x2a8] sm:$0xff]
    %v123 = vld [vmem:[%s1 + $0x2b0] sm:$0xff]
    %v124 = vld [vmem:[%s1 + $0x2b8] sm:$0xff]
    %v125 = vld [vmem:[%s1 + $0x2c0] sm:$0xff]
    %v126 = vld [vmem:[%s1 + $0x2c8] sm:$0xff]
    %v127 = vld [vmem:[%s1 + $0x2d0] sm:$0xff]
    %v128 = vld [vmem:[%s1 + $0x2d8] sm:$0xff]
    %v129 = vld [vmem:[%s1 + $0x2e0] sm:$0xff]
    %v130 = vld [vmem:[%s1 + $0x2e8] sm:$0xff]
    %v131 = vld [vmem:[%s1 + $0x2f0] sm:$0xff]
    %v132 = vld [vmem:[%s1 + $0x2f8] sm:$0xff]
    %v133 = vld [vmem:[%s1 + $0x300] sm:$0xff]
    %v134 = vld [vmem:[%s1 + $0x308] sm:$0xff]
    %v135 = vld [vmem:[%s2] sm:$0x1]
    %v137 = vlaneseq
    %v138 = vshrl.u32 %v137, 7
    %v139 = vsub.s32 0, %v138
    %v140 = vrot.slane %v135, %v139
    %v144 = vcombine.high %v35, %v35
    %v146 = vunpack.c.l.s4 1983009808
    %v147 = vunpack.c.0.s8 %v146
    %v148 = vlaneseq
    %v149 = vshrl.u32 %v148, 7
    %v150 = vsub.s32 %v147, %v149
    %v151 = vrot.slane %v35, %v150
    %v153 = vunpack.c.l.s4 1983009808
    %v154 = vunpack.c.0.s8 %v153
    %v155 = vlaneseq
    %v156 = vshrl.u32 %v155, 7
    %v157 = vsub.s32 %v154, %v156
    %v158 = vrot.slane %v144, %v157
    %v159 = vcombine.high %v151, %v151
    %v160 = vcombine.high %v158, %v158
    %v161 = vcombine.high %v36, %v36
    %v163 = vunpack.c.l.s4 1983009808
    %v164 = vunpack.c.0.s8 %v163
    %v165 = vlaneseq
    %v166 = vshrl.u32 %v165, 7
    %v167 = vsub.s32 %v164, %v166
    %v168 = vrot.slane %v36, %v167
    %v170 = vunpack.c.l.s4 1983009808
    %v171 = vunpack.c.0.s8 %v170
    %v172 = vlaneseq
    %v173 = vshrl.u32 %v172, 7
    %v174 = vsub.s32 %v171, %v173
    %v175 = vrot.slane %v161, %v174
    %v176 = vcombine.high %v168, %v168
    %vm183 = vcmask 130048
    %v184 = vsel %vm183, %v175, 0
    %186 = vmatprep.subr.mxu0 0.0
    %187 = vmatpush1.msra.mxu0 %v37
    %188 = vmatprep.subr.mxu0 0.0
    %189 = vmatpush1.msra.mxu0 %v38
    %190 = vmatprep.subr.mxu0 0.0
    %191 = vmatpush1.msra.mxu0 %v39
    %192 = vmatprep.subr.mxu0 0.0
    %193 = vmatpush1.msra.mxu0 %v40
    %194 = vmatprep.subr.mxu0 0.0
    %195 = vmatpush1.msra.mxu0 %v41
    %196 = vmatprep.subr.mxu0 0.0
    %197 = vmatpush1.msra.mxu0 %v42
    %198 = vmatprep.subr.mxu0 0.0
    %199 = vmatpush1.msra.mxu0 %v43
    %200 = vmatprep.subr.mxu0 0.0
    %201 = vmatpush1.msra.mxu0 %v44
    %202 = vmatprep.subr.mxu0 0.0
    %203 = vmatpush1.msra.mxu0 %v45
    %204 = vmatprep.subr.mxu0 0.0
    %205 = vmatpush1.msra.mxu0 %v46
    %206 = vmatprep.subr.mxu0 0.0
    %207 = vmatpush1.msra.mxu0 %v47
    %208 = vmatprep.subr.mxu0 0.0
    %209 = vmatpush1.msra.mxu0 %v48
    %210 = vmatprep.subr.mxu0 0.0
    %211 = vmatpush1.msra.mxu0 %v49
    %212 = vmatprep.subr.mxu0 0.0
    %213 = vmatpush1.msra.mxu0 %v50
    %214 = vmatprep.subr.mxu0 0.0
    %215 = vmatpush1.msra.mxu0 %v51
    %216 = vmatprep.subr.mxu0 0.0
    %217 = vmatpush1.msra.mxu0 %v52
    %218 = vmatprep.subr.mxu0 0.0
    %219 = vmatpush1.msra.mxu0 %v53
    %220 = vmatprep.subr.mxu0 0.0
    %221 = vmatpush1.msra.mxu0 %v54
    %222 = vmatprep.subr.mxu0 0.0
    %223 = vmatpush1.msra.mxu0 %v55
    %224 = vmatprep.subr.mxu0 0.0
    %225 = vmatpush1.msra.mxu0 %v56
    %226 = vmatprep.subr.mxu0 0.0
    %227 = vmatpush1.msra.mxu0 %v57
    %228 = vmatprep.subr.mxu0 0.0
    %229 = vmatpush1.msra.mxu0 %v58
    %230 = vmatprep.subr.mxu0 0.0
    %231 = vmatpush1.msra.mxu0 %v59
    %232 = vmatprep.subr.mxu0 0.0
    %233 = vmatpush1.msra.mxu0 %v60
    %234 = vmatprep.subr.mxu0 0.0
    %235 = vmatpush1.msra.mxu0 %v61
    %236 = vmatprep.subr.mxu0 0.0
    %237 = vmatpush1.msra.mxu0 %v62
    %238 = vmatprep.subr.mxu0 0.0
    %239 = vmatpush1.msra.mxu0 %v63
    %240 = vmatprep.subr.mxu0 0.0
    %241 = vmatpush1.msra.mxu0 %v64
    %242 = vmatprep.subr.mxu0 0.0
    %243 = vmatpush1.msra.mxu0 %v65
    %244 = vmatprep.subr.mxu0 0.0
    %245 = vmatpush1.msra.mxu0 %v66
    %246 = vmatprep.subr.mxu0 0.0
    %247 = vmatpush1.msra.mxu0 %v67
    %248 = vmatprep.subr.mxu0 0.0
    %249 = vmatpush1.msra.mxu0 %v68
    %250 = vmatprep.mubr.f32.mxu0 %v159
    %251 = vmatmul.mubr.f32.gmra.mrb[0].mxu0 %v151
    %v252 = vpop.f32.mrb[0].mxu0
    %v253 = vadd.f32 %v140, %v252
    %v254 = vpop.f32.mrb[0].mxu0
    %255 = vdwg.mxu0
    %256 = vmatprep.subr.mxu0 0.0
    %257 = vmatpush1.msra.mxu0 %v69
    %258 = vmatprep.subr.mxu0 0.0
    %259 = vmatpush1.msra.mxu0 %v70
    %260 = vmatprep.subr.mxu0 0.0
    %261 = vmatpush1.msra.mxu0 %v71
    %262 = vmatprep.subr.mxu0 0.0
    %263 = vmatpush1.msra.mxu0 %v72
    %264 = vmatprep.subr.mxu0 0.0
    %265 = vmatpush1.msra.mxu0 %v73
    %266 = vmatprep.subr.mxu0 0.0
    %267 = vmatpush1.msra.mxu0 %v74
    %268 = vmatprep.subr.mxu0 0.0
    %269 = vmatpush1.msra.mxu0 %v75
    %270 = vmatprep.subr.mxu0 0.0
    %271 = vmatpush1.msra.mxu0 %v76
    %272 = vmatprep.subr.mxu0 0.0
    %273 = vmatpush1.msra.mxu0 %v77
    %274 = vmatprep.subr.mxu0 0.0
    %275 = vmatpush1.msra.mxu0 %v78
    %276 = vmatprep.subr.mxu0 0.0
    %277 = vmatpush1.msra.mxu0 %v79
    %278 = vmatprep.subr.mxu0 0.0
    %279 = vmatpush1.msra.mxu0 %v80
    %280 = vmatprep.subr.mxu0 0.0
    %281 = vmatpush1.msra.mxu0 %v81
    %282 = vmatprep.subr.mxu0 0.0
    %283 = vmatpush1.msra.mxu0 %v82
    %284 = vmatprep.subr.mxu0 0.0
    %285 = vmatpush1.msra.mxu0 %v83
    %286 = vmatprep.subr.mxu0 0.0
    %287 = vmatpush1.msra.mxu0 %v84
    %288 = vmatprep.subr.mxu0 0.0
    %289 = vmatpush1.msra.mxu0 %v85
    %290 = vmatprep.subr.mxu0 0.0
    %291 = vmatpush1.msra.mxu0 %v86
    %292 = vmatprep.subr.mxu0 0.0
    %293 = vmatpush1.msra.mxu0 %v87
    %294 = vmatprep.subr.mxu0 0.0
    %295 = vmatpush1.msra.mxu0 %v88
    %296 = vmatprep.subr.mxu0 0.0
    %297 = vmatpush1.msra.mxu0 %v89
    %298 = vmatprep.subr.mxu0 0.0
    %299 = vmatpush1.msra.mxu0 %v90
    %300 = vmatprep.subr.mxu0 0.0
    %301 = vmatpush1.msra.mxu0 %v91
    %302 = vmatprep.subr.mxu0 0.0
    %303 = vmatpush1.msra.mxu0 %v92
    %304 = vmatprep.subr.mxu0 0.0
    %305 = vmatpush1.msra.mxu0 %v93
    %306 = vmatprep.subr.mxu0 0.0
    %307 = vmatpush1.msra.mxu0 %v94
    %308 = vmatprep.subr.mxu0 0.0
    %309 = vmatpush1.msra.mxu0 %v95
    %310 = vmatprep.subr.mxu0 0.0
    %311 = vmatpush1.msra.mxu0 %v96
    %312 = vmatprep.subr.mxu0 0.0
    %313 = vmatpush1.msra.mxu0 %v97
    %314 = vmatprep.subr.mxu0 0.0
    %315 = vmatpush1.msra.mxu0 %v98
    %316 = vmatprep.subr.mxu0 0.0
    %317 = vmatpush1.msra.mxu0 %v99
    %318 = vmatprep.subr.mxu0 0.0
    %319 = vmatpush1.msra.mxu0 %v100
    %320 = vmatprep.mubr.f32.mxu0 %v160
    %321 = vmatmul.mubr.f32.gmra.mrb[0].mxu0 %v158
    %v322 = vpop.f32.mrb[0].mxu0
    %v323 = vadd.f32 %v253, %v322
    %v324 = vpop.f32.mrb[0].mxu0
    %325 = vdwg.mxu0
    %326 = vmatprep.subr.mxu0 0.0
    %327 = vmatpush1.msra.mxu0 %v101
    %328 = vmatprep.subr.mxu0 0.0
    %329 = vmatpush1.msra.mxu0 %v102
    %330 = vmatprep.subr.mxu0 0.0
    %331 = vmatpush1.msra.mxu0 %v103
    %332 = vmatprep.subr.mxu0 0.0
    %333 = vmatpush1.msra.mxu0 %v104
    %334 = vmatprep.subr.mxu0 0.0
    %335 = vmatpush1.msra.mxu0 %v105
    %336 = vmatprep.subr.mxu0 0.0
    %337 = vmatpush1.msra.mxu0 %v106
    %338 = vmatprep.subr.mxu0 0.0
    %339 = vmatpush1.msra.mxu0 %v107
    %340 = vmatprep.subr.mxu0 0.0
    %341 = vmatpush1.msra.mxu0 %v108
    %342 = vmatprep.subr.mxu0 0.0
    %343 = vmatpush1.msra.mxu0 %v109
    %344 = vmatprep.subr.mxu0 0.0
    %345 = vmatpush1.msra.mxu0 %v110
    %346 = vmatprep.subr.mxu0 0.0
    %347 = vmatpush1.msra.mxu0 %v111
    %348 = vmatprep.subr.mxu0 0.0
    %349 = vmatpush1.msra.mxu0 %v112
    %350 = vmatprep.subr.mxu0 0.0
    %351 = vmatpush1.msra.mxu0 %v113
    %352 = vmatprep.subr.mxu0 0.0
    %353 = vmatpush1.msra.mxu0 %v114
    %354 = vmatprep.subr.mxu0 0.0
    %355 = vmatpush1.msra.mxu0 %v115
    %356 = vmatprep.subr.mxu0 0.0
    %357 = vmatpush1.msra.mxu0 %v116
    %358 = vmatprep.subr.mxu0 0.0
    %359 = vmatpush1.msra.mxu0 %v117
    %360 = vmatprep.subr.mxu0 0.0
    %361 = vmatpush1.msra.mxu0 %v118
    %362 = vmatprep.subr.mxu0 0.0
    %363 = vmatpush1.msra.mxu0 %v119
    %364 = vmatprep.subr.mxu0 0.0
    %365 = vmatpush1.msra.mxu0 %v120
    %366 = vmatprep.subr.mxu0 0.0
    %367 = vmatpush1.msra.mxu0 %v121
    %368 = vmatprep.subr.mxu0 0.0
    %369 = vmatpush1.msra.mxu0 %v122
    %370 = vmatprep.subr.mxu0 0.0
    %371 = vmatpush1.msra.mxu0 %v123
    %372 = vmatprep.subr.mxu0 0.0
    %373 = vmatpush1.msra.mxu0 %v124
    %374 = vmatprep.subr.mxu0 0.0
    %375 = vmatpush1.msra.mxu0 %v125
    %376 = vmatprep.subr.mxu0 0.0
    %377 = vmatpush1.msra.mxu0 %v126
    %378 = vmatprep.subr.mxu0 0.0
    %379 = vmatpush1.msra.mxu0 %v127
    %380 = vmatprep.subr.mxu0 0.0
    %381 = vmatpush1.msra.mxu0 %v128
    %382 = vmatprep.subr.mxu0 0.0
    %383 = vmatpush1.msra.mxu0 %v129
    %384 = vmatprep.subr.mxu0 0.0
    %385 = vmatpush1.msra.mxu0 %v130
    %386 = vmatprep.subr.mxu0 0.0
    %387 = vmatpush1.msra.mxu0 %v131
    %388 = vmatprep.subr.mxu0 0.0
    %389 = vmatpush1.msra.mxu0 %v132
    %390 = vmatprep.mubr.f32.mxu0 %v176
    %391 = vmatmul.mubr.f32.gmra.mrb[0].mxu0 %v168
    %v392 = vpop.f32.mrb[0].mxu0
    %v393 = vadd.f32 %v323, %v392
    %v394 = vpop.f32.mrb[0].mxu0
    %395 = vdwg.mxu0
    %396 = vmatprep.subr.mxu0 0.0
    %397 = vmatpush1.msra.mxu0 %v133
    %398 = vmatprep.subr.mxu0 0.0
    %399 = vmatpush1.msra.mxu0 %v134
    %400 = vmatprep.subr.mxu0 0.0
    %401 = vmatpush1.msra.mxu0 0.0
    %402 = vmatprep.subr.mxu0 0.0
    %403 = vmatpush1.msra.mxu0 0.0
    %404 = vmatprep.subr.mxu0 0.0
    %405 = vmatpush1.msra.mxu0 0.0
    %406 = vmatprep.subr.mxu0 0.0
    %407 = vmatpush1.msra.mxu0 0.0
    %408 = vmatprep.subr.mxu0 0.0
    %409 = vmatpush1.msra.mxu0 0.0
    %410 = vmatprep.subr.mxu0 0.0
    %411 = vmatpush1.msra.mxu0 0.0
    %412 = vmatprep.subr.mxu0 0.0
    %413 = vmatpush1.msra.mxu0 0.0
    %414 = vmatprep.subr.mxu0 0.0
    %415 = vmatpush1.msra.mxu0 0.0
    %416 = vmatprep.subr.mxu0 0.0
    %417 = vmatpush1.msra.mxu0 0.0
    %418 = vmatprep.subr.mxu0 0.0
    %419 = vmatpush1.msra.mxu0 0.0
    %420 = vmatprep.subr.mxu0 0.0
    %421 = vmatpush1.msra.mxu0 0.0
    %422 = vmatprep.subr.mxu0 0.0
    %423 = vmatpush1.msra.mxu0 0.0
    %424 = vmatprep.subr.mxu0 0.0
    %425 = vmatpush1.msra.mxu0 0.0
    %426 = vmatprep.subr.mxu0 0.0
    %427 = vmatpush1.msra.mxu0 0.0
    %428 = vmatprep.subr.mxu0 0.0
    %429 = vmatpush1.msra.mxu0 0.0
    %430 = vmatprep.subr.mxu0 0.0
    %431 = vmatpush1.msra.mxu0 0.0
    %432 = vmatprep.subr.mxu0 0.0
    %433 = vmatpush1.msra.mxu0 0.0
    %434 = vmatprep.subr.mxu0 0.0
    %435 = vmatpush1.msra.mxu0 0.0
    %436 = vmatprep.subr.mxu0 0.0
    %437 = vmatpush1.msra.mxu0 0.0
    %438 = vmatprep.subr.mxu0 0.0
    %439 = vmatpush1.msra.mxu0 0.0
    %440 = vmatprep.subr.mxu0 0.0
    %441 = vmatpush1.msra.mxu0 0.0
    %442 = vmatprep.subr.mxu0 0.0
    %443 = vmatpush1.msra.mxu0 0.0
    %444 = vmatprep.subr.mxu0 0.0
    %445 = vmatpush1.msra.mxu0 0.0
    %446 = vmatprep.subr.mxu0 0.0
    %447 = vmatpush1.msra.mxu0 0.0
    %448 = vmatprep.subr.mxu0 0.0
    %449 = vmatpush1.msra.mxu0 0.0
    %450 = vmatprep.subr.mxu0 0.0
    %451 = vmatpush1.msra.mxu0 0.0
    %452 = vmatprep.subr.mxu0 0.0
    %453 = vmatpush1.msra.mxu0 0.0
    %454 = vmatprep.subr.mxu0 0.0
    %455 = vmatpush1.msra.mxu0 0.0
    %456 = vmatprep.subr.mxu0 0.0
    %457 = vmatpush1.msra.mxu0 0.0
    %458 = vmatprep.subr.mxu0 0.0
    %459 = vmatpush1.msra.mxu0 0.0
    %460 = vmatprep.mubr.f32.mxu0 0.0
    %461 = vmatmul.mubr.f32.gmra.mrb[0].mxu0 %v184
    %v462 = vpop.f32.mrb[0].mxu0
    %v463 = vadd.f32 %v393, %v462
    %v464 = vpop.f32.mrb[0].mxu0
    %465 = vdwg.mxu0
    %v466 = vld [vmem:[%s3] sm:$0xff]
    %v467 = vld [vmem:[%s3 + $0x8] sm:$0xff]
    %v468 = vld [vmem:[%s3 + $0x10] sm:$0xff]
    %v469 = vld [vmem:[%s3 + $0x18] sm:$0xff]
    %v470 = vld [vmem:[%s3 + $0x20] sm:$0xff]
    %v471 = vld [vmem:[%s3 + $0x28] sm:$0xff]
    %v472 = vld [vmem:[%s3 + $0x30] sm:$0xff]
    %v473 = vld [vmem:[%s3 + $0x38] sm:$0xff]
    %v474 = vld [vmem:[%s3 + $0x40] sm:$0xff]
    %v475 = vld [vmem:[%s3 + $0x48] sm:$0xff]
    %v476 = vld [vmem:[%s3 + $0x50] sm:$0xff]
    %v477 = vld [vmem:[%s3 + $0x58] sm:$0xff]
    %v478 = vld [vmem:[%s3 + $0x60] sm:$0xff]
    %v479 = vld [vmem:[%s3 + $0x68] sm:$0xff]
    %v480 = vld [vmem:[%s3 + $0x70] sm:$0xff]
    %v481 = vld [vmem:[%s3 + $0x78] sm:$0xff]
    %v482 = vld [vmem:[%s3 + $0x80] sm:$0xff]
    %v483 = vld [vmem:[%s3 + $0x88] sm:$0xff]
    %v484 = vld [vmem:[%s3 + $0x90] sm:$0xff]
    %v485 = vld [vmem:[%s3 + $0x98] sm:$0xff]
    %v486 = vld [vmem:[%s3 + $0xa0] sm:$0xff]
    %v487 = vld [vmem:[%s3 + $0xa8] sm:$0xff]
    %v488 = vld [vmem:[%s3 + $0xb0] sm:$0xff]
    %v489 = vld [vmem:[%s3 + $0xb8] sm:$0xff]
    %v490 = vld [vmem:[%s3 + $0xc0] sm:$0xff]
    %v491 = vld [vmem:[%s3 + $0xc8] sm:$0xff]
    %v492 = vld [vmem:[%s3 + $0xd0] sm:$0xff]
    %v493 = vld [vmem:[%s3 + $0xd8] sm:$0xff]
    %v494 = vld [vmem:[%s3 + $0xe0] sm:$0xff]
    %v495 = vld [vmem:[%s3 + $0xe8] sm:$0xff]
    %v496 = vld [vmem:[%s3 + $0xf0] sm:$0xff]
    %v497 = vld [vmem:[%s3 + $0xf8] sm:$0xff]
    %v498 = vld [vmem:[%s3 + $0x100] sm:$0xff]
    %v499 = vld [vmem:[%s3 + $0x108] sm:$0xff]
    %v500 = vld [vmem:[%s3 + $0x110] sm:$0xff]
    %v501 = vld [vmem:[%s3 + $0x118] sm:$0xff]
    %v502 = vld [vmem:[%s3 + $0x120] sm:$0xff]
    %v503 = vld [vmem:[%s3 + $0x128] sm:$0xff]
    %v504 = vld [vmem:[%s3 + $0x130] sm:$0xff]
    %v505 = vld [vmem:[%s3 + $0x138] sm:$0xff]
    %v506 = vld [vmem:[%s3 + $0x140] sm:$0xff]
    %v507 = vld [vmem:[%s3 + $0x148] sm:$0xff]
    %v508 = vld [vmem:[%s3 + $0x150] sm:$0xff]
    %v509 = vld [vmem:[%s3 + $0x158] sm:$0xff]
    %v510 = vld [vmem:[%s3 + $0x160] sm:$0xff]
    %v511 = vld [vmem:[%s3 + $0x168] sm:$0xff]
    %v512 = vld [vmem:[%s3 + $0x170] sm:$0xff]
    %v513 = vld [vmem:[%s3 + $0x178] sm:$0xff]
    %v514 = vld [vmem:[%s3 + $0x180] sm:$0xff]
    %v515 = vld [vmem:[%s3 + $0x188] sm:$0xff]
    %v516 = vld [vmem:[%s3 + $0x190] sm:$0xff]
    %v517 = vld [vmem:[%s3 + $0x198] sm:$0xff]
    %v518 = vld [vmem:[%s3 + $0x1a0] sm:$0xff]
    %v519 = vld [vmem:[%s3 + $0x1a8] sm:$0xff]
    %v520 = vld [vmem:[%s3 + $0x1b0] sm:$0xff]
    %v521 = vld [vmem:[%s3 + $0x1b8] sm:$0xff]
    %v522 = vld [vmem:[%s3 + $0x1c0] sm:$0xff]
    %v523 = vld [vmem:[%s3 + $0x1c8] sm:$0xff]
    %v524 = vld [vmem:[%s3 + $0x1d0] sm:$0xff]
    %v525 = vld [vmem:[%s3 + $0x1d8] sm:$0xff]
    %v526 = vld [vmem:[%s3 + $0x1e0] sm:$0xff]
    %v527 = vld [vmem:[%s3 + $0x1e8] sm:$0xff]
    %v528 = vld [vmem:[%s3 + $0x1f0] sm:$0xff]
    %v529 = vld [vmem:[%s3 + $0x1f8] sm:$0xff]
    %v530 = vld [vmem:[%s3 + $0x200] sm:$0xff]
    %v531 = vld [vmem:[%s3 + $0x208] sm:$0xff]
    %v532 = vld [vmem:[%s3 + $0x210] sm:$0xff]
    %v533 = vld [vmem:[%s3 + $0x218] sm:$0xff]
    %v534 = vld [vmem:[%s3 + $0x220] sm:$0xff]
    %v535 = vld [vmem:[%s3 + $0x228] sm:$0xff]
    %v536 = vld [vmem:[%s3 + $0x230] sm:$0xff]
    %v537 = vld [vmem:[%s3 + $0x238] sm:$0xff]
    %v538 = vld [vmem:[%s3 + $0x240] sm:$0xff]
    %v539 = vld [vmem:[%s3 + $0x248] sm:$0xff]
    %v540 = vld [vmem:[%s3 + $0x250] sm:$0xff]
    %v541 = vld [vmem:[%s3 + $0x258] sm:$0xff]
    %v542 = vld [vmem:[%s3 + $0x260] sm:$0xff]
    %v543 = vld [vmem:[%s3 + $0x268] sm:$0xff]
    %v544 = vld [vmem:[%s3 + $0x270] sm:$0xff]
    %v545 = vld [vmem:[%s3 + $0x278] sm:$0xff]
    %v546 = vld [vmem:[%s3 + $0x280] sm:$0xff]
    %v547 = vld [vmem:[%s3 + $0x288] sm:$0xff]
    %v548 = vld [vmem:[%s3 + $0x290] sm:$0xff]
    %v549 = vld [vmem:[%s3 + $0x298] sm:$0xff]
    %v550 = vld [vmem:[%s3 + $0x2a0] sm:$0xff]
    %v551 = vld [vmem:[%s3 + $0x2a8] sm:$0xff]
    %v552 = vld [vmem:[%s3 + $0x2b0] sm:$0xff]
    %v553 = vld [vmem:[%s3 + $0x2b8] sm:$0xff]
    %v554 = vld [vmem:[%s3 + $0x2c0] sm:$0xff]
    %v555 = vld [vmem:[%s3 + $0x2c8] sm:$0xff]
    %v556 = vld [vmem:[%s3 + $0x2d0] sm:$0xff]
    %v557 = vld [vmem:[%s3 + $0x2d8] sm:$0xff]
    %v558 = vld [vmem:[%s3 + $0x2e0] sm:$0xff]
    %v559 = vld [vmem:[%s3 + $0x2e8] sm:$0xff]
    %v560 = vld [vmem:[%s3 + $0x2f0] sm:$0xff]
    %v561 = vld [vmem:[%s3 + $0x2f8] sm:$0xff]
    %v562 = vld [vmem:[%s3 + $0x300] sm:$0xff]
    %v563 = vld [vmem:[%s3 + $0x308] sm:$0xff]
    %v564 = vld [vmem:[%s4] sm:$0x1]
    %v566 = vlaneseq
    %v567 = vshrl.u32 %v566, 7
    %v568 = vsub.s32 0, %v567
    %v569 = vrot.slane %v564, %v568
    %571 = vmatprep.subr.mxu0 0.0
    %572 = vmatpush1.msra.mxu0 %v466
    %573 = vmatprep.subr.mxu0 0.0
    %574 = vmatpush1.msra.mxu0 %v467
    %575 = vmatprep.subr.mxu0 0.0
    %576 = vmatpush1.msra.mxu0 %v468
    %577 = vmatprep.subr.mxu0 0.0
    %578 = vmatpush1.msra.mxu0 %v469
    %579 = vmatprep.subr.mxu0 0.0
    %580 = vmatpush1.msra.mxu0 %v470
    %581 = vmatprep.subr.mxu0 0.0
    %582 = vmatpush1.msra.mxu0 %v471
    %583 = vmatprep.subr.mxu0 0.0
    %584 = vmatpush1.msra.mxu0 %v472
    %585 = vmatprep.subr.mxu0 0.0
    %586 = vmatpush1.msra.mxu0 %v473
    %587 = vmatprep.subr.mxu0 0.0
    %588 = vmatpush1.msra.mxu0 %v474
    %589 = vmatprep.subr.mxu0 0.0
    %590 = vmatpush1.msra.mxu0 %v475
    %591 = vmatprep.subr.mxu0 0.0
    %592 = vmatpush1.msra.mxu0 %v476
    %593 = vmatprep.subr.mxu0 0.0
    %594 = vmatpush1.msra.mxu0 %v477
    %595 = vmatprep.subr.mxu0 0.0
    %596 = vmatpush1.msra.mxu0 %v478
    %597 = vmatprep.subr.mxu0 0.0
    %598 = vmatpush1.msra.mxu0 %v479
    %599 = vmatprep.subr.mxu0 0.0
    %600 = vmatpush1.msra.mxu0 %v480
    %601 = vmatprep.subr.mxu0 0.0
    %602 = vmatpush1.msra.mxu0 %v481
    %603 = vmatprep.subr.mxu0 0.0
    %604 = vmatpush1.msra.mxu0 %v482
    %605 = vmatprep.subr.mxu0 0.0
    %606 = vmatpush1.msra.mxu0 %v483
    %607 = vmatprep.subr.mxu0 0.0
    %608 = vmatpush1.msra.mxu0 %v484
    %609 = vmatprep.subr.mxu0 0.0
    %610 = vmatpush1.msra.mxu0 %v485
    %611 = vmatprep.subr.mxu0 0.0
    %612 = vmatpush1.msra.mxu0 %v486
    %613 = vmatprep.subr.mxu0 0.0
    %614 = vmatpush1.msra.mxu0 %v487
    %615 = vmatprep.subr.mxu0 0.0
    %616 = vmatpush1.msra.mxu0 %v488
    %617 = vmatprep.subr.mxu0 0.0
    %618 = vmatpush1.msra.mxu0 %v489
    %619 = vmatprep.subr.mxu0 0.0
    %620 = vmatpush1.msra.mxu0 %v490
    %621 = vmatprep.subr.mxu0 0.0
    %622 = vmatpush1.msra.mxu0 %v491
    %623 = vmatprep.subr.mxu0 0.0
    %624 = vmatpush1.msra.mxu0 %v492
    %625 = vmatprep.subr.mxu0 0.0
    %626 = vmatpush1.msra.mxu0 %v493
    %627 = vmatprep.subr.mxu0 0.0
    %628 = vmatpush1.msra.mxu0 %v494
    %629 = vmatprep.subr.mxu0 0.0
    %630 = vmatpush1.msra.mxu0 %v495
    %631 = vmatprep.subr.mxu0 0.0
    %632 = vmatpush1.msra.mxu0 %v496
    %633 = vmatprep.subr.mxu0 0.0
    %634 = vmatpush1.msra.mxu0 %v497
    %635 = vmatprep.mubr.f32.mxu0 %v159
    %636 = vmatmul.mubr.f32.gmra.mrb[0].mxu0 %v151
    %v637 = vpop.f32.mrb[0].mxu0
    %v638 = vadd.f32 %v569, %v637
    %v639 = vpop.f32.mrb[0].mxu0
    %640 = vdwg.mxu0
    %641 = vmatprep.subr.mxu0 0.0
    %642 = vmatpush1.msra.mxu0 %v498
    %643 = vmatprep.subr.mxu0 0.0
    %644 = vmatpush1.msra.mxu0 %v499
    %645 = vmatprep.subr.mxu0 0.0
    %646 = vmatpush1.msra.mxu0 %v500
    %647 = vmatprep.subr.mxu0 0.0
    %648 = vmatpush1.msra.mxu0 %v501
    %649 = vmatprep.subr.mxu0 0.0
    %650 = vmatpush1.msra.mxu0 %v502
    %651 = vmatprep.subr.mxu0 0.0
    %652 = vmatpush1.msra.mxu0 %v503
    %653 = vmatprep.subr.mxu0 0.0
    %654 = vmatpush1.msra.mxu0 %v504
    %655 = vmatprep.subr.mxu0 0.0
    %656 = vmatpush1.msra.mxu0 %v505
    %657 = vmatprep.subr.mxu0 0.0
    %658 = vmatpush1.msra.mxu0 %v506
    %659 = vmatprep.subr.mxu0 0.0
    %660 = vmatpush1.msra.mxu0 %v507
    %661 = vmatprep.subr.mxu0 0.0
    %662 = vmatpush1.msra.mxu0 %v508
    %663 = vmatprep.subr.mxu0 0.0
    %664 = vmatpush1.msra.mxu0 %v509
    %665 = vmatprep.subr.mxu0 0.0
    %666 = vmatpush1.msra.mxu0 %v510
    %667 = vmatprep.subr.mxu0 0.0
    %668 = vmatpush1.msra.mxu0 %v511
    %669 = vmatprep.subr.mxu0 0.0
    %670 = vmatpush1.msra.mxu0 %v512
    %671 = vmatprep.subr.mxu0 0.0
    %672 = vmatpush1.msra.mxu0 %v513
    %673 = vmatprep.subr.mxu0 0.0
    %674 = vmatpush1.msra.mxu0 %v514
    %675 = vmatprep.subr.mxu0 0.0
    %676 = vmatpush1.msra.mxu0 %v515
    %677 = vmatprep.subr.mxu0 0.0
    %678 = vmatpush1.msra.mxu0 %v516
    %679 = vmatprep.subr.mxu0 0.0
    %680 = vmatpush1.msra.mxu0 %v517
    %681 = vmatprep.subr.mxu0 0.0
    %682 = vmatpush1.msra.mxu0 %v518
    %683 = vmatprep.subr.mxu0 0.0
    %684 = vmatpush1.msra.mxu0 %v519
    %685 = vmatprep.subr.mxu0 0.0
    %686 = vmatpush1.msra.mxu0 %v520
    %687 = vmatprep.subr.mxu0 0.0
    %688 = vmatpush1.msra.mxu0 %v521
    %689 = vmatprep.subr.mxu0 0.0
    %690 = vmatpush1.msra.mxu0 %v522
    %691 = vmatprep.subr.mxu0 0.0
    %692 = vmatpush1.msra.mxu0 %v523
    %693 = vmatprep.subr.mxu0 0.0
    %694 = vmatpush1.msra.mxu0 %v524
    %695 = vmatprep.subr.mxu0 0.0
    %696 = vmatpush1.msra.mxu0 %v525
    %697 = vmatprep.subr.mxu0 0.0
    %698 = vmatpush1.msra.mxu0 %v526
    %699 = vmatprep.subr.mxu0 0.0
    %700 = vmatpush1.msra.mxu0 %v527
    %701 = vmatprep.subr.mxu0 0.0
    %702 = vmatpush1.msra.mxu0 %v528
    %703 = vmatprep.subr.mxu0 0.0
    %704 = vmatpush1.msra.mxu0 %v529
    %705 = vmatprep.mubr.f32.mxu0 %v160
    %706 = vmatmul.mubr.f32.gmra.mrb[0].mxu0 %v158
    %v707 = vpop.f32.mrb[0].mxu0
    %v708 = vadd.f32 %v638, %v707
    %v709 = vpop.f32.mrb[0].mxu0
    %710 = vdwg.mxu0
    %711 = vmatprep.subr.mxu0 0.0
    %712 = vmatpush1.msra.mxu0 %v530
    %713 = vmatprep.subr.mxu0 0.0
    %714 = vmatpush1.msra.mxu0 %v531
    %715 = vmatprep.subr.mxu0 0.0
    %716 = vmatpush1.msra.mxu0 %v532
    %717 = vmatprep.subr.mxu0 0.0
    %718 = vmatpush1.msra.mxu0 %v533
    %719 = vmatprep.subr.mxu0 0.0
    %720 = vmatpush1.msra.mxu0 %v534
    %721 = vmatprep.subr.mxu0 0.0
    %722 = vmatpush1.msra.mxu0 %v535
    %723 = vmatprep.subr.mxu0 0.0
    %724 = vmatpush1.msra.mxu0 %v536
    %725 = vmatprep.subr.mxu0 0.0
    %726 = vmatpush1.msra.mxu0 %v537
    %727 = vmatprep.subr.mxu0 0.0
    %728 = vmatpush1.msra.mxu0 %v538
    %729 = vmatprep.subr.mxu0 0.0
    %730 = vmatpush1.msra.mxu0 %v539
    %731 = vmatprep.subr.mxu0 0.0
    %732 = vmatpush1.msra.mxu0 %v540
    %733 = vmatprep.subr.mxu0 0.0
    %734 = vmatpush1.msra.mxu0 %v541
    %735 = vmatprep.subr.mxu0 0.0
    %736 = vmatpush1.msra.mxu0 %v542
    %737 = vmatprep.subr.mxu0 0.0
    %738 = vmatpush1.msra.mxu0 %v543
    %739 = vmatprep.subr.mxu0 0.0
    %740 = vmatpush1.msra.mxu0 %v544
    %741 = vmatprep.subr.mxu0 0.0
    %742 = vmatpush1.msra.mxu0 %v545
    %743 = vmatprep.subr.mxu0 0.0
    %744 = vmatpush1.msra.mxu0 %v546
    %745 = vmatprep.subr.mxu0 0.0
    %746 = vmatpush1.msra.mxu0 %v547
    %747 = vmatprep.subr.mxu0 0.0
    %748 = vmatpush1.msra.mxu0 %v548
    %749 = vmatprep.subr.mxu0 0.0
    %750 = vmatpush1.msra.mxu0 %v549
    %751 = vmatprep.subr.mxu0 0.0
    %752 = vmatpush1.msra.mxu0 %v550
    %753 = vmatprep.subr.mxu0 0.0
    %754 = vmatpush1.msra.mxu0 %v551
    %755 = vmatprep.subr.mxu0 0.0
    %756 = vmatpush1.msra.mxu0 %v552
    %757 = vmatprep.subr.mxu0 0.0
    %758 = vmatpush1.msra.mxu0 %v553
    %759 = vmatprep.subr.mxu0 0.0
    %760 = vmatpush1.msra.mxu0 %v554
    %761 = vmatprep.subr.mxu0 0.0
    %762 = vmatpush1.msra.mxu0 %v555
    %763 = vmatprep.subr.mxu0 0.0
    %764 = vmatpush1.msra.mxu0 %v556
    %765 = vmatprep.subr.mxu0 0.0
    %766 = vmatpush1.msra.mxu0 %v557
    %767 = vmatprep.subr.mxu0 0.0
    %768 = vmatpush1.msra.mxu0 %v558
    %769 = vmatprep.subr.mxu0 0.0
    %770 = vmatpush1.msra.mxu0 %v559
    %771 = vmatprep.subr.mxu0 0.0
    %772 = vmatpush1.msra.mxu0 %v560
    %773 = vmatprep.subr.mxu0 0.0
    %774 = vmatpush1.msra.mxu0 %v561
    %775 = vmatprep.mubr.f32.mxu0 %v176
    %776 = vmatmul.mubr.f32.gmra.mrb[0].mxu0 %v168
    %v777 = vpop.f32.mrb[0].mxu0
    %v778 = vadd.f32 %v708, %v777
    %v779 = vpop.f32.mrb[0].mxu0
    %780 = vdwg.mxu0
    %781 = vmatprep.subr.mxu0 0.0
    %782 = vmatpush1.msra.mxu0 %v562
    %783 = vmatprep.subr.mxu0 0.0
    %784 = vmatpush1.msra.mxu0 %v563
    %785 = vmatprep.subr.mxu0 0.0
    %786 = vmatpush1.msra.mxu0 0.0
    %787 = vmatprep.subr.mxu0 0.0
    %788 = vmatpush1.msra.mxu0 0.0
    %789 = vmatprep.subr.mxu0 0.0
    %790 = vmatpush1.msra.mxu0 0.0
    %791 = vmatprep.subr.mxu0 0.0
    %792 = vmatpush1.msra.mxu0 0.0
    %793 = vmatprep.subr.mxu0 0.0
    %794 = vmatpush1.msra.mxu0 0.0
    %795 = vmatprep.subr.mxu0 0.0
    %796 = vmatpush1.msra.mxu0 0.0
    %797 = vmatprep.subr.mxu0 0.0
    %798 = vmatpush1.msra.mxu0 0.0
    %799 = vmatprep.subr.mxu0 0.0
    %800 = vmatpush1.msra.mxu0 0.0
    %801 = vmatprep.subr.mxu0 0.0
    %802 = vmatpush1.msra.mxu0 0.0
    %803 = vmatprep.subr.mxu0 0.0
    %804 = vmatpush1.msra.mxu0 0.0
    %805 = vmatprep.subr.mxu0 0.0
    %806 = vmatpush1.msra.mxu0 0.0
    %807 = vmatprep.subr.mxu0 0.0
    %808 = vmatpush1.msra.mxu0 0.0
    %809 = vmatprep.subr.mxu0 0.0
    %810 = vmatpush1.msra.mxu0 0.0
    %811 = vmatprep.subr.mxu0 0.0
    %812 = vmatpush1.msra.mxu0 0.0
    %813 = vmatprep.subr.mxu0 0.0
    %814 = vmatpush1.msra.mxu0 0.0
    %815 = vmatprep.subr.mxu0 0.0
    %816 = vmatpush1.msra.mxu0 0.0
    %817 = vmatprep.subr.mxu0 0.0
    %818 = vmatpush1.msra.mxu0 0.0
    %819 = vmatprep.subr.mxu0 0.0
    %820 = vmatpush1.msra.mxu0 0.0
    %821 = vmatprep.subr.mxu0 0.0
    %822 = vmatpush1.msra.mxu0 0.0
    %823 = vmatprep.subr.mxu0 0.0
    %824 = vmatpush1.msra.mxu0 0.0
    %825 = vmatprep.subr.mxu0 0.0
    %826 = vmatpush1.msra.mxu0 0.0
    %827 = vmatprep.subr.mxu0 0.0
    %828 = vmatpush1.msra.mxu0 0.0
    %829 = vmatprep.subr.mxu0 0.0
    %830 = vmatpush1.msra.mxu0 0.0
    %831 = vmatprep.subr.mxu0 0.0
    %832 = vmatpush1.msra.mxu0 0.0
    %833 = vmatprep.subr.mxu0 0.0
    %834 = vmatpush1.msra.mxu0 0.0
    %835 = vmatprep.subr.mxu0 0.0
    %836 = vmatpush1.msra.mxu0 0.0
    %837 = vmatprep.subr.mxu0 0.0
    %838 = vmatpush1.msra.mxu0 0.0
    %839 = vmatprep.subr.mxu0 0.0
    %840 = vmatpush1.msra.mxu0 0.0
    %841 = vmatprep.subr.mxu0 0.0
    %842 = vmatpush1.msra.mxu0 0.0
    %843 = vmatprep.subr.mxu0 0.0
    %844 = vmatpush1.msra.mxu0 0.0
    %845 = vmatprep.mubr.f32.mxu0 0.0
    %846 = vmatmul.mubr.f32.gmra.mrb[0].mxu0 %v184
    %v847 = vpop.f32.mrb[0].mxu0
    %v848 = vadd.f32 %v778, %v847
    %v849 = vpop.f32.mrb[0].mxu0
    %850 = vdwg.mxu0
    %v851 = vld [vmem:[%s5] sm:$0x3]
    %v852 = vmul.f32 %v848, 0.5
    %v853 = vmul.f32 %v852, 1.442695
    %v854 = vpow.pop %v853
    %v855 = vmul.f32 %v851, %v854
    %v856 = vadd.f32 %v855, %v463
    %v857 = vld [vmem:[%s6] sm:$0x77]
    %v858 = vld [vmem:[%s6 + $0x8] sm:$0x77]
    %v859 = vld [vmem:[%s6 + $0x10] sm:$0x77]
    %v860 = vld [vmem:[%s6 + $0x18] sm:$0x7]
    %v861 = vld [vmem:[%s7] sm:$0x7f]
    %v863 = vlaneseq
    %v864 = vshrl.u32 %v863, 7
    %v865 = vsub.s32 0, %v864
    %v866 = vrot.slane %v861, %v865
    %v867 = vlaneseq
    %v868 = vshrl.u32 %v867, 7
    %v869 = vsub.s32 1, %v868
    %v870 = vrot.slane %v861, %v869
    %v871 = vlaneseq
    %v872 = vshrl.u32 %v871, 7
    %v873 = vsub.s32 2, %v872
    %v874 = vrot.slane %v861, %v873
    %v875 = vlaneseq
    %v876 = vshrl.u32 %v875, 7
    %v877 = vsub.s32 3, %v876
    %v878 = vrot.slane %v861, %v877
    %v879 = vlaneseq
    %v880 = vshrl.u32 %v879, 7
    %v881 = vsub.s32 4, %v880
    %v882 = vrot.slane %v861, %v881
    %v883 = vlaneseq
    %v884 = vshrl.u32 %v883, 7
    %v885 = vsub.s32 5, %v884
    %v886 = vrot.slane %v861, %v885
    %v887 = vlaneseq
    %v888 = vshrl.u32 %v887, 7
    %v889 = vsub.s32 6, %v888
    %v890 = vrot.slane %v861, %v889
    %v902 = vcombine.high %v857, %v857
    %v903 = vcombine.high %v858, %v858
    %v904 = vcombine.high %v859, %v859
    %vm905 = vcmask 23552
    %v907 = vsel %vm905, %v856, 0
    %vm909 = vcmask 1042432
    %v910 = vsel %vm909, %v857, 0
    %v912 = vsel %vm909, %v902, 0
    %v914 = vsel %vm909, %v858, 0
    %v916 = vsel %vm909, %v903, 0
    %v918 = vsel %vm909, %v859, 0
    %v920 = vsel %vm909, %v904, 0
    %v922 = vsel %vm909, %v860, 0
    %924 = vmatprep.subr.mxu0 %v912
    %925 = vmatpush1.msra.mxu0 %v910
    %926 = vmatprep.subr.mxu0 0.0
    %927 = vmatpush1.msra.mxu0 0.0
    %928 = vmatprep.subr.mxu0 0.0
    %929 = vmatpush1.msra.mxu0 0.0
    %930 = vmatprep.subr.mxu0 0.0
    %931 = vmatpush1.msra.mxu0 0.0
    %932 = vmatprep.subr.mxu0 0.0
    %933 = vmatpush1.msra.mxu0 0.0
    %934 = vmatprep.subr.mxu0 0.0
    %935 = vmatpush1.msra.mxu0 0.0
    %936 = vmatprep.subr.mxu0 0.0
    %937 = vmatpush1.msra.mxu0 0.0
    %938 = vmatprep.subr.mxu0 0.0
    %939 = vmatpush1.msra.mxu0 0.0
    %940 = vmatprep.subr.mxu0 0.0
    %941 = vmatpush1.msra.mxu0 0.0
    %942 = vmatprep.subr.mxu0 0.0
    %943 = vmatpush1.msra.mxu0 0.0
    %944 = vmatprep.subr.mxu0 0.0
    %945 = vmatpush1.msra.mxu0 0.0
    %946 = vmatprep.subr.mxu0 0.0
    %947 = vmatpush1.msra.mxu0 0.0
    %948 = vmatprep.subr.mxu0 0.0
    %949 = vmatpush1.msra.mxu0 0.0
    %950 = vmatprep.subr.mxu0 0.0
    %951 = vmatpush1.msra.mxu0 0.0
    %952 = vmatprep.subr.mxu0 0.0
    %953 = vmatpush1.msra.mxu0 0.0
    %954 = vmatprep.subr.mxu0 0.0
    %955 = vmatpush1.msra.mxu0 0.0
    %956 = vmatprep.subr.mxu0 0.0
    %957 = vmatpush1.msra.mxu0 0.0
    %958 = vmatprep.subr.mxu0 0.0
    %959 = vmatpush1.msra.mxu0 0.0
    %960 = vmatprep.subr.mxu0 0.0
    %961 = vmatpush1.msra.mxu0 0.0
    %962 = vmatprep.subr.mxu0 0.0
    %963 = vmatpush1.msra.mxu0 0.0
    %964 = vmatprep.subr.mxu0 0.0
    %965 = vmatpush1.msra.mxu0 0.0
    %966 = vmatprep.subr.mxu0 0.0
    %967 = vmatpush1.msra.mxu0 0.0
    %968 = vmatprep.subr.mxu0 0.0
    %969 = vmatpush1.msra.mxu0 0.0
    %970 = vmatprep.subr.mxu0 0.0
    %971 = vmatpush1.msra.mxu0 0.0
    %972 = vmatprep.subr.mxu0 0.0
    %973 = vmatpush1.msra.mxu0 0.0
    %974 = vmatprep.subr.mxu0 0.0
    %975 = vmatpush1.msra.mxu0 0.0
    %976 = vmatprep.subr.mxu0 0.0
    %977 = vmatpush1.msra.mxu0 0.0
    %978 = vmatprep.subr.mxu0 0.0
    %979 = vmatpush1.msra.mxu0 0.0
    %980 = vmatprep.subr.mxu0 0.0
    %981 = vmatpush1.msra.mxu0 0.0
    %982 = vmatprep.subr.mxu0 0.0
    %983 = vmatpush1.msra.mxu0 0.0
    %984 = vmatprep.subr.mxu0 0.0
    %985 = vmatpush1.msra.mxu0 0.0
    %986 = vmatprep.subr.mxu0 0.0
    %987 = vmatpush1.msra.mxu0 0.0
    %988 = vmatprep.mubr.f32.mxu0 0.0
    %989 = vmatmul.mubr.f32.gmra.mrb[0].mxu0 %v907
    %v990 = vpop.f32.mrb[0].mxu0
    %v991 = vadd.f32 %v866, %v990
    %v992 = vpop.f32.mrb[0].mxu0
    %v993 = vadd.f32 %v870, %v992
    %994 = vdwg.mxu0
    %995 = vmatprep.subr.mxu0 %v916
    %996 = vmatpush1.msra.mxu0 %v914
    %997 = vmatprep.subr.mxu0 0.0
    %998 = vmatpush1.msra.mxu0 0.0
    %999 = vmatprep.subr.mxu0 0.0
    %1000 = vmatpush1.msra.mxu0 0.0
    %1001 = vmatprep.subr.mxu0 0.0
    %1002 = vmatpush1.msra.mxu0 0.0
    %1003 = vmatprep.subr.mxu0 0.0
    %1004 = vmatpush1.msra.mxu0 0.0
    %1005 = vmatprep.subr.mxu0 0.0
    %1006 = vmatpush1.msra.mxu0 0.0
    %1007 = vmatprep.subr.mxu0 0.0
    %1008 = vmatpush1.msra.mxu0 0.0
    %1009 = vmatprep.subr.mxu0 0.0
    %1010 = vmatpush1.msra.mxu0 0.0
    %1011 = vmatprep.subr.mxu0 0.0
    %1012 = vmatpush1.msra.mxu0 0.0
    %1013 = vmatprep.subr.mxu0 0.0
    %1014 = vmatpush1.msra.mxu0 0.0
    %1015 = vmatprep.subr.mxu0 0.0
    %1016 = vmatpush1.msra.mxu0 0.0
    %1017 = vmatprep.subr.mxu0 0.0
    %1018 = vmatpush1.msra.mxu0 0.0
    %1019 = vmatprep.subr.mxu0 0.0
    %1020 = vmatpush1.msra.mxu0 0.0
    %1021 = vmatprep.subr.mxu0 0.0
    %1022 = vmatpush1.msra.mxu0 0.0
    %1023 = vmatprep.subr.mxu0 0.0
    %1024 = vmatpush1.msra.mxu0 0.0
    %1025 = vmatprep.subr.mxu0 0.0
    %1026 = vmatpush1.msra.mxu0 0.0
    %1027 = vmatprep.subr.mxu0 0.0
    %1028 = vmatpush1.msra.mxu0 0.0
    %1029 = vmatprep.subr.mxu0 0.0
    %1030 = vmatpush1.msra.mxu0 0.0
    %1031 = vmatprep.subr.mxu0 0.0
    %1032 = vmatpush1.msra.mxu0 0.0
    %1033 = vmatprep.subr.mxu0 0.0
    %1034 = vmatpush1.msra.mxu0 0.0
    %1035 = vmatprep.subr.mxu0 0.0
    %1036 = vmatpush1.msra.mxu0 0.0
    %1037 = vmatprep.subr.mxu0 0.0
    %1038 = vmatpush1.msra.mxu0 0.0
    %1039 = vmatprep.subr.mxu0 0.0
    %1040 = vmatpush1.msra.mxu0 0.0
    %1041 = vmatprep.subr.mxu0 0.0
    %1042 = vmatpush1.msra.mxu0 0.0
    %1043 = vmatprep.subr.mxu0 0.0
    %1044 = vmatpush1.msra.mxu0 0.0
    %1045 = vmatprep.subr.mxu0 0.0
    %1046 = vmatpush1.msra.mxu0 0.0
    %1047 = vmatprep.subr.mxu0 0.0
    %1048 = vmatpush1.msra.mxu0 0.0
    %1049 = vmatprep.subr.mxu0 0.0
    %1050 = vmatpush1.msra.mxu0 0.0
    %1051 = vmatprep.subr.mxu0 0.0
    %1052 = vmatpush1.msra.mxu0 0.0
    %1053 = vmatprep.subr.mxu0 0.0
    %1054 = vmatpush1.msra.mxu0 0.0
    %1055 = vmatprep.subr.mxu0 0.0
    %1056 = vmatpush1.msra.mxu0 0.0
    %1057 = vmatprep.subr.mxu0 0.0
    %1058 = vmatpush1.msra.mxu0 0.0
    %1059 = vmatprep.mubr.f32.mxu0 0.0
    %1060 = vmatmul.mubr.f32.gmra.mrb[0].mxu0 %v907
    %v1061 = vpop.f32.mrb[0].mxu0
    %v1062 = vadd.f32 %v874, %v1061
    %v1063 = vpop.f32.mrb[0].mxu0
    %v1064 = vadd.f32 %v878, %v1063
    %1065 = vdwg.mxu0
    %1066 = vmatprep.subr.mxu0 %v920
    %1067 = vmatpush1.msra.mxu0 %v918
    %1068 = vmatprep.subr.mxu0 0.0
    %1069 = vmatpush1.msra.mxu0 0.0
    %1070 = vmatprep.subr.mxu0 0.0
    %1071 = vmatpush1.msra.mxu0 0.0
    %1072 = vmatprep.subr.mxu0 0.0
    %1073 = vmatpush1.msra.mxu0 0.0
    %1074 = vmatprep.subr.mxu0 0.0
    %1075 = vmatpush1.msra.mxu0 0.0
    %1076 = vmatprep.subr.mxu0 0.0
    %1077 = vmatpush1.msra.mxu0 0.0
    %1078 = vmatprep.subr.mxu0 0.0
    %1079 = vmatpush1.msra.mxu0 0.0
    %1080 = vmatprep.subr.mxu0 0.0
    %1081 = vmatpush1.msra.mxu0 0.0
    %1082 = vmatprep.subr.mxu0 0.0
    %1083 = vmatpush1.msra.mxu0 0.0
    %1084 = vmatprep.subr.mxu0 0.0
    %1085 = vmatpush1.msra.mxu0 0.0
    %1086 = vmatprep.subr.mxu0 0.0
    %1087 = vmatpush1.msra.mxu0 0.0
    %1088 = vmatprep.subr.mxu0 0.0
    %1089 = vmatpush1.msra.mxu0 0.0
    %1090 = vmatprep.subr.mxu0 0.0
    %1091 = vmatpush1.msra.mxu0 0.0
    %1092 = vmatprep.subr.mxu0 0.0
    %1093 = vmatpush1.msra.mxu0 0.0
    %1094 = vmatprep.subr.mxu0 0.0
    %1095 = vmatpush1.msra.mxu0 0.0
    %1096 = vmatprep.subr.mxu0 0.0
    %1097 = vmatpush1.msra.mxu0 0.0
    %1098 = vmatprep.subr.mxu0 0.0
    %1099 = vmatpush1.msra.mxu0 0.0
    %1100 = vmatprep.subr.mxu0 0.0
    %1101 = vmatpush1.msra.mxu0 0.0
    %1102 = vmatprep.subr.mxu0 0.0
    %1103 = vmatpush1.msra.mxu0 0.0
    %1104 = vmatprep.subr.mxu0 0.0
    %1105 = vmatpush1.msra.mxu0 0.0
    %1106 = vmatprep.subr.mxu0 0.0
    %1107 = vmatpush1.msra.mxu0 0.0
    %1108 = vmatprep.subr.mxu0 0.0
    %1109 = vmatpush1.msra.mxu0 0.0
    %1110 = vmatprep.subr.mxu0 0.0
    %1111 = vmatpush1.msra.mxu0 0.0
    %1112 = vmatprep.subr.mxu0 0.0
    %1113 = vmatpush1.msra.mxu0 0.0
    %1114 = vmatprep.subr.mxu0 0.0
    %1115 = vmatpush1.msra.mxu0 0.0
    %1116 = vmatprep.subr.mxu0 0.0
    %1117 = vmatpush1.msra.mxu0 0.0
    %1118 = vmatprep.subr.mxu0 0.0
    %1119 = vmatpush1.msra.mxu0 0.0
    %1120 = vmatprep.subr.mxu0 0.0
    %1121 = vmatpush1.msra.mxu0 0.0
    %1122 = vmatprep.subr.mxu0 0.0
    %1123 = vmatpush1.msra.mxu0 0.0
    %1124 = vmatprep.subr.mxu0 0.0
    %1125 = vmatpush1.msra.mxu0 0.0
    %1126 = vmatprep.subr.mxu0 0.0
    %1127 = vmatpush1.msra.mxu0 0.0
    %1128 = vmatprep.subr.mxu0 0.0
    %1129 = vmatpush1.msra.mxu0 0.0
    %1130 = vmatprep.mubr.f32.mxu0 0.0
    %1131 = vmatmul.mubr.f32.gmra.mrb[0].mxu0 %v907
    %v1132 = vpop.f32.mrb[0].mxu0
    %v1133 = vadd.f32 %v882, %v1132
    %v1134 = vpop.f32.mrb[0].mxu0
    %v1135 = vadd.f32 %v886, %v1134
    %1136 = vdwg.mxu0
    %1137 = vmatprep.subr.mxu0 0.0
    %1138 = vmatpush1.msra.mxu0 %v922
    %1139 = vmatprep.subr.mxu0 0.0
    %1140 = vmatpush1.msra.mxu0 0.0
    %1141 = vmatprep.subr.mxu0 0.0
    %1142 = vmatpush1.msra.mxu0 0.0
    %1143 = vmatprep.subr.mxu0 0.0
    %1144 = vmatpush1.msra.mxu0 0.0
    %1145 = vmatprep.subr.mxu0 0.0
    %1146 = vmatpush1.msra.mxu0 0.0
    %1147 = vmatprep.subr.mxu0 0.0
    %1148 = vmatpush1.msra.mxu0 0.0
    %1149 = vmatprep.subr.mxu0 0.0
    %1150 = vmatpush1.msra.mxu0 0.0
    %1151 = vmatprep.subr.mxu0 0.0
    %1152 = vmatpush1.msra.mxu0 0.0
    %1153 = vmatprep.subr.mxu0 0.0
    %1154 = vmatpush1.msra.mxu0 0.0
    %1155 = vmatprep.subr.mxu0 0.0
    %1156 = vmatpush1.msra.mxu0 0.0
    %1157 = vmatprep.subr.mxu0 0.0
    %1158 = vmatpush1.msra.mxu0 0.0
    %1159 = vmatprep.subr.mxu0 0.0
    %1160 = vmatpush1.msra.mxu0 0.0
    %1161 = vmatprep.subr.mxu0 0.0
    %1162 = vmatpush1.msra.mxu0 0.0
    %1163 = vmatprep.subr.mxu0 0.0
    %1164 = vmatpush1.msra.mxu0 0.0
    %1165 = vmatprep.subr.mxu0 0.0
    %1166 = vmatpush1.msra.mxu0 0.0
    %1167 = vmatprep.subr.mxu0 0.0
    %1168 = vmatpush1.msra.mxu0 0.0
    %1169 = vmatprep.subr.mxu0 0.0
    %1170 = vmatpush1.msra.mxu0 0.0
    %1171 = vmatprep.subr.mxu0 0.0
    %1172 = vmatpush1.msra.mxu0 0.0
    %1173 = vmatprep.subr.mxu0 0.0
    %1174 = vmatpush1.msra.mxu0 0.0
    %1175 = vmatprep.subr.mxu0 0.0
    %1176 = vmatpush1.msra.mxu0 0.0
    %1177 = vmatprep.subr.mxu0 0.0
    %1178 = vmatpush1.msra.mxu0 0.0
    %1179 = vmatprep.subr.mxu0 0.0
    %1180 = vmatpush1.msra.mxu0 0.0
    %1181 = vmatprep.subr.mxu0 0.0
    %1182 = vmatpush1.msra.mxu0 0.0
    %1183 = vmatprep.subr.mxu0 0.0
    %1184 = vmatpush1.msra.mxu0 0.0
    %1185 = vmatprep.subr.mxu0 0.0
    %1186 = vmatpush1.msra.mxu0 0.0
    %1187 = vmatprep.subr.mxu0 0.0
    %1188 = vmatpush1.msra.mxu0 0.0
    %1189 = vmatprep.subr.mxu0 0.0
    %1190 = vmatpush1.msra.mxu0 0.0
    %1191 = vmatprep.subr.mxu0 0.0
    %1192 = vmatpush1.msra.mxu0 0.0
    %1193 = vmatprep.subr.mxu0 0.0
    %1194 = vmatpush1.msra.mxu0 0.0
    %1195 = vmatprep.subr.mxu0 0.0
    %1196 = vmatpush1.msra.mxu0 0.0
    %1197 = vmatprep.subr.mxu0 0.0
    %1198 = vmatpush1.msra.mxu0 0.0
    %1199 = vmatprep.subr.mxu0 0.0
    %1200 = vmatpush1.msra.mxu0 0.0
    %1201 = vmatprep.mubr.f32.mxu0 0.0
    %1202 = vmatmul.mubr.f32.gmra.mrb[0].mxu0 %v907
    %v1203 = vpop.f32.mrb[0].mxu0
    %v1204 = vadd.f32 %v890, %v1203
    %v1205 = vpop.f32.mrb[0].mxu0
    %1206 = vdwg.mxu0
    %vm1207 = vcmask 17408
    %1208 = vst.msk [vmem:[#allocation2] sm:$0x3] %vm1207, %v463
    %1209 = vst.msk [vmem:[#allocation4] sm:$0x3] %vm1207, %v848
    %1210 = vst.msk [vmem:[#allocation6] sm:$0x3] %vm1207, %v856
    %v1218 = vcombine.low %v991, %v993
    %v1219 = vcombine.low %v1062, %v1064
    %v1221 = vunpack.c.l.s4 1983009808
    %v1222 = vunpack.c.0.s8 %v1221
    %v1223 = vlaneseq
    %v1224 = vshrl.u32 %v1223, 7
    %v1225 = vsub.s32 %v1222, %v1224
    %v1226 = vrot.slane %v1218, %v1225
    %v1228 = vunpack.c.l.s4 1983009808
    %v1229 = vunpack.c.0.s8 %v1228
    %v1230 = vlaneseq
    %v1231 = vshrl.u32 %v1230, 7
    %v1232 = vsub.s32 %v1229, %v1231
    %v1233 = vrot.slane %v1219, %v1232
    %v1234 = vcombine.low %v1226, %v1233
    %v1235 = vcombine.low %v1133, %v1135
    %v1237 = vunpack.c.l.s4 1983009808
    %v1238 = vunpack.c.0.s8 %v1237
    %v1239 = vlaneseq
    %v1240 = vshrl.u32 %v1239, 7
    %v1241 = vsub.s32 %v1238, %v1240
    %v1242 = vrot.slane %v1235, %v1241
    %v1244 = vunpack.c.l.s4 1983009808
    %v1245 = vunpack.c.0.s8 %v1244
    %v1246 = vlaneseq
    %v1247 = vshrl.u32 %v1246, 7
    %v1248 = vsub.s32 %v1245, %v1247
    %v1249 = vrot.slane %v1204, %v1248
    %v1250 = vcombine.low %v1242, %v1249
    %1253 = vst [vmem:[%s11] sm:$0xff] %v1234
    %vm1254 = vcmask 1041408
    %vm1255 = vcmask 1043458
    %vm1256 = vmor %vm1255, %vm1254
    %vm1257 = vcmask 128004
    %vm1258 = vmor %vm1257, %vm1256
    %1259 = vst.msk [vmem:[%s11 + $0x8] sm:$0x3f] %vm1258, %v1250
    // Predicated region
    $region34: #{vae_forward.9} parent=1 // pred_check
      _
    $region35: #{vae_forward.9} parent=1 // pred_check_branch
      %1261 = sbr.rel (0) target = $region37
    $region36: #{vae_forward.9} parent=1 // pred_region
      %s1263 = ssub.s32 32, 32
      %1264 = vsyncadd [#allocation3], %s1263
      %s1266 = sshll.u32 [#allocation2], 4
      %s1267 = int_to_ptr.vmem [resolvable:$true] %s1266
      %1269 = dma.vmem_to_hbm [thread:$0]  %s1267, 32, %s8, [#allocation3]
    $region37: #{vae_forward.9} parent=1 // pred_fallthru
      _
    // Predicated region
    $region38: #{vae_forward.9} parent=1 // pred_check
      _
    $region39: #{vae_forward.9} parent=1 // pred_check_branch
      %1271 = sbr.rel (0) target = $region41
    $region40: #{vae_forward.9} parent=1 // pred_region
      %s1273 = ssub.s32 32, 32
      %1274 = vsyncadd [#allocation5], %s1273
      %s1276 = sshll.u32 [#allocation4], 4
      %s1277 = int_to_ptr.vmem [resolvable:$true] %s1276
      %1279 = dma.vmem_to_hbm [thread:$0]  %s1277, 32, %s9, [#allocation5]
    $region41: #{vae_forward.9} parent=1 // pred_fallthru
      _
    // Predicated region
    $region42: #{vae_forward.9} parent=1 // pred_check
      _
    $region43: #{vae_forward.9} parent=1 // pred_check_branch
      %1281 = sbr.rel (0) target = $region45
    $region44: #{vae_forward.9} parent=1 // pred_region
      %s1283 = ssub.s32 32, 32
      %1284 = vsyncadd [#allocation5], %s1283
      %s1286 = sshll.u32 [#allocation6], 4
      %s1287 = int_to_ptr.vmem [resolvable:$true] %s1286
      %1289 = dma.vmem_to_hbm [thread:$0]  %s1287, 32, %s10, [#allocation5]
    $region45: #{vae_forward.9} parent=1 // pred_fallthru
      _
    // Predicated region
    $region46: #{vae_forward.9} parent=1 // pred_check
      _
    $region47: #{vae_forward.9} parent=1 // pred_check_branch
      %1291 = sbr.rel (0) target = $region49
    $region48: #{vae_forward.9} parent=1 // pred_region
      _
    $region49: #{vae_forward.9} parent=1 // pred_fallthru
      _
    // Predicated region
    $region50: #{vae_forward.9} parent=1 // pred_check
      _
    $region51: #{vae_forward.9} parent=1 // pred_check_branch
      %1293 = sbr.rel (0) target = $region53
    $region52: #{vae_forward.9} parent=1 // pred_region
      %1294 = dma.done [#allocation3], 32
    $region53: #{vae_forward.9} parent=1 // pred_fallthru
      _
    // Predicated region
    $region54: #{vae_forward.9} parent=1 // pred_check
      _
    $region55: #{vae_forward.9} parent=1 // pred_check_branch
      %1296 = sbr.rel (0) target = $region57
    $region56: #{vae_forward.9} parent=1 // pred_region
      %1297 = dma.done [#allocation5], 32
    $region57: #{vae_forward.9} parent=1 // pred_fallthru
      _
    // Predicated region
    $region58: #{vae_forward.9} parent=1 // pred_check
      _
    $region59: #{vae_forward.9} parent=1 // pred_check_branch
      %1299 = sbr.rel (0) target = $region61
    $region60: #{vae_forward.9} parent=1 // pred_region
      %1300 = dma.done [#allocation5], 32
    $region61: #{vae_forward.9} parent=1 // pred_fallthru
      _
    // Predicated region
    $region62: #{vae_forward.9} parent=1 // pred_check
      _
    $region63: #{vae_forward.9} parent=1 // pred_check_branch
      %1302 = sbr.rel (0) target = $region65
    $region64: #{vae_forward.9} parent=1 // pred_region
      _
    $region65: #{vae_forward.9} parent=1 // pred_fallthru
      _
    %1303 = vsyncpa [#allocation3], 1
    %1304 = vsyncpa [#allocation5], 1

// kernel: vae_forward.10
$region0: #{vae_forward.10}
  #allocation0 [shape = 'u32[]', space=smem, size = 0x4, offset = 0x4, fixed_abs, tag = 'smem constant byte address 0x4 - core index']
  #allocation1 [shape = 'u32[144,128]{1,0:T(1,128)}', space=vmem, size = 0x12000, scoped, tag = 'internal scratch']
  %s0 = inlined_call_operand.vmem [shape: f32[392,256], index: 0, kind: input, shape index: {}]
  %s1 = inlined_call_operand.vmem [shape: f32[256,16], index: 1, kind: input, shape index: {}]
  %s2 = inlined_call_operand.vmem [shape: f32[1,16], index: 2, kind: input, shape index: {}]
  %s3 = inlined_call_operand.vmem [shape: f32[1,16], index: 3, kind: input, shape index: {}]
  %s4 = inlined_call_operand.vmem [shape: f32[1,16], index: 4, kind: input, shape index: {}]
  %s5 = inlined_call_operand.vmem [shape: f32[392,16], index: 5, kind: output, shape index: {}]
  %s6 = sld [smem:[#allocation0]]
  $region30: #{vae_forward.10} parent=0
    _
  %s8 = ssub.s32 1, %s6
  %s9 = scalar_select 0, %s8, %s6
  // Predicated region
  $region2: #{vae_forward.10} parent=0 // pred_check
    _
  $region3: #{vae_forward.10} parent=0 // pred_check_branch
    %11 = sbr.rel (0) target = $region5
  $region4: #{vae_forward.10} parent=0 // pred_region
    _
  $region5: #{vae_forward.10} parent=0 // pred_fallthru
    _
  // Predicated region
  $region6: #{vae_forward.10} parent=0 // pred_check
    _
  $region7: #{vae_forward.10} parent=0 // pred_check_branch
    %13 = sbr.rel (0) target = $region9
  $region8: #{vae_forward.10} parent=0 // pred_region
    _
  $region9: #{vae_forward.10} parent=0 // pred_fallthru
    _
  // Predicated region
  $region10: #{vae_forward.10} parent=0 // pred_check
    _
  $region11: #{vae_forward.10} parent=0 // pred_check_branch
    %15 = sbr.rel (0) target = $region13
  $region12: #{vae_forward.10} parent=0 // pred_region
    _
  $region13: #{vae_forward.10} parent=0 // pred_fallthru
    _
  // Predicated region
  $region14: #{vae_forward.10} parent=0 // pred_check
    _
  $region15: #{vae_forward.10} parent=0 // pred_check_branch
    %17 = sbr.rel (0) target = $region17
  $region16: #{vae_forward.10} parent=0 // pred_region
    _
  $region17: #{vae_forward.10} parent=0 // pred_fallthru
    _
  // Predicated region
  $region18: #{vae_forward.10} parent=0 // pred_check
    _
  $region19: #{vae_forward.10} parent=0 // pred_check_branch
    %19 = sbr.rel (0) target = $region21
  $region20: #{vae_forward.10} parent=0 // pred_region
    _
  $region21: #{vae_forward.10} parent=0 // pred_fallthru
    _
  %v20 = vld [vmem:[%s0] sm:$0xff]
  %v21 = vld [vmem:[%s0 + $0x8] sm:$0xff]
  %v22 = vld [vmem:[%s0 + $0x10] sm:$0xff]
  %v23 = vld [vmem:[%s0 + $0x18] sm:$0xff]
  %v24 = vld [vmem:[%s0 + $0x20] sm:$0xff]
  %v25 = vld [vmem:[%s0 + $0x28] sm:$0xff]
  %v26 = vld [vmem:[%s0 + $0x30] sm:$0xff]
  %v27 = vld [vmem:[%s0 + $0x38] sm:$0xff]
  %v28 = vld [vmem:[%s0 + $0x40] sm:$0xff]
  %v29 = vld [vmem:[%s0 + $0x48] sm:$0xff]
  %v30 = vld [vmem:[%s0 + $0x50] sm:$0xff]
  %v31 = vld [vmem:[%s0 + $0x58] sm:$0xff]
  %v32 = vld [vmem:[%s0 + $0x60] sm:$0xff]
  %v33 = vld [vmem:[%s0 + $0x68] sm:$0xff]
  %v34 = vld [vmem:[%s0 + $0x70] sm:$0xff]
  %v35 = vld [vmem:[%s0 + $0x78] sm:$0xff]
  %v36 = vld [vmem:[%s0 + $0x80] sm:$0xff]
  %v37 = vld [vmem:[%s0 + $0x88] sm:$0xff]
  %v38 = vld [vmem:[%s0 + $0x90] sm:$0xff]
  %v39 = vld [vmem:[%s0 + $0x98] sm:$0xff]
  %v40 = vld [vmem:[%s0 + $0xa0] sm:$0xff]
  %v41 = vld [vmem:[%s0 + $0xa8] sm:$0xff]
  %v42 = vld [vmem:[%s0 + $0xb0] sm:$0xff]
  %v43 = vld [vmem:[%s0 + $0xb8] sm:$0xff]
  %v44 = vld [vmem:[%s0 + $0xc0] sm:$0xff]
  %v45 = vld [vmem:[%s0 + $0xc8] sm:$0xff]
  %v46 = vld [vmem:[%s0 + $0xd0] sm:$0xff]
  %v47 = vld [vmem:[%s0 + $0xd8] sm:$0xff]
  %v48 = vld [vmem:[%s0 + $0xe0] sm:$0xff]
  %v49 = vld [vmem:[%s0 + $0xe8] sm:$0xff]
  %v50 = vld [vmem:[%s0 + $0xf0] sm:$0xff]
  %v51 = vld [vmem:[%s0 + $0xf8] sm:$0xff]
  %v52 = vld [vmem:[%s0 + $0x100] sm:$0xff]
  %v53 = vld [vmem:[%s0 + $0x108] sm:$0xff]
  %v54 = vld [vmem:[%s0 + $0x110] sm:$0xff]
  %v55 = vld [vmem:[%s0 + $0x118] sm:$0xff]
  %v56 = vld [vmem:[%s0 + $0x120] sm:$0xff]
  %v57 = vld [vmem:[%s0 + $0x128] sm:$0xff]
  %v58 = vld [vmem:[%s0 + $0x130] sm:$0xff]
  %v59 = vld [vmem:[%s0 + $0x138] sm:$0xff]
  %v60 = vld [vmem:[%s0 + $0x140] sm:$0xff]
  %v61 = vld [vmem:[%s0 + $0x148] sm:$0xff]
  %v62 = vld [vmem:[%s0 + $0x150] sm:$0xff]
  %v63 = vld [vmem:[%s0 + $0x158] sm:$0xff]
  %v64 = vld [vmem:[%s0 + $0x160] sm:$0xff]
  %v65 = vld [vmem:[%s0 + $0x168] sm:$0xff]
  %v66 = vld [vmem:[%s0 + $0x170] sm:$0xff]
  %v67 = vld [vmem:[%s0 + $0x178] sm:$0xff]
  %v68 = vld [vmem:[%s0 + $0x180] sm:$0xff]
  %v69 = vld [vmem:[%s0 + $0x188] sm:$0xff]
  %v70 = vld [vmem:[%s0 + $0x190] sm:$0xff]
  %v71 = vld [vmem:[%s0 + $0x198] sm:$0xff]
  %v72 = vld [vmem:[%s0 + $0x1a0] sm:$0xff]
  %v73 = vld [vmem:[%s0 + $0x1a8] sm:$0xff]
  %v74 = vld [vmem:[%s0 + $0x1b0] sm:$0xff]
  %v75 = vld [vmem:[%s0 + $0x1b8] sm:$0xff]
  %v76 = vld [vmem:[%s0 + $0x1c0] sm:$0xff]
  %v77 = vld [vmem:[%s0 + $0x1c8] sm:$0xff]
  %v78 = vld [vmem:[%s0 + $0x1d0] sm:$0xff]
  %v79 = vld [vmem:[%s0 + $0x1d8] sm:$0xff]
  %v80 = vld [vmem:[%s0 + $0x1e0] sm:$0xff]
  %v81 = vld [vmem:[%s0 + $0x1e8] sm:$0xff]
  %v82 = vld [vmem:[%s0 + $0x1f0] sm:$0xff]
  %v83 = vld [vmem:[%s0 + $0x1f8] sm:$0xff]
  %v84 = vld [vmem:[%s0 + $0x200] sm:$0xff]
  %v85 = vld [vmem:[%s0 + $0x208] sm:$0xff]
  %v86 = vld [vmem:[%s0 + $0x210] sm:$0xff]
  %v87 = vld [vmem:[%s0 + $0x218] sm:$0xff]
  %v88 = vld [vmem:[%s0 + $0x220] sm:$0xff]
  %v89 = vld [vmem:[%s0 + $0x228] sm:$0xff]
  %v90 = vld [vmem:[%s0 + $0x230] sm:$0xff]
  %v91 = vld [vmem:[%s0 + $0x238] sm:$0xff]
  %v92 = vld [vmem:[%s0 + $0x240] sm:$0xff]
  %v93 = vld [vmem:[%s0 + $0x248] sm:$0xff]
  %v94 = vld [vmem:[%s0 + $0x250] sm:$0xff]
  %v95 = vld [vmem:[%s0 + $0x258] sm:$0xff]
  %v96 = vld [vmem:[%s0 + $0x260] sm:$0xff]
  %v97 = vld [vmem:[%s0 + $0x268] sm:$0xff]
  %v98 = vld [vmem:[%s0 + $0x270] sm:$0xff]
  %v99 = vld [vmem:[%s0 + $0x278] sm:$0xff]
  %v100 = vld [vmem:[%s0 + $0x280] sm:$0xff]
  %v101 = vld [vmem:[%s0 + $0x288] sm:$0xff]
  %v102 = vld [vmem:[%s0 + $0x290] sm:$0xff]
  %v103 = vld [vmem:[%s0 + $0x298] sm:$0xff]
  %v104 = vld [vmem:[%s0 + $0x2a0] sm:$0xff]
  %v105 = vld [vmem:[%s0 + $0x2a8] sm:$0xff]
  %v106 = vld [vmem:[%s0 + $0x2b0] sm:$0xff]
  %v107 = vld [vmem:[%s0 + $0x2b8] sm:$0xff]
  %v108 = vld [vmem:[%s0 + $0x2c0] sm:$0xff]
  %v109 = vld [vmem:[%s0 + $0x2c8] sm:$0xff]
  %v110 = vld [vmem:[%s0 + $0x2d0] sm:$0xff]
  %v111 = vld [vmem:[%s0 + $0x2d8] sm:$0xff]
  %v112 = vld [vmem:[%s0 + $0x2e0] sm:$0xff]
  %v113 = vld [vmem:[%s0 + $0x2e8] sm:$0xff]
  %v114 = vld [vmem:[%s0 + $0x2f0] sm:$0xff]
  %v115 = vld [vmem:[%s0 + $0x2f8] sm:$0xff]
  %v116 = vld [vmem:[%s0 + $0x300] sm:$0xff]
  %v117 = vld [vmem:[%s0 + $0x308] sm:$0xff]
  %v118 = vld [vmem:[%s1] sm:$0xff]
  %v119 = vld [vmem:[%s1 + $0x8] sm:$0xff]
  %v120 = vld [vmem:[%s1 + $0x10] sm:$0xff]
  %v121 = vld [vmem:[%s1 + $0x18] sm:$0xff]
  %v122 = vld [vmem:[%s1 + $0x20] sm:$0xff]
  %v123 = vld [vmem:[%s1 + $0x28] sm:$0xff]
  %v124 = vld [vmem:[%s1 + $0x30] sm:$0xff]
  %v125 = vld [vmem:[%s1 + $0x38] sm:$0xff]
  %v126 = vld [vmem:[%s1 + $0x40] sm:$0xff]
  %v127 = vld [vmem:[%s1 + $0x48] sm:$0xff]
  %v128 = vld [vmem:[%s1 + $0x50] sm:$0xff]
  %v129 = vld [vmem:[%s1 + $0x58] sm:$0xff]
  %v130 = vld [vmem:[%s1 + $0x60] sm:$0xff]
  %v131 = vld [vmem:[%s1 + $0x68] sm:$0xff]
  %v132 = vld [vmem:[%s1 + $0x70] sm:$0xff]
  %v133 = vld [vmem:[%s1 + $0x78] sm:$0xff]
  %v134 = vld [vmem:[%s1 + $0x80] sm:$0xff]
  %v135 = vld [vmem:[%s1 + $0x88] sm:$0xff]
  %v136 = vld [vmem:[%s1 + $0x90] sm:$0xff]
  %v137 = vld [vmem:[%s1 + $0x98] sm:$0xff]
  %v138 = vld [vmem:[%s1 + $0xa0] sm:$0xff]
  %v139 = vld [vmem:[%s1 + $0xa8] sm:$0xff]
  %v140 = vld [vmem:[%s1 + $0xb0] sm:$0xff]
  %v141 = vld [vmem:[%s1 + $0xb8] sm:$0xff]
  %v142 = vld [vmem:[%s1 + $0xc0] sm:$0xff]
  %v143 = vld [vmem:[%s1 + $0xc8] sm:$0xff]
  %v144 = vld [vmem:[%s1 + $0xd0] sm:$0xff]
  %v145 = vld [vmem:[%s1 + $0xd8] sm:$0xff]
  %v146 = vld [vmem:[%s1 + $0xe0] sm:$0xff]
  %v147 = vld [vmem:[%s1 + $0xe8] sm:$0xff]
  %v148 = vld [vmem:[%s1 + $0xf0] sm:$0xff]
  %v149 = vld [vmem:[%s1 + $0xf8] sm:$0xff]
  %v150 = vld [vmem:[%s2] sm:$0x1]
  %v152 = vlaneseq
  %v153 = vshrl.u32 %v152, 7
  %v154 = vsub.s32 0, %v153
  %v155 = vrot.slane %v150, %v154
  %157 = vmatprep.subr.mxu0 0.0
  %158 = vmatpush1.msra.mxu0 %v118
  %159 = vmatprep.subr.mxu0 0.0
  %160 = vmatpush1.msra.mxu0 %v119
  %161 = vmatprep.subr.mxu0 0.0
  %162 = vmatpush1.msra.mxu0 %v120
  %163 = vmatprep.subr.mxu0 0.0
  %164 = vmatpush1.msra.mxu0 %v121
  %165 = vmatprep.subr.mxu0 0.0
  %166 = vmatpush1.msra.mxu0 %v122
  %167 = vmatprep.subr.mxu0 0.0
  %168 = vmatpush1.msra.mxu0 %v123
  %169 = vmatprep.subr.mxu0 0.0
  %170 = vmatpush1.msra.mxu0 %v124
  %171 = vmatprep.subr.mxu0 0.0
  %172 = vmatpush1.msra.mxu0 %v125
  %173 = vmatprep.subr.mxu0 0.0
  %174 = vmatpush1.msra.mxu0 %v126
  %175 = vmatprep.subr.mxu0 0.0
  %176 = vmatpush1.msra.mxu0 %v127
  %177 = vmatprep.subr.mxu0 0.0
  %178 = vmatpush1.msra.mxu0 %v128
  %179 = vmatprep.subr.mxu0 0.0
  %180 = vmatpush1.msra.mxu0 %v129
  %181 = vmatprep.subr.mxu0 0.0
  %182 = vmatpush1.msra.mxu0 %v130
  %183 = vmatprep.subr.mxu0 0.0
  %184 = vmatpush1.msra.mxu0 %v131
  %185 = vmatprep.subr.mxu0 0.0
  %186 = vmatpush1.msra.mxu0 %v132
  %187 = vmatprep.subr.mxu0 0.0
  %188 = vmatpush1.msra.mxu0 %v133
  %189 = vmatprep.subr.mxu0 0.0
  %190 = vmatpush1.msra.mxu0 %v134
  %191 = vmatprep.subr.mxu0 0.0
  %192 = vmatpush1.msra.mxu0 %v135
  %193 = vmatprep.subr.mxu0 0.0
  %194 = vmatpush1.msra.mxu0 %v136
  %195 = vmatprep.subr.mxu0 0.0
  %196 = vmatpush1.msra.mxu0 %v137
  %197 = vmatprep.subr.mxu0 0.0
  %198 = vmatpush1.msra.mxu0 %v138
  %199 = vmatprep.subr.mxu0 0.0
  %200 = vmatpush1.msra.mxu0 %v139
  %201 = vmatprep.subr.mxu0 0.0
  %202 = vmatpush1.msra.mxu0 %v140
  %203 = vmatprep.subr.mxu0 0.0
  %204 = vmatpush1.msra.mxu0 %v141
  %205 = vmatprep.subr.mxu0 0.0
  %206 = vmatpush1.msra.mxu0 %v142
  %207 = vmatprep.subr.mxu0 0.0
  %208 = vmatpush1.msra.mxu0 %v143
  %209 = vmatprep.subr.mxu0 0.0
  %210 = vmatpush1.msra.mxu0 %v144
  %211 = vmatprep.subr.mxu0 0.0
  %212 = vmatpush1.msra.mxu0 %v145
  %213 = vmatprep.subr.mxu0 0.0
  %214 = vmatpush1.msra.mxu0 %v146
  %215 = vmatprep.subr.mxu0 0.0
  %216 = vmatpush1.msra.mxu0 %v147
  %217 = vmatprep.subr.mxu0 0.0
  %218 = vmatpush1.msra.mxu0 %v148
  %219 = vmatprep.subr.mxu0 0.0
  %220 = vmatpush1.msra.mxu0 %v149
  %221 = vmatprep.mubr.f32.mxu0 %v21
  %222 = vmatmul.mubr.f32.gmra.mrb[0].mxu0 %v20
  %v223 = vpop.f32.mrb[0].mxu0
  %v224 = vadd.f32 %v155, %v223
  %v225 = vpop.f32.mrb[0].mxu0
  %226 = vmatprep.mubr.f32.mxu0 %v23
  %227 = vmatmul.mubr.f32.gmra.mrb[0].mxu0 %v22
  %v228 = vpop.f32.mrb[0].mxu0
  %v229 = vadd.f32 %v155, %v228
  %v230 = vpop.f32.mrb[0].mxu0
  %231 = vmatprep.mubr.f32.mxu0 %v25
  %232 = vmatmul.mubr.f32.gmra.mrb[0].mxu0 %v24
  %v233 = vpop.f32.mrb[0].mxu0
  %v234 = vadd.f32 %v155, %v233
  %v235 = vpop.f32.mrb[0].mxu0
  %236 = vmatprep.mubr.f32.mxu0 %v27
  %237 = vmatmul.mubr.f32.gmra.mrb[0].mxu0 %v26
  %v238 = vpop.f32.mrb[0].mxu0
  %v239 = vadd.f32 %v155, %v238
  %v240 = vpop.f32.mrb[0].mxu0
  %241 = vmatprep.mubr.f32.mxu0 %v29
  %242 = vmatmul.mubr.f32.gmra.mrb[0].mxu0 %v28
  %v243 = vpop.f32.mrb[0].mxu0
  %v244 = vadd.f32 %v155, %v243
  %v245 = vpop.f32.mrb[0].mxu0
  %246 = vmatprep.mubr.f32.mxu0 %v31
  %247 = vmatmul.mubr.f32.gmra.mrb[0].mxu0 %v30
  %v248 = vpop.f32.mrb[0].mxu0
  %v249 = vadd.f32 %v155, %v248
  %v250 = vpop.f32.mrb[0].mxu0
  %251 = vmatprep.mubr.f32.mxu0 %v33
  %252 = vmatmul.mubr.f32.gmra.mrb[0].mxu0 %v32
  %v253 = vpop.f32.mrb[0].mxu0
  %v254 = vadd.f32 %v155, %v253
  %v255 = vpop.f32.mrb[0].mxu0
  %256 = vmatprep.mubr.f32.mxu0 %v35
  %257 = vmatmul.mubr.f32.gmra.mrb[0].mxu0 %v34
  %v258 = vpop.f32.mrb[0].mxu0
  %v259 = vadd.f32 %v155, %v258
  %v260 = vpop.f32.mrb[0].mxu0
  %261 = vmatprep.mubr.f32.mxu0 %v37
  %262 = vmatmul.mubr.f32.gmra.mrb[0].mxu0 %v36
  %v263 = vpop.f32.mrb[0].mxu0
  %v264 = vadd.f32 %v155, %v263
  %v265 = vpop.f32.mrb[0].mxu0
  %266 = vmatprep.mubr.f32.mxu0 %v39
  %267 = vmatmul.mubr.f32.gmra.mrb[0].mxu0 %v38
  %v268 = vpop.f32.mrb[0].mxu0
  %v269 = vadd.f32 %v155, %v268
  %v270 = vpop.f32.mrb[0].mxu0
  %271 = vmatprep.mubr.f32.mxu0 %v41
  %272 = vmatmul.mubr.f32.gmra.mrb[0].mxu0 %v40
  %v273 = vpop.f32.mrb[0].mxu0
  %v274 = vadd.f32 %v155, %v273
  %v275 = vpop.f32.mrb[0].mxu0
  %276 = vmatprep.mubr.f32.mxu0 %v43
  %277 = vmatmul.mubr.f32.gmra.mrb[0].mxu0 %v42
  %v278 = vpop.f32.mrb[0].mxu0
  %v279 = vadd.f32 %v155, %v278
  %v280 = vpop.f32.mrb[0].mxu0
  %281 = vmatprep.mubr.f32.mxu0 %v45
  %282 = vmatmul.mubr.f32.gmra.mrb[0].mxu0 %v44
  %v283 = vpop.f32.mrb[0].mxu0
  %v284 = vadd.f32 %v155, %v283
  %v285 = vpop.f32.mrb[0].mxu0
  %286 = vmatprep.mubr.f32.mxu0 %v47
  %287 = vmatmul.mubr.f32.gmra.mrb[0].mxu0 %v46
  %v288 = vpop.f32.mrb[0].mxu0
  %v289 = vadd.f32 %v155, %v288
  %v290 = vpop.f32.mrb[0].mxu0
  %291 = vmatprep.mubr.f32.mxu0 %v49
  %292 = vmatmul.mubr.f32.gmra.mrb[0].mxu0 %v48
  %v293 = vpop.f32.mrb[0].mxu0
  %v294 = vadd.f32 %v155, %v293
  %v295 = vpop.f32.mrb[0].mxu0
  %296 = vmatprep.mubr.f32.mxu0 %v51
  %297 = vmatmul.mubr.f32.gmra.mrb[0].mxu0 %v50
  %v298 = vpop.f32.mrb[0].mxu0
  %v299 = vadd.f32 %v155, %v298
  %v300 = vpop.f32.mrb[0].mxu0
  %301 = vmatprep.mubr.f32.mxu0 %v53
  %302 = vmatmul.mubr.f32.gmra.mrb[0].mxu0 %v52
  %v303 = vpop.f32.mrb[0].mxu0
  %v304 = vadd.f32 %v155, %v303
  %v305 = vpop.f32.mrb[0].mxu0
  %306 = vmatprep.mubr.f32.mxu0 %v55
  %307 = vmatmul.mubr.f32.gmra.mrb[0].mxu0 %v54
  %v308 = vpop.f32.mrb[0].mxu0
  %v309 = vadd.f32 %v155, %v308
  %v310 = vpop.f32.mrb[0].mxu0
  %311 = vmatprep.mubr.f32.mxu0 %v57
  %312 = vmatmul.mubr.f32.gmra.mrb[0].mxu0 %v56
  %v313 = vpop.f32.mrb[0].mxu0
  %v314 = vadd.f32 %v155, %v313
  %v315 = vpop.f32.mrb[0].mxu0
  %316 = vmatprep.mubr.f32.mxu0 %v59
  %317 = vmatmul.mubr.f32.gmra.mrb[0].mxu0 %v58
  %v318 = vpop.f32.mrb[0].mxu0
  %v319 = vadd.f32 %v155, %v318
  %v320 = vpop.f32.mrb[0].mxu0
  %321 = vmatprep.mubr.f32.mxu0 %v61
  %322 = vmatmul.mubr.f32.gmra.mrb[0].mxu0 %v60
  %v323 = vpop.f32.mrb[0].mxu0
  %v324 = vadd.f32 %v155, %v323
  %v325 = vpop.f32.mrb[0].mxu0
  %326 = vmatprep.mubr.f32.mxu0 %v63
  %327 = vmatmul.mubr.f32.gmra.mrb[0].mxu0 %v62
  %v328 = vpop.f32.mrb[0].mxu0
  %v329 = vadd.f32 %v155, %v328
  %v330 = vpop.f32.mrb[0].mxu0
  %331 = vmatprep.mubr.f32.mxu0 %v65
  %332 = vmatmul.mubr.f32.gmra.mrb[0].mxu0 %v64
  %v333 = vpop.f32.mrb[0].mxu0
  %v334 = vadd.f32 %v155, %v333
  %v335 = vpop.f32.mrb[0].mxu0
  %336 = vmatprep.mubr.f32.mxu0 %v67
  %337 = vmatmul.mubr.f32.gmra.mrb[0].mxu0 %v66
  %v338 = vpop.f32.mrb[0].mxu0
  %v339 = vadd.f32 %v155, %v338
  %v340 = vpop.f32.mrb[0].mxu0
  %341 = vmatprep.mubr.f32.mxu0 %v69
  %342 = vmatmul.mubr.f32.gmra.mrb[0].mxu0 %v68
  %v343 = vpop.f32.mrb[0].mxu0
  %v344 = vadd.f32 %v155, %v343
  %v345 = vpop.f32.mrb[0].mxu0
  %346 = vmatprep.mubr.f32.mxu0 %v71
  %347 = vmatmul.mubr.f32.gmra.mrb[0].mxu0 %v70
  %v348 = vpop.f32.mrb[0].mxu0
  %v349 = vadd.f32 %v155, %v348
  %v350 = vpop.f32.mrb[0].mxu0
  %351 = vmatprep.mubr.f32.mxu0 %v73
  %352 = vmatmul.mubr.f32.gmra.mrb[0].mxu0 %v72
  %v353 = vpop.f32.mrb[0].mxu0
  %v354 = vadd.f32 %v155, %v353
  %v355 = vpop.f32.mrb[0].mxu0
  %356 = vmatprep.mubr.f32.mxu0 %v75
  %357 = vmatmul.mubr.f32.gmra.mrb[0].mxu0 %v74
  %v358 = vpop.f32.mrb[0].mxu0
  %v359 = vadd.f32 %v155, %v358
  %v360 = vpop.f32.mrb[0].mxu0
  %361 = vmatprep.mubr.f32.mxu0 %v77
  %362 = vmatmul.mubr.f32.gmra.mrb[0].mxu0 %v76
  %v363 = vpop.f32.mrb[0].mxu0
  %v364 = vadd.f32 %v155, %v363
  %v365 = vpop.f32.mrb[0].mxu0
  %366 = vmatprep.mubr.f32.mxu0 %v79
  %367 = vmatmul.mubr.f32.gmra.mrb[0].mxu0 %v78
  %v368 = vpop.f32.mrb[0].mxu0
  %v369 = vadd.f32 %v155, %v368
  %v370 = vpop.f32.mrb[0].mxu0
  %371 = vmatprep.mubr.f32.mxu0 %v81
  %372 = vmatmul.mubr.f32.gmra.mrb[0].mxu0 %v80
  %v373 = vpop.f32.mrb[0].mxu0
  %v374 = vadd.f32 %v155, %v373
  %v375 = vpop.f32.mrb[0].mxu0
  %376 = vmatprep.mubr.f32.mxu0 %v83
  %377 = vmatmul.mubr.f32.gmra.mrb[0].mxu0 %v82
  %v378 = vpop.f32.mrb[0].mxu0
  %v379 = vadd.f32 %v155, %v378
  %v380 = vpop.f32.mrb[0].mxu0
  %381 = vmatprep.mubr.f32.mxu0 %v85
  %382 = vmatmul.mubr.f32.gmra.mrb[0].mxu0 %v84
  %v383 = vpop.f32.mrb[0].mxu0
  %v384 = vadd.f32 %v155, %v383
  %v385 = vpop.f32.mrb[0].mxu0
  %386 = vmatprep.mubr.f32.mxu0 %v87
  %387 = vmatmul.mubr.f32.gmra.mrb[0].mxu0 %v86
  %v388 = vpop.f32.mrb[0].mxu0
  %v389 = vadd.f32 %v155, %v388
  %v390 = vpop.f32.mrb[0].mxu0
  %391 = vmatprep.mubr.f32.mxu0 %v89
  %392 = vmatmul.mubr.f32.gmra.mrb[0].mxu0 %v88
  %v393 = vpop.f32.mrb[0].mxu0
  %v394 = vadd.f32 %v155, %v393
  %v395 = vpop.f32.mrb[0].mxu0
  %396 = vmatprep.mubr.f32.mxu0 %v91
  %397 = vmatmul.mubr.f32.gmra.mrb[0].mxu0 %v90
  %v398 = vpop.f32.mrb[0].mxu0
  %v399 = vadd.f32 %v155, %v398
  %v400 = vpop.f32.mrb[0].mxu0
  %401 = vmatprep.mubr.f32.mxu0 %v93
  %402 = vmatmul.mubr.f32.gmra.mrb[0].mxu0 %v92
  %v403 = vpop.f32.mrb[0].mxu0
  %v404 = vadd.f32 %v155, %v403
  %v405 = vpop.f32.mrb[0].mxu0
  %406 = vmatprep.mubr.f32.mxu0 %v95
  %407 = vmatmul.mubr.f32.gmra.mrb[0].mxu0 %v94
  %v408 = vpop.f32.mrb[0].mxu0
  %v409 = vadd.f32 %v155, %v408
  %v410 = vpop.f32.mrb[0].mxu0
  %411 = vmatprep.mubr.f32.mxu0 %v97
  %412 = vmatmul.mubr.f32.gmra.mrb[0].mxu0 %v96
  %v413 = vpop.f32.mrb[0].mxu0
  %v414 = vadd.f32 %v155, %v413
  %v415 = vpop.f32.mrb[0].mxu0
  %416 = vmatprep.mubr.f32.mxu0 %v99
  %417 = vmatmul.mubr.f32.gmra.mrb[0].mxu0 %v98
  %v418 = vpop.f32.mrb[0].mxu0
  %v419 = vadd.f32 %v155, %v418
  %v420 = vpop.f32.mrb[0].mxu0
  %421 = vmatprep.mubr.f32.mxu0 %v101
  %422 = vmatmul.mubr.f32.gmra.mrb[0].mxu0 %v100
  %v423 = vpop.f32.mrb[0].mxu0
  %v424 = vadd.f32 %v155, %v423
  %v425 = vpop.f32.mrb[0].mxu0
  %426 = vmatprep.mubr.f32.mxu0 %v103
  %427 = vmatmul.mubr.f32.gmra.mrb[0].mxu0 %v102
  %v428 = vpop.f32.mrb[0].mxu0
  %v429 = vadd.f32 %v155, %v428
  %v430 = vpop.f32.mrb[0].mxu0
  %431 = vmatprep.mubr.f32.mxu0 %v105
  %432 = vmatmul.mubr.f32.gmra.mrb[0].mxu0 %v104
  %v433 = vpop.f32.mrb[0].mxu0
  %v434 = vadd.f32 %v155, %v433
  %v435 = vpop.f32.mrb[0].mxu0
  %436 = vmatprep.mubr.f32.mxu0 %v107
  %437 = vmatmul.mubr.f32.gmra.mrb[0].mxu0 %v106
  %v438 = vpop.f32.mrb[0].mxu0
  %v439 = vadd.f32 %v155, %v438
  %v440 = vpop.f32.mrb[0].mxu0
  %441 = vmatprep.mubr.f32.mxu0 %v109
  %442 = vmatmul.mubr.f32.gmra.mrb[0].mxu0 %v108
  %v443 = vpop.f32.mrb[0].mxu0
  %v444 = vadd.f32 %v155, %v443
  %v445 = vpop.f32.mrb[0].mxu0
  %446 = vmatprep.mubr.f32.mxu0 %v111
  %447 = vmatmul.mubr.f32.gmra.mrb[0].mxu0 %v110
  %v448 = vpop.f32.mrb[0].mxu0
  %v449 = vadd.f32 %v155, %v448
  %v450 = vpop.f32.mrb[0].mxu0
  %451 = vmatprep.mubr.f32.mxu0 %v113
  %452 = vmatmul.mubr.f32.gmra.mrb[0].mxu0 %v112
  %v453 = vpop.f32.mrb[0].mxu0
  %v454 = vadd.f32 %v155, %v453
  %v455 = vpop.f32.mrb[0].mxu0
  %456 = vmatprep.mubr.f32.mxu0 %v115
  %457 = vmatmul.mubr.f32.gmra.mrb[0].mxu0 %v114
  %v458 = vpop.f32.mrb[0].mxu0
  %v459 = vadd.f32 %v155, %v458
  %v460 = vpop.f32.mrb[0].mxu0
  %461 = vmatprep.mubr.f32.mxu0 %v117
  %462 = vmatmul.mubr.f32.gmra.mrb[0].mxu0 %v116
  %v463 = vpop.f32.mrb[0].mxu0
  %v464 = vadd.f32 %v155, %v463
  %v465 = vpop.f32.mrb[0].mxu0
  %466 = vdwg.mxu0
  %vm467 = vcmask 130048
  %v468 = vsel %vm467, %v224, 0.0
  %v469 = vsel %vm467, %v229, 0.0
  %v470 = vadd.f32 %v468, %v469
  %v471 = vsel %vm467, %v234, 0.0
  %v472 = vadd.f32 %v470, %v471
  %v473 = vsel %vm467, %v239, 0.0
  %v474 = vadd.f32 %v472, %v473
  %v475 = vsel %vm467, %v244, 0.0
  %v476 = vadd.f32 %v474, %v475
  %v477 = vsel %vm467, %v249, 0.0
  %v478 = vadd.f32 %v476, %v477
  %v479 = vsel %vm467, %v254, 0.0
  %v480 = vadd.f32 %v478, %v479
  %v481 = vsel %vm467, %v259, 0.0
  %v482 = vadd.f32 %v480, %v481
  %v483 = vsel %vm467, %v264, 0.0
  %v484 = vadd.f32 %v482, %v483
  %v485 = vsel %vm467, %v269, 0.0
  %v486 = vadd.f32 %v484, %v485
  %v487 = vsel %vm467, %v274, 0.0
  %v488 = vadd.f32 %v486, %v487
  %v489 = vsel %vm467, %v279, 0.0
  %v490 = vadd.f32 %v488, %v489
  %v491 = vsel %vm467, %v284, 0.0
  %v492 = vadd.f32 %v490, %v491
  %v493 = vsel %vm467, %v289, 0.0
  %v494 = vadd.f32 %v492, %v493
  %v495 = vsel %vm467, %v294, 0.0
  %v496 = vadd.f32 %v494, %v495
  %v497 = vsel %vm467, %v299, 0.0
  %v498 = vadd.f32 %v496, %v497
  %v499 = vsel %vm467, %v304, 0.0
  %v500 = vadd.f32 %v498, %v499
  %v501 = vsel %vm467, %v309, 0.0
  %v502 = vadd.f32 %v500, %v501
  %v503 = vsel %vm467, %v314, 0.0
  %v504 = vadd.f32 %v502, %v503
  %v505 = vsel %vm467, %v319, 0.0
  %v506 = vadd.f32 %v504, %v505
  %v507 = vsel %vm467, %v324, 0.0
  %v508 = vadd.f32 %v506, %v507
  %v509 = vsel %vm467, %v329, 0.0
  %v510 = vadd.f32 %v508, %v509
  %v511 = vsel %vm467, %v334, 0.0
  %v512 = vadd.f32 %v510, %v511
  %v513 = vsel %vm467, %v339, 0.0
  %v514 = vadd.f32 %v512, %v513
  %v515 = vsel %vm467, %v344, 0.0
  %v516 = vadd.f32 %v514, %v515
  %v517 = vsel %vm467, %v349, 0.0
  %v518 = vadd.f32 %v516, %v517
  %v519 = vsel %vm467, %v354, 0.0
  %v520 = vadd.f32 %v518, %v519
  %v521 = vsel %vm467, %v359, 0.0
  %v522 = vadd.f32 %v520, %v521
  %v523 = vsel %vm467, %v364, 0.0
  %v524 = vadd.f32 %v522, %v523
  %v525 = vsel %vm467, %v369, 0.0
  %v526 = vadd.f32 %v524, %v525
  %v527 = vsel %vm467, %v374, 0.0
  %v528 = vadd.f32 %v526, %v527
  %v529 = vsel %vm467, %v379, 0.0
  %v530 = vadd.f32 %v528, %v529
  %v531 = vsel %vm467, %v384, 0.0
  %v532 = vadd.f32 %v530, %v531
  %v533 = vsel %vm467, %v389, 0.0
  %v534 = vadd.f32 %v532, %v533
  %v535 = vsel %vm467, %v394, 0.0
  %v536 = vadd.f32 %v534, %v535
  %v537 = vsel %vm467, %v399, 0.0
  %v538 = vadd.f32 %v536, %v537
  %v539 = vsel %vm467, %v404, 0.0
  %v540 = vadd.f32 %v538, %v539
  %v541 = vsel %vm467, %v409, 0.0
  %v542 = vadd.f32 %v540, %v541
  %v543 = vsel %vm467, %v414, 0.0
  %v544 = vadd.f32 %v542, %v543
  %v545 = vsel %vm467, %v419, 0.0
  %v546 = vadd.f32 %v544, %v545
  %v547 = vsel %vm467, %v424, 0.0
  %v548 = vadd.f32 %v546, %v547
  %v549 = vsel %vm467, %v429, 0.0
  %v550 = vadd.f32 %v548, %v549
  %v551 = vsel %vm467, %v434, 0.0
  %v552 = vadd.f32 %v550, %v551
  %v553 = vsel %vm467, %v439, 0.0
  %v554 = vadd.f32 %v552, %v553
  %v555 = vsel %vm467, %v444, 0.0
  %v556 = vadd.f32 %v554, %v555
  %v557 = vsel %vm467, %v449, 0.0
  %v558 = vadd.f32 %v556, %v557
  %v559 = vsel %vm467, %v454, 0.0
  %v560 = vadd.f32 %v558, %v559
  %v561 = vsel %vm467, %v459, 0.0
  %v562 = vadd.f32 %v560, %v561
  %v563 = vsel %vm467, %v464, 0.0
  %v564 = vadd.f32 %v562, %v563
  %v565 = vrot.slane %v564, 4
  %v566 = vadd.f32 %v564, %v565
  %v567 = vrot.slane %v566, 2
  %v568 = vadd.f32 %v566, %v567
  %v569 = vrot.slane %v568, 1
  %v570 = vadd.f32 %v568, %v569
  %v571 = vrcp.pop 392.0
  %v572 = vmul.f32 %v570, %v571
  %v573 = vsub.f32 %v224, %v572
  %v574 = vsub.f32 %v229, %v572
  %v575 = vsub.f32 %v234, %v572
  %v576 = vsub.f32 %v239, %v572
  %v577 = vsub.f32 %v244, %v572
  %v578 = vsub.f32 %v249, %v572
  %v579 = vsub.f32 %v254, %v572
  %v580 = vsub.f32 %v259, %v572
  %v581 = vsub.f32 %v264, %v572
  %v582 = vsub.f32 %v269, %v572
  %v583 = vsub.f32 %v274, %v572
  %v584 = vsub.f32 %v279, %v572
  %v585 = vsub.f32 %v284, %v572
  %v586 = vsub.f32 %v289, %v572
  %v587 = vsub.f32 %v294, %v572
  %v588 = vsub.f32 %v299, %v572
  %v589 = vsub.f32 %v304, %v572
  %v590 = vsub.f32 %v309, %v572
  %v591 = vsub.f32 %v314, %v572
  %v592 = vsub.f32 %v319, %v572
  %v593 = vsub.f32 %v324, %v572
  %v594 = vsub.f32 %v329, %v572
  %v595 = vsub.f32 %v334, %v572
  %v596 = vsub.f32 %v339, %v572
  %v597 = vsub.f32 %v344, %v572
  %v598 = vsub.f32 %v349, %v572
  %v599 = vsub.f32 %v354, %v572
  %v600 = vsub.f32 %v359, %v572
  %v601 = vsub.f32 %v364, %v572
  %v602 = vsub.f32 %v369, %v572
  %v603 = vsub.f32 %v374, %v572
  %v604 = vsub.f32 %v379, %v572
  %v605 = vsub.f32 %v384, %v572
  %v606 = vsub.f32 %v389, %v572
  %v607 = vsub.f32 %v394, %v572
  %v608 = vsub.f32 %v399, %v572
  %v609 = vsub.f32 %v404, %v572
  %v610 = vsub.f32 %v409, %v572
  %v611 = vsub.f32 %v414, %v572
  %v612 = vsub.f32 %v419, %v572
  %v613 = vsub.f32 %v424, %v572
  %v614 = vsub.f32 %v429, %v572
  %v615 = vsub.f32 %v434, %v572
  %v616 = vsub.f32 %v439, %v572
  %v617 = vsub.f32 %v444, %v572
  %v618 = vsub.f32 %v449, %v572
  %v619 = vsub.f32 %v454, %v572
  %v620 = vsub.f32 %v459, %v572
  %v621 = vsub.f32 %v464, %v572
  %v622 = vmul.f32 %v573, %v573
  %v623 = vmul.f32 %v574, %v574
  %v624 = vmul.f32 %v575, %v575
  %v625 = vmul.f32 %v576, %v576
  %v626 = vmul.f32 %v577, %v577
  %v627 = vmul.f32 %v578, %v578
  %v628 = vmul.f32 %v579, %v579
  %v629 = vmul.f32 %v580, %v580
  %v630 = vmul.f32 %v581, %v581
  %v631 = vmul.f32 %v582, %v582
  %v632 = vmul.f32 %v583, %v583
  %v633 = vmul.f32 %v584, %v584
  %v634 = vmul.f32 %v585, %v585
  %v635 = vmul.f32 %v586, %v586
  %v636 = vmul.f32 %v587, %v587
  %v637 = vmul.f32 %v588, %v588
  %v638 = vmul.f32 %v589, %v589
  %v639 = vmul.f32 %v590, %v590
  %v640 = vmul.f32 %v591, %v591
  %v641 = vmul.f32 %v592, %v592
  %v642 = vmul.f32 %v593, %v593
  %v643 = vmul.f32 %v594, %v594
  %v644 = vmul.f32 %v595, %v595
  %v645 = vmul.f32 %v596, %v596
  %v646 = vmul.f32 %v597, %v597
  %v647 = vmul.f32 %v598, %v598
  %v648 = vmul.f32 %v599, %v599
  %v649 = vmul.f32 %v600, %v600
  %v650 = vmul.f32 %v601, %v601
  %v651 = vmul.f32 %v602, %v602
  %v652 = vmul.f32 %v603, %v603
  %v653 = vmul.f32 %v604, %v604
  %v654 = vmul.f32 %v605, %v605
  %v655 = vmul.f32 %v606, %v606
  %v656 = vmul.f32 %v607, %v607
  %v657 = vmul.f32 %v608, %v608
  %v658 = vmul.f32 %v609, %v609
  %v659 = vmul.f32 %v610, %v610
  %v660 = vmul.f32 %v611, %v611
  %v661 = vmul.f32 %v612, %v612
  %v662 = vmul.f32 %v613, %v613
  %v663 = vmul.f32 %v614, %v614
  %v664 = vmul.f32 %v615, %v615
  %v665 = vmul.f32 %v616, %v616
  %v666 = vmul.f32 %v617, %v617
  %v667 = vmul.f32 %v618, %v618
  %v668 = vmul.f32 %v619, %v619
  %v669 = vmul.f32 %v620, %v620
  %v670 = vmul.f32 %v621, %v621
  %v671 = vsel %vm467, %v622, 0.0
  %v672 = vsel %vm467, %v623, 0.0
  %v673 = vadd.f32 %v671, %v672
  %v674 = vsel %vm467, %v624, 0.0
  %v675 = vadd.f32 %v673, %v674
  %v676 = vsel %vm467, %v625, 0.0
  %v677 = vadd.f32 %v675, %v676
  %v678 = vsel %vm467, %v626, 0.0
  %v679 = vadd.f32 %v677, %v678
  %v680 = vsel %vm467, %v627, 0.0
  %v681 = vadd.f32 %v679, %v680
  %v682 = vsel %vm467, %v628, 0.0
  %v683 = vadd.f32 %v681, %v682
  %v684 = vsel %vm467, %v629, 0.0
  %v685 = vadd.f32 %v683, %v684
  %v686 = vsel %vm467, %v630, 0.0
  %v687 = vadd.f32 %v685, %v686
  %v688 = vsel %vm467, %v631, 0.0
  %v689 = vadd.f32 %v687, %v688
  %v690 = vsel %vm467, %v632, 0.0
  %v691 = vadd.f32 %v689, %v690
  %v692 = vsel %vm467, %v633, 0.0
  %v693 = vadd.f32 %v691, %v692
  %v694 = vsel %vm467, %v634, 0.0
  %v695 = vadd.f32 %v693, %v694
  %v696 = vsel %vm467, %v635, 0.0
  %v697 = vadd.f32 %v695, %v696
  %v698 = vsel %vm467, %v636, 0.0
  %v699 = vadd.f32 %v697, %v698
  %v700 = vsel %vm467, %v637, 0.0
  %v701 = vadd.f32 %v699, %v700
  %v702 = vsel %vm467, %v638, 0.0
  %v703 = vadd.f32 %v701, %v702
  %v704 = vsel %vm467, %v639, 0.0
  %v705 = vadd.f32 %v703, %v704
  %v706 = vsel %vm467, %v640, 0.0
  %v707 = vadd.f32 %v705, %v706
  %v708 = vsel %vm467, %v641, 0.0
  %v709 = vadd.f32 %v707, %v708
  %v710 = vsel %vm467, %v642, 0.0
  %v711 = vadd.f32 %v709, %v710
  %v712 = vsel %vm467, %v643, 0.0
  %v713 = vadd.f32 %v711, %v712
  %v714 = vsel %vm467, %v644, 0.0
  %v715 = vadd.f32 %v713, %v714
  %v716 = vsel %vm467, %v645, 0.0
  %v717 = vadd.f32 %v715, %v716
  %v718 = vsel %vm467, %v646, 0.0
  %v719 = vadd.f32 %v717, %v718
  %v720 = vsel %vm467, %v647, 0.0
  %v721 = vadd.f32 %v719, %v720
  %v722 = vsel %vm467, %v648, 0.0
  %v723 = vadd.f32 %v721, %v722
  %v724 = vsel %vm467, %v649, 0.0
  %v725 = vadd.f32 %v723, %v724
  %v726 = vsel %vm467, %v650, 0.0
  %v727 = vadd.f32 %v725, %v726
  %v728 = vsel %vm467, %v651, 0.0
  %v729 = vadd.f32 %v727, %v728
  %v730 = vsel %vm467, %v652, 0.0
  %v731 = vadd.f32 %v729, %v730
  %v732 = vsel %vm467, %v653, 0.0
  %v733 = vadd.f32 %v731, %v732
  %v734 = vsel %vm467, %v654, 0.0
  %v735 = vadd.f32 %v733, %v734
  %v736 = vsel %vm467, %v655, 0.0
  %v737 = vadd.f32 %v735, %v736
  %v738 = vsel %vm467, %v656, 0.0
  %v739 = vadd.f32 %v737, %v738
  %v740 = vsel %vm467, %v657, 0.0
  %v741 = vadd.f32 %v739, %v740
  %v742 = vsel %vm467, %v658, 0.0
  %v743 = vadd.f32 %v741, %v742
  %v744 = vsel %vm467, %v659, 0.0
  %v745 = vadd.f32 %v743, %v744
  %v746 = vsel %vm467, %v660, 0.0
  %v747 = vadd.f32 %v745, %v746
  %v748 = vsel %vm467, %v661, 0.0
  %v749 = vadd.f32 %v747, %v748
  %v750 = vsel %vm467, %v662, 0.0
  %v751 = vadd.f32 %v749, %v750
  %v752 = vsel %vm467, %v663, 0.0
  %v753 = vadd.f32 %v751, %v752
  %v754 = vsel %vm467, %v664, 0.0
  %v755 = vadd.f32 %v753, %v754
  %v756 = vsel %vm467, %v665, 0.0
  %v757 = vadd.f32 %v755, %v756
  %v758 = vsel %vm467, %v666, 0.0
  %v759 = vadd.f32 %v757, %v758
  %v760 = vsel %vm467, %v667, 0.0
  %v761 = vadd.f32 %v759, %v760
  %v762 = vsel %vm467, %v668, 0.0
  %v763 = vadd.f32 %v761, %v762
  %v764 = vsel %vm467, %v669, 0.0
  %v765 = vadd.f32 %v763, %v764
  %v766 = vsel %vm467, %v670, 0.0
  %v767 = vadd.f32 %v765, %v766
  %v768 = vrot.slane %v767, 4
  %v769 = vadd.f32 %v767, %v768
  %v770 = vrot.slane %v769, 2
  %v771 = vadd.f32 %v769, %v770
  %v772 = vrot.slane %v771, 1
  %v773 = vadd.f32 %v771, %v772
  %v774 = vmul.f32 %v773, %v571
  %v775 = vld [vmem:[%s3] sm:$0x1]
  %v776 = vadd.f32 %v774, 1e-05
  %v777 = vrsqrt.pop %v776
  %v778 = vmul.f32 %v775, %v777
  %v779 = vld [vmem:[%s4] sm:$0x1]
  %v780 = vmul.f32 %v572, %v778
  %v781 = vsub.f32 %v779, %v780
  %v783 = vlaneseq
  %v784 = vshrl.u32 %v783, 7
  %v785 = vsub.s32 0, %v784
  %v786 = vrot.slane %v778, %v785
  %v788 = vmul.f32 %v224, %v786
  %v789 = vmul.f32 %v229, %v786
  %v790 = vmul.f32 %v234, %v786
  %v791 = vmul.f32 %v239, %v786
  %v792 = vmul.f32 %v244, %v786
  %v793 = vmul.f32 %v249, %v786
  %v794 = vmul.f32 %v254, %v786
  %v795 = vmul.f32 %v259, %v786
  %v796 = vmul.f32 %v264, %v786
  %v797 = vmul.f32 %v269, %v786
  %v798 = vmul.f32 %v274, %v786
  %v799 = vmul.f32 %v279, %v786
  %v800 = vmul.f32 %v284, %v786
  %v801 = vmul.f32 %v289, %v786
  %v802 = vmul.f32 %v294, %v786
  %v803 = vmul.f32 %v299, %v786
  %v804 = vmul.f32 %v304, %v786
  %v805 = vmul.f32 %v309, %v786
  %v806 = vmul.f32 %v314, %v786
  %v807 = vmul.f32 %v319, %v786
  %v808 = vmul.f32 %v324, %v786
  %v809 = vmul.f32 %v329, %v786
  %v810 = vmul.f32 %v334, %v786
  %v811 = vmul.f32 %v339, %v786
  %v812 = vmul.f32 %v344, %v786
  %v813 = vmul.f32 %v349, %v786
  %v814 = vmul.f32 %v354, %v786
  %v815 = vmul.f32 %v359, %v786
  %v816 = vmul.f32 %v364, %v786
  %v817 = vmul.f32 %v369, %v786
  %v818 = vmul.f32 %v374, %v786
  %v819 = vmul.f32 %v379, %v786
  %v820 = vmul.f32 %v384, %v786
  %v821 = vmul.f32 %v389, %v786
  %v822 = vmul.f32 %v394, %v786
  %v823 = vmul.f32 %v399, %v786
  %v824 = vmul.f32 %v404, %v786
  %v825 = vmul.f32 %v409, %v786
  %v826 = vmul.f32 %v414, %v786
  %v827 = vmul.f32 %v419, %v786
  %v828 = vmul.f32 %v424, %v786
  %v829 = vmul.f32 %v429, %v786
  %v830 = vmul.f32 %v434, %v786
  %v831 = vmul.f32 %v439, %v786
  %v832 = vmul.f32 %v444, %v786
  %v833 = vmul.f32 %v449, %v786
  %v834 = vmul.f32 %v454, %v786
  %v835 = vmul.f32 %v459, %v786
  %v836 = vmul.f32 %v464, %v786
  %v838 = vlaneseq
  %v839 = vshrl.u32 %v838, 7
  %v840 = vsub.s32 0, %v839
  %v841 = vrot.slane %v781, %v840
  %v843 = vadd.f32 %v788, %v841
  %v844 = vadd.f32 %v789, %v841
  %v845 = vadd.f32 %v790, %v841
  %v846 = vadd.f32 %v791, %v841
  %v847 = vadd.f32 %v792, %v841
  %v848 = vadd.f32 %v793, %v841
  %v849 = vadd.f32 %v794, %v841
  %v850 = vadd.f32 %v795, %v841
  %v851 = vadd.f32 %v796, %v841
  %v852 = vadd.f32 %v797, %v841
  %v853 = vadd.f32 %v798, %v841
  %v854 = vadd.f32 %v799, %v841
  %v855 = vadd.f32 %v800, %v841
  %v856 = vadd.f32 %v801, %v841
  %v857 = vadd.f32 %v802, %v841
  %v858 = vadd.f32 %v803, %v841
  %v859 = vadd.f32 %v804, %v841
  %v860 = vadd.f32 %v805, %v841
  %v861 = vadd.f32 %v806, %v841
  %v862 = vadd.f32 %v807, %v841
  %v863 = vadd.f32 %v808, %v841
  %v864 = vadd.f32 %v809, %v841
  %v865 = vadd.f32 %v810, %v841
  %v866 = vadd.f32 %v811, %v841
  %v867 = vadd.f32 %v812, %v841
  %v868 = vadd.f32 %v813, %v841
  %v869 = vadd.f32 %v814, %v841
  %v870 = vadd.f32 %v815, %v841
  %v871 = vadd.f32 %v816, %v841
  %v872 = vadd.f32 %v817, %v841
  %v873 = vadd.f32 %v818, %v841
  %v874 = vadd.f32 %v819, %v841
  %v875 = vadd.f32 %v820, %v841
  %v876 = vadd.f32 %v821, %v841
  %v877 = vadd.f32 %v822, %v841
  %v878 = vadd.f32 %v823, %v841
  %v879 = vadd.f32 %v824, %v841
  %v880 = vadd.f32 %v825, %v841
  %v881 = vadd.f32 %v826, %v841
  %v882 = vadd.f32 %v827, %v841
  %v883 = vadd.f32 %v828, %v841
  %v884 = vadd.f32 %v829, %v841
  %v885 = vadd.f32 %v830, %v841
  %v886 = vadd.f32 %v831, %v841
  %v887 = vadd.f32 %v832, %v841
  %v888 = vadd.f32 %v833, %v841
  %v889 = vadd.f32 %v834, %v841
  %v890 = vadd.f32 %v835, %v841
  %v891 = vadd.f32 %v836, %v841
  %v892 = vmax.f32 %v843, 0.0
  %v893 = vmax.f32 %v844, 0.0
  %v894 = vmax.f32 %v845, 0.0
  %v895 = vmax.f32 %v846, 0.0
  %v896 = vmax.f32 %v847, 0.0
  %v897 = vmax.f32 %v848, 0.0
  %v898 = vmax.f32 %v849, 0.0
  %v899 = vmax.f32 %v850, 0.0
  %v900 = vmax.f32 %v851, 0.0
  %v901 = vmax.f32 %v852, 0.0
  %v902 = vmax.f32 %v853, 0.0
  %v903 = vmax.f32 %v854, 0.0
  %v904 = vmax.f32 %v855, 0.0
  %v905 = vmax.f32 %v856, 0.0
  %v906 = vmax.f32 %v857, 0.0
  %v907 = vmax.f32 %v858, 0.0
  %v908 = vmax.f32 %v859, 0.0
  %v909 = vmax.f32 %v860, 0.0
  %v910 = vmax.f32 %v861, 0.0
  %v911 = vmax.f32 %v862, 0.0
  %v912 = vmax.f32 %v863, 0.0
  %v913 = vmax.f32 %v864, 0.0
  %v914 = vmax.f32 %v865, 0.0
  %v915 = vmax.f32 %v866, 0.0
  %v916 = vmax.f32 %v867, 0.0
  %v917 = vmax.f32 %v868, 0.0
  %v918 = vmax.f32 %v869, 0.0
  %v919 = vmax.f32 %v870, 0.0
  %v920 = vmax.f32 %v871, 0.0
  %v921 = vmax.f32 %v872, 0.0
  %v922 = vmax.f32 %v873, 0.0
  %v923 = vmax.f32 %v874, 0.0
  %v924 = vmax.f32 %v875, 0.0
  %v925 = vmax.f32 %v876, 0.0
  %v926 = vmax.f32 %v877, 0.0
  %v927 = vmax.f32 %v878, 0.0
  %v928 = vmax.f32 %v879, 0.0
  %v929 = vmax.f32 %v880, 0.0
  %v930 = vmax.f32 %v881, 0.0
  %v931 = vmax.f32 %v882, 0.0
  %v932 = vmax.f32 %v883, 0.0
  %v933 = vmax.f32 %v884, 0.0
  %v934 = vmax.f32 %v885, 0.0
  %v935 = vmax.f32 %v886, 0.0
  %v936 = vmax.f32 %v887, 0.0
  %v937 = vmax.f32 %v888, 0.0
  %v938 = vmax.f32 %v889, 0.0
  %v939 = vmax.f32 %v890, 0.0
  %v940 = vmax.f32 %v891, 0.0
  %941 = vst.msk [vmem:[%s5] sm:$0xff] %vm467, %v892
  %942 = vst.msk [vmem:[%s5 + $0x8] sm:$0xff] %vm467, %v893
  %943 = vst.msk [vmem:[%s5 + $0x10] sm:$0xff] %vm467, %v894
  %944 = vst.msk [vmem:[%s5 + $0x18] sm:$0xff] %vm467, %v895
  %945 = vst.msk [vmem:[%s5 + $0x20] sm:$0xff] %vm467, %v896
  %946 = vst.msk [vmem:[%s5 + $0x28] sm:$0xff] %vm467, %v897
  %947 = vst.msk [vmem:[%s5 + $0x30] sm:$0xff] %vm467, %v898
  %948 = vst.msk [vmem:[%s5 + $0x38] sm:$0xff] %vm467, %v899
  %949 = vst.msk [vmem:[%s5 + $0x40] sm:$0xff] %vm467, %v900
  %950 = vst.msk [vmem:[%s5 + $0x48] sm:$0xff] %vm467, %v901
  %951 = vst.msk [vmem:[%s5 + $0x50] sm:$0xff] %vm467, %v902
  %952 = vst.msk [vmem:[%s5 + $0x58] sm:$0xff] %vm467, %v903
  %953 = vst.msk [vmem:[%s5 + $0x60] sm:$0xff] %vm467, %v904
  %954 = vst.msk [vmem:[%s5 + $0x68] sm:$0xff] %vm467, %v905
  %955 = vst.msk [vmem:[%s5 + $0x70] sm:$0xff] %vm467, %v906
  %956 = vst.msk [vmem:[%s5 + $0x78] sm:$0xff] %vm467, %v907
  %957 = vst.msk [vmem:[%s5 + $0x80] sm:$0xff] %vm467, %v908
  %958 = vst.msk [vmem:[%s5 + $0x88] sm:$0xff] %vm467, %v909
  %959 = vst.msk [vmem:[%s5 + $0x90] sm:$0xff] %vm467, %v910
  %960 = vst.msk [vmem:[%s5 + $0x98] sm:$0xff] %vm467, %v911
  %961 = vst.msk [vmem:[%s5 + $0xa0] sm:$0xff] %vm467, %v912
  %962 = vst.msk [vmem:[%s5 + $0xa8] sm:$0xff] %vm467, %v913
  %963 = vst.msk [vmem:[%s5 + $0xb0] sm:$0xff] %vm467, %v914
  %964 = vst.msk [vmem:[%s5 + $0xb8] sm:$0xff] %vm467, %v915
  %965 = vst.msk [vmem:[%s5 + $0xc0] sm:$0xff] %vm467, %v916
  %966 = vst.msk [vmem:[%s5 + $0xc8] sm:$0xff] %vm467, %v917
  %967 = vst.msk [vmem:[%s5 + $0xd0] sm:$0xff] %vm467, %v918
  %968 = vst.msk [vmem:[%s5 + $0xd8] sm:$0xff] %vm467, %v919
  %969 = vst.msk [vmem:[%s5 + $0xe0] sm:$0xff] %vm467, %v920
  %970 = vst.msk [vmem:[%s5 + $0xe8] sm:$0xff] %vm467, %v921
  %971 = vst.msk [vmem:[%s5 + $0xf0] sm:$0xff] %vm467, %v922
  %972 = vst.msk [vmem:[%s5 + $0xf8] sm:$0xff] %vm467, %v923
  %973 = vst.msk [vmem:[%s5 + $0x100] sm:$0xff] %vm467, %v924
  %974 = vst.msk [vmem:[%s5 + $0x108] sm:$0xff] %vm467, %v925
  %975 = vst.msk [vmem:[%s5 + $0x110] sm:$0xff] %vm467, %v926
  %976 = vst.msk [vmem:[%s5 + $0x118] sm:$0xff] %vm467, %v927
  %977 = vst.msk [vmem:[%s5 + $0x120] sm:$0xff] %vm467, %v928
  %978 = vst.msk [vmem:[%s5 + $0x128] sm:$0xff] %vm467, %v929
  %979 = vst.msk [vmem:[%s5 + $0x130] sm:$0xff] %vm467, %v930
  %980 = vst.msk [vmem:[%s5 + $0x138] sm:$0xff] %vm467, %v931
  %981 = vst.msk [vmem:[%s5 + $0x140] sm:$0xff] %vm467, %v932
  %982 = vst.msk [vmem:[%s5 + $0x148] sm:$0xff] %vm467, %v933
  %983 = vst.msk [vmem:[%s5 + $0x150] sm:$0xff] %vm467, %v934
  %984 = vst.msk [vmem:[%s5 + $0x158] sm:$0xff] %vm467, %v935
  %985 = vst.msk [vmem:[%s5 + $0x160] sm:$0xff] %vm467, %v936
  %986 = vst.msk [vmem:[%s5 + $0x168] sm:$0xff] %vm467, %v937
  %987 = vst.msk [vmem:[%s5 + $0x170] sm:$0xff] %vm467, %v938
  %988 = vst.msk [vmem:[%s5 + $0x178] sm:$0xff] %vm467, %v939
  %989 = vst.msk [vmem:[%s5 + $0x180] sm:$0xff] %vm467, %v940
  // Predicated region
  $region22: #{vae_forward.10} parent=0 // pred_check
    _
  $region23: #{vae_forward.10} parent=0 // pred_check_branch
    %991 = sbr.rel (0) target = $region25
  $region24: #{vae_forward.10} parent=0 // pred_region
    _
  $region25: #{vae_forward.10} parent=0 // pred_fallthru
    _
  // Predicated region
  $region26: #{vae_forward.10} parent=0 // pred_check
    _
  $region27: #{vae_forward.10} parent=0 // pred_check_branch
    %993 = sbr.rel (0) target = $region29
  $region28: #{vae_forward.10} parent=0 // pred_region
    _
  $region29: #{vae_forward.10} parent=0 // pred_fallthru
    _

// kernel: vae_forward.11
$region0: #{vae_forward.11}
  #allocation0 [shape = 'u32[]', space=smem, size = 0x4, offset = 0x4, fixed_abs, tag = 'smem constant byte address 0x4 - core index']
  #allocation1 [shape = 'u32[144,128]{1,0:T(1,128)}', space=vmem, size = 0x12000, scoped, tag = 'internal scratch']
  #allocation2 [shape = 'f32[1,1]{1,0:T(1,128)S(1)}', space=vmem, size = 0x200, scoped, tag = 'scoped memory for vae_forward.11']
  %s0 = inlined_call_operand.vmem [shape: f32[1568,256], index: 0, kind: input, shape index: {}]
  %s1 = inlined_call_operand.vmem [shape: f32[1,256], index: 1, kind: input, shape index: {}]
  %s2 = inlined_call_operand.<no memory space> [shape: f32[1,1], index: 2, kind: input, shape index: {}]
  %s3 = inlined_call_operand.vmem [shape: f32[1568,1], index: 3, kind: output, shape index: {}]
  %s4 = sld [smem:[#allocation0]]
  $region22: #{vae_forward.11} parent=0
    _
  %s6 = ssub.s32 1, %s4
  %s7 = scalar_select 0, %s6, %s4
  %v8 = vstv %s2
  %9 = vst [vmem:[#allocation2] sm:$0x1] %v8
  // Predicated region
  $region2: #{vae_forward.11} parent=0 // pred_check
    _
  $region3: #{vae_forward.11} parent=0 // pred_check_branch
    %11 = sbr.rel (0) target = $region5
  $region4: #{vae_forward.11} parent=0 // pred_region
    _
  $region5: #{vae_forward.11} parent=0 // pred_fallthru
    _
  // Predicated region
  $region6: #{vae_forward.11} parent=0 // pred_check
    _
  $region7: #{vae_forward.11} parent=0 // pred_check_branch
    %13 = sbr.rel (0) target = $region9
  $region8: #{vae_forward.11} parent=0 // pred_region
    _
  $region9: #{vae_forward.11} parent=0 // pred_fallthru
    _
  // Predicated region
  $region10: #{vae_forward.11} parent=0 // pred_check
    _
  $region11: #{vae_forward.11} parent=0 // pred_check_branch
    %15 = sbr.rel (0) target = $region13
  $region12: #{vae_forward.11} parent=0 // pred_region
    _
  $region13: #{vae_forward.11} parent=0 // pred_fallthru
    _
  %v16 = vld [vmem:[%s0] sm:$0xff]
  %v17 = vld [vmem:[%s0 + $0x8] sm:$0xff]
  %v18 = vld [vmem:[%s0 + $0x10] sm:$0xff]
  %v19 = vld [vmem:[%s0 + $0x18] sm:$0xff]
  %v20 = vld [vmem:[%s0 + $0x20] sm:$0xff]
  %v21 = vld [vmem:[%s0 + $0x28] sm:$0xff]
  %v22 = vld [vmem:[%s0 + $0x30] sm:$0xff]
  %v23 = vld [vmem:[%s0 + $0x38] sm:$0xff]
  %v24 = vld [vmem:[%s0 + $0x40] sm:$0xff]
  %v25 = vld [vmem:[%s0 + $0x48] sm:$0xff]
  %v26 = vld [vmem:[%s0 + $0x50] sm:$0xff]
  %v27 = vld [vmem:[%s0 + $0x58] sm:$0xff]
  %v28 = vld [vmem:[%s0 + $0x60] sm:$0xff]
  %v29 = vld [vmem:[%s0 + $0x68] sm:$0xff]
  %v30 = vld [vmem:[%s0 + $0x70] sm:$0xff]
  %v31 = vld [vmem:[%s0 + $0x78] sm:$0xff]
  %v32 = vld [vmem:[%s0 + $0x80] sm:$0xff]
  %v33 = vld [vmem:[%s0 + $0x88] sm:$0xff]
  %v34 = vld [vmem:[%s0 + $0x90] sm:$0xff]
  %v35 = vld [vmem:[%s0 + $0x98] sm:$0xff]
  %v36 = vld [vmem:[%s0 + $0xa0] sm:$0xff]
  %v37 = vld [vmem:[%s0 + $0xa8] sm:$0xff]
  %v38 = vld [vmem:[%s0 + $0xb0] sm:$0xff]
  %v39 = vld [vmem:[%s0 + $0xb8] sm:$0xff]
  %v40 = vld [vmem:[%s0 + $0xc0] sm:$0xff]
  %v41 = vld [vmem:[%s0 + $0xc8] sm:$0xff]
  %v42 = vld [vmem:[%s0 + $0xd0] sm:$0xff]
  %v43 = vld [vmem:[%s0 + $0xd8] sm:$0xff]
  %v44 = vld [vmem:[%s0 + $0xe0] sm:$0xff]
  %v45 = vld [vmem:[%s0 + $0xe8] sm:$0xff]
  %v46 = vld [vmem:[%s0 + $0xf0] sm:$0xff]
  %v47 = vld [vmem:[%s0 + $0xf8] sm:$0xff]
  %v48 = vld [vmem:[%s0 + $0x100] sm:$0xff]
  %v49 = vld [vmem:[%s0 + $0x108] sm:$0xff]
  %v50 = vld [vmem:[%s0 + $0x110] sm:$0xff]
  %v51 = vld [vmem:[%s0 + $0x118] sm:$0xff]
  %v52 = vld [vmem:[%s0 + $0x120] sm:$0xff]
  %v53 = vld [vmem:[%s0 + $0x128] sm:$0xff]
  %v54 = vld [vmem:[%s0 + $0x130] sm:$0xff]
  %v55 = vld [vmem:[%s0 + $0x138] sm:$0xff]
  %v56 = vld [vmem:[%s0 + $0x140] sm:$0xff]
  %v57 = vld [vmem:[%s0 + $0x148] sm:$0xff]
  %v58 = vld [vmem:[%s0 + $0x150] sm:$0xff]
  %v59 = vld [vmem:[%s0 + $0x158] sm:$0xff]
  %v60 = vld [vmem:[%s0 + $0x160] sm:$0xff]
  %v61 = vld [vmem:[%s0 + $0x168] sm:$0xff]
  %v62 = vld [vmem:[%s0 + $0x170] sm:$0xff]
  %v63 = vld [vmem:[%s0 + $0x178] sm:$0xff]
  %v64 = vld [vmem:[%s0 + $0x180] sm:$0xff]
  %v65 = vld [vmem:[%s0 + $0x188] sm:$0xff]
  %v66 = vld [vmem:[%s0 + $0x190] sm:$0xff]
  %v67 = vld [vmem:[%s0 + $0x198] sm:$0xff]
  %v68 = vld [vmem:[%s0 + $0x1a0] sm:$0xff]
  %v69 = vld [vmem:[%s0 + $0x1a8] sm:$0xff]
  %v70 = vld [vmem:[%s0 + $0x1b0] sm:$0xff]
  %v71 = vld [vmem:[%s0 + $0x1b8] sm:$0xff]
  %v72 = vld [vmem:[%s0 + $0x1c0] sm:$0xff]
  %v73 = vld [vmem:[%s0 + $0x1c8] sm:$0xff]
  %v74 = vld [vmem:[%s0 + $0x1d0] sm:$0xff]
  %v75 = vld [vmem:[%s0 + $0x1d8] sm:$0xff]
  %v76 = vld [vmem:[%s0 + $0x1e0] sm:$0xff]
  %v77 = vld [vmem:[%s0 + $0x1e8] sm:$0xff]
  %v78 = vld [vmem:[%s0 + $0x1f0] sm:$0xff]
  %v79 = vld [vmem:[%s0 + $0x1f8] sm:$0xff]
  %v80 = vld [vmem:[%s0 + $0x200] sm:$0xff]
  %v81 = vld [vmem:[%s0 + $0x208] sm:$0xff]
  %v82 = vld [vmem:[%s0 + $0x210] sm:$0xff]
  %v83 = vld [vmem:[%s0 + $0x218] sm:$0xff]
  %v84 = vld [vmem:[%s0 + $0x220] sm:$0xff]
  %v85 = vld [vmem:[%s0 + $0x228] sm:$0xff]
  %v86 = vld [vmem:[%s0 + $0x230] sm:$0xff]
  %v87 = vld [vmem:[%s0 + $0x238] sm:$0xff]
  %v88 = vld [vmem:[%s0 + $0x240] sm:$0xff]
  %v89 = vld [vmem:[%s0 + $0x248] sm:$0xff]
  %v90 = vld [vmem:[%s0 + $0x250] sm:$0xff]
  %v91 = vld [vmem:[%s0 + $0x258] sm:$0xff]
  %v92 = vld [vmem:[%s0 + $0x260] sm:$0xff]
  %v93 = vld [vmem:[%s0 + $0x268] sm:$0xff]
  %v94 = vld [vmem:[%s0 + $0x270] sm:$0xff]
  %v95 = vld [vmem:[%s0 + $0x278] sm:$0xff]
  %v96 = vld [vmem:[%s0 + $0x280] sm:$0xff]
  %v97 = vld [vmem:[%s0 + $0x288] sm:$0xff]
  %v98 = vld [vmem:[%s0 + $0x290] sm:$0xff]
  %v99 = vld [vmem:[%s0 + $0x298] sm:$0xff]
  %v100 = vld [vmem:[%s0 + $0x2a0] sm:$0xff]
  %v101 = vld [vmem:[%s0 + $0x2a8] sm:$0xff]
  %v102 = vld [vmem:[%s0 + $0x2b0] sm:$0xff]
  %v103 = vld [vmem:[%s0 + $0x2b8] sm:$0xff]
  %v104 = vld [vmem:[%s0 + $0x2c0] sm:$0xff]
  %v105 = vld [vmem:[%s0 + $0x2c8] sm:$0xff]
  %v106 = vld [vmem:[%s0 + $0x2d0] sm:$0xff]
  %v107 = vld [vmem:[%s0 + $0x2d8] sm:$0xff]
  %v108 = vld [vmem:[%s0 + $0x2e0] sm:$0xff]
  %v109 = vld [vmem:[%s0 + $0x2e8] sm:$0xff]
  %v110 = vld [vmem:[%s0 + $0x2f0] sm:$0xff]
  %v111 = vld [vmem:[%s0 + $0x2f8] sm:$0xff]
  %v112 = vld [vmem:[%s0 + $0x300] sm:$0xff]
  %v113 = vld [vmem:[%s0 + $0x308] sm:$0xff]
  %v114 = vld [vmem:[%s0 + $0x310] sm:$0xff]
  %v115 = vld [vmem:[%s0 + $0x318] sm:$0xff]
  %v116 = vld [vmem:[%s0 + $0x320] sm:$0xff]
  %v117 = vld [vmem:[%s0 + $0x328] sm:$0xff]
  %v118 = vld [vmem:[%s0 + $0x330] sm:$0xff]
  %v119 = vld [vmem:[%s0 + $0x338] sm:$0xff]
  %v120 = vld [vmem:[%s0 + $0x340] sm:$0xff]
  %v121 = vld [vmem:[%s0 + $0x348] sm:$0xff]
  %v122 = vld [vmem:[%s0 + $0x350] sm:$0xff]
  %v123 = vld [vmem:[%s0 + $0x358] sm:$0xff]
  %v124 = vld [vmem:[%s0 + $0x360] sm:$0xff]
  %v125 = vld [vmem:[%s0 + $0x368] sm:$0xff]
  %v126 = vld [vmem:[%s0 + $0x370] sm:$0xff]
  %v127 = vld [vmem:[%s0 + $0x378] sm:$0xff]
  %v128 = vld [vmem:[%s0 + $0x380] sm:$0xff]
  %v129 = vld [vmem:[%s0 + $0x388] sm:$0xff]
  %v130 = vld [vmem:[%s0 + $0x390] sm:$0xff]
  %v131 = vld [vmem:[%s0 + $0x398] sm:$0xff]
  %v132 = vld [vmem:[%s0 + $0x3a0] sm:$0xff]
  %v133 = vld [vmem:[%s0 + $0x3a8] sm:$0xff]
  %v134 = vld [vmem:[%s0 + $0x3b0] sm:$0xff]
  %v135 = vld [vmem:[%s0 + $0x3b8] sm:$0xff]
  %v136 = vld [vmem:[%s0 + $0x3c0] sm:$0xff]
  %v137 = vld [vmem:[%s0 + $0x3c8] sm:$0xff]
  %v138 = vld [vmem:[%s0 + $0x3d0] sm:$0xff]
  %v139 = vld [vmem:[%s0 + $0x3d8] sm:$0xff]
  %v140 = vld [vmem:[%s0 + $0x3e0] sm:$0xff]
  %v141 = vld [vmem:[%s0 + $0x3e8] sm:$0xff]
  %v142 = vld [vmem:[%s0 + $0x3f0] sm:$0xff]
  %v143 = vld [vmem:[%s0 + $0x3f8] sm:$0xff]
  %v144 = vld [vmem:[%s0 + $0x400] sm:$0xff]
  %v145 = vld [vmem:[%s0 + $0x408] sm:$0xff]
  %v146 = vld [vmem:[%s0 + $0x410] sm:$0xff]
  %v147 = vld [vmem:[%s0 + $0x418] sm:$0xff]
  %v148 = vld [vmem:[%s0 + $0x420] sm:$0xff]
  %v149 = vld [vmem:[%s0 + $0x428] sm:$0xff]
  %v150 = vld [vmem:[%s0 + $0x430] sm:$0xff]
  %v151 = vld [vmem:[%s0 + $0x438] sm:$0xff]
  %v152 = vld [vmem:[%s0 + $0x440] sm:$0xff]
  %v153 = vld [vmem:[%s0 + $0x448] sm:$0xff]
  %v154 = vld [vmem:[%s0 + $0x450] sm:$0xff]
  %v155 = vld [vmem:[%s0 + $0x458] sm:$0xff]
  %v156 = vld [vmem:[%s0 + $0x460] sm:$0xff]
  %v157 = vld [vmem:[%s0 + $0x468] sm:$0xff]
  %v158 = vld [vmem:[%s0 + $0x470] sm:$0xff]
  %v159 = vld [vmem:[%s0 + $0x478] sm:$0xff]
  %v160 = vld [vmem:[%s0 + $0x480] sm:$0xff]
  %v161 = vld [vmem:[%s0 + $0x488] sm:$0xff]
  %v162 = vld [vmem:[%s0 + $0x490] sm:$0xff]
  %v163 = vld [vmem:[%s0 + $0x498] sm:$0xff]
  %v164 = vld [vmem:[%s0 + $0x4a0] sm:$0xff]
  %v165 = vld [vmem:[%s0 + $0x4a8] sm:$0xff]
  %v166 = vld [vmem:[%s0 + $0x4b0] sm:$0xff]
  %v167 = vld [vmem:[%s0 + $0x4b8] sm:$0xff]
  %v168 = vld [vmem:[%s0 + $0x4c0] sm:$0xff]
  %v169 = vld [vmem:[%s0 + $0x4c8] sm:$0xff]
  %v170 = vld [vmem:[%s0 + $0x4d0] sm:$0xff]
  %v171 = vld [vmem:[%s0 + $0x4d8] sm:$0xff]
  %v172 = vld [vmem:[%s0 + $0x4e0] sm:$0xff]
  %v173 = vld [vmem:[%s0 + $0x4e8] sm:$0xff]
  %v174 = vld [vmem:[%s0 + $0x4f0] sm:$0xff]
  %v175 = vld [vmem:[%s0 + $0x4f8] sm:$0xff]
  %v176 = vld [vmem:[%s0 + $0x500] sm:$0xff]
  %v177 = vld [vmem:[%s0 + $0x508] sm:$0xff]
  %v178 = vld [vmem:[%s0 + $0x510] sm:$0xff]
  %v179 = vld [vmem:[%s0 + $0x518] sm:$0xff]
  %v180 = vld [vmem:[%s0 + $0x520] sm:$0xff]
  %v181 = vld [vmem:[%s0 + $0x528] sm:$0xff]
  %v182 = vld [vmem:[%s0 + $0x530] sm:$0xff]
  %v183 = vld [vmem:[%s0 + $0x538] sm:$0xff]
  %v184 = vld [vmem:[%s0 + $0x540] sm:$0xff]
  %v185 = vld [vmem:[%s0 + $0x548] sm:$0xff]
  %v186 = vld [vmem:[%s0 + $0x550] sm:$0xff]
  %v187 = vld [vmem:[%s0 + $0x558] sm:$0xff]
  %v188 = vld [vmem:[%s0 + $0x560] sm:$0xff]
  %v189 = vld [vmem:[%s0 + $0x568] sm:$0xff]
  %v190 = vld [vmem:[%s0 + $0x570] sm:$0xff]
  %v191 = vld [vmem:[%s0 + $0x578] sm:$0xff]
  %v192 = vld [vmem:[%s0 + $0x580] sm:$0xff]
  %v193 = vld [vmem:[%s0 + $0x588] sm:$0xff]
  %v194 = vld [vmem:[%s0 + $0x590] sm:$0xff]
  %v195 = vld [vmem:[%s0 + $0x598] sm:$0xff]
  %v196 = vld [vmem:[%s0 + $0x5a0] sm:$0xff]
  %v197 = vld [vmem:[%s0 + $0x5a8] sm:$0xff]
  %v198 = vld [vmem:[%s0 + $0x5b0] sm:$0xff]
  %v199 = vld [vmem:[%s0 + $0x5b8] sm:$0xff]
  %v200 = vld [vmem:[%s0 + $0x5c0] sm:$0xff]
  %v201 = vld [vmem:[%s0 + $0x5c8] sm:$0xff]
  %v202 = vld [vmem:[%s0 + $0x5d0] sm:$0xff]
  %v203 = vld [vmem:[%s0 + $0x5d8] sm:$0xff]
  %v204 = vld [vmem:[%s0 + $0x5e0] sm:$0xff]
  %v205 = vld [vmem:[%s0 + $0x5e8] sm:$0xff]
  %v206 = vld [vmem:[%s0 + $0x5f0] sm:$0xff]
  %v207 = vld [vmem:[%s0 + $0x5f8] sm:$0xff]
  %v208 = vld [vmem:[%s0 + $0x600] sm:$0xff]
  %v209 = vld [vmem:[%s0 + $0x608] sm:$0xff]
  %v210 = vld [vmem:[%s0 + $0x610] sm:$0xff]
  %v211 = vld [vmem:[%s0 + $0x618] sm:$0xff]
  %v212 = vld [vmem:[%s0 + $0x620] sm:$0xff]
  %v213 = vld [vmem:[%s0 + $0x628] sm:$0xff]
  %v214 = vld [vmem:[%s0 + $0x630] sm:$0xff]
  %v215 = vld [vmem:[%s0 + $0x638] sm:$0xff]
  %v216 = vld [vmem:[%s0 + $0x640] sm:$0xff]
  %v217 = vld [vmem:[%s0 + $0x648] sm:$0xff]
  %v218 = vld [vmem:[%s0 + $0x650] sm:$0xff]
  %v219 = vld [vmem:[%s0 + $0x658] sm:$0xff]
  %v220 = vld [vmem:[%s0 + $0x660] sm:$0xff]
  %v221 = vld [vmem:[%s0 + $0x668] sm:$0xff]
  %v222 = vld [vmem:[%s0 + $0x670] sm:$0xff]
  %v223 = vld [vmem:[%s0 + $0x678] sm:$0xff]
  %v224 = vld [vmem:[%s0 + $0x680] sm:$0xff]
  %v225 = vld [vmem:[%s0 + $0x688] sm:$0xff]
  %v226 = vld [vmem:[%s0 + $0x690] sm:$0xff]
  %v227 = vld [vmem:[%s0 + $0x698] sm:$0xff]
  %v228 = vld [vmem:[%s0 + $0x6a0] sm:$0xff]
  %v229 = vld [vmem:[%s0 + $0x6a8] sm:$0xff]
  %v230 = vld [vmem:[%s0 + $0x6b0] sm:$0xff]
  %v231 = vld [vmem:[%s0 + $0x6b8] sm:$0xff]
  %v232 = vld [vmem:[%s0 + $0x6c0] sm:$0xff]
  %v233 = vld [vmem:[%s0 + $0x6c8] sm:$0xff]
  %v234 = vld [vmem:[%s0 + $0x6d0] sm:$0xff]
  %v235 = vld [vmem:[%s0 + $0x6d8] sm:$0xff]
  %v236 = vld [vmem:[%s0 + $0x6e0] sm:$0xff]
  %v237 = vld [vmem:[%s0 + $0x6e8] sm:$0xff]
  %v238 = vld [vmem:[%s0 + $0x6f0] sm:$0xff]
  %v239 = vld [vmem:[%s0 + $0x6f8] sm:$0xff]
  %v240 = vld [vmem:[%s0 + $0x700] sm:$0xff]
  %v241 = vld [vmem:[%s0 + $0x708] sm:$0xff]
  %v242 = vld [vmem:[%s0 + $0x710] sm:$0xff]
  %v243 = vld [vmem:[%s0 + $0x718] sm:$0xff]
  %v244 = vld [vmem:[%s0 + $0x720] sm:$0xff]
  %v245 = vld [vmem:[%s0 + $0x728] sm:$0xff]
  %v246 = vld [vmem:[%s0 + $0x730] sm:$0xff]
  %v247 = vld [vmem:[%s0 + $0x738] sm:$0xff]
  %v248 = vld [vmem:[%s0 + $0x740] sm:$0xff]
  %v249 = vld [vmem:[%s0 + $0x748] sm:$0xff]
  %v250 = vld [vmem:[%s0 + $0x750] sm:$0xff]
  %v251 = vld [vmem:[%s0 + $0x758] sm:$0xff]
  %v252 = vld [vmem:[%s0 + $0x760] sm:$0xff]
  %v253 = vld [vmem:[%s0 + $0x768] sm:$0xff]
  %v254 = vld [vmem:[%s0 + $0x770] sm:$0xff]
  %v255 = vld [vmem:[%s0 + $0x778] sm:$0xff]
  %v256 = vld [vmem:[%s0 + $0x780] sm:$0xff]
  %v257 = vld [vmem:[%s0 + $0x788] sm:$0xff]
  %v258 = vld [vmem:[%s0 + $0x790] sm:$0xff]
  %v259 = vld [vmem:[%s0 + $0x798] sm:$0xff]
  %v260 = vld [vmem:[%s0 + $0x7a0] sm:$0xff]
  %v261 = vld [vmem:[%s0 + $0x7a8] sm:$0xff]
  %v262 = vld [vmem:[%s0 + $0x7b0] sm:$0xff]
  %v263 = vld [vmem:[%s0 + $0x7b8] sm:$0xff]
  %v264 = vld [vmem:[%s0 + $0x7c0] sm:$0xff]
  %v265 = vld [vmem:[%s0 + $0x7c8] sm:$0xff]
  %v266 = vld [vmem:[%s0 + $0x7d0] sm:$0xff]
  %v267 = vld [vmem:[%s0 + $0x7d8] sm:$0xff]
  %v268 = vld [vmem:[%s0 + $0x7e0] sm:$0xff]
  %v269 = vld [vmem:[%s0 + $0x7e8] sm:$0xff]
  %v270 = vld [vmem:[%s0 + $0x7f0] sm:$0xff]
  %v271 = vld [vmem:[%s0 + $0x7f8] sm:$0xff]
  %v272 = vld [vmem:[%s0 + $0x800] sm:$0xff]
  %v273 = vld [vmem:[%s0 + $0x808] sm:$0xff]
  %v274 = vld [vmem:[%s0 + $0x810] sm:$0xff]
  %v275 = vld [vmem:[%s0 + $0x818] sm:$0xff]
  %v276 = vld [vmem:[%s0 + $0x820] sm:$0xff]
  %v277 = vld [vmem:[%s0 + $0x828] sm:$0xff]
  %v278 = vld [vmem:[%s0 + $0x830] sm:$0xff]
  %v279 = vld [vmem:[%s0 + $0x838] sm:$0xff]
  %v280 = vld [vmem:[%s0 + $0x840] sm:$0xff]
  %v281 = vld [vmem:[%s0 + $0x848] sm:$0xff]
  %v282 = vld [vmem:[%s0 + $0x850] sm:$0xff]
  %v283 = vld [vmem:[%s0 + $0x858] sm:$0xff]
  %v284 = vld [vmem:[%s0 + $0x860] sm:$0xff]
  %v285 = vld [vmem:[%s0 + $0x868] sm:$0xff]
  %v286 = vld [vmem:[%s0 + $0x870] sm:$0xff]
  %v287 = vld [vmem:[%s0 + $0x878] sm:$0xff]
  %v288 = vld [vmem:[%s0 + $0x880] sm:$0xff]
  %v289 = vld [vmem:[%s0 + $0x888] sm:$0xff]
  %v290 = vld [vmem:[%s0 + $0x890] sm:$0xff]
  %v291 = vld [vmem:[%s0 + $0x898] sm:$0xff]
  %v292 = vld [vmem:[%s0 + $0x8a0] sm:$0xff]
  %v293 = vld [vmem:[%s0 + $0x8a8] sm:$0xff]
  %v294 = vld [vmem:[%s0 + $0x8b0] sm:$0xff]
  %v295 = vld [vmem:[%s0 + $0x8b8] sm:$0xff]
  %v296 = vld [vmem:[%s0 + $0x8c0] sm:$0xff]
  %v297 = vld [vmem:[%s0 + $0x8c8] sm:$0xff]
  %v298 = vld [vmem:[%s0 + $0x8d0] sm:$0xff]
  %v299 = vld [vmem:[%s0 + $0x8d8] sm:$0xff]
  %v300 = vld [vmem:[%s0 + $0x8e0] sm:$0xff]
  %v301 = vld [vmem:[%s0 + $0x8e8] sm:$0xff]
  %v302 = vld [vmem:[%s0 + $0x8f0] sm:$0xff]
  %v303 = vld [vmem:[%s0 + $0x8f8] sm:$0xff]
  %v304 = vld [vmem:[%s0 + $0x900] sm:$0xff]
  %v305 = vld [vmem:[%s0 + $0x908] sm:$0xff]
  %v306 = vld [vmem:[%s0 + $0x910] sm:$0xff]
  %v307 = vld [vmem:[%s0 + $0x918] sm:$0xff]
  %v308 = vld [vmem:[%s0 + $0x920] sm:$0xff]
  %v309 = vld [vmem:[%s0 + $0x928] sm:$0xff]
  %v310 = vld [vmem:[%s0 + $0x930] sm:$0xff]
  %v311 = vld [vmem:[%s0 + $0x938] sm:$0xff]
  %v312 = vld [vmem:[%s0 + $0x940] sm:$0xff]
  %v313 = vld [vmem:[%s0 + $0x948] sm:$0xff]
  %v314 = vld [vmem:[%s0 + $0x950] sm:$0xff]
  %v315 = vld [vmem:[%s0 + $0x958] sm:$0xff]
  %v316 = vld [vmem:[%s0 + $0x960] sm:$0xff]
  %v317 = vld [vmem:[%s0 + $0x968] sm:$0xff]
  %v318 = vld [vmem:[%s0 + $0x970] sm:$0xff]
  %v319 = vld [vmem:[%s0 + $0x978] sm:$0xff]
  %v320 = vld [vmem:[%s0 + $0x980] sm:$0xff]
  %v321 = vld [vmem:[%s0 + $0x988] sm:$0xff]
  %v322 = vld [vmem:[%s0 + $0x990] sm:$0xff]
  %v323 = vld [vmem:[%s0 + $0x998] sm:$0xff]
  %v324 = vld [vmem:[%s0 + $0x9a0] sm:$0xff]
  %v325 = vld [vmem:[%s0 + $0x9a8] sm:$0xff]
  %v326 = vld [vmem:[%s0 + $0x9b0] sm:$0xff]
  %v327 = vld [vmem:[%s0 + $0x9b8] sm:$0xff]
  %v328 = vld [vmem:[%s0 + $0x9c0] sm:$0xff]
  %v329 = vld [vmem:[%s0 + $0x9c8] sm:$0xff]
  %v330 = vld [vmem:[%s0 + $0x9d0] sm:$0xff]
  %v331 = vld [vmem:[%s0 + $0x9d8] sm:$0xff]
  %v332 = vld [vmem:[%s0 + $0x9e0] sm:$0xff]
  %v333 = vld [vmem:[%s0 + $0x9e8] sm:$0xff]
  %v334 = vld [vmem:[%s0 + $0x9f0] sm:$0xff]
  %v335 = vld [vmem:[%s0 + $0x9f8] sm:$0xff]
  %v336 = vld [vmem:[%s0 + $0xa00] sm:$0xff]
  %v337 = vld [vmem:[%s0 + $0xa08] sm:$0xff]
  %v338 = vld [vmem:[%s0 + $0xa10] sm:$0xff]
  %v339 = vld [vmem:[%s0 + $0xa18] sm:$0xff]
  %v340 = vld [vmem:[%s0 + $0xa20] sm:$0xff]
  %v341 = vld [vmem:[%s0 + $0xa28] sm:$0xff]
  %v342 = vld [vmem:[%s0 + $0xa30] sm:$0xff]
  %v343 = vld [vmem:[%s0 + $0xa38] sm:$0xff]
  %v344 = vld [vmem:[%s0 + $0xa40] sm:$0xff]
  %v345 = vld [vmem:[%s0 + $0xa48] sm:$0xff]
  %v346 = vld [vmem:[%s0 + $0xa50] sm:$0xff]
  %v347 = vld [vmem:[%s0 + $0xa58] sm:$0xff]
  %v348 = vld [vmem:[%s0 + $0xa60] sm:$0xff]
  %v349 = vld [vmem:[%s0 + $0xa68] sm:$0xff]
  %v350 = vld [vmem:[%s0 + $0xa70] sm:$0xff]
  %v351 = vld [vmem:[%s0 + $0xa78] sm:$0xff]
  %v352 = vld [vmem:[%s0 + $0xa80] sm:$0xff]
  %v353 = vld [vmem:[%s0 + $0xa88] sm:$0xff]
  %v354 = vld [vmem:[%s0 + $0xa90] sm:$0xff]
  %v355 = vld [vmem:[%s0 + $0xa98] sm:$0xff]
  %v356 = vld [vmem:[%s0 + $0xaa0] sm:$0xff]
  %v357 = vld [vmem:[%s0 + $0xaa8] sm:$0xff]
  %v358 = vld [vmem:[%s0 + $0xab0] sm:$0xff]
  %v359 = vld [vmem:[%s0 + $0xab8] sm:$0xff]
  %v360 = vld [vmem:[%s0 + $0xac0] sm:$0xff]
  %v361 = vld [vmem:[%s0 + $0xac8] sm:$0xff]
  %v362 = vld [vmem:[%s0 + $0xad0] sm:$0xff]
  %v363 = vld [vmem:[%s0 + $0xad8] sm:$0xff]
  %v364 = vld [vmem:[%s0 + $0xae0] sm:$0xff]
  %v365 = vld [vmem:[%s0 + $0xae8] sm:$0xff]
  %v366 = vld [vmem:[%s0 + $0xaf0] sm:$0xff]
  %v367 = vld [vmem:[%s0 + $0xaf8] sm:$0xff]
  %v368 = vld [vmem:[%s0 + $0xb00] sm:$0xff]
  %v369 = vld [vmem:[%s0 + $0xb08] sm:$0xff]
  %v370 = vld [vmem:[%s0 + $0xb10] sm:$0xff]
  %v371 = vld [vmem:[%s0 + $0xb18] sm:$0xff]
  %v372 = vld [vmem:[%s0 + $0xb20] sm:$0xff]
  %v373 = vld [vmem:[%s0 + $0xb28] sm:$0xff]
  %v374 = vld [vmem:[%s0 + $0xb30] sm:$0xff]
  %v375 = vld [vmem:[%s0 + $0xb38] sm:$0xff]
  %v376 = vld [vmem:[%s0 + $0xb40] sm:$0xff]
  %v377 = vld [vmem:[%s0 + $0xb48] sm:$0xff]
  %v378 = vld [vmem:[%s0 + $0xb50] sm:$0xff]
  %v379 = vld [vmem:[%s0 + $0xb58] sm:$0xff]
  %v380 = vld [vmem:[%s0 + $0xb60] sm:$0xff]
  %v381 = vld [vmem:[%s0 + $0xb68] sm:$0xff]
  %v382 = vld [vmem:[%s0 + $0xb70] sm:$0xff]
  %v383 = vld [vmem:[%s0 + $0xb78] sm:$0xff]
  %v384 = vld [vmem:[%s0 + $0xb80] sm:$0xff]
  %v385 = vld [vmem:[%s0 + $0xb88] sm:$0xff]
  %v386 = vld [vmem:[%s0 + $0xb90] sm:$0xff]
  %v387 = vld [vmem:[%s0 + $0xb98] sm:$0xff]
  %v388 = vld [vmem:[%s0 + $0xba0] sm:$0xff]
  %v389 = vld [vmem:[%s0 + $0xba8] sm:$0xff]
  %v390 = vld [vmem:[%s0 + $0xbb0] sm:$0xff]
  %v391 = vld [vmem:[%s0 + $0xbb8] sm:$0xff]
  %v392 = vld [vmem:[%s0 + $0xbc0] sm:$0xff]
  %v393 = vld [vmem:[%s0 + $0xbc8] sm:$0xff]
  %v394 = vld [vmem:[%s0 + $0xbd0] sm:$0xff]
  %v395 = vld [vmem:[%s0 + $0xbd8] sm:$0xff]
  %v396 = vld [vmem:[%s0 + $0xbe0] sm:$0xff]
  %v397 = vld [vmem:[%s0 + $0xbe8] sm:$0xff]
  %v398 = vld [vmem:[%s0 + $0xbf0] sm:$0xff]
  %v399 = vld [vmem:[%s0 + $0xbf8] sm:$0xff]
  %v400 = vld [vmem:[%s0 + $0xc00] sm:$0xff]
  %v401 = vld [vmem:[%s0 + $0xc08] sm:$0xff]
  %v402 = vld [vmem:[%s0 + $0xc10] sm:$0xff]
  %v403 = vld [vmem:[%s0 + $0xc18] sm:$0xff]
  %v404 = vld [vmem:[%s0 + $0xc20] sm:$0xff]
  %v405 = vld [vmem:[%s0 + $0xc28] sm:$0xff]
  %v406 = vld [vmem:[%s0 + $0xc30] sm:$0xff]
  %v407 = vld [vmem:[%s0 + $0xc38] sm:$0xff]
  %v408 = vld [vmem:[%s1] sm:$0x3]
  %v410 = vlaneseq
  %v411 = vshrl.u32 %v410, 7
  %v412 = vsub.s32 0, %v411
  %v413 = vrot.slane %v408, %v412
  %v414 = vlaneseq
  %v415 = vshrl.u32 %v414, 7
  %v416 = vsub.s32 1, %v415
  %v417 = vrot.slane %v408, %v416
  %v420 = vmul.f32 %v16, %v413
  %v421 = vmul.f32 %v17, %v417
  %v422 = vmul.f32 %v18, %v413
  %v423 = vmul.f32 %v19, %v417
  %v424 = vmul.f32 %v20, %v413
  %v425 = vmul.f32 %v21, %v417
  %v426 = vmul.f32 %v22, %v413
  %v427 = vmul.f32 %v23, %v417
  %v428 = vmul.f32 %v24, %v413
  %v429 = vmul.f32 %v25, %v417
  %v430 = vmul.f32 %v26, %v413
  %v431 = vmul.f32 %v27, %v417
  %v432 = vmul.f32 %v28, %v413
  %v433 = vmul.f32 %v29, %v417
  %v434 = vmul.f32 %v30, %v413
  %v435 = vmul.f32 %v31, %v417
  %v436 = vmul.f32 %v32, %v413
  %v437 = vmul.f32 %v33, %v417
  %v438 = vmul.f32 %v34, %v413
  %v439 = vmul.f32 %v35, %v417
  %v440 = vmul.f32 %v36, %v413
  %v441 = vmul.f32 %v37, %v417
  %v442 = vmul.f32 %v38, %v413
  %v443 = vmul.f32 %v39, %v417
  %v444 = vmul.f32 %v40, %v413
  %v445 = vmul.f32 %v41, %v417
  %v446 = vmul.f32 %v42, %v413
  %v447 = vmul.f32 %v43, %v417
  %v448 = vmul.f32 %v44, %v413
  %v449 = vmul.f32 %v45, %v417
  %v450 = vmul.f32 %v46, %v413
  %v451 = vmul.f32 %v47, %v417
  %v452 = vmul.f32 %v48, %v413
  %v453 = vmul.f32 %v49, %v417
  %v454 = vmul.f32 %v50, %v413
  %v455 = vmul.f32 %v51, %v417
  %v456 = vmul.f32 %v52, %v413
  %v457 = vmul.f32 %v53, %v417
  %v458 = vmul.f32 %v54, %v413
  %v459 = vmul.f32 %v55, %v417
  %v460 = vmul.f32 %v56, %v413
  %v461 = vmul.f32 %v57, %v417
  %v462 = vmul.f32 %v58, %v413
  %v463 = vmul.f32 %v59, %v417
  %v464 = vmul.f32 %v60, %v413
  %v465 = vmul.f32 %v61, %v417
  %v466 = vmul.f32 %v62, %v413
  %v467 = vmul.f32 %v63, %v417
  %v468 = vmul.f32 %v64, %v413
  %v469 = vmul.f32 %v65, %v417
  %v470 = vmul.f32 %v66, %v413
  %v471 = vmul.f32 %v67, %v417
  %v472 = vmul.f32 %v68, %v413
  %v473 = vmul.f32 %v69, %v417
  %v474 = vmul.f32 %v70, %v413
  %v475 = vmul.f32 %v71, %v417
  %v476 = vmul.f32 %v72, %v413
  %v477 = vmul.f32 %v73, %v417
  %v478 = vmul.f32 %v74, %v413
  %v479 = vmul.f32 %v75, %v417
  %v480 = vmul.f32 %v76, %v413
  %v481 = vmul.f32 %v77, %v417
  %v482 = vmul.f32 %v78, %v413
  %v483 = vmul.f32 %v79, %v417
  %v484 = vmul.f32 %v80, %v413
  %v485 = vmul.f32 %v81, %v417
  %v486 = vmul.f32 %v82, %v413
  %v487 = vmul.f32 %v83, %v417
  %v488 = vmul.f32 %v84, %v413
  %v489 = vmul.f32 %v85, %v417
  %v490 = vmul.f32 %v86, %v413
  %v491 = vmul.f32 %v87, %v417
  %v492 = vmul.f32 %v88, %v413
  %v493 = vmul.f32 %v89, %v417
  %v494 = vmul.f32 %v90, %v413
  %v495 = vmul.f32 %v91, %v417
  %v496 = vmul.f32 %v92, %v413
  %v497 = vmul.f32 %v93, %v417
  %v498 = vmul.f32 %v94, %v413
  %v499 = vmul.f32 %v95, %v417
  %v500 = vmul.f32 %v96, %v413
  %v501 = vmul.f32 %v97, %v417
  %v502 = vmul.f32 %v98, %v413
  %v503 = vmul.f32 %v99, %v417
  %v504 = vmul.f32 %v100, %v413
  %v505 = vmul.f32 %v101, %v417
  %v506 = vmul.f32 %v102, %v413
  %v507 = vmul.f32 %v103, %v417
  %v508 = vmul.f32 %v104, %v413
  %v509 = vmul.f32 %v105, %v417
  %v510 = vmul.f32 %v106, %v413
  %v511 = vmul.f32 %v107, %v417
  %v512 = vmul.f32 %v108, %v413
  %v513 = vmul.f32 %v109, %v417
  %v514 = vmul.f32 %v110, %v413
  %v515 = vmul.f32 %v111, %v417
  %v516 = vmul.f32 %v112, %v413
  %v517 = vmul.f32 %v113, %v417
  %v518 = vmul.f32 %v114, %v413
  %v519 = vmul.f32 %v115, %v417
  %v520 = vmul.f32 %v116, %v413
  %v521 = vmul.f32 %v117, %v417
  %v522 = vmul.f32 %v118, %v413
  %v523 = vmul.f32 %v119, %v417
  %v524 = vmul.f32 %v120, %v413
  %v525 = vmul.f32 %v121, %v417
  %v526 = vmul.f32 %v122, %v413
  %v527 = vmul.f32 %v123, %v417
  %v528 = vmul.f32 %v124, %v413
  %v529 = vmul.f32 %v125, %v417
  %v530 = vmul.f32 %v126, %v413
  %v531 = vmul.f32 %v127, %v417
  %v532 = vmul.f32 %v128, %v413
  %v533 = vmul.f32 %v129, %v417
  %v534 = vmul.f32 %v130, %v413
  %v535 = vmul.f32 %v131, %v417
  %v536 = vmul.f32 %v132, %v413
  %v537 = vmul.f32 %v133, %v417
  %v538 = vmul.f32 %v134, %v413
  %v539 = vmul.f32 %v135, %v417
  %v540 = vmul.f32 %v136, %v413
  %v541 = vmul.f32 %v137, %v417
  %v542 = vmul.f32 %v138, %v413
  %v543 = vmul.f32 %v139, %v417
  %v544 = vmul.f32 %v140, %v413
  %v545 = vmul.f32 %v141, %v417
  %v546 = vmul.f32 %v142, %v413
  %v547 = vmul.f32 %v143, %v417
  %v548 = vmul.f32 %v144, %v413
  %v549 = vmul.f32 %v145, %v417
  %v550 = vmul.f32 %v146, %v413
  %v551 = vmul.f32 %v147, %v417
  %v552 = vmul.f32 %v148, %v413
  %v553 = vmul.f32 %v149, %v417
  %v554 = vmul.f32 %v150, %v413
  %v555 = vmul.f32 %v151, %v417
  %v556 = vmul.f32 %v152, %v413
  %v557 = vmul.f32 %v153, %v417
  %v558 = vmul.f32 %v154, %v413
  %v559 = vmul.f32 %v155, %v417
  %v560 = vmul.f32 %v156, %v413
  %v561 = vmul.f32 %v157, %v417
  %v562 = vmul.f32 %v158, %v413
  %v563 = vmul.f32 %v159, %v417
  %v564 = vmul.f32 %v160, %v413
  %v565 = vmul.f32 %v161, %v417
  %v566 = vmul.f32 %v162, %v413
  %v567 = vmul.f32 %v163, %v417
  %v568 = vmul.f32 %v164, %v413
  %v569 = vmul.f32 %v165, %v417
  %v570 = vmul.f32 %v166, %v413
  %v571 = vmul.f32 %v167, %v417
  %v572 = vmul.f32 %v168, %v413
  %v573 = vmul.f32 %v169, %v417
  %v574 = vmul.f32 %v170, %v413
  %v575 = vmul.f32 %v171, %v417
  %v576 = vmul.f32 %v172, %v413
  %v577 = vmul.f32 %v173, %v417
  %v578 = vmul.f32 %v174, %v413
  %v579 = vmul.f32 %v175, %v417
  %v580 = vmul.f32 %v176, %v413
  %v581 = vmul.f32 %v177, %v417
  %v582 = vmul.f32 %v178, %v413
  %v583 = vmul.f32 %v179, %v417
  %v584 = vmul.f32 %v180, %v413
  %v585 = vmul.f32 %v181, %v417
  %v586 = vmul.f32 %v182, %v413
  %v587 = vmul.f32 %v183, %v417
  %v588 = vmul.f32 %v184, %v413
  %v589 = vmul.f32 %v185, %v417
  %v590 = vmul.f32 %v186, %v413
  %v591 = vmul.f32 %v187, %v417
  %v592 = vmul.f32 %v188, %v413
  %v593 = vmul.f32 %v189, %v417
  %v594 = vmul.f32 %v190, %v413
  %v595 = vmul.f32 %v191, %v417
  %v596 = vmul.f32 %v192, %v413
  %v597 = vmul.f32 %v193, %v417
  %v598 = vmul.f32 %v194, %v413
  %v599 = vmul.f32 %v195, %v417
  %v600 = vmul.f32 %v196, %v413
  %v601 = vmul.f32 %v197, %v417
  %v602 = vmul.f32 %v198, %v413
  %v603 = vmul.f32 %v199, %v417
  %v604 = vmul.f32 %v200, %v413
  %v605 = vmul.f32 %v201, %v417
  %v606 = vmul.f32 %v202, %v413
  %v607 = vmul.f32 %v203, %v417
  %v608 = vmul.f32 %v204, %v413
  %v609 = vmul.f32 %v205, %v417
  %v610 = vmul.f32 %v206, %v413
  %v611 = vmul.f32 %v207, %v417
  %v612 = vmul.f32 %v208, %v413
  %v613 = vmul.f32 %v209, %v417
  %v614 = vmul.f32 %v210, %v413
  %v615 = vmul.f32 %v211, %v417
  %v616 = vmul.f32 %v212, %v413
  %v617 = vmul.f32 %v213, %v417
  %v618 = vmul.f32 %v214, %v413
  %v619 = vmul.f32 %v215, %v417
  %v620 = vmul.f32 %v216, %v413
  %v621 = vmul.f32 %v217, %v417
  %v622 = vmul.f32 %v218, %v413
  %v623 = vmul.f32 %v219, %v417
  %v624 = vmul.f32 %v220, %v413
  %v625 = vmul.f32 %v221, %v417
  %v626 = vmul.f32 %v222, %v413
  %v627 = vmul.f32 %v223, %v417
  %v628 = vmul.f32 %v224, %v413
  %v629 = vmul.f32 %v225, %v417
  %v630 = vmul.f32 %v226, %v413
  %v631 = vmul.f32 %v227, %v417
  %v632 = vmul.f32 %v228, %v413
  %v633 = vmul.f32 %v229, %v417
  %v634 = vmul.f32 %v230, %v413
  %v635 = vmul.f32 %v231, %v417
  %v636 = vmul.f32 %v232, %v413
  %v637 = vmul.f32 %v233, %v417
  %v638 = vmul.f32 %v234, %v413
  %v639 = vmul.f32 %v235, %v417
  %v640 = vmul.f32 %v236, %v413
  %v641 = vmul.f32 %v237, %v417
  %v642 = vmul.f32 %v238, %v413
  %v643 = vmul.f32 %v239, %v417
  %v644 = vmul.f32 %v240, %v413
  %v645 = vmul.f32 %v241, %v417
  %v646 = vmul.f32 %v242, %v413
  %v647 = vmul.f32 %v243, %v417
  %v648 = vmul.f32 %v244, %v413
  %v649 = vmul.f32 %v245, %v417
  %v650 = vmul.f32 %v246, %v413
  %v651 = vmul.f32 %v247, %v417
  %v652 = vmul.f32 %v248, %v413
  %v653 = vmul.f32 %v249, %v417
  %v654 = vmul.f32 %v250, %v413
  %v655 = vmul.f32 %v251, %v417
  %v656 = vmul.f32 %v252, %v413
  %v657 = vmul.f32 %v253, %v417
  %v658 = vmul.f32 %v254, %v413
  %v659 = vmul.f32 %v255, %v417
  %v660 = vmul.f32 %v256, %v413
  %v661 = vmul.f32 %v257, %v417
  %v662 = vmul.f32 %v258, %v413
  %v663 = vmul.f32 %v259, %v417
  %v664 = vmul.f32 %v260, %v413
  %v665 = vmul.f32 %v261, %v417
  %v666 = vmul.f32 %v262, %v413
  %v667 = vmul.f32 %v263, %v417
  %v668 = vmul.f32 %v264, %v413
  %v669 = vmul.f32 %v265, %v417
  %v670 = vmul.f32 %v266, %v413
  %v671 = vmul.f32 %v267, %v417
  %v672 = vmul.f32 %v268, %v413
  %v673 = vmul.f32 %v269, %v417
  %v674 = vmul.f32 %v270, %v413
  %v675 = vmul.f32 %v271, %v417
  %v676 = vmul.f32 %v272, %v413
  %v677 = vmul.f32 %v273, %v417
  %v678 = vmul.f32 %v274, %v413
  %v679 = vmul.f32 %v275, %v417
  %v680 = vmul.f32 %v276, %v413
  %v681 = vmul.f32 %v277, %v417
  %v682 = vmul.f32 %v278, %v413
  %v683 = vmul.f32 %v279, %v417
  %v684 = vmul.f32 %v280, %v413
  %v685 = vmul.f32 %v281, %v417
  %v686 = vmul.f32 %v282, %v413
  %v687 = vmul.f32 %v283, %v417
  %v688 = vmul.f32 %v284, %v413
  %v689 = vmul.f32 %v285, %v417
  %v690 = vmul.f32 %v286, %v413
  %v691 = vmul.f32 %v287, %v417
  %v692 = vmul.f32 %v288, %v413
  %v693 = vmul.f32 %v289, %v417
  %v694 = vmul.f32 %v290, %v413
  %v695 = vmul.f32 %v291, %v417
  %v696 = vmul.f32 %v292, %v413
  %v697 = vmul.f32 %v293, %v417
  %v698 = vmul.f32 %v294, %v413
  %v699 = vmul.f32 %v295, %v417
  %v700 = vmul.f32 %v296, %v413
  %v701 = vmul.f32 %v297, %v417
  %v702 = vmul.f32 %v298, %v413
  %v703 = vmul.f32 %v299, %v417
  %v704 = vmul.f32 %v300, %v413
  %v705 = vmul.f32 %v301, %v417
  %v706 = vmul.f32 %v302, %v413
  %v707 = vmul.f32 %v303, %v417
  %v708 = vmul.f32 %v304, %v413
  %v709 = vmul.f32 %v305, %v417
  %v710 = vmul.f32 %v306, %v413
  %v711 = vmul.f32 %v307, %v417
  %v712 = vmul.f32 %v308, %v413
  %v713 = vmul.f32 %v309, %v417
  %v714 = vmul.f32 %v310, %v413
  %v715 = vmul.f32 %v311, %v417
  %v716 = vmul.f32 %v312, %v413
  %v717 = vmul.f32 %v313, %v417
  %v718 = vmul.f32 %v314, %v413
  %v719 = vmul.f32 %v315, %v417
  %v720 = vmul.f32 %v316, %v413
  %v721 = vmul.f32 %v317, %v417
  %v722 = vmul.f32 %v318, %v413
  %v723 = vmul.f32 %v319, %v417
  %v724 = vmul.f32 %v320, %v413
  %v725 = vmul.f32 %v321, %v417
  %v726 = vmul.f32 %v322, %v413
  %v727 = vmul.f32 %v323, %v417
  %v728 = vmul.f32 %v324, %v413
  %v729 = vmul.f32 %v325, %v417
  %v730 = vmul.f32 %v326, %v413
  %v731 = vmul.f32 %v327, %v417
  %v732 = vmul.f32 %v328, %v413
  %v733 = vmul.f32 %v329, %v417
  %v734 = vmul.f32 %v330, %v413
  %v735 = vmul.f32 %v331, %v417
  %v736 = vmul.f32 %v332, %v413
  %v737 = vmul.f32 %v333, %v417
  %v738 = vmul.f32 %v334, %v413
  %v739 = vmul.f32 %v335, %v417
  %v740 = vmul.f32 %v336, %v413
  %v741 = vmul.f32 %v337, %v417
  %v742 = vmul.f32 %v338, %v413
  %v743 = vmul.f32 %v339, %v417
  %v744 = vmul.f32 %v340, %v413
  %v745 = vmul.f32 %v341, %v417
  %v746 = vmul.f32 %v342, %v413
  %v747 = vmul.f32 %v343, %v417
  %v748 = vmul.f32 %v344, %v413
  %v749 = vmul.f32 %v345, %v417
  %v750 = vmul.f32 %v346, %v413
  %v751 = vmul.f32 %v347, %v417
  %v752 = vmul.f32 %v348, %v413
  %v753 = vmul.f32 %v349, %v417
  %v754 = vmul.f32 %v350, %v413
  %v755 = vmul.f32 %v351, %v417
  %v756 = vmul.f32 %v352, %v413
  %v757 = vmul.f32 %v353, %v417
  %v758 = vmul.f32 %v354, %v413
  %v759 = vmul.f32 %v355, %v417
  %v760 = vmul.f32 %v356, %v413
  %v761 = vmul.f32 %v357, %v417
  %v762 = vmul.f32 %v358, %v413
  %v763 = vmul.f32 %v359, %v417
  %v764 = vmul.f32 %v360, %v413
  %v765 = vmul.f32 %v361, %v417
  %v766 = vmul.f32 %v362, %v413
  %v767 = vmul.f32 %v363, %v417
  %v768 = vmul.f32 %v364, %v413
  %v769 = vmul.f32 %v365, %v417
  %v770 = vmul.f32 %v366, %v413
  %v771 = vmul.f32 %v367, %v417
  %v772 = vmul.f32 %v368, %v413
  %v773 = vmul.f32 %v369, %v417
  %v774 = vmul.f32 %v370, %v413
  %v775 = vmul.f32 %v371, %v417
  %v776 = vmul.f32 %v372, %v413
  %v777 = vmul.f32 %v373, %v417
  %v778 = vmul.f32 %v374, %v413
  %v779 = vmul.f32 %v375, %v417
  %v780 = vmul.f32 %v376, %v413
  %v781 = vmul.f32 %v377, %v417
  %v782 = vmul.f32 %v378, %v413
  %v783 = vmul.f32 %v379, %v417
  %v784 = vmul.f32 %v380, %v413
  %v785 = vmul.f32 %v381, %v417
  %v786 = vmul.f32 %v382, %v413
  %v787 = vmul.f32 %v383, %v417
  %v788 = vmul.f32 %v384, %v413
  %v789 = vmul.f32 %v385, %v417
  %v790 = vmul.f32 %v386, %v413
  %v791 = vmul.f32 %v387, %v417
  %v792 = vmul.f32 %v388, %v413
  %v793 = vmul.f32 %v389, %v417
  %v794 = vmul.f32 %v390, %v413
  %v795 = vmul.f32 %v391, %v417
  %v796 = vmul.f32 %v392, %v413
  %v797 = vmul.f32 %v393, %v417
  %v798 = vmul.f32 %v394, %v413
  %v799 = vmul.f32 %v395, %v417
  %v800 = vmul.f32 %v396, %v413
  %v801 = vmul.f32 %v397, %v417
  %v802 = vmul.f32 %v398, %v413
  %v803 = vmul.f32 %v399, %v417
  %v804 = vmul.f32 %v400, %v413
  %v805 = vmul.f32 %v401, %v417
  %v806 = vmul.f32 %v402, %v413
  %v807 = vmul.f32 %v403, %v417
  %v808 = vmul.f32 %v404, %v413
  %v809 = vmul.f32 %v405, %v417
  %v810 = vmul.f32 %v406, %v413
  %v811 = vmul.f32 %v407, %v417
  %v812 = vadd.f32 %v420, %v421
  %813 = vadd.xlane.f32.xlu0 %v812
  %v814 = vpop.xlane.xlu0 %813
  %v815 = vadd.f32 %v422, %v423
  %816 = vadd.xlane.f32.xlu0 %v815
  %v817 = vpop.xlane.xlu0 %816
  %v818 = vadd.f32 %v424, %v425
  %819 = vadd.xlane.f32.xlu0 %v818
  %v820 = vpop.xlane.xlu0 %819
  %v821 = vadd.f32 %v426, %v427
  %822 = vadd.xlane.f32.xlu0 %v821
  %v823 = vpop.xlane.xlu0 %822
  %v824 = vadd.f32 %v428, %v429
  %825 = vadd.xlane.f32.xlu0 %v824
  %v826 = vpop.xlane.xlu0 %825
  %v827 = vadd.f32 %v430, %v431
  %828 = vadd.xlane.f32.xlu0 %v827
  %v829 = vpop.xlane.xlu0 %828
  %v830 = vadd.f32 %v432, %v433
  %831 = vadd.xlane.f32.xlu0 %v830
  %v832 = vpop.xlane.xlu0 %831
  %v833 = vadd.f32 %v434, %v435
  %834 = vadd.xlane.f32.xlu0 %v833
  %v835 = vpop.xlane.xlu0 %834
  %v836 = vadd.f32 %v436, %v437
  %837 = vadd.xlane.f32.xlu0 %v836
  %v838 = vpop.xlane.xlu0 %837
  %v839 = vadd.f32 %v438, %v439
  %840 = vadd.xlane.f32.xlu0 %v839
  %v841 = vpop.xlane.xlu0 %840
  %v842 = vadd.f32 %v440, %v441
  %843 = vadd.xlane.f32.xlu0 %v842
  %v844 = vpop.xlane.xlu0 %843
  %v845 = vadd.f32 %v442, %v443
  %846 = vadd.xlane.f32.xlu0 %v845
  %v847 = vpop.xlane.xlu0 %846
  %v848 = vadd.f32 %v444, %v445
  %849 = vadd.xlane.f32.xlu0 %v848
  %v850 = vpop.xlane.xlu0 %849
  %v851 = vadd.f32 %v446, %v447
  %852 = vadd.xlane.f32.xlu0 %v851
  %v853 = vpop.xlane.xlu0 %852
  %v854 = vadd.f32 %v448, %v449
  %855 = vadd.xlane.f32.xlu0 %v854
  %v856 = vpop.xlane.xlu0 %855
  %v857 = vadd.f32 %v450, %v451
  %858 = vadd.xlane.f32.xlu0 %v857
  %v859 = vpop.xlane.xlu0 %858
  %v860 = vadd.f32 %v452, %v453
  %861 = vadd.xlane.f32.xlu0 %v860
  %v862 = vpop.xlane.xlu0 %861
  %v863 = vadd.f32 %v454, %v455
  %864 = vadd.xlane.f32.xlu0 %v863
  %v865 = vpop.xlane.xlu0 %864
  %v866 = vadd.f32 %v456, %v457
  %867 = vadd.xlane.f32.xlu0 %v866
  %v868 = vpop.xlane.xlu0 %867
  %v869 = vadd.f32 %v458, %v459
  %870 = vadd.xlane.f32.xlu0 %v869
  %v871 = vpop.xlane.xlu0 %870
  %v872 = vadd.f32 %v460, %v461
  %873 = vadd.xlane.f32.xlu0 %v872
  %v874 = vpop.xlane.xlu0 %873
  %v875 = vadd.f32 %v462, %v463
  %876 = vadd.xlane.f32.xlu0 %v875
  %v877 = vpop.xlane.xlu0 %876
  %v878 = vadd.f32 %v464, %v465
  %879 = vadd.xlane.f32.xlu0 %v878
  %v880 = vpop.xlane.xlu0 %879
  %v881 = vadd.f32 %v466, %v467
  %882 = vadd.xlane.f32.xlu0 %v881
  %v883 = vpop.xlane.xlu0 %882
  %v884 = vadd.f32 %v468, %v469
  %885 = vadd.xlane.f32.xlu0 %v884
  %v886 = vpop.xlane.xlu0 %885
  %v887 = vadd.f32 %v470, %v471
  %888 = vadd.xlane.f32.xlu0 %v887
  %v889 = vpop.xlane.xlu0 %888
  %v890 = vadd.f32 %v472, %v473
  %891 = vadd.xlane.f32.xlu0 %v890
  %v892 = vpop.xlane.xlu0 %891
  %v893 = vadd.f32 %v474, %v475
  %894 = vadd.xlane.f32.xlu0 %v893
  %v895 = vpop.xlane.xlu0 %894
  %v896 = vadd.f32 %v476, %v477
  %897 = vadd.xlane.f32.xlu0 %v896
  %v898 = vpop.xlane.xlu0 %897
  %v899 = vadd.f32 %v478, %v479
  %900 = vadd.xlane.f32.xlu0 %v899
  %v901 = vpop.xlane.xlu0 %900
  %v902 = vadd.f32 %v480, %v481
  %903 = vadd.xlane.f32.xlu0 %v902
  %v904 = vpop.xlane.xlu0 %903
  %v905 = vadd.f32 %v482, %v483
  %906 = vadd.xlane.f32.xlu0 %v905
  %v907 = vpop.xlane.xlu0 %906
  %v908 = vadd.f32 %v484, %v485
  %909 = vadd.xlane.f32.xlu0 %v908
  %v910 = vpop.xlane.xlu0 %909
  %v911 = vadd.f32 %v486, %v487
  %912 = vadd.xlane.f32.xlu0 %v911
  %v913 = vpop.xlane.xlu0 %912
  %v914 = vadd.f32 %v488, %v489
  %915 = vadd.xlane.f32.xlu0 %v914
  %v916 = vpop.xlane.xlu0 %915
  %v917 = vadd.f32 %v490, %v491
  %918 = vadd.xlane.f32.xlu0 %v917
  %v919 = vpop.xlane.xlu0 %918
  %v920 = vadd.f32 %v492, %v493
  %921 = vadd.xlane.f32.xlu0 %v920
  %v922 = vpop.xlane.xlu0 %921
  %v923 = vadd.f32 %v494, %v495
  %924 = vadd.xlane.f32.xlu0 %v923
  %v925 = vpop.xlane.xlu0 %924
  %v926 = vadd.f32 %v496, %v497
  %927 = vadd.xlane.f32.xlu0 %v926
  %v928 = vpop.xlane.xlu0 %927
  %v929 = vadd.f32 %v498, %v499
  %930 = vadd.xlane.f32.xlu0 %v929
  %v931 = vpop.xlane.xlu0 %930
  %v932 = vadd.f32 %v500, %v501
  %933 = vadd.xlane.f32.xlu0 %v932
  %v934 = vpop.xlane.xlu0 %933
  %v935 = vadd.f32 %v502, %v503
  %936 = vadd.xlane.f32.xlu0 %v935
  %v937 = vpop.xlane.xlu0 %936
  %v938 = vadd.f32 %v504, %v505
  %939 = vadd.xlane.f32.xlu0 %v938
  %v940 = vpop.xlane.xlu0 %939
  %v941 = vadd.f32 %v506, %v507
  %942 = vadd.xlane.f32.xlu0 %v941
  %v943 = vpop.xlane.xlu0 %942
  %v944 = vadd.f32 %v508, %v509
  %945 = vadd.xlane.f32.xlu0 %v944
  %v946 = vpop.xlane.xlu0 %945
  %v947 = vadd.f32 %v510, %v511
  %948 = vadd.xlane.f32.xlu0 %v947
  %v949 = vpop.xlane.xlu0 %948
  %v950 = vadd.f32 %v512, %v513
  %951 = vadd.xlane.f32.xlu0 %v950
  %v952 = vpop.xlane.xlu0 %951
  %v953 = vadd.f32 %v514, %v515
  %954 = vadd.xlane.f32.xlu0 %v953
  %v955 = vpop.xlane.xlu0 %954
  %v956 = vadd.f32 %v516, %v517
  %957 = vadd.xlane.f32.xlu0 %v956
  %v958 = vpop.xlane.xlu0 %957
  %v959 = vadd.f32 %v518, %v519
  %960 = vadd.xlane.f32.xlu0 %v959
  %v961 = vpop.xlane.xlu0 %960
  %v962 = vadd.f32 %v520, %v521
  %963 = vadd.xlane.f32.xlu0 %v962
  %v964 = vpop.xlane.xlu0 %963
  %v965 = vadd.f32 %v522, %v523
  %966 = vadd.xlane.f32.xlu0 %v965
  %v967 = vpop.xlane.xlu0 %966
  %v968 = vadd.f32 %v524, %v525
  %969 = vadd.xlane.f32.xlu0 %v968
  %v970 = vpop.xlane.xlu0 %969
  %v971 = vadd.f32 %v526, %v527
  %972 = vadd.xlane.f32.xlu0 %v971
  %v973 = vpop.xlane.xlu0 %972
  %v974 = vadd.f32 %v528, %v529
  %975 = vadd.xlane.f32.xlu0 %v974
  %v976 = vpop.xlane.xlu0 %975
  %v977 = vadd.f32 %v530, %v531
  %978 = vadd.xlane.f32.xlu0 %v977
  %v979 = vpop.xlane.xlu0 %978
  %v980 = vadd.f32 %v532, %v533
  %981 = vadd.xlane.f32.xlu0 %v980
  %v982 = vpop.xlane.xlu0 %981
  %v983 = vadd.f32 %v534, %v535
  %984 = vadd.xlane.f32.xlu0 %v983
  %v985 = vpop.xlane.xlu0 %984
  %v986 = vadd.f32 %v536, %v537
  %987 = vadd.xlane.f32.xlu0 %v986
  %v988 = vpop.xlane.xlu0 %987
  %v989 = vadd.f32 %v538, %v539
  %990 = vadd.xlane.f32.xlu0 %v989
  %v991 = vpop.xlane.xlu0 %990
  %v992 = vadd.f32 %v540, %v541
  %993 = vadd.xlane.f32.xlu0 %v992
  %v994 = vpop.xlane.xlu0 %993
  %v995 = vadd.f32 %v542, %v543
  %996 = vadd.xlane.f32.xlu0 %v995
  %v997 = vpop.xlane.xlu0 %996
  %v998 = vadd.f32 %v544, %v545
  %999 = vadd.xlane.f32.xlu0 %v998
  %v1000 = vpop.xlane.xlu0 %999
  %v1001 = vadd.f32 %v546, %v547
  %1002 = vadd.xlane.f32.xlu0 %v1001
  %v1003 = vpop.xlane.xlu0 %1002
  %v1004 = vadd.f32 %v548, %v549
  %1005 = vadd.xlane.f32.xlu0 %v1004
  %v1006 = vpop.xlane.xlu0 %1005
  %v1007 = vadd.f32 %v550, %v551
  %1008 = vadd.xlane.f32.xlu0 %v1007
  %v1009 = vpop.xlane.xlu0 %1008
  %v1010 = vadd.f32 %v552, %v553
  %1011 = vadd.xlane.f32.xlu0 %v1010
  %v1012 = vpop.xlane.xlu0 %1011
  %v1013 = vadd.f32 %v554, %v555
  %1014 = vadd.xlane.f32.xlu0 %v1013
  %v1015 = vpop.xlane.xlu0 %1014
  %v1016 = vadd.f32 %v556, %v557
  %1017 = vadd.xlane.f32.xlu0 %v1016
  %v1018 = vpop.xlane.xlu0 %1017
  %v1019 = vadd.f32 %v558, %v559
  %1020 = vadd.xlane.f32.xlu0 %v1019
  %v1021 = vpop.xlane.xlu0 %1020
  %v1022 = vadd.f32 %v560, %v561
  %1023 = vadd.xlane.f32.xlu0 %v1022
  %v1024 = vpop.xlane.xlu0 %1023
  %v1025 = vadd.f32 %v562, %v563
  %1026 = vadd.xlane.f32.xlu0 %v1025
  %v1027 = vpop.xlane.xlu0 %1026
  %v1028 = vadd.f32 %v564, %v565
  %1029 = vadd.xlane.f32.xlu0 %v1028
  %v1030 = vpop.xlane.xlu0 %1029
  %v1031 = vadd.f32 %v566, %v567
  %1032 = vadd.xlane.f32.xlu0 %v1031
  %v1033 = vpop.xlane.xlu0 %1032
  %v1034 = vadd.f32 %v568, %v569
  %1035 = vadd.xlane.f32.xlu0 %v1034
  %v1036 = vpop.xlane.xlu0 %1035
  %v1037 = vadd.f32 %v570, %v571
  %1038 = vadd.xlane.f32.xlu0 %v1037
  %v1039 = vpop.xlane.xlu0 %1038
  %v1040 = vadd.f32 %v572, %v573
  %1041 = vadd.xlane.f32.xlu0 %v1040
  %v1042 = vpop.xlane.xlu0 %1041
  %v1043 = vadd.f32 %v574, %v575
  %1044 = vadd.xlane.f32.xlu0 %v1043
  %v1045 = vpop.xlane.xlu0 %1044
  %v1046 = vadd.f32 %v576, %v577
  %1047 = vadd.xlane.f32.xlu0 %v1046
  %v1048 = vpop.xlane.xlu0 %1047
  %v1049 = vadd.f32 %v578, %v579
  %1050 = vadd.xlane.f32.xlu0 %v1049
  %v1051 = vpop.xlane.xlu0 %1050
  %v1052 = vadd.f32 %v580, %v581
  %1053 = vadd.xlane.f32.xlu0 %v1052
  %v1054 = vpop.xlane.xlu0 %1053
  %v1055 = vadd.f32 %v582, %v583
  %1056 = vadd.xlane.f32.xlu0 %v1055
  %v1057 = vpop.xlane.xlu0 %1056
  %v1058 = vadd.f32 %v584, %v585
  %1059 = vadd.xlane.f32.xlu0 %v1058
  %v1060 = vpop.xlane.xlu0 %1059
  %v1061 = vadd.f32 %v586, %v587
  %1062 = vadd.xlane.f32.xlu0 %v1061
  %v1063 = vpop.xlane.xlu0 %1062
  %v1064 = vadd.f32 %v588, %v589
  %1065 = vadd.xlane.f32.xlu0 %v1064
  %v1066 = vpop.xlane.xlu0 %1065
  %v1067 = vadd.f32 %v590, %v591
  %1068 = vadd.xlane.f32.xlu0 %v1067
  %v1069 = vpop.xlane.xlu0 %1068
  %v1070 = vadd.f32 %v592, %v593
  %1071 = vadd.xlane.f32.xlu0 %v1070
  %v1072 = vpop.xlane.xlu0 %1071
  %v1073 = vadd.f32 %v594, %v595
  %1074 = vadd.xlane.f32.xlu0 %v1073
  %v1075 = vpop.xlane.xlu0 %1074
  %v1076 = vadd.f32 %v596, %v597
  %1077 = vadd.xlane.f32.xlu0 %v1076
  %v1078 = vpop.xlane.xlu0 %1077
  %v1079 = vadd.f32 %v598, %v599
  %1080 = vadd.xlane.f32.xlu0 %v1079
  %v1081 = vpop.xlane.xlu0 %1080
  %v1082 = vadd.f32 %v600, %v601
  %1083 = vadd.xlane.f32.xlu0 %v1082
  %v1084 = vpop.xlane.xlu0 %1083
  %v1085 = vadd.f32 %v602, %v603
  %1086 = vadd.xlane.f32.xlu0 %v1085
  %v1087 = vpop.xlane.xlu0 %1086
  %v1088 = vadd.f32 %v604, %v605
  %1089 = vadd.xlane.f32.xlu0 %v1088
  %v1090 = vpop.xlane.xlu0 %1089
  %v1091 = vadd.f32 %v606, %v607
  %1092 = vadd.xlane.f32.xlu0 %v1091
  %v1093 = vpop.xlane.xlu0 %1092
  %v1094 = vadd.f32 %v608, %v609
  %1095 = vadd.xlane.f32.xlu0 %v1094
  %v1096 = vpop.xlane.xlu0 %1095
  %v1097 = vadd.f32 %v610, %v611
  %1098 = vadd.xlane.f32.xlu0 %v1097
  %v1099 = vpop.xlane.xlu0 %1098
  %v1100 = vadd.f32 %v612, %v613
  %1101 = vadd.xlane.f32.xlu0 %v1100
  %v1102 = vpop.xlane.xlu0 %1101
  %v1103 = vadd.f32 %v614, %v615
  %1104 = vadd.xlane.f32.xlu0 %v1103
  %v1105 = vpop.xlane.xlu0 %1104
  %v1106 = vadd.f32 %v616, %v617
  %1107 = vadd.xlane.f32.xlu0 %v1106
  %v1108 = vpop.xlane.xlu0 %1107
  %v1109 = vadd.f32 %v618, %v619
  %1110 = vadd.xlane.f32.xlu0 %v1109
  %v1111 = vpop.xlane.xlu0 %1110
  %v1112 = vadd.f32 %v620, %v621
  %1113 = vadd.xlane.f32.xlu0 %v1112
  %v1114 = vpop.xlane.xlu0 %1113
  %v1115 = vadd.f32 %v622, %v623
  %1116 = vadd.xlane.f32.xlu0 %v1115
  %v1117 = vpop.xlane.xlu0 %1116
  %v1118 = vadd.f32 %v624, %v625
  %1119 = vadd.xlane.f32.xlu0 %v1118
  %v1120 = vpop.xlane.xlu0 %1119
  %v1121 = vadd.f32 %v626, %v627
  %1122 = vadd.xlane.f32.xlu0 %v1121
  %v1123 = vpop.xlane.xlu0 %1122
  %v1124 = vadd.f32 %v628, %v629
  %1125 = vadd.xlane.f32.xlu0 %v1124
  %v1126 = vpop.xlane.xlu0 %1125
  %v1127 = vadd.f32 %v630, %v631
  %1128 = vadd.xlane.f32.xlu0 %v1127
  %v1129 = vpop.xlane.xlu0 %1128
  %v1130 = vadd.f32 %v632, %v633
  %1131 = vadd.xlane.f32.xlu0 %v1130
  %v1132 = vpop.xlane.xlu0 %1131
  %v1133 = vadd.f32 %v634, %v635
  %1134 = vadd.xlane.f32.xlu0 %v1133
  %v1135 = vpop.xlane.xlu0 %1134
  %v1136 = vadd.f32 %v636, %v637
  %1137 = vadd.xlane.f32.xlu0 %v1136
  %v1138 = vpop.xlane.xlu0 %1137
  %v1139 = vadd.f32 %v638, %v639
  %1140 = vadd.xlane.f32.xlu0 %v1139
  %v1141 = vpop.xlane.xlu0 %1140
  %v1142 = vadd.f32 %v640, %v641
  %1143 = vadd.xlane.f32.xlu0 %v1142
  %v1144 = vpop.xlane.xlu0 %1143
  %v1145 = vadd.f32 %v642, %v643
  %1146 = vadd.xlane.f32.xlu0 %v1145
  %v1147 = vpop.xlane.xlu0 %1146
  %v1148 = vadd.f32 %v644, %v645
  %1149 = vadd.xlane.f32.xlu0 %v1148
  %v1150 = vpop.xlane.xlu0 %1149
  %v1151 = vadd.f32 %v646, %v647
  %1152 = vadd.xlane.f32.xlu0 %v1151
  %v1153 = vpop.xlane.xlu0 %1152
  %v1154 = vadd.f32 %v648, %v649
  %1155 = vadd.xlane.f32.xlu0 %v1154
  %v1156 = vpop.xlane.xlu0 %1155
  %v1157 = vadd.f32 %v650, %v651
  %1158 = vadd.xlane.f32.xlu0 %v1157
  %v1159 = vpop.xlane.xlu0 %1158
  %v1160 = vadd.f32 %v652, %v653
  %1161 = vadd.xlane.f32.xlu0 %v1160
  %v1162 = vpop.xlane.xlu0 %1161
  %v1163 = vadd.f32 %v654, %v655
  %1164 = vadd.xlane.f32.xlu0 %v1163
  %v1165 = vpop.xlane.xlu0 %1164
  %v1166 = vadd.f32 %v656, %v657
  %1167 = vadd.xlane.f32.xlu0 %v1166
  %v1168 = vpop.xlane.xlu0 %1167
  %v1169 = vadd.f32 %v658, %v659
  %1170 = vadd.xlane.f32.xlu0 %v1169
  %v1171 = vpop.xlane.xlu0 %1170
  %v1172 = vadd.f32 %v660, %v661
  %1173 = vadd.xlane.f32.xlu0 %v1172
  %v1174 = vpop.xlane.xlu0 %1173
  %v1175 = vadd.f32 %v662, %v663
  %1176 = vadd.xlane.f32.xlu0 %v1175
  %v1177 = vpop.xlane.xlu0 %1176
  %v1178 = vadd.f32 %v664, %v665
  %1179 = vadd.xlane.f32.xlu0 %v1178
  %v1180 = vpop.xlane.xlu0 %1179
  %v1181 = vadd.f32 %v666, %v667
  %1182 = vadd.xlane.f32.xlu0 %v1181
  %v1183 = vpop.xlane.xlu0 %1182
  %v1184 = vadd.f32 %v668, %v669
  %1185 = vadd.xlane.f32.xlu0 %v1184
  %v1186 = vpop.xlane.xlu0 %1185
  %v1187 = vadd.f32 %v670, %v671
  %1188 = vadd.xlane.f32.xlu0 %v1187
  %v1189 = vpop.xlane.xlu0 %1188
  %v1190 = vadd.f32 %v672, %v673
  %1191 = vadd.xlane.f32.xlu0 %v1190
  %v1192 = vpop.xlane.xlu0 %1191
  %v1193 = vadd.f32 %v674, %v675
  %1194 = vadd.xlane.f32.xlu0 %v1193
  %v1195 = vpop.xlane.xlu0 %1194
  %v1196 = vadd.f32 %v676, %v677
  %1197 = vadd.xlane.f32.xlu0 %v1196
  %v1198 = vpop.xlane.xlu0 %1197
  %v1199 = vadd.f32 %v678, %v679
  %1200 = vadd.xlane.f32.xlu0 %v1199
  %v1201 = vpop.xlane.xlu0 %1200
  %v1202 = vadd.f32 %v680, %v681
  %1203 = vadd.xlane.f32.xlu0 %v1202
  %v1204 = vpop.xlane.xlu0 %1203
  %v1205 = vadd.f32 %v682, %v683
  %1206 = vadd.xlane.f32.xlu0 %v1205
  %v1207 = vpop.xlane.xlu0 %1206
  %v1208 = vadd.f32 %v684, %v685
  %1209 = vadd.xlane.f32.xlu0 %v1208
  %v1210 = vpop.xlane.xlu0 %1209
  %v1211 = vadd.f32 %v686, %v687
  %1212 = vadd.xlane.f32.xlu0 %v1211
  %v1213 = vpop.xlane.xlu0 %1212
  %v1214 = vadd.f32 %v688, %v689
  %1215 = vadd.xlane.f32.xlu0 %v1214
  %v1216 = vpop.xlane.xlu0 %1215
  %v1217 = vadd.f32 %v690, %v691
  %1218 = vadd.xlane.f32.xlu0 %v1217
  %v1219 = vpop.xlane.xlu0 %1218
  %v1220 = vadd.f32 %v692, %v693
  %1221 = vadd.xlane.f32.xlu0 %v1220
  %v1222 = vpop.xlane.xlu0 %1221
  %v1223 = vadd.f32 %v694, %v695
  %1224 = vadd.xlane.f32.xlu0 %v1223
  %v1225 = vpop.xlane.xlu0 %1224
  %v1226 = vadd.f32 %v696, %v697
  %1227 = vadd.xlane.f32.xlu0 %v1226
  %v1228 = vpop.xlane.xlu0 %1227
  %v1229 = vadd.f32 %v698, %v699
  %1230 = vadd.xlane.f32.xlu0 %v1229
  %v1231 = vpop.xlane.xlu0 %1230
  %v1232 = vadd.f32 %v700, %v701
  %1233 = vadd.xlane.f32.xlu0 %v1232
  %v1234 = vpop.xlane.xlu0 %1233
  %v1235 = vadd.f32 %v702, %v703
  %1236 = vadd.xlane.f32.xlu0 %v1235
  %v1237 = vpop.xlane.xlu0 %1236
  %v1238 = vadd.f32 %v704, %v705
  %1239 = vadd.xlane.f32.xlu0 %v1238
  %v1240 = vpop.xlane.xlu0 %1239
  %v1241 = vadd.f32 %v706, %v707
  %1242 = vadd.xlane.f32.xlu0 %v1241
  %v1243 = vpop.xlane.xlu0 %1242
  %v1244 = vadd.f32 %v708, %v709
  %1245 = vadd.xlane.f32.xlu0 %v1244
  %v1246 = vpop.xlane.xlu0 %1245
  %v1247 = vadd.f32 %v710, %v711
  %1248 = vadd.xlane.f32.xlu0 %v1247
  %v1249 = vpop.xlane.xlu0 %1248
  %v1250 = vadd.f32 %v712, %v713
  %1251 = vadd.xlane.f32.xlu0 %v1250
  %v1252 = vpop.xlane.xlu0 %1251
  %v1253 = vadd.f32 %v714, %v715
  %1254 = vadd.xlane.f32.xlu0 %v1253
  %v1255 = vpop.xlane.xlu0 %1254
  %v1256 = vadd.f32 %v716, %v717
  %1257 = vadd.xlane.f32.xlu0 %v1256
  %v1258 = vpop.xlane.xlu0 %1257
  %v1259 = vadd.f32 %v718, %v719
  %1260 = vadd.xlane.f32.xlu0 %v1259
  %v1261 = vpop.xlane.xlu0 %1260
  %v1262 = vadd.f32 %v720, %v721
  %1263 = vadd.xlane.f32.xlu0 %v1262
  %v1264 = vpop.xlane.xlu0 %1263
  %v1265 = vadd.f32 %v722, %v723
  %1266 = vadd.xlane.f32.xlu0 %v1265
  %v1267 = vpop.xlane.xlu0 %1266
  %v1268 = vadd.f32 %v724, %v725
  %1269 = vadd.xlane.f32.xlu0 %v1268
  %v1270 = vpop.xlane.xlu0 %1269
  %v1271 = vadd.f32 %v726, %v727
  %1272 = vadd.xlane.f32.xlu0 %v1271
  %v1273 = vpop.xlane.xlu0 %1272
  %v1274 = vadd.f32 %v728, %v729
  %1275 = vadd.xlane.f32.xlu0 %v1274
  %v1276 = vpop.xlane.xlu0 %1275
  %v1277 = vadd.f32 %v730, %v731
  %1278 = vadd.xlane.f32.xlu0 %v1277
  %v1279 = vpop.xlane.xlu0 %1278
  %v1280 = vadd.f32 %v732, %v733
  %1281 = vadd.xlane.f32.xlu0 %v1280
  %v1282 = vpop.xlane.xlu0 %1281
  %v1283 = vadd.f32 %v734, %v735
  %1284 = vadd.xlane.f32.xlu0 %v1283
  %v1285 = vpop.xlane.xlu0 %1284
  %v1286 = vadd.f32 %v736, %v737
  %1287 = vadd.xlane.f32.xlu0 %v1286
  %v1288 = vpop.xlane.xlu0 %1287
  %v1289 = vadd.f32 %v738, %v739
  %1290 = vadd.xlane.f32.xlu0 %v1289
  %v1291 = vpop.xlane.xlu0 %1290
  %v1292 = vadd.f32 %v740, %v741
  %1293 = vadd.xlane.f32.xlu0 %v1292
  %v1294 = vpop.xlane.xlu0 %1293
  %v1295 = vadd.f32 %v742, %v743
  %1296 = vadd.xlane.f32.xlu0 %v1295
  %v1297 = vpop.xlane.xlu0 %1296
  %v1298 = vadd.f32 %v744, %v745
  %1299 = vadd.xlane.f32.xlu0 %v1298
  %v1300 = vpop.xlane.xlu0 %1299
  %v1301 = vadd.f32 %v746, %v747
  %1302 = vadd.xlane.f32.xlu0 %v1301
  %v1303 = vpop.xlane.xlu0 %1302
  %v1304 = vadd.f32 %v748, %v749
  %1305 = vadd.xlane.f32.xlu0 %v1304
  %v1306 = vpop.xlane.xlu0 %1305
  %v1307 = vadd.f32 %v750, %v751
  %1308 = vadd.xlane.f32.xlu0 %v1307
  %v1309 = vpop.xlane.xlu0 %1308
  %v1310 = vadd.f32 %v752, %v753
  %1311 = vadd.xlane.f32.xlu0 %v1310
  %v1312 = vpop.xlane.xlu0 %1311
  %v1313 = vadd.f32 %v754, %v755
  %1314 = vadd.xlane.f32.xlu0 %v1313
  %v1315 = vpop.xlane.xlu0 %1314
  %v1316 = vadd.f32 %v756, %v757
  %1317 = vadd.xlane.f32.xlu0 %v1316
  %v1318 = vpop.xlane.xlu0 %1317
  %v1319 = vadd.f32 %v758, %v759
  %1320 = vadd.xlane.f32.xlu0 %v1319
  %v1321 = vpop.xlane.xlu0 %1320
  %v1322 = vadd.f32 %v760, %v761
  %1323 = vadd.xlane.f32.xlu0 %v1322
  %v1324 = vpop.xlane.xlu0 %1323
  %v1325 = vadd.f32 %v762, %v763
  %1326 = vadd.xlane.f32.xlu0 %v1325
  %v1327 = vpop.xlane.xlu0 %1326
  %v1328 = vadd.f32 %v764, %v765
  %1329 = vadd.xlane.f32.xlu0 %v1328
  %v1330 = vpop.xlane.xlu0 %1329
  %v1331 = vadd.f32 %v766, %v767
  %1332 = vadd.xlane.f32.xlu0 %v1331
  %v1333 = vpop.xlane.xlu0 %1332
  %v1334 = vadd.f32 %v768, %v769
  %1335 = vadd.xlane.f32.xlu0 %v1334
  %v1336 = vpop.xlane.xlu0 %1335
  %v1337 = vadd.f32 %v770, %v771
  %1338 = vadd.xlane.f32.xlu0 %v1337
  %v1339 = vpop.xlane.xlu0 %1338
  %v1340 = vadd.f32 %v772, %v773
  %1341 = vadd.xlane.f32.xlu0 %v1340
  %v1342 = vpop.xlane.xlu0 %1341
  %v1343 = vadd.f32 %v774, %v775
  %1344 = vadd.xlane.f32.xlu0 %v1343
  %v1345 = vpop.xlane.xlu0 %1344
  %v1346 = vadd.f32 %v776, %v777
  %1347 = vadd.xlane.f32.xlu0 %v1346
  %v1348 = vpop.xlane.xlu0 %1347
  %v1349 = vadd.f32 %v778, %v779
  %1350 = vadd.xlane.f32.xlu0 %v1349
  %v1351 = vpop.xlane.xlu0 %1350
  %v1352 = vadd.f32 %v780, %v781
  %1353 = vadd.xlane.f32.xlu0 %v1352
  %v1354 = vpop.xlane.xlu0 %1353
  %v1355 = vadd.f32 %v782, %v783
  %1356 = vadd.xlane.f32.xlu0 %v1355
  %v1357 = vpop.xlane.xlu0 %1356
  %v1358 = vadd.f32 %v784, %v785
  %1359 = vadd.xlane.f32.xlu0 %v1358
  %v1360 = vpop.xlane.xlu0 %1359
  %v1361 = vadd.f32 %v786, %v787
  %1362 = vadd.xlane.f32.xlu0 %v1361
  %v1363 = vpop.xlane.xlu0 %1362
  %v1364 = vadd.f32 %v788, %v789
  %1365 = vadd.xlane.f32.xlu0 %v1364
  %v1366 = vpop.xlane.xlu0 %1365
  %v1367 = vadd.f32 %v790, %v791
  %1368 = vadd.xlane.f32.xlu0 %v1367
  %v1369 = vpop.xlane.xlu0 %1368
  %v1370 = vadd.f32 %v792, %v793
  %1371 = vadd.xlane.f32.xlu0 %v1370
  %v1372 = vpop.xlane.xlu0 %1371
  %v1373 = vadd.f32 %v794, %v795
  %1374 = vadd.xlane.f32.xlu0 %v1373
  %v1375 = vpop.xlane.xlu0 %1374
  %v1376 = vadd.f32 %v796, %v797
  %1377 = vadd.xlane.f32.xlu0 %v1376
  %v1378 = vpop.xlane.xlu0 %1377
  %v1379 = vadd.f32 %v798, %v799
  %1380 = vadd.xlane.f32.xlu0 %v1379
  %v1381 = vpop.xlane.xlu0 %1380
  %v1382 = vadd.f32 %v800, %v801
  %1383 = vadd.xlane.f32.xlu0 %v1382
  %v1384 = vpop.xlane.xlu0 %1383
  %v1385 = vadd.f32 %v802, %v803
  %1386 = vadd.xlane.f32.xlu0 %v1385
  %v1387 = vpop.xlane.xlu0 %1386
  %v1388 = vadd.f32 %v804, %v805
  %1389 = vadd.xlane.f32.xlu0 %v1388
  %v1390 = vpop.xlane.xlu0 %1389
  %v1391 = vadd.f32 %v806, %v807
  %1392 = vadd.xlane.f32.xlu0 %v1391
  %v1393 = vpop.xlane.xlu0 %1392
  %v1394 = vadd.f32 %v808, %v809
  %1395 = vadd.xlane.f32.xlu0 %v1394
  %v1396 = vpop.xlane.xlu0 %1395
  %v1397 = vadd.f32 %v810, %v811
  %1398 = vadd.xlane.f32.xlu0 %v1397
  %v1399 = vpop.xlane.xlu0 %1398
  %v1400 = vld [vmem:[#allocation2] sm:$0x1]
  %v1402 = vlaneseq
  %v1403 = vshrl.u32 %v1402, 7
  %v1404 = vsub.s32 0, %v1403
  %v1405 = vrot.slane %v1400, %v1404
  %v1407 = vadd.f32 %v814, %v1405
  %v1408 = vadd.f32 %v817, %v1405
  %v1409 = vadd.f32 %v820, %v1405
  %v1410 = vadd.f32 %v823, %v1405
  %v1411 = vadd.f32 %v826, %v1405
  %v1412 = vadd.f32 %v829, %v1405
  %v1413 = vadd.f32 %v832, %v1405
  %v1414 = vadd.f32 %v835, %v1405
  %v1415 = vadd.f32 %v838, %v1405
  %v1416 = vadd.f32 %v841, %v1405
  %v1417 = vadd.f32 %v844, %v1405
  %v1418 = vadd.f32 %v847, %v1405
  %v1419 = vadd.f32 %v850, %v1405
  %v1420 = vadd.f32 %v853, %v1405
  %v1421 = vadd.f32 %v856, %v1405
  %v1422 = vadd.f32 %v859, %v1405
  %v1423 = vadd.f32 %v862, %v1405
  %v1424 = vadd.f32 %v865, %v1405
  %v1425 = vadd.f32 %v868, %v1405
  %v1426 = vadd.f32 %v871, %v1405
  %v1427 = vadd.f32 %v874, %v1405
  %v1428 = vadd.f32 %v877, %v1405
  %v1429 = vadd.f32 %v880, %v1405
  %v1430 = vadd.f32 %v883, %v1405
  %v1431 = vadd.f32 %v886, %v1405
  %v1432 = vadd.f32 %v889, %v1405
  %v1433 = vadd.f32 %v892, %v1405
  %v1434 = vadd.f32 %v895, %v1405
  %v1435 = vadd.f32 %v898, %v1405
  %v1436 = vadd.f32 %v901, %v1405
  %v1437 = vadd.f32 %v904, %v1405
  %v1438 = vadd.f32 %v907, %v1405
  %v1439 = vadd.f32 %v910, %v1405
  %v1440 = vadd.f32 %v913, %v1405
  %v1441 = vadd.f32 %v916, %v1405
  %v1442 = vadd.f32 %v919, %v1405
  %v1443 = vadd.f32 %v922, %v1405
  %v1444 = vadd.f32 %v925, %v1405
  %v1445 = vadd.f32 %v928, %v1405
  %v1446 = vadd.f32 %v931, %v1405
  %v1447 = vadd.f32 %v934, %v1405
  %v1448 = vadd.f32 %v937, %v1405
  %v1449 = vadd.f32 %v940, %v1405
  %v1450 = vadd.f32 %v943, %v1405
  %v1451 = vadd.f32 %v946, %v1405
  %v1452 = vadd.f32 %v949, %v1405
  %v1453 = vadd.f32 %v952, %v1405
  %v1454 = vadd.f32 %v955, %v1405
  %v1455 = vadd.f32 %v958, %v1405
  %v1456 = vadd.f32 %v961, %v1405
  %v1457 = vadd.f32 %v964, %v1405
  %v1458 = vadd.f32 %v967, %v1405
  %v1459 = vadd.f32 %v970, %v1405
  %v1460 = vadd.f32 %v973, %v1405
  %v1461 = vadd.f32 %v976, %v1405
  %v1462 = vadd.f32 %v979, %v1405
  %v1463 = vadd.f32 %v982, %v1405
  %v1464 = vadd.f32 %v985, %v1405
  %v1465 = vadd.f32 %v988, %v1405
  %v1466 = vadd.f32 %v991, %v1405
  %v1467 = vadd.f32 %v994, %v1405
  %v1468 = vadd.f32 %v997, %v1405
  %v1469 = vadd.f32 %v1000, %v1405
  %v1470 = vadd.f32 %v1003, %v1405
  %v1471 = vadd.f32 %v1006, %v1405
  %v1472 = vadd.f32 %v1009, %v1405
  %v1473 = vadd.f32 %v1012, %v1405
  %v1474 = vadd.f32 %v1015, %v1405
  %v1475 = vadd.f32 %v1018, %v1405
  %v1476 = vadd.f32 %v1021, %v1405
  %v1477 = vadd.f32 %v1024, %v1405
  %v1478 = vadd.f32 %v1027, %v1405
  %v1479 = vadd.f32 %v1030, %v1405
  %v1480 = vadd.f32 %v1033, %v1405
  %v1481 = vadd.f32 %v1036, %v1405
  %v1482 = vadd.f32 %v1039, %v1405
  %v1483 = vadd.f32 %v1042, %v1405
  %v1484 = vadd.f32 %v1045, %v1405
  %v1485 = vadd.f32 %v1048, %v1405
  %v1486 = vadd.f32 %v1051, %v1405
  %v1487 = vadd.f32 %v1054, %v1405
  %v1488 = vadd.f32 %v1057, %v1405
  %v1489 = vadd.f32 %v1060, %v1405
  %v1490 = vadd.f32 %v1063, %v1405
  %v1491 = vadd.f32 %v1066, %v1405
  %v1492 = vadd.f32 %v1069, %v1405
  %v1493 = vadd.f32 %v1072, %v1405
  %v1494 = vadd.f32 %v1075, %v1405
  %v1495 = vadd.f32 %v1078, %v1405
  %v1496 = vadd.f32 %v1081, %v1405
  %v1497 = vadd.f32 %v1084, %v1405
  %v1498 = vadd.f32 %v1087, %v1405
  %v1499 = vadd.f32 %v1090, %v1405
  %v1500 = vadd.f32 %v1093, %v1405
  %v1501 = vadd.f32 %v1096, %v1405
  %v1502 = vadd.f32 %v1099, %v1405
  %v1503 = vadd.f32 %v1102, %v1405
  %v1504 = vadd.f32 %v1105, %v1405
  %v1505 = vadd.f32 %v1108, %v1405
  %v1506 = vadd.f32 %v1111, %v1405
  %v1507 = vadd.f32 %v1114, %v1405
  %v1508 = vadd.f32 %v1117, %v1405
  %v1509 = vadd.f32 %v1120, %v1405
  %v1510 = vadd.f32 %v1123, %v1405
  %v1511 = vadd.f32 %v1126, %v1405
  %v1512 = vadd.f32 %v1129, %v1405
  %v1513 = vadd.f32 %v1132, %v1405
  %v1514 = vadd.f32 %v1135, %v1405
  %v1515 = vadd.f32 %v1138, %v1405
  %v1516 = vadd.f32 %v1141, %v1405
  %v1517 = vadd.f32 %v1144, %v1405
  %v1518 = vadd.f32 %v1147, %v1405
  %v1519 = vadd.f32 %v1150, %v1405
  %v1520 = vadd.f32 %v1153, %v1405
  %v1521 = vadd.f32 %v1156, %v1405
  %v1522 = vadd.f32 %v1159, %v1405
  %v1523 = vadd.f32 %v1162, %v1405
  %v1524 = vadd.f32 %v1165, %v1405
  %v1525 = vadd.f32 %v1168, %v1405
  %v1526 = vadd.f32 %v1171, %v1405
  %v1527 = vadd.f32 %v1174, %v1405
  %v1528 = vadd.f32 %v1177, %v1405
  %v1529 = vadd.f32 %v1180, %v1405
  %v1530 = vadd.f32 %v1183, %v1405
  %v1531 = vadd.f32 %v1186, %v1405
  %v1532 = vadd.f32 %v1189, %v1405
  %v1533 = vadd.f32 %v1192, %v1405
  %v1534 = vadd.f32 %v1195, %v1405
  %v1535 = vadd.f32 %v1198, %v1405
  %v1536 = vadd.f32 %v1201, %v1405
  %v1537 = vadd.f32 %v1204, %v1405
  %v1538 = vadd.f32 %v1207, %v1405
  %v1539 = vadd.f32 %v1210, %v1405
  %v1540 = vadd.f32 %v1213, %v1405
  %v1541 = vadd.f32 %v1216, %v1405
  %v1542 = vadd.f32 %v1219, %v1405
  %v1543 = vadd.f32 %v1222, %v1405
  %v1544 = vadd.f32 %v1225, %v1405
  %v1545 = vadd.f32 %v1228, %v1405
  %v1546 = vadd.f32 %v1231, %v1405
  %v1547 = vadd.f32 %v1234, %v1405
  %v1548 = vadd.f32 %v1237, %v1405
  %v1549 = vadd.f32 %v1240, %v1405
  %v1550 = vadd.f32 %v1243, %v1405
  %v1551 = vadd.f32 %v1246, %v1405
  %v1552 = vadd.f32 %v1249, %v1405
  %v1553 = vadd.f32 %v1252, %v1405
  %v1554 = vadd.f32 %v1255, %v1405
  %v1555 = vadd.f32 %v1258, %v1405
  %v1556 = vadd.f32 %v1261, %v1405
  %v1557 = vadd.f32 %v1264, %v1405
  %v1558 = vadd.f32 %v1267, %v1405
  %v1559 = vadd.f32 %v1270, %v1405
  %v1560 = vadd.f32 %v1273, %v1405
  %v1561 = vadd.f32 %v1276, %v1405
  %v1562 = vadd.f32 %v1279, %v1405
  %v1563 = vadd.f32 %v1282, %v1405
  %v1564 = vadd.f32 %v1285, %v1405
  %v1565 = vadd.f32 %v1288, %v1405
  %v1566 = vadd.f32 %v1291, %v1405
  %v1567 = vadd.f32 %v1294, %v1405
  %v1568 = vadd.f32 %v1297, %v1405
  %v1569 = vadd.f32 %v1300, %v1405
  %v1570 = vadd.f32 %v1303, %v1405
  %v1571 = vadd.f32 %v1306, %v1405
  %v1572 = vadd.f32 %v1309, %v1405
  %v1573 = vadd.f32 %v1312, %v1405
  %v1574 = vadd.f32 %v1315, %v1405
  %v1575 = vadd.f32 %v1318, %v1405
  %v1576 = vadd.f32 %v1321, %v1405
  %v1577 = vadd.f32 %v1324, %v1405
  %v1578 = vadd.f32 %v1327, %v1405
  %v1579 = vadd.f32 %v1330, %v1405
  %v1580 = vadd.f32 %v1333, %v1405
  %v1581 = vadd.f32 %v1336, %v1405
  %v1582 = vadd.f32 %v1339, %v1405
  %v1583 = vadd.f32 %v1342, %v1405
  %v1584 = vadd.f32 %v1345, %v1405
  %v1585 = vadd.f32 %v1348, %v1405
  %v1586 = vadd.f32 %v1351, %v1405
  %v1587 = vadd.f32 %v1354, %v1405
  %v1588 = vadd.f32 %v1357, %v1405
  %v1589 = vadd.f32 %v1360, %v1405
  %v1590 = vadd.f32 %v1363, %v1405
  %v1591 = vadd.f32 %v1366, %v1405
  %v1592 = vadd.f32 %v1369, %v1405
  %v1593 = vadd.f32 %v1372, %v1405
  %v1594 = vadd.f32 %v1375, %v1405
  %v1595 = vadd.f32 %v1378, %v1405
  %v1596 = vadd.f32 %v1381, %v1405
  %v1597 = vadd.f32 %v1384, %v1405
  %v1598 = vadd.f32 %v1387, %v1405
  %v1599 = vadd.f32 %v1390, %v1405
  %v1600 = vadd.f32 %v1393, %v1405
  %v1601 = vadd.f32 %v1396, %v1405
  %v1602 = vadd.f32 %v1399, %v1405
  %v1603 = vxor.u32 %v1407, 2147483648
  %v1604 = vxor.u32 %v1408, 2147483648
  %v1605 = vxor.u32 %v1409, 2147483648
  %v1606 = vxor.u32 %v1410, 2147483648
  %v1607 = vxor.u32 %v1411, 2147483648
  %v1608 = vxor.u32 %v1412, 2147483648
  %v1609 = vxor.u32 %v1413, 2147483648
  %v1610 = vxor.u32 %v1414, 2147483648
  %v1611 = vxor.u32 %v1415, 2147483648
  %v1612 = vxor.u32 %v1416, 2147483648
  %v1613 = vxor.u32 %v1417, 2147483648
  %v1614 = vxor.u32 %v1418, 2147483648
  %v1615 = vxor.u32 %v1419, 2147483648
  %v1616 = vxor.u32 %v1420, 2147483648
  %v1617 = vxor.u32 %v1421, 2147483648
  %v1618 = vxor.u32 %v1422, 2147483648
  %v1619 = vxor.u32 %v1423, 2147483648
  %v1620 = vxor.u32 %v1424, 2147483648
  %v1621 = vxor.u32 %v1425, 2147483648
  %v1622 = vxor.u32 %v1426, 2147483648
  %v1623 = vxor.u32 %v1427, 2147483648
  %v1624 = vxor.u32 %v1428, 2147483648
  %v1625 = vxor.u32 %v1429, 2147483648
  %v1626 = vxor.u32 %v1430, 2147483648
  %v1627 = vxor.u32 %v1431, 2147483648
  %v1628 = vxor.u32 %v1432, 2147483648
  %v1629 = vxor.u32 %v1433, 2147483648
  %v1630 = vxor.u32 %v1434, 2147483648
  %v1631 = vxor.u32 %v1435, 2147483648
  %v1632 = vxor.u32 %v1436, 2147483648
  %v1633 = vxor.u32 %v1437, 2147483648
  %v1634 = vxor.u32 %v1438, 2147483648
  %v1635 = vxor.u32 %v1439, 2147483648
  %v1636 = vxor.u32 %v1440, 2147483648
  %v1637 = vxor.u32 %v1441, 2147483648
  %v1638 = vxor.u32 %v1442, 2147483648
  %v1639 = vxor.u32 %v1443, 2147483648
  %v1640 = vxor.u32 %v1444, 2147483648
  %v1641 = vxor.u32 %v1445, 2147483648
  %v1642 = vxor.u32 %v1446, 2147483648
  %v1643 = vxor.u32 %v1447, 2147483648
  %v1644 = vxor.u32 %v1448, 2147483648
  %v1645 = vxor.u32 %v1449, 2147483648
  %v1646 = vxor.u32 %v1450, 2147483648
  %v1647 = vxor.u32 %v1451, 2147483648
  %v1648 = vxor.u32 %v1452, 2147483648
  %v1649 = vxor.u32 %v1453, 2147483648
  %v1650 = vxor.u32 %v1454, 2147483648
  %v1651 = vxor.u32 %v1455, 2147483648
  %v1652 = vxor.u32 %v1456, 2147483648
  %v1653 = vxor.u32 %v1457, 2147483648
  %v1654 = vxor.u32 %v1458, 2147483648
  %v1655 = vxor.u32 %v1459, 2147483648
  %v1656 = vxor.u32 %v1460, 2147483648
  %v1657 = vxor.u32 %v1461, 2147483648
  %v1658 = vxor.u32 %v1462, 2147483648
  %v1659 = vxor.u32 %v1463, 2147483648
  %v1660 = vxor.u32 %v1464, 2147483648
  %v1661 = vxor.u32 %v1465, 2147483648
  %v1662 = vxor.u32 %v1466, 2147483648
  %v1663 = vxor.u32 %v1467, 2147483648
  %v1664 = vxor.u32 %v1468, 2147483648
  %v1665 = vxor.u32 %v1469, 2147483648
  %v1666 = vxor.u32 %v1470, 2147483648
  %v1667 = vxor.u32 %v1471, 2147483648
  %v1668 = vxor.u32 %v1472, 2147483648
  %v1669 = vxor.u32 %v1473, 2147483648
  %v1670 = vxor.u32 %v1474, 2147483648
  %v1671 = vxor.u32 %v1475, 2147483648
  %v1672 = vxor.u32 %v1476, 2147483648
  %v1673 = vxor.u32 %v1477, 2147483648
  %v1674 = vxor.u32 %v1478, 2147483648
  %v1675 = vxor.u32 %v1479, 2147483648
  %v1676 = vxor.u32 %v1480, 2147483648
  %v1677 = vxor.u32 %v1481, 2147483648
  %v1678 = vxor.u32 %v1482, 2147483648
  %v1679 = vxor.u32 %v1483, 2147483648
  %v1680 = vxor.u32 %v1484, 2147483648
  %v1681 = vxor.u32 %v1485, 2147483648
  %v1682 = vxor.u32 %v1486, 2147483648
  %v1683 = vxor.u32 %v1487, 2147483648
  %v1684 = vxor.u32 %v1488, 2147483648
  %v1685 = vxor.u32 %v1489, 2147483648
  %v1686 = vxor.u32 %v1490, 2147483648
  %v1687 = vxor.u32 %v1491, 2147483648
  %v1688 = vxor.u32 %v1492, 2147483648
  %v1689 = vxor.u32 %v1493, 2147483648
  %v1690 = vxor.u32 %v1494, 2147483648
  %v1691 = vxor.u32 %v1495, 2147483648
  %v1692 = vxor.u32 %v1496, 2147483648
  %v1693 = vxor.u32 %v1497, 2147483648
  %v1694 = vxor.u32 %v1498, 2147483648
  %v1695 = vxor.u32 %v1499, 2147483648
  %v1696 = vxor.u32 %v1500, 2147483648
  %v1697 = vxor.u32 %v1501, 2147483648
  %v1698 = vxor.u32 %v1502, 2147483648
  %v1699 = vxor.u32 %v1503, 2147483648
  %v1700 = vxor.u32 %v1504, 2147483648
  %v1701 = vxor.u32 %v1505, 2147483648
  %v1702 = vxor.u32 %v1506, 2147483648
  %v1703 = vxor.u32 %v1507, 2147483648
  %v1704 = vxor.u32 %v1508, 2147483648
  %v1705 = vxor.u32 %v1509, 2147483648
  %v1706 = vxor.u32 %v1510, 2147483648
  %v1707 = vxor.u32 %v1511, 2147483648
  %v1708 = vxor.u32 %v1512, 2147483648
  %v1709 = vxor.u32 %v1513, 2147483648
  %v1710 = vxor.u32 %v1514, 2147483648
  %v1711 = vxor.u32 %v1515, 2147483648
  %v1712 = vxor.u32 %v1516, 2147483648
  %v1713 = vxor.u32 %v1517, 2147483648
  %v1714 = vxor.u32 %v1518, 2147483648
  %v1715 = vxor.u32 %v1519, 2147483648
  %v1716 = vxor.u32 %v1520, 2147483648
  %v1717 = vxor.u32 %v1521, 2147483648
  %v1718 = vxor.u32 %v1522, 2147483648
  %v1719 = vxor.u32 %v1523, 2147483648
  %v1720 = vxor.u32 %v1524, 2147483648
  %v1721 = vxor.u32 %v1525, 2147483648
  %v1722 = vxor.u32 %v1526, 2147483648
  %v1723 = vxor.u32 %v1527, 2147483648
  %v1724 = vxor.u32 %v1528, 2147483648
  %v1725 = vxor.u32 %v1529, 2147483648
  %v1726 = vxor.u32 %v1530, 2147483648
  %v1727 = vxor.u32 %v1531, 2147483648
  %v1728 = vxor.u32 %v1532, 2147483648
  %v1729 = vxor.u32 %v1533, 2147483648
  %v1730 = vxor.u32 %v1534, 2147483648
  %v1731 = vxor.u32 %v1535, 2147483648
  %v1732 = vxor.u32 %v1536, 2147483648
  %v1733 = vxor.u32 %v1537, 2147483648
  %v1734 = vxor.u32 %v1538, 2147483648
  %v1735 = vxor.u32 %v1539, 2147483648
  %v1736 = vxor.u32 %v1540, 2147483648
  %v1737 = vxor.u32 %v1541, 2147483648
  %v1738 = vxor.u32 %v1542, 2147483648
  %v1739 = vxor.u32 %v1543, 2147483648
  %v1740 = vxor.u32 %v1544, 2147483648
  %v1741 = vxor.u32 %v1545, 2147483648
  %v1742 = vxor.u32 %v1546, 2147483648
  %v1743 = vxor.u32 %v1547, 2147483648
  %v1744 = vxor.u32 %v1548, 2147483648
  %v1745 = vxor.u32 %v1549, 2147483648
  %v1746 = vxor.u32 %v1550, 2147483648
  %v1747 = vxor.u32 %v1551, 2147483648
  %v1748 = vxor.u32 %v1552, 2147483648
  %v1749 = vxor.u32 %v1553, 2147483648
  %v1750 = vxor.u32 %v1554, 2147483648
  %v1751 = vxor.u32 %v1555, 2147483648
  %v1752 = vxor.u32 %v1556, 2147483648
  %v1753 = vxor.u32 %v1557, 2147483648
  %v1754 = vxor.u32 %v1558, 2147483648
  %v1755 = vxor.u32 %v1559, 2147483648
  %v1756 = vxor.u32 %v1560, 2147483648
  %v1757 = vxor.u32 %v1561, 2147483648
  %v1758 = vxor.u32 %v1562, 2147483648
  %v1759 = vxor.u32 %v1563, 2147483648
  %v1760 = vxor.u32 %v1564, 2147483648
  %v1761 = vxor.u32 %v1565, 2147483648
  %v1762 = vxor.u32 %v1566, 2147483648
  %v1763 = vxor.u32 %v1567, 2147483648
  %v1764 = vxor.u32 %v1568, 2147483648
  %v1765 = vxor.u32 %v1569, 2147483648
  %v1766 = vxor.u32 %v1570, 2147483648
  %v1767 = vxor.u32 %v1571, 2147483648
  %v1768 = vxor.u32 %v1572, 2147483648
  %v1769 = vxor.u32 %v1573, 2147483648
  %v1770 = vxor.u32 %v1574, 2147483648
  %v1771 = vxor.u32 %v1575, 2147483648
  %v1772 = vxor.u32 %v1576, 2147483648
  %v1773 = vxor.u32 %v1577, 2147483648
  %v1774 = vxor.u32 %v1578, 2147483648
  %v1775 = vxor.u32 %v1579, 2147483648
  %v1776 = vxor.u32 %v1580, 2147483648
  %v1777 = vxor.u32 %v1581, 2147483648
  %v1778 = vxor.u32 %v1582, 2147483648
  %v1779 = vxor.u32 %v1583, 2147483648
  %v1780 = vxor.u32 %v1584, 2147483648
  %v1781 = vxor.u32 %v1585, 2147483648
  %v1782 = vxor.u32 %v1586, 2147483648
  %v1783 = vxor.u32 %v1587, 2147483648
  %v1784 = vxor.u32 %v1588, 2147483648
  %v1785 = vxor.u32 %v1589, 2147483648
  %v1786 = vxor.u32 %v1590, 2147483648
  %v1787 = vxor.u32 %v1591, 2147483648
  %v1788 = vxor.u32 %v1592, 2147483648
  %v1789 = vxor.u32 %v1593, 2147483648
  %v1790 = vxor.u32 %v1594, 2147483648
  %v1791 = vxor.u32 %v1595, 2147483648
  %v1792 = vxor.u32 %v1596, 2147483648
  %v1793 = vxor.u32 %v1597, 2147483648
  %v1794 = vxor.u32 %v1598, 2147483648
  %v1795 = vxor.u32 %v1599, 2147483648
  %v1796 = vxor.u32 %v1600, 2147483648
  %v1797 = vxor.u32 %v1601, 2147483648
  %v1798 = vxor.u32 %v1602, 2147483648
  %v1799 = vmul.f32 %v1603, 1.442695
  %v1800 = vpow.pop %v1799
  %v1801 = vmul.f32 %v1604, 1.442695
  %v1802 = vpow.pop %v1801
  %v1803 = vmul.f32 %v1605, 1.442695
  %v1804 = vpow.pop %v1803
  %v1805 = vmul.f32 %v1606, 1.442695
  %v1806 = vpow.pop %v1805
  %v1807 = vmul.f32 %v1607, 1.442695
  %v1808 = vpow.pop %v1807
  %v1809 = vmul.f32 %v1608, 1.442695
  %v1810 = vpow.pop %v1809
  %v1811 = vmul.f32 %v1609, 1.442695
  %v1812 = vpow.pop %v1811
  %v1813 = vmul.f32 %v1610, 1.442695
  %v1814 = vpow.pop %v1813
  %v1815 = vmul.f32 %v1611, 1.442695
  %v1816 = vpow.pop %v1815
  %v1817 = vmul.f32 %v1612, 1.442695
  %v1818 = vpow.pop %v1817
  %v1819 = vmul.f32 %v1613, 1.442695
  %v1820 = vpow.pop %v1819
  %v1821 = vmul.f32 %v1614, 1.442695
  %v1822 = vpow.pop %v1821
  %v1823 = vmul.f32 %v1615, 1.442695
  %v1824 = vpow.pop %v1823
  %v1825 = vmul.f32 %v1616, 1.442695
  %v1826 = vpow.pop %v1825
  %v1827 = vmul.f32 %v1617, 1.442695
  %v1828 = vpow.pop %v1827
  %v1829 = vmul.f32 %v1618, 1.442695
  %v1830 = vpow.pop %v1829
  %v1831 = vmul.f32 %v1619, 1.442695
  %v1832 = vpow.pop %v1831
  %v1833 = vmul.f32 %v1620, 1.442695
  %v1834 = vpow.pop %v1833
  %v1835 = vmul.f32 %v1621, 1.442695
  %v1836 = vpow.pop %v1835
  %v1837 = vmul.f32 %v1622, 1.442695
  %v1838 = vpow.pop %v1837
  %v1839 = vmul.f32 %v1623, 1.442695
  %v1840 = vpow.pop %v1839
  %v1841 = vmul.f32 %v1624, 1.442695
  %v1842 = vpow.pop %v1841
  %v1843 = vmul.f32 %v1625, 1.442695
  %v1844 = vpow.pop %v1843
  %v1845 = vmul.f32 %v1626, 1.442695
  %v1846 = vpow.pop %v1845
  %v1847 = vmul.f32 %v1627, 1.442695
  %v1848 = vpow.pop %v1847
  %v1849 = vmul.f32 %v1628, 1.442695
  %v1850 = vpow.pop %v1849
  %v1851 = vmul.f32 %v1629, 1.442695
  %v1852 = vpow.pop %v1851
  %v1853 = vmul.f32 %v1630, 1.442695
  %v1854 = vpow.pop %v1853
  %v1855 = vmul.f32 %v1631, 1.442695
  %v1856 = vpow.pop %v1855
  %v1857 = vmul.f32 %v1632, 1.442695
  %v1858 = vpow.pop %v1857
  %v1859 = vmul.f32 %v1633, 1.442695
  %v1860 = vpow.pop %v1859
  %v1861 = vmul.f32 %v1634, 1.442695
  %v1862 = vpow.pop %v1861
  %v1863 = vmul.f32 %v1635, 1.442695
  %v1864 = vpow.pop %v1863
  %v1865 = vmul.f32 %v1636, 1.442695
  %v1866 = vpow.pop %v1865
  %v1867 = vmul.f32 %v1637, 1.442695
  %v1868 = vpow.pop %v1867
  %v1869 = vmul.f32 %v1638, 1.442695
  %v1870 = vpow.pop %v1869
  %v1871 = vmul.f32 %v1639, 1.442695
  %v1872 = vpow.pop %v1871
  %v1873 = vmul.f32 %v1640, 1.442695
  %v1874 = vpow.pop %v1873
  %v1875 = vmul.f32 %v1641, 1.442695
  %v1876 = vpow.pop %v1875
  %v1877 = vmul.f32 %v1642, 1.442695
  %v1878 = vpow.pop %v1877
  %v1879 = vmul.f32 %v1643, 1.442695
  %v1880 = vpow.pop %v1879
  %v1881 = vmul.f32 %v1644, 1.442695
  %v1882 = vpow.pop %v1881
  %v1883 = vmul.f32 %v1645, 1.442695
  %v1884 = vpow.pop %v1883
  %v1885 = vmul.f32 %v1646, 1.442695
  %v1886 = vpow.pop %v1885
  %v1887 = vmul.f32 %v1647, 1.442695
  %v1888 = vpow.pop %v1887
  %v1889 = vmul.f32 %v1648, 1.442695
  %v1890 = vpow.pop %v1889
  %v1891 = vmul.f32 %v1649, 1.442695
  %v1892 = vpow.pop %v1891
  %v1893 = vmul.f32 %v1650, 1.442695
  %v1894 = vpow.pop %v1893
  %v1895 = vmul.f32 %v1651, 1.442695
  %v1896 = vpow.pop %v1895
  %v1897 = vmul.f32 %v1652, 1.442695
  %v1898 = vpow.pop %v1897
  %v1899 = vmul.f32 %v1653, 1.442695
  %v1900 = vpow.pop %v1899
  %v1901 = vmul.f32 %v1654, 1.442695
  %v1902 = vpow.pop %v1901
  %v1903 = vmul.f32 %v1655, 1.442695
  %v1904 = vpow.pop %v1903
  %v1905 = vmul.f32 %v1656, 1.442695
  %v1906 = vpow.pop %v1905
  %v1907 = vmul.f32 %v1657, 1.442695
  %v1908 = vpow.pop %v1907
  %v1909 = vmul.f32 %v1658, 1.442695
  %v1910 = vpow.pop %v1909
  %v1911 = vmul.f32 %v1659, 1.442695
  %v1912 = vpow.pop %v1911
  %v1913 = vmul.f32 %v1660, 1.442695
  %v1914 = vpow.pop %v1913
  %v1915 = vmul.f32 %v1661, 1.442695
  %v1916 = vpow.pop %v1915
  %v1917 = vmul.f32 %v1662, 1.442695
  %v1918 = vpow.pop %v1917
  %v1919 = vmul.f32 %v1663, 1.442695
  %v1920 = vpow.pop %v1919
  %v1921 = vmul.f32 %v1664, 1.442695
  %v1922 = vpow.pop %v1921
  %v1923 = vmul.f32 %v1665, 1.442695
  %v1924 = vpow.pop %v1923
  %v1925 = vmul.f32 %v1666, 1.442695
  %v1926 = vpow.pop %v1925
  %v1927 = vmul.f32 %v1667, 1.442695
  %v1928 = vpow.pop %v1927
  %v1929 = vmul.f32 %v1668, 1.442695
  %v1930 = vpow.pop %v1929
  %v1931 = vmul.f32 %v1669, 1.442695
  %v1932 = vpow.pop %v1931
  %v1933 = vmul.f32 %v1670, 1.442695
  %v1934 = vpow.pop %v1933
  %v1935 = vmul.f32 %v1671, 1.442695
  %v1936 = vpow.pop %v1935
  %v1937 = vmul.f32 %v1672, 1.442695
  %v1938 = vpow.pop %v1937
  %v1939 = vmul.f32 %v1673, 1.442695
  %v1940 = vpow.pop %v1939
  %v1941 = vmul.f32 %v1674, 1.442695
  %v1942 = vpow.pop %v1941
  %v1943 = vmul.f32 %v1675, 1.442695
  %v1944 = vpow.pop %v1943
  %v1945 = vmul.f32 %v1676, 1.442695
  %v1946 = vpow.pop %v1945
  %v1947 = vmul.f32 %v1677, 1.442695
  %v1948 = vpow.pop %v1947
  %v1949 = vmul.f32 %v1678, 1.442695
  %v1950 = vpow.pop %v1949
  %v1951 = vmul.f32 %v1679, 1.442695
  %v1952 = vpow.pop %v1951
  %v1953 = vmul.f32 %v1680, 1.442695
  %v1954 = vpow.pop %v1953
  %v1955 = vmul.f32 %v1681, 1.442695
  %v1956 = vpow.pop %v1955
  %v1957 = vmul.f32 %v1682, 1.442695
  %v1958 = vpow.pop %v1957
  %v1959 = vmul.f32 %v1683, 1.442695
  %v1960 = vpow.pop %v1959
  %v1961 = vmul.f32 %v1684, 1.442695
  %v1962 = vpow.pop %v1961
  %v1963 = vmul.f32 %v1685, 1.442695
  %v1964 = vpow.pop %v1963
  %v1965 = vmul.f32 %v1686, 1.442695
  %v1966 = vpow.pop %v1965
  %v1967 = vmul.f32 %v1687, 1.442695
  %v1968 = vpow.pop %v1967
  %v1969 = vmul.f32 %v1688, 1.442695
  %v1970 = vpow.pop %v1969
  %v1971 = vmul.f32 %v1689, 1.442695
  %v1972 = vpow.pop %v1971
  %v1973 = vmul.f32 %v1690, 1.442695
  %v1974 = vpow.pop %v1973
  %v1975 = vmul.f32 %v1691, 1.442695
  %v1976 = vpow.pop %v1975
  %v1977 = vmul.f32 %v1692, 1.442695
  %v1978 = vpow.pop %v1977
  %v1979 = vmul.f32 %v1693, 1.442695
  %v1980 = vpow.pop %v1979
  %v1981 = vmul.f32 %v1694, 1.442695
  %v1982 = vpow.pop %v1981
  %v1983 = vmul.f32 %v1695, 1.442695
  %v1984 = vpow.pop %v1983
  %v1985 = vmul.f32 %v1696, 1.442695
  %v1986 = vpow.pop %v1985
  %v1987 = vmul.f32 %v1697, 1.442695
  %v1988 = vpow.pop %v1987
  %v1989 = vmul.f32 %v1698, 1.442695
  %v1990 = vpow.pop %v1989
  %v1991 = vmul.f32 %v1699, 1.442695
  %v1992 = vpow.pop %v1991
  %v1993 = vmul.f32 %v1700, 1.442695
  %v1994 = vpow.pop %v1993
  %v1995 = vmul.f32 %v1701, 1.442695
  %v1996 = vpow.pop %v1995
  %v1997 = vmul.f32 %v1702, 1.442695
  %v1998 = vpow.pop %v1997
  %v1999 = vmul.f32 %v1703, 1.442695
  %v2000 = vpow.pop %v1999
  %v2001 = vmul.f32 %v1704, 1.442695
  %v2002 = vpow.pop %v2001
  %v2003 = vmul.f32 %v1705, 1.442695
  %v2004 = vpow.pop %v2003
  %v2005 = vmul.f32 %v1706, 1.442695
  %v2006 = vpow.pop %v2005
  %v2007 = vmul.f32 %v1707, 1.442695
  %v2008 = vpow.pop %v2007
  %v2009 = vmul.f32 %v1708, 1.442695
  %v2010 = vpow.pop %v2009
  %v2011 = vmul.f32 %v1709, 1.442695
  %v2012 = vpow.pop %v2011
  %v2013 = vmul.f32 %v1710, 1.442695
  %v2014 = vpow.pop %v2013
  %v2015 = vmul.f32 %v1711, 1.442695
  %v2016 = vpow.pop %v2015
  %v2017 = vmul.f32 %v1712, 1.442695
  %v2018 = vpow.pop %v2017
  %v2019 = vmul.f32 %v1713, 1.442695
  %v2020 = vpow.pop %v2019
  %v2021 = vmul.f32 %v1714, 1.442695
  %v2022 = vpow.pop %v2021
  %v2023 = vmul.f32 %v1715, 1.442695
  %v2024 = vpow.pop %v2023
  %v2025 = vmul.f32 %v1716, 1.442695
  %v2026 = vpow.pop %v2025
  %v2027 = vmul.f32 %v1717, 1.442695
  %v2028 = vpow.pop %v2027
  %v2029 = vmul.f32 %v1718, 1.442695
  %v2030 = vpow.pop %v2029
  %v2031 = vmul.f32 %v1719, 1.442695
  %v2032 = vpow.pop %v2031
  %v2033 = vmul.f32 %v1720, 1.442695
  %v2034 = vpow.pop %v2033
  %v2035 = vmul.f32 %v1721, 1.442695
  %v2036 = vpow.pop %v2035
  %v2037 = vmul.f32 %v1722, 1.442695
  %v2038 = vpow.pop %v2037
  %v2039 = vmul.f32 %v1723, 1.442695
  %v2040 = vpow.pop %v2039
  %v2041 = vmul.f32 %v1724, 1.442695
  %v2042 = vpow.pop %v2041
  %v2043 = vmul.f32 %v1725, 1.442695
  %v2044 = vpow.pop %v2043
  %v2045 = vmul.f32 %v1726, 1.442695
  %v2046 = vpow.pop %v2045
  %v2047 = vmul.f32 %v1727, 1.442695
  %v2048 = vpow.pop %v2047
  %v2049 = vmul.f32 %v1728, 1.442695
  %v2050 = vpow.pop %v2049
  %v2051 = vmul.f32 %v1729, 1.442695
  %v2052 = vpow.pop %v2051
  %v2053 = vmul.f32 %v1730, 1.442695
  %v2054 = vpow.pop %v2053
  %v2055 = vmul.f32 %v1731, 1.442695
  %v2056 = vpow.pop %v2055
  %v2057 = vmul.f32 %v1732, 1.442695
  %v2058 = vpow.pop %v2057
  %v2059 = vmul.f32 %v1733, 1.442695
  %v2060 = vpow.pop %v2059
  %v2061 = vmul.f32 %v1734, 1.442695
  %v2062 = vpow.pop %v2061
  %v2063 = vmul.f32 %v1735, 1.442695
  %v2064 = vpow.pop %v2063
  %v2065 = vmul.f32 %v1736, 1.442695
  %v2066 = vpow.pop %v2065
  %v2067 = vmul.f32 %v1737, 1.442695
  %v2068 = vpow.pop %v2067
  %v2069 = vmul.f32 %v1738, 1.442695
  %v2070 = vpow.pop %v2069
  %v2071 = vmul.f32 %v1739, 1.442695
  %v2072 = vpow.pop %v2071
  %v2073 = vmul.f32 %v1740, 1.442695
  %v2074 = vpow.pop %v2073
  %v2075 = vmul.f32 %v1741, 1.442695
  %v2076 = vpow.pop %v2075
  %v2077 = vmul.f32 %v1742, 1.442695
  %v2078 = vpow.pop %v2077
  %v2079 = vmul.f32 %v1743, 1.442695
  %v2080 = vpow.pop %v2079
  %v2081 = vmul.f32 %v1744, 1.442695
  %v2082 = vpow.pop %v2081
  %v2083 = vmul.f32 %v1745, 1.442695
  %v2084 = vpow.pop %v2083
  %v2085 = vmul.f32 %v1746, 1.442695
  %v2086 = vpow.pop %v2085
  %v2087 = vmul.f32 %v1747, 1.442695
  %v2088 = vpow.pop %v2087
  %v2089 = vmul.f32 %v1748, 1.442695
  %v2090 = vpow.pop %v2089
  %v2091 = vmul.f32 %v1749, 1.442695
  %v2092 = vpow.pop %v2091
  %v2093 = vmul.f32 %v1750, 1.442695
  %v2094 = vpow.pop %v2093
  %v2095 = vmul.f32 %v1751, 1.442695
  %v2096 = vpow.pop %v2095
  %v2097 = vmul.f32 %v1752, 1.442695
  %v2098 = vpow.pop %v2097
  %v2099 = vmul.f32 %v1753, 1.442695
  %v2100 = vpow.pop %v2099
  %v2101 = vmul.f32 %v1754, 1.442695
  %v2102 = vpow.pop %v2101
  %v2103 = vmul.f32 %v1755, 1.442695
  %v2104 = vpow.pop %v2103
  %v2105 = vmul.f32 %v1756, 1.442695
  %v2106 = vpow.pop %v2105
  %v2107 = vmul.f32 %v1757, 1.442695
  %v2108 = vpow.pop %v2107
  %v2109 = vmul.f32 %v1758, 1.442695
  %v2110 = vpow.pop %v2109
  %v2111 = vmul.f32 %v1759, 1.442695
  %v2112 = vpow.pop %v2111
  %v2113 = vmul.f32 %v1760, 1.442695
  %v2114 = vpow.pop %v2113
  %v2115 = vmul.f32 %v1761, 1.442695
  %v2116 = vpow.pop %v2115
  %v2117 = vmul.f32 %v1762, 1.442695
  %v2118 = vpow.pop %v2117
  %v2119 = vmul.f32 %v1763, 1.442695
  %v2120 = vpow.pop %v2119
  %v2121 = vmul.f32 %v1764, 1.442695
  %v2122 = vpow.pop %v2121
  %v2123 = vmul.f32 %v1765, 1.442695
  %v2124 = vpow.pop %v2123
  %v2125 = vmul.f32 %v1766, 1.442695
  %v2126 = vpow.pop %v2125
  %v2127 = vmul.f32 %v1767, 1.442695
  %v2128 = vpow.pop %v2127
  %v2129 = vmul.f32 %v1768, 1.442695
  %v2130 = vpow.pop %v2129
  %v2131 = vmul.f32 %v1769, 1.442695
  %v2132 = vpow.pop %v2131
  %v2133 = vmul.f32 %v1770, 1.442695
  %v2134 = vpow.pop %v2133
  %v2135 = vmul.f32 %v1771, 1.442695
  %v2136 = vpow.pop %v2135
  %v2137 = vmul.f32 %v1772, 1.442695
  %v2138 = vpow.pop %v2137
  %v2139 = vmul.f32 %v1773, 1.442695
  %v2140 = vpow.pop %v2139
  %v2141 = vmul.f32 %v1774, 1.442695
  %v2142 = vpow.pop %v2141
  %v2143 = vmul.f32 %v1775, 1.442695
  %v2144 = vpow.pop %v2143
  %v2145 = vmul.f32 %v1776, 1.442695
  %v2146 = vpow.pop %v2145
  %v2147 = vmul.f32 %v1777, 1.442695
  %v2148 = vpow.pop %v2147
  %v2149 = vmul.f32 %v1778, 1.442695
  %v2150 = vpow.pop %v2149
  %v2151 = vmul.f32 %v1779, 1.442695
  %v2152 = vpow.pop %v2151
  %v2153 = vmul.f32 %v1780, 1.442695
  %v2154 = vpow.pop %v2153
  %v2155 = vmul.f32 %v1781, 1.442695
  %v2156 = vpow.pop %v2155
  %v2157 = vmul.f32 %v1782, 1.442695
  %v2158 = vpow.pop %v2157
  %v2159 = vmul.f32 %v1783, 1.442695
  %v2160 = vpow.pop %v2159
  %v2161 = vmul.f32 %v1784, 1.442695
  %v2162 = vpow.pop %v2161
  %v2163 = vmul.f32 %v1785, 1.442695
  %v2164 = vpow.pop %v2163
  %v2165 = vmul.f32 %v1786, 1.442695
  %v2166 = vpow.pop %v2165
  %v2167 = vmul.f32 %v1787, 1.442695
  %v2168 = vpow.pop %v2167
  %v2169 = vmul.f32 %v1788, 1.442695
  %v2170 = vpow.pop %v2169
  %v2171 = vmul.f32 %v1789, 1.442695
  %v2172 = vpow.pop %v2171
  %v2173 = vmul.f32 %v1790, 1.442695
  %v2174 = vpow.pop %v2173
  %v2175 = vmul.f32 %v1791, 1.442695
  %v2176 = vpow.pop %v2175
  %v2177 = vmul.f32 %v1792, 1.442695
  %v2178 = vpow.pop %v2177
  %v2179 = vmul.f32 %v1793, 1.442695
  %v2180 = vpow.pop %v2179
  %v2181 = vmul.f32 %v1794, 1.442695
  %v2182 = vpow.pop %v2181
  %v2183 = vmul.f32 %v1795, 1.442695
  %v2184 = vpow.pop %v2183
  %v2185 = vmul.f32 %v1796, 1.442695
  %v2186 = vpow.pop %v2185
  %v2187 = vmul.f32 %v1797, 1.442695
  %v2188 = vpow.pop %v2187
  %v2189 = vmul.f32 %v1798, 1.442695
  %v2190 = vpow.pop %v2189
  %v2191 = vadd.f32 %v1800, 1.0
  %v2192 = vadd.f32 %v1802, 1.0
  %v2193 = vadd.f32 %v1804, 1.0
  %v2194 = vadd.f32 %v1806, 1.0
  %v2195 = vadd.f32 %v1808, 1.0
  %v2196 = vadd.f32 %v1810, 1.0
  %v2197 = vadd.f32 %v1812, 1.0
  %v2198 = vadd.f32 %v1814, 1.0
  %v2199 = vadd.f32 %v1816, 1.0
  %v2200 = vadd.f32 %v1818, 1.0
  %v2201 = vadd.f32 %v1820, 1.0
  %v2202 = vadd.f32 %v1822, 1.0
  %v2203 = vadd.f32 %v1824, 1.0
  %v2204 = vadd.f32 %v1826, 1.0
  %v2205 = vadd.f32 %v1828, 1.0
  %v2206 = vadd.f32 %v1830, 1.0
  %v2207 = vadd.f32 %v1832, 1.0
  %v2208 = vadd.f32 %v1834, 1.0
  %v2209 = vadd.f32 %v1836, 1.0
  %v2210 = vadd.f32 %v1838, 1.0
  %v2211 = vadd.f32 %v1840, 1.0
  %v2212 = vadd.f32 %v1842, 1.0
  %v2213 = vadd.f32 %v1844, 1.0
  %v2214 = vadd.f32 %v1846, 1.0
  %v2215 = vadd.f32 %v1848, 1.0
  %v2216 = vadd.f32 %v1850, 1.0
  %v2217 = vadd.f32 %v1852, 1.0
  %v2218 = vadd.f32 %v1854, 1.0
  %v2219 = vadd.f32 %v1856, 1.0
  %v2220 = vadd.f32 %v1858, 1.0
  %v2221 = vadd.f32 %v1860, 1.0
  %v2222 = vadd.f32 %v1862, 1.0
  %v2223 = vadd.f32 %v1864, 1.0
  %v2224 = vadd.f32 %v1866, 1.0
  %v2225 = vadd.f32 %v1868, 1.0
  %v2226 = vadd.f32 %v1870, 1.0
  %v2227 = vadd.f32 %v1872, 1.0
  %v2228 = vadd.f32 %v1874, 1.0
  %v2229 = vadd.f32 %v1876, 1.0
  %v2230 = vadd.f32 %v1878, 1.0
  %v2231 = vadd.f32 %v1880, 1.0
  %v2232 = vadd.f32 %v1882, 1.0
  %v2233 = vadd.f32 %v1884, 1.0
  %v2234 = vadd.f32 %v1886, 1.0
  %v2235 = vadd.f32 %v1888, 1.0
  %v2236 = vadd.f32 %v1890, 1.0
  %v2237 = vadd.f32 %v1892, 1.0
  %v2238 = vadd.f32 %v1894, 1.0
  %v2239 = vadd.f32 %v1896, 1.0
  %v2240 = vadd.f32 %v1898, 1.0
  %v2241 = vadd.f32 %v1900, 1.0
  %v2242 = vadd.f32 %v1902, 1.0
  %v2243 = vadd.f32 %v1904, 1.0
  %v2244 = vadd.f32 %v1906, 1.0
  %v2245 = vadd.f32 %v1908, 1.0
  %v2246 = vadd.f32 %v1910, 1.0
  %v2247 = vadd.f32 %v1912, 1.0
  %v2248 = vadd.f32 %v1914, 1.0
  %v2249 = vadd.f32 %v1916, 1.0
  %v2250 = vadd.f32 %v1918, 1.0
  %v2251 = vadd.f32 %v1920, 1.0
  %v2252 = vadd.f32 %v1922, 1.0
  %v2253 = vadd.f32 %v1924, 1.0
  %v2254 = vadd.f32 %v1926, 1.0
  %v2255 = vadd.f32 %v1928, 1.0
  %v2256 = vadd.f32 %v1930, 1.0
  %v2257 = vadd.f32 %v1932, 1.0
  %v2258 = vadd.f32 %v1934, 1.0
  %v2259 = vadd.f32 %v1936, 1.0
  %v2260 = vadd.f32 %v1938, 1.0
  %v2261 = vadd.f32 %v1940, 1.0
  %v2262 = vadd.f32 %v1942, 1.0
  %v2263 = vadd.f32 %v1944, 1.0
  %v2264 = vadd.f32 %v1946, 1.0
  %v2265 = vadd.f32 %v1948, 1.0
  %v2266 = vadd.f32 %v1950, 1.0
  %v2267 = vadd.f32 %v1952, 1.0
  %v2268 = vadd.f32 %v1954, 1.0
  %v2269 = vadd.f32 %v1956, 1.0
  %v2270 = vadd.f32 %v1958, 1.0
  %v2271 = vadd.f32 %v1960, 1.0
  %v2272 = vadd.f32 %v1962, 1.0
  %v2273 = vadd.f32 %v1964, 1.0
  %v2274 = vadd.f32 %v1966, 1.0
  %v2275 = vadd.f32 %v1968, 1.0
  %v2276 = vadd.f32 %v1970, 1.0
  %v2277 = vadd.f32 %v1972, 1.0
  %v2278 = vadd.f32 %v1974, 1.0
  %v2279 = vadd.f32 %v1976, 1.0
  %v2280 = vadd.f32 %v1978, 1.0
  %v2281 = vadd.f32 %v1980, 1.0
  %v2282 = vadd.f32 %v1982, 1.0
  %v2283 = vadd.f32 %v1984, 1.0
  %v2284 = vadd.f32 %v1986, 1.0
  %v2285 = vadd.f32 %v1988, 1.0
  %v2286 = vadd.f32 %v1990, 1.0
  %v2287 = vadd.f32 %v1992, 1.0
  %v2288 = vadd.f32 %v1994, 1.0
  %v2289 = vadd.f32 %v1996, 1.0
  %v2290 = vadd.f32 %v1998, 1.0
  %v2291 = vadd.f32 %v2000, 1.0
  %v2292 = vadd.f32 %v2002, 1.0
  %v2293 = vadd.f32 %v2004, 1.0
  %v2294 = vadd.f32 %v2006, 1.0
  %v2295 = vadd.f32 %v2008, 1.0
  %v2296 = vadd.f32 %v2010, 1.0
  %v2297 = vadd.f32 %v2012, 1.0
  %v2298 = vadd.f32 %v2014, 1.0
  %v2299 = vadd.f32 %v2016, 1.0
  %v2300 = vadd.f32 %v2018, 1.0
  %v2301 = vadd.f32 %v2020, 1.0
  %v2302 = vadd.f32 %v2022, 1.0
  %v2303 = vadd.f32 %v2024, 1.0
  %v2304 = vadd.f32 %v2026, 1.0
  %v2305 = vadd.f32 %v2028, 1.0
  %v2306 = vadd.f32 %v2030, 1.0
  %v2307 = vadd.f32 %v2032, 1.0
  %v2308 = vadd.f32 %v2034, 1.0
  %v2309 = vadd.f32 %v2036, 1.0
  %v2310 = vadd.f32 %v2038, 1.0
  %v2311 = vadd.f32 %v2040, 1.0
  %v2312 = vadd.f32 %v2042, 1.0
  %v2313 = vadd.f32 %v2044, 1.0
  %v2314 = vadd.f32 %v2046, 1.0
  %v2315 = vadd.f32 %v2048, 1.0
  %v2316 = vadd.f32 %v2050, 1.0
  %v2317 = vadd.f32 %v2052, 1.0
  %v2318 = vadd.f32 %v2054, 1.0
  %v2319 = vadd.f32 %v2056, 1.0
  %v2320 = vadd.f32 %v2058, 1.0
  %v2321 = vadd.f32 %v2060, 1.0
  %v2322 = vadd.f32 %v2062, 1.0
  %v2323 = vadd.f32 %v2064, 1.0
  %v2324 = vadd.f32 %v2066, 1.0
  %v2325 = vadd.f32 %v2068, 1.0
  %v2326 = vadd.f32 %v2070, 1.0
  %v2327 = vadd.f32 %v2072, 1.0
  %v2328 = vadd.f32 %v2074, 1.0
  %v2329 = vadd.f32 %v2076, 1.0
  %v2330 = vadd.f32 %v2078, 1.0
  %v2331 = vadd.f32 %v2080, 1.0
  %v2332 = vadd.f32 %v2082, 1.0
  %v2333 = vadd.f32 %v2084, 1.0
  %v2334 = vadd.f32 %v2086, 1.0
  %v2335 = vadd.f32 %v2088, 1.0
  %v2336 = vadd.f32 %v2090, 1.0
  %v2337 = vadd.f32 %v2092, 1.0
  %v2338 = vadd.f32 %v2094, 1.0
  %v2339 = vadd.f32 %v2096, 1.0
  %v2340 = vadd.f32 %v2098, 1.0
  %v2341 = vadd.f32 %v2100, 1.0
  %v2342 = vadd.f32 %v2102, 1.0
  %v2343 = vadd.f32 %v2104, 1.0
  %v2344 = vadd.f32 %v2106, 1.0
  %v2345 = vadd.f32 %v2108, 1.0
  %v2346 = vadd.f32 %v2110, 1.0
  %v2347 = vadd.f32 %v2112, 1.0
  %v2348 = vadd.f32 %v2114, 1.0
  %v2349 = vadd.f32 %v2116, 1.0
  %v2350 = vadd.f32 %v2118, 1.0
  %v2351 = vadd.f32 %v2120, 1.0
  %v2352 = vadd.f32 %v2122, 1.0
  %v2353 = vadd.f32 %v2124, 1.0
  %v2354 = vadd.f32 %v2126, 1.0
  %v2355 = vadd.f32 %v2128, 1.0
  %v2356 = vadd.f32 %v2130, 1.0
  %v2357 = vadd.f32 %v2132, 1.0
  %v2358 = vadd.f32 %v2134, 1.0
  %v2359 = vadd.f32 %v2136, 1.0
  %v2360 = vadd.f32 %v2138, 1.0
  %v2361 = vadd.f32 %v2140, 1.0
  %v2362 = vadd.f32 %v2142, 1.0
  %v2363 = vadd.f32 %v2144, 1.0
  %v2364 = vadd.f32 %v2146, 1.0
  %v2365 = vadd.f32 %v2148, 1.0
  %v2366 = vadd.f32 %v2150, 1.0
  %v2367 = vadd.f32 %v2152, 1.0
  %v2368 = vadd.f32 %v2154, 1.0
  %v2369 = vadd.f32 %v2156, 1.0
  %v2370 = vadd.f32 %v2158, 1.0
  %v2371 = vadd.f32 %v2160, 1.0
  %v2372 = vadd.f32 %v2162, 1.0
  %v2373 = vadd.f32 %v2164, 1.0
  %v2374 = vadd.f32 %v2166, 1.0
  %v2375 = vadd.f32 %v2168, 1.0
  %v2376 = vadd.f32 %v2170, 1.0
  %v2377 = vadd.f32 %v2172, 1.0
  %v2378 = vadd.f32 %v2174, 1.0
  %v2379 = vadd.f32 %v2176, 1.0
  %v2380 = vadd.f32 %v2178, 1.0
  %v2381 = vadd.f32 %v2180, 1.0
  %v2382 = vadd.f32 %v2182, 1.0
  %v2383 = vadd.f32 %v2184, 1.0
  %v2384 = vadd.f32 %v2186, 1.0
  %v2385 = vadd.f32 %v2188, 1.0
  %v2386 = vadd.f32 %v2190, 1.0
  %v2387 = vrcp.pop %v2191
  %v2388 = vmul.f32 1.0, %v2387
  %v2389 = vrcp.pop %v2192
  %v2390 = vmul.f32 1.0, %v2389
  %v2391 = vrcp.pop %v2193
  %v2392 = vmul.f32 1.0, %v2391
  %v2393 = vrcp.pop %v2194
  %v2394 = vmul.f32 1.0, %v2393
  %v2395 = vrcp.pop %v2195
  %v2396 = vmul.f32 1.0, %v2395
  %v2397 = vrcp.pop %v2196
  %v2398 = vmul.f32 1.0, %v2397
  %v2399 = vrcp.pop %v2197
  %v2400 = vmul.f32 1.0, %v2399
  %v2401 = vrcp.pop %v2198
  %v2402 = vmul.f32 1.0, %v2401
  %v2403 = vrcp.pop %v2199
  %v2404 = vmul.f32 1.0, %v2403
  %v2405 = vrcp.pop %v2200
  %v2406 = vmul.f32 1.0, %v2405
  %v2407 = vrcp.pop %v2201
  %v2408 = vmul.f32 1.0, %v2407
  %v2409 = vrcp.pop %v2202
  %v2410 = vmul.f32 1.0, %v2409
  %v2411 = vrcp.pop %v2203
  %v2412 = vmul.f32 1.0, %v2411
  %v2413 = vrcp.pop %v2204
  %v2414 = vmul.f32 1.0, %v2413
  %v2415 = vrcp.pop %v2205
  %v2416 = vmul.f32 1.0, %v2415
  %v2417 = vrcp.pop %v2206
  %v2418 = vmul.f32 1.0, %v2417
  %v2419 = vrcp.pop %v2207
  %v2420 = vmul.f32 1.0, %v2419
  %v2421 = vrcp.pop %v2208
  %v2422 = vmul.f32 1.0, %v2421
  %v2423 = vrcp.pop %v2209
  %v2424 = vmul.f32 1.0, %v2423
  %v2425 = vrcp.pop %v2210
  %v2426 = vmul.f32 1.0, %v2425
  %v2427 = vrcp.pop %v2211
  %v2428 = vmul.f32 1.0, %v2427
  %v2429 = vrcp.pop %v2212
  %v2430 = vmul.f32 1.0, %v2429
  %v2431 = vrcp.pop %v2213
  %v2432 = vmul.f32 1.0, %v2431
  %v2433 = vrcp.pop %v2214
  %v2434 = vmul.f32 1.0, %v2433
  %v2435 = vrcp.pop %v2215
  %v2436 = vmul.f32 1.0, %v2435
  %v2437 = vrcp.pop %v2216
  %v2438 = vmul.f32 1.0, %v2437
  %v2439 = vrcp.pop %v2217
  %v2440 = vmul.f32 1.0, %v2439
  %v2441 = vrcp.pop %v2218
  %v2442 = vmul.f32 1.0, %v2441
  %v2443 = vrcp.pop %v2219
  %v2444 = vmul.f32 1.0, %v2443
  %v2445 = vrcp.pop %v2220
  %v2446 = vmul.f32 1.0, %v2445
  %v2447 = vrcp.pop %v2221
  %v2448 = vmul.f32 1.0, %v2447
  %v2449 = vrcp.pop %v2222
  %v2450 = vmul.f32 1.0, %v2449
  %v2451 = vrcp.pop %v2223
  %v2452 = vmul.f32 1.0, %v2451
  %v2453 = vrcp.pop %v2224
  %v2454 = vmul.f32 1.0, %v2453
  %v2455 = vrcp.pop %v2225
  %v2456 = vmul.f32 1.0, %v2455
  %v2457 = vrcp.pop %v2226
  %v2458 = vmul.f32 1.0, %v2457
  %v2459 = vrcp.pop %v2227
  %v2460 = vmul.f32 1.0, %v2459
  %v2461 = vrcp.pop %v2228
  %v2462 = vmul.f32 1.0, %v2461
  %v2463 = vrcp.pop %v2229
  %v2464 = vmul.f32 1.0, %v2463
  %v2465 = vrcp.pop %v2230
  %v2466 = vmul.f32 1.0, %v2465
  %v2467 = vrcp.pop %v2231
  %v2468 = vmul.f32 1.0, %v2467
  %v2469 = vrcp.pop %v2232
  %v2470 = vmul.f32 1.0, %v2469
  %v2471 = vrcp.pop %v2233
  %v2472 = vmul.f32 1.0, %v2471
  %v2473 = vrcp.pop %v2234
  %v2474 = vmul.f32 1.0, %v2473
  %v2475 = vrcp.pop %v2235
  %v2476 = vmul.f32 1.0, %v2475
  %v2477 = vrcp.pop %v2236
  %v2478 = vmul.f32 1.0, %v2477
  %v2479 = vrcp.pop %v2237
  %v2480 = vmul.f32 1.0, %v2479
  %v2481 = vrcp.pop %v2238
  %v2482 = vmul.f32 1.0, %v2481
  %v2483 = vrcp.pop %v2239
  %v2484 = vmul.f32 1.0, %v2483
  %v2485 = vrcp.pop %v2240
  %v2486 = vmul.f32 1.0, %v2485
  %v2487 = vrcp.pop %v2241
  %v2488 = vmul.f32 1.0, %v2487
  %v2489 = vrcp.pop %v2242
  %v2490 = vmul.f32 1.0, %v2489
  %v2491 = vrcp.pop %v2243
  %v2492 = vmul.f32 1.0, %v2491
  %v2493 = vrcp.pop %v2244
  %v2494 = vmul.f32 1.0, %v2493
  %v2495 = vrcp.pop %v2245
  %v2496 = vmul.f32 1.0, %v2495
  %v2497 = vrcp.pop %v2246
  %v2498 = vmul.f32 1.0, %v2497
  %v2499 = vrcp.pop %v2247
  %v2500 = vmul.f32 1.0, %v2499
  %v2501 = vrcp.pop %v2248
  %v2502 = vmul.f32 1.0, %v2501
  %v2503 = vrcp.pop %v2249
  %v2504 = vmul.f32 1.0, %v2503
  %v2505 = vrcp.pop %v2250
  %v2506 = vmul.f32 1.0, %v2505
  %v2507 = vrcp.pop %v2251
  %v2508 = vmul.f32 1.0, %v2507
  %v2509 = vrcp.pop %v2252
  %v2510 = vmul.f32 1.0, %v2509
  %v2511 = vrcp.pop %v2253
  %v2512 = vmul.f32 1.0, %v2511
  %v2513 = vrcp.pop %v2254
  %v2514 = vmul.f32 1.0, %v2513
  %v2515 = vrcp.pop %v2255
  %v2516 = vmul.f32 1.0, %v2515
  %v2517 = vrcp.pop %v2256
  %v2518 = vmul.f32 1.0, %v2517
  %v2519 = vrcp.pop %v2257
  %v2520 = vmul.f32 1.0, %v2519
  %v2521 = vrcp.pop %v2258
  %v2522 = vmul.f32 1.0, %v2521
  %v2523 = vrcp.pop %v2259
  %v2524 = vmul.f32 1.0, %v2523
  %v2525 = vrcp.pop %v2260
  %v2526 = vmul.f32 1.0, %v2525
  %v2527 = vrcp.pop %v2261
  %v2528 = vmul.f32 1.0, %v2527
  %v2529 = vrcp.pop %v2262
  %v2530 = vmul.f32 1.0, %v2529
  %v2531 = vrcp.pop %v2263
  %v2532 = vmul.f32 1.0, %v2531
  %v2533 = vrcp.pop %v2264
  %v2534 = vmul.f32 1.0, %v2533
  %v2535 = vrcp.pop %v2265
  %v2536 = vmul.f32 1.0, %v2535
  %v2537 = vrcp.pop %v2266
  %v2538 = vmul.f32 1.0, %v2537
  %v2539 = vrcp.pop %v2267
  %v2540 = vmul.f32 1.0, %v2539
  %v2541 = vrcp.pop %v2268
  %v2542 = vmul.f32 1.0, %v2541
  %v2543 = vrcp.pop %v2269
  %v2544 = vmul.f32 1.0, %v2543
  %v2545 = vrcp.pop %v2270
  %v2546 = vmul.f32 1.0, %v2545
  %v2547 = vrcp.pop %v2271
  %v2548 = vmul.f32 1.0, %v2547
  %v2549 = vrcp.pop %v2272
  %v2550 = vmul.f32 1.0, %v2549
  %v2551 = vrcp.pop %v2273
  %v2552 = vmul.f32 1.0, %v2551
  %v2553 = vrcp.pop %v2274
  %v2554 = vmul.f32 1.0, %v2553
  %v2555 = vrcp.pop %v2275
  %v2556 = vmul.f32 1.0, %v2555
  %v2557 = vrcp.pop %v2276
  %v2558 = vmul.f32 1.0, %v2557
  %v2559 = vrcp.pop %v2277
  %v2560 = vmul.f32 1.0, %v2559
  %v2561 = vrcp.pop %v2278
  %v2562 = vmul.f32 1.0, %v2561
  %v2563 = vrcp.pop %v2279
  %v2564 = vmul.f32 1.0, %v2563
  %v2565 = vrcp.pop %v2280
  %v2566 = vmul.f32 1.0, %v2565
  %v2567 = vrcp.pop %v2281
  %v2568 = vmul.f32 1.0, %v2567
  %v2569 = vrcp.pop %v2282
  %v2570 = vmul.f32 1.0, %v2569
  %v2571 = vrcp.pop %v2283
  %v2572 = vmul.f32 1.0, %v2571
  %v2573 = vrcp.pop %v2284
  %v2574 = vmul.f32 1.0, %v2573
  %v2575 = vrcp.pop %v2285
  %v2576 = vmul.f32 1.0, %v2575
  %v2577 = vrcp.pop %v2286
  %v2578 = vmul.f32 1.0, %v2577
  %v2579 = vrcp.pop %v2287
  %v2580 = vmul.f32 1.0, %v2579
  %v2581 = vrcp.pop %v2288
  %v2582 = vmul.f32 1.0, %v2581
  %v2583 = vrcp.pop %v2289
  %v2584 = vmul.f32 1.0, %v2583
  %v2585 = vrcp.pop %v2290
  %v2586 = vmul.f32 1.0, %v2585
  %v2587 = vrcp.pop %v2291
  %v2588 = vmul.f32 1.0, %v2587
  %v2589 = vrcp.pop %v2292
  %v2590 = vmul.f32 1.0, %v2589
  %v2591 = vrcp.pop %v2293
  %v2592 = vmul.f32 1.0, %v2591
  %v2593 = vrcp.pop %v2294
  %v2594 = vmul.f32 1.0, %v2593
  %v2595 = vrcp.pop %v2295
  %v2596 = vmul.f32 1.0, %v2595
  %v2597 = vrcp.pop %v2296
  %v2598 = vmul.f32 1.0, %v2597
  %v2599 = vrcp.pop %v2297
  %v2600 = vmul.f32 1.0, %v2599
  %v2601 = vrcp.pop %v2298
  %v2602 = vmul.f32 1.0, %v2601
  %v2603 = vrcp.pop %v2299
  %v2604 = vmul.f32 1.0, %v2603
  %v2605 = vrcp.pop %v2300
  %v2606 = vmul.f32 1.0, %v2605
  %v2607 = vrcp.pop %v2301
  %v2608 = vmul.f32 1.0, %v2607
  %v2609 = vrcp.pop %v2302
  %v2610 = vmul.f32 1.0, %v2609
  %v2611 = vrcp.pop %v2303
  %v2612 = vmul.f32 1.0, %v2611
  %v2613 = vrcp.pop %v2304
  %v2614 = vmul.f32 1.0, %v2613
  %v2615 = vrcp.pop %v2305
  %v2616 = vmul.f32 1.0, %v2615
  %v2617 = vrcp.pop %v2306
  %v2618 = vmul.f32 1.0, %v2617
  %v2619 = vrcp.pop %v2307
  %v2620 = vmul.f32 1.0, %v2619
  %v2621 = vrcp.pop %v2308
  %v2622 = vmul.f32 1.0, %v2621
  %v2623 = vrcp.pop %v2309
  %v2624 = vmul.f32 1.0, %v2623
  %v2625 = vrcp.pop %v2310
  %v2626 = vmul.f32 1.0, %v2625
  %v2627 = vrcp.pop %v2311
  %v2628 = vmul.f32 1.0, %v2627
  %v2629 = vrcp.pop %v2312
  %v2630 = vmul.f32 1.0, %v2629
  %v2631 = vrcp.pop %v2313
  %v2632 = vmul.f32 1.0, %v2631
  %v2633 = vrcp.pop %v2314
  %v2634 = vmul.f32 1.0, %v2633
  %v2635 = vrcp.pop %v2315
  %v2636 = vmul.f32 1.0, %v2635
  %v2637 = vrcp.pop %v2316
  %v2638 = vmul.f32 1.0, %v2637
  %v2639 = vrcp.pop %v2317
  %v2640 = vmul.f32 1.0, %v2639
  %v2641 = vrcp.pop %v2318
  %v2642 = vmul.f32 1.0, %v2641
  %v2643 = vrcp.pop %v2319
  %v2644 = vmul.f32 1.0, %v2643
  %v2645 = vrcp.pop %v2320
  %v2646 = vmul.f32 1.0, %v2645
  %v2647 = vrcp.pop %v2321
  %v2648 = vmul.f32 1.0, %v2647
  %v2649 = vrcp.pop %v2322
  %v2650 = vmul.f32 1.0, %v2649
  %v2651 = vrcp.pop %v2323
  %v2652 = vmul.f32 1.0, %v2651
  %v2653 = vrcp.pop %v2324
  %v2654 = vmul.f32 1.0, %v2653
  %v2655 = vrcp.pop %v2325
  %v2656 = vmul.f32 1.0, %v2655
  %v2657 = vrcp.pop %v2326
  %v2658 = vmul.f32 1.0, %v2657
  %v2659 = vrcp.pop %v2327
  %v2660 = vmul.f32 1.0, %v2659
  %v2661 = vrcp.pop %v2328
  %v2662 = vmul.f32 1.0, %v2661
  %v2663 = vrcp.pop %v2329
  %v2664 = vmul.f32 1.0, %v2663
  %v2665 = vrcp.pop %v2330
  %v2666 = vmul.f32 1.0, %v2665
  %v2667 = vrcp.pop %v2331
  %v2668 = vmul.f32 1.0, %v2667
  %v2669 = vrcp.pop %v2332
  %v2670 = vmul.f32 1.0, %v2669
  %v2671 = vrcp.pop %v2333
  %v2672 = vmul.f32 1.0, %v2671
  %v2673 = vrcp.pop %v2334
  %v2674 = vmul.f32 1.0, %v2673
  %v2675 = vrcp.pop %v2335
  %v2676 = vmul.f32 1.0, %v2675
  %v2677 = vrcp.pop %v2336
  %v2678 = vmul.f32 1.0, %v2677
  %v2679 = vrcp.pop %v2337
  %v2680 = vmul.f32 1.0, %v2679
  %v2681 = vrcp.pop %v2338
  %v2682 = vmul.f32 1.0, %v2681
  %v2683 = vrcp.pop %v2339
  %v2684 = vmul.f32 1.0, %v2683
  %v2685 = vrcp.pop %v2340
  %v2686 = vmul.f32 1.0, %v2685
  %v2687 = vrcp.pop %v2341
  %v2688 = vmul.f32 1.0, %v2687
  %v2689 = vrcp.pop %v2342
  %v2690 = vmul.f32 1.0, %v2689
  %v2691 = vrcp.pop %v2343
  %v2692 = vmul.f32 1.0, %v2691
  %v2693 = vrcp.pop %v2344
  %v2694 = vmul.f32 1.0, %v2693
  %v2695 = vrcp.pop %v2345
  %v2696 = vmul.f32 1.0, %v2695
  %v2697 = vrcp.pop %v2346
  %v2698 = vmul.f32 1.0, %v2697
  %v2699 = vrcp.pop %v2347
  %v2700 = vmul.f32 1.0, %v2699
  %v2701 = vrcp.pop %v2348
  %v2702 = vmul.f32 1.0, %v2701
  %v2703 = vrcp.pop %v2349
  %v2704 = vmul.f32 1.0, %v2703
  %v2705 = vrcp.pop %v2350
  %v2706 = vmul.f32 1.0, %v2705
  %v2707 = vrcp.pop %v2351
  %v2708 = vmul.f32 1.0, %v2707
  %v2709 = vrcp.pop %v2352
  %v2710 = vmul.f32 1.0, %v2709
  %v2711 = vrcp.pop %v2353
  %v2712 = vmul.f32 1.0, %v2711
  %v2713 = vrcp.pop %v2354
  %v2714 = vmul.f32 1.0, %v2713
  %v2715 = vrcp.pop %v2355
  %v2716 = vmul.f32 1.0, %v2715
  %v2717 = vrcp.pop %v2356
  %v2718 = vmul.f32 1.0, %v2717
  %v2719 = vrcp.pop %v2357
  %v2720 = vmul.f32 1.0, %v2719
  %v2721 = vrcp.pop %v2358
  %v2722 = vmul.f32 1.0, %v2721
  %v2723 = vrcp.pop %v2359
  %v2724 = vmul.f32 1.0, %v2723
  %v2725 = vrcp.pop %v2360
  %v2726 = vmul.f32 1.0, %v2725
  %v2727 = vrcp.pop %v2361
  %v2728 = vmul.f32 1.0, %v2727
  %v2729 = vrcp.pop %v2362
  %v2730 = vmul.f32 1.0, %v2729
  %v2731 = vrcp.pop %v2363
  %v2732 = vmul.f32 1.0, %v2731
  %v2733 = vrcp.pop %v2364
  %v2734 = vmul.f32 1.0, %v2733
  %v2735 = vrcp.pop %v2365
  %v2736 = vmul.f32 1.0, %v2735
  %v2737 = vrcp.pop %v2366
  %v2738 = vmul.f32 1.0, %v2737
  %v2739 = vrcp.pop %v2367
  %v2740 = vmul.f32 1.0, %v2739
  %v2741 = vrcp.pop %v2368
  %v2742 = vmul.f32 1.0, %v2741
  %v2743 = vrcp.pop %v2369
  %v2744 = vmul.f32 1.0, %v2743
  %v2745 = vrcp.pop %v2370
  %v2746 = vmul.f32 1.0, %v2745
  %v2747 = vrcp.pop %v2371
  %v2748 = vmul.f32 1.0, %v2747
  %v2749 = vrcp.pop %v2372
  %v2750 = vmul.f32 1.0, %v2749
  %v2751 = vrcp.pop %v2373
  %v2752 = vmul.f32 1.0, %v2751
  %v2753 = vrcp.pop %v2374
  %v2754 = vmul.f32 1.0, %v2753
  %v2755 = vrcp.pop %v2375
  %v2756 = vmul.f32 1.0, %v2755
  %v2757 = vrcp.pop %v2376
  %v2758 = vmul.f32 1.0, %v2757
  %v2759 = vrcp.pop %v2377
  %v2760 = vmul.f32 1.0, %v2759
  %v2761 = vrcp.pop %v2378
  %v2762 = vmul.f32 1.0, %v2761
  %v2763 = vrcp.pop %v2379
  %v2764 = vmul.f32 1.0, %v2763
  %v2765 = vrcp.pop %v2380
  %v2766 = vmul.f32 1.0, %v2765
  %v2767 = vrcp.pop %v2381
  %v2768 = vmul.f32 1.0, %v2767
  %v2769 = vrcp.pop %v2382
  %v2770 = vmul.f32 1.0, %v2769
  %v2771 = vrcp.pop %v2383
  %v2772 = vmul.f32 1.0, %v2771
  %v2773 = vrcp.pop %v2384
  %v2774 = vmul.f32 1.0, %v2773
  %v2775 = vrcp.pop %v2385
  %v2776 = vmul.f32 1.0, %v2775
  %v2777 = vrcp.pop %v2386
  %v2778 = vmul.f32 1.0, %v2777
  %vm2779 = vcmask 7168
  %2780 = vst.msk [vmem:[%s3] sm:$0xff] %vm2779, %v2388
  %2781 = vst.msk [vmem:[%s3 + $0x8] sm:$0xff] %vm2779, %v2390
  %2782 = vst.msk [vmem:[%s3 + $0x10] sm:$0xff] %vm2779, %v2392
  %2783 = vst.msk [vmem:[%s3 + $0x18] sm:$0xff] %vm2779, %v2394
  %2784 = vst.msk [vmem:[%s3 + $0x20] sm:$0xff] %vm2779, %v2396
  %2785 = vst.msk [vmem:[%s3 + $0x28] sm:$0xff] %vm2779, %v2398
  %2786 = vst.msk [vmem:[%s3 + $0x30] sm:$0xff] %vm2779, %v2400
  %2787 = vst.msk [vmem:[%s3 + $0x38] sm:$0xff] %vm2779, %v2402
  %2788 = vst.msk [vmem:[%s3 + $0x40] sm:$0xff] %vm2779, %v2404
  %2789 = vst.msk [vmem:[%s3 + $0x48] sm:$0xff] %vm2779, %v2406
  %2790 = vst.msk [vmem:[%s3 + $0x50] sm:$0xff] %vm2779, %v2408
  %2791 = vst.msk [vmem:[%s3 + $0x58] sm:$0xff] %vm2779, %v2410
  %2792 = vst.msk [vmem:[%s3 + $0x60] sm:$0xff] %vm2779, %v2412
  %2793 = vst.msk [vmem:[%s3 + $0x68] sm:$0xff] %vm2779, %v2414
  %2794 = vst.msk [vmem:[%s3 + $0x70] sm:$0xff] %vm2779, %v2416
  %2795 = vst.msk [vmem:[%s3 + $0x78] sm:$0xff] %vm2779, %v2418
  %2796 = vst.msk [vmem:[%s3 + $0x80] sm:$0xff] %vm2779, %v2420
  %2797 = vst.msk [vmem:[%s3 + $0x88] sm:$0xff] %vm2779, %v2422
  %2798 = vst.msk [vmem:[%s3 + $0x90] sm:$0xff] %vm2779, %v2424
  %2799 = vst.msk [vmem:[%s3 + $0x98] sm:$0xff] %vm2779, %v2426
  %2800 = vst.msk [vmem:[%s3 + $0xa0] sm:$0xff] %vm2779, %v2428
  %2801 = vst.msk [vmem:[%s3 + $0xa8] sm:$0xff] %vm2779, %v2430
  %2802 = vst.msk [vmem:[%s3 + $0xb0] sm:$0xff] %vm2779, %v2432
  %2803 = vst.msk [vmem:[%s3 + $0xb8] sm:$0xff] %vm2779, %v2434
  %2804 = vst.msk [vmem:[%s3 + $0xc0] sm:$0xff] %vm2779, %v2436
  %2805 = vst.msk [vmem:[%s3 + $0xc8] sm:$0xff] %vm2779, %v2438
  %2806 = vst.msk [vmem:[%s3 + $0xd0] sm:$0xff] %vm2779, %v2440
  %2807 = vst.msk [vmem:[%s3 + $0xd8] sm:$0xff] %vm2779, %v2442
  %2808 = vst.msk [vmem:[%s3 + $0xe0] sm:$0xff] %vm2779, %v2444
  %2809 = vst.msk [vmem:[%s3 + $0xe8] sm:$0xff] %vm2779, %v2446
  %2810 = vst.msk [vmem:[%s3 + $0xf0] sm:$0xff] %vm2779, %v2448
  %2811 = vst.msk [vmem:[%s3 + $0xf8] sm:$0xff] %vm2779, %v2450
  %2812 = vst.msk [vmem:[%s3 + $0x100] sm:$0xff] %vm2779, %v2452
  %2813 = vst.msk [vmem:[%s3 + $0x108] sm:$0xff] %vm2779, %v2454
  %2814 = vst.msk [vmem:[%s3 + $0x110] sm:$0xff] %vm2779, %v2456
  %2815 = vst.msk [vmem:[%s3 + $0x118] sm:$0xff] %vm2779, %v2458
  %2816 = vst.msk [vmem:[%s3 + $0x120] sm:$0xff] %vm2779, %v2460
  %2817 = vst.msk [vmem:[%s3 + $0x128] sm:$0xff] %vm2779, %v2462
  %2818 = vst.msk [vmem:[%s3 + $0x130] sm:$0xff] %vm2779, %v2464
  %2819 = vst.msk [vmem:[%s3 + $0x138] sm:$0xff] %vm2779, %v2466
  %2820 = vst.msk [vmem:[%s3 + $0x140] sm:$0xff] %vm2779, %v2468
  %2821 = vst.msk [vmem:[%s3 + $0x148] sm:$0xff] %vm2779, %v2470
  %2822 = vst.msk [vmem:[%s3 + $0x150] sm:$0xff] %vm2779, %v2472
  %2823 = vst.msk [vmem:[%s3 + $0x158] sm:$0xff] %vm2779, %v2474
  %2824 = vst.msk [vmem:[%s3 + $0x160] sm:$0xff] %vm2779, %v2476
  %2825 = vst.msk [vmem:[%s3 + $0x168] sm:$0xff] %vm2779, %v2478
  %2826 = vst.msk [vmem:[%s3 + $0x170] sm:$0xff] %vm2779, %v2480
  %2827 = vst.msk [vmem:[%s3 + $0x178] sm:$0xff] %vm2779, %v2482
  %2828 = vst.msk [vmem:[%s3 + $0x180] sm:$0xff] %vm2779, %v2484
  %2829 = vst.msk [vmem:[%s3 + $0x188] sm:$0xff] %vm2779, %v2486
  %2830 = vst.msk [vmem:[%s3 + $0x190] sm:$0xff] %vm2779, %v2488
  %2831 = vst.msk [vmem:[%s3 + $0x198] sm:$0xff] %vm2779, %v2490
  %2832 = vst.msk [vmem:[%s3 + $0x1a0] sm:$0xff] %vm2779, %v2492
  %2833 = vst.msk [vmem:[%s3 + $0x1a8] sm:$0xff] %vm2779, %v2494
  %2834 = vst.msk [vmem:[%s3 + $0x1b0] sm:$0xff] %vm2779, %v2496
  %2835 = vst.msk [vmem:[%s3 + $0x1b8] sm:$0xff] %vm2779, %v2498
  %2836 = vst.msk [vmem:[%s3 + $0x1c0] sm:$0xff] %vm2779, %v2500
  %2837 = vst.msk [vmem:[%s3 + $0x1c8] sm:$0xff] %vm2779, %v2502
  %2838 = vst.msk [vmem:[%s3 + $0x1d0] sm:$0xff] %vm2779, %v2504
  %2839 = vst.msk [vmem:[%s3 + $0x1d8] sm:$0xff] %vm2779, %v2506
  %2840 = vst.msk [vmem:[%s3 + $0x1e0] sm:$0xff] %vm2779, %v2508
  %2841 = vst.msk [vmem:[%s3 + $0x1e8] sm:$0xff] %vm2779, %v2510
  %2842 = vst.msk [vmem:[%s3 + $0x1f0] sm:$0xff] %vm2779, %v2512
  %2843 = vst.msk [vmem:[%s3 + $0x1f8] sm:$0xff] %vm2779, %v2514
  %2844 = vst.msk [vmem:[%s3 + $0x200] sm:$0xff] %vm2779, %v2516
  %2845 = vst.msk [vmem:[%s3 + $0x208] sm:$0xff] %vm2779, %v2518
  %2846 = vst.msk [vmem:[%s3 + $0x210] sm:$0xff] %vm2779, %v2520
  %2847 = vst.msk [vmem:[%s3 + $0x218] sm:$0xff] %vm2779, %v2522
  %2848 = vst.msk [vmem:[%s3 + $0x220] sm:$0xff] %vm2779, %v2524
  %2849 = vst.msk [vmem:[%s3 + $0x228] sm:$0xff] %vm2779, %v2526
  %2850 = vst.msk [vmem:[%s3 + $0x230] sm:$0xff] %vm2779, %v2528
  %2851 = vst.msk [vmem:[%s3 + $0x238] sm:$0xff] %vm2779, %v2530
  %2852 = vst.msk [vmem:[%s3 + $0x240] sm:$0xff] %vm2779, %v2532
  %2853 = vst.msk [vmem:[%s3 + $0x248] sm:$0xff] %vm2779, %v2534
  %2854 = vst.msk [vmem:[%s3 + $0x250] sm:$0xff] %vm2779, %v2536
  %2855 = vst.msk [vmem:[%s3 + $0x258] sm:$0xff] %vm2779, %v2538
  %2856 = vst.msk [vmem:[%s3 + $0x260] sm:$0xff] %vm2779, %v2540
  %2857 = vst.msk [vmem:[%s3 + $0x268] sm:$0xff] %vm2779, %v2542
  %2858 = vst.msk [vmem:[%s3 + $0x270] sm:$0xff] %vm2779, %v2544
  %2859 = vst.msk [vmem:[%s3 + $0x278] sm:$0xff] %vm2779, %v2546
  %2860 = vst.msk [vmem:[%s3 + $0x280] sm:$0xff] %vm2779, %v2548
  %2861 = vst.msk [vmem:[%s3 + $0x288] sm:$0xff] %vm2779, %v2550
  %2862 = vst.msk [vmem:[%s3 + $0x290] sm:$0xff] %vm2779, %v2552
  %2863 = vst.msk [vmem:[%s3 + $0x298] sm:$0xff] %vm2779, %v2554
  %2864 = vst.msk [vmem:[%s3 + $0x2a0] sm:$0xff] %vm2779, %v2556
  %2865 = vst.msk [vmem:[%s3 + $0x2a8] sm:$0xff] %vm2779, %v2558
  %2866 = vst.msk [vmem:[%s3 + $0x2b0] sm:$0xff] %vm2779, %v2560
  %2867 = vst.msk [vmem:[%s3 + $0x2b8] sm:$0xff] %vm2779, %v2562
  %2868 = vst.msk [vmem:[%s3 + $0x2c0] sm:$0xff] %vm2779, %v2564
  %2869 = vst.msk [vmem:[%s3 + $0x2c8] sm:$0xff] %vm2779, %v2566
  %2870 = vst.msk [vmem:[%s3 + $0x2d0] sm:$0xff] %vm2779, %v2568
  %2871 = vst.msk [vmem:[%s3 + $0x2d8] sm:$0xff] %vm2779, %v2570
  %2872 = vst.msk [vmem:[%s3 + $0x2e0] sm:$0xff] %vm2779, %v2572
  %2873 = vst.msk [vmem:[%s3 + $0x2e8] sm:$0xff] %vm2779, %v2574
  %2874 = vst.msk [vmem:[%s3 + $0x2f0] sm:$0xff] %vm2779, %v2576
  %2875 = vst.msk [vmem:[%s3 + $0x2f8] sm:$0xff] %vm2779, %v2578
  %2876 = vst.msk [vmem:[%s3 + $0x300] sm:$0xff] %vm2779, %v2580
  %2877 = vst.msk [vmem:[%s3 + $0x308] sm:$0xff] %vm2779, %v2582
  %2878 = vst.msk [vmem:[%s3 + $0x310] sm:$0xff] %vm2779, %v2584
  %2879 = vst.msk [vmem:[%s3 + $0x318] sm:$0xff] %vm2779, %v2586
  %2880 = vst.msk [vmem:[%s3 + $0x320] sm:$0xff] %vm2779, %v2588
  %2881 = vst.msk [vmem:[%s3 + $0x328] sm:$0xff] %vm2779, %v2590
  %2882 = vst.msk [vmem:[%s3 + $0x330] sm:$0xff] %vm2779, %v2592
  %2883 = vst.msk [vmem:[%s3 + $0x338] sm:$0xff] %vm2779, %v2594
  %2884 = vst.msk [vmem:[%s3 + $0x340] sm:$0xff] %vm2779, %v2596
  %2885 = vst.msk [vmem:[%s3 + $0x348] sm:$0xff] %vm2779, %v2598
  %2886 = vst.msk [vmem:[%s3 + $0x350] sm:$0xff] %vm2779, %v2600
  %2887 = vst.msk [vmem:[%s3 + $0x358] sm:$0xff] %vm2779, %v2602
  %2888 = vst.msk [vmem:[%s3 + $0x360] sm:$0xff] %vm2779, %v2604
  %2889 = vst.msk [vmem:[%s3 + $0x368] sm:$0xff] %vm2779, %v2606
  %2890 = vst.msk [vmem:[%s3 + $0x370] sm:$0xff] %vm2779, %v2608
  %2891 = vst.msk [vmem:[%s3 + $0x378] sm:$0xff] %vm2779, %v2610
  %2892 = vst.msk [vmem:[%s3 + $0x380] sm:$0xff] %vm2779, %v2612
  %2893 = vst.msk [vmem:[%s3 + $0x388] sm:$0xff] %vm2779, %v2614
  %2894 = vst.msk [vmem:[%s3 + $0x390] sm:$0xff] %vm2779, %v2616
  %2895 = vst.msk [vmem:[%s3 + $0x398] sm:$0xff] %vm2779, %v2618
  %2896 = vst.msk [vmem:[%s3 + $0x3a0] sm:$0xff] %vm2779, %v2620
  %2897 = vst.msk [vmem:[%s3 + $0x3a8] sm:$0xff] %vm2779, %v2622
  %2898 = vst.msk [vmem:[%s3 + $0x3b0] sm:$0xff] %vm2779, %v2624
  %2899 = vst.msk [vmem:[%s3 + $0x3b8] sm:$0xff] %vm2779, %v2626
  %2900 = vst.msk [vmem:[%s3 + $0x3c0] sm:$0xff] %vm2779, %v2628
  %2901 = vst.msk [vmem:[%s3 + $0x3c8] sm:$0xff] %vm2779, %v2630
  %2902 = vst.msk [vmem:[%s3 + $0x3d0] sm:$0xff] %vm2779, %v2632
  %2903 = vst.msk [vmem:[%s3 + $0x3d8] sm:$0xff] %vm2779, %v2634
  %2904 = vst.msk [vmem:[%s3 + $0x3e0] sm:$0xff] %vm2779, %v2636
  %2905 = vst.msk [vmem:[%s3 + $0x3e8] sm:$0xff] %vm2779, %v2638
  %2906 = vst.msk [vmem:[%s3 + $0x3f0] sm:$0xff] %vm2779, %v2640
  %2907 = vst.msk [vmem:[%s3 + $0x3f8] sm:$0xff] %vm2779, %v2642
  %2908 = vst.msk [vmem:[%s3 + $0x400] sm:$0xff] %vm2779, %v2644
  %2909 = vst.msk [vmem:[%s3 + $0x408] sm:$0xff] %vm2779, %v2646
  %2910 = vst.msk [vmem:[%s3 + $0x410] sm:$0xff] %vm2779, %v2648
  %2911 = vst.msk [vmem:[%s3 + $0x418] sm:$0xff] %vm2779, %v2650
  %2912 = vst.msk [vmem:[%s3 + $0x420] sm:$0xff] %vm2779, %v2652
  %2913 = vst.msk [vmem:[%s3 + $0x428] sm:$0xff] %vm2779, %v2654
  %2914 = vst.msk [vmem:[%s3 + $0x430] sm:$0xff] %vm2779, %v2656
  %2915 = vst.msk [vmem:[%s3 + $0x438] sm:$0xff] %vm2779, %v2658
  %2916 = vst.msk [vmem:[%s3 + $0x440] sm:$0xff] %vm2779, %v2660
  %2917 = vst.msk [vmem:[%s3 + $0x448] sm:$0xff] %vm2779, %v2662
  %2918 = vst.msk [vmem:[%s3 + $0x450] sm:$0xff] %vm2779, %v2664
  %2919 = vst.msk [vmem:[%s3 + $0x458] sm:$0xff] %vm2779, %v2666
  %2920 = vst.msk [vmem:[%s3 + $0x460] sm:$0xff] %vm2779, %v2668
  %2921 = vst.msk [vmem:[%s3 + $0x468] sm:$0xff] %vm2779, %v2670
  %2922 = vst.msk [vmem:[%s3 + $0x470] sm:$0xff] %vm2779, %v2672
  %2923 = vst.msk [vmem:[%s3 + $0x478] sm:$0xff] %vm2779, %v2674
  %2924 = vst.msk [vmem:[%s3 + $0x480] sm:$0xff] %vm2779, %v2676
  %2925 = vst.msk [vmem:[%s3 + $0x488] sm:$0xff] %vm2779, %v2678
  %2926 = vst.msk [vmem:[%s3 + $0x490] sm:$0xff] %vm2779, %v2680
  %2927 = vst.msk [vmem:[%s3 + $0x498] sm:$0xff] %vm2779, %v2682
  %2928 = vst.msk [vmem:[%s3 + $0x4a0] sm:$0xff] %vm2779, %v2684
  %2929 = vst.msk [vmem:[%s3 + $0x4a8] sm:$0xff] %vm2779, %v2686
  %2930 = vst.msk [vmem:[%s3 + $0x4b0] sm:$0xff] %vm2779, %v2688
  %2931 = vst.msk [vmem:[%s3 + $0x4b8] sm:$0xff] %vm2779, %v2690
  %2932 = vst.msk [vmem:[%s3 + $0x4c0] sm:$0xff] %vm2779, %v2692
  %2933 = vst.msk [vmem:[%s3 + $0x4c8] sm:$0xff] %vm2779, %v2694
  %2934 = vst.msk [vmem:[%s3 + $0x4d0] sm:$0xff] %vm2779, %v2696
  %2935 = vst.msk [vmem:[%s3 + $0x4d8] sm:$0xff] %vm2779, %v2698
  %2936 = vst.msk [vmem:[%s3 + $0x4e0] sm:$0xff] %vm2779, %v2700
  %2937 = vst.msk [vmem:[%s3 + $0x4e8] sm:$0xff] %vm2779, %v2702
  %2938 = vst.msk [vmem:[%s3 + $0x4f0] sm:$0xff] %vm2779, %v2704
  %2939 = vst.msk [vmem:[%s3 + $0x4f8] sm:$0xff] %vm2779, %v2706
  %2940 = vst.msk [vmem:[%s3 + $0x500] sm:$0xff] %vm2779, %v2708
  %2941 = vst.msk [vmem:[%s3 + $0x508] sm:$0xff] %vm2779, %v2710
  %2942 = vst.msk [vmem:[%s3 + $0x510] sm:$0xff] %vm2779, %v2712
  %2943 = vst.msk [vmem:[%s3 + $0x518] sm:$0xff] %vm2779, %v2714
  %2944 = vst.msk [vmem:[%s3 + $0x520] sm:$0xff] %vm2779, %v2716
  %2945 = vst.msk [vmem:[%s3 + $0x528] sm:$0xff] %vm2779, %v2718
  %2946 = vst.msk [vmem:[%s3 + $0x530] sm:$0xff] %vm2779, %v2720
  %2947 = vst.msk [vmem:[%s3 + $0x538] sm:$0xff] %vm2779, %v2722
  %2948 = vst.msk [vmem:[%s3 + $0x540] sm:$0xff] %vm2779, %v2724
  %2949 = vst.msk [vmem:[%s3 + $0x548] sm:$0xff] %vm2779, %v2726
  %2950 = vst.msk [vmem:[%s3 + $0x550] sm:$0xff] %vm2779, %v2728
  %2951 = vst.msk [vmem:[%s3 + $0x558] sm:$0xff] %vm2779, %v2730
  %2952 = vst.msk [vmem:[%s3 + $0x560] sm:$0xff] %vm2779, %v2732
  %2953 = vst.msk [vmem:[%s3 + $0x568] sm:$0xff] %vm2779, %v2734
  %2954 = vst.msk [vmem:[%s3 + $0x570] sm:$0xff] %vm2779, %v2736
  %2955 = vst.msk [vmem:[%s3 + $0x578] sm:$0xff] %vm2779, %v2738
  %2956 = vst.msk [vmem:[%s3 + $0x580] sm:$0xff] %vm2779, %v2740
  %2957 = vst.msk [vmem:[%s3 + $0x588] sm:$0xff] %vm2779, %v2742
  %2958 = vst.msk [vmem:[%s3 + $0x590] sm:$0xff] %vm2779, %v2744
  %2959 = vst.msk [vmem:[%s3 + $0x598] sm:$0xff] %vm2779, %v2746
  %2960 = vst.msk [vmem:[%s3 + $0x5a0] sm:$0xff] %vm2779, %v2748
  %2961 = vst.msk [vmem:[%s3 + $0x5a8] sm:$0xff] %vm2779, %v2750
  %2962 = vst.msk [vmem:[%s3 + $0x5b0] sm:$0xff] %vm2779, %v2752
  %2963 = vst.msk [vmem:[%s3 + $0x5b8] sm:$0xff] %vm2779, %v2754
  %2964 = vst.msk [vmem:[%s3 + $0x5c0] sm:$0xff] %vm2779, %v2756
  %2965 = vst.msk [vmem:[%s3 + $0x5c8] sm:$0xff] %vm2779, %v2758
  %2966 = vst.msk [vmem:[%s3 + $0x5d0] sm:$0xff] %vm2779, %v2760
  %2967 = vst.msk [vmem:[%s3 + $0x5d8] sm:$0xff] %vm2779, %v2762
  %2968 = vst.msk [vmem:[%s3 + $0x5e0] sm:$0xff] %vm2779, %v2764
  %2969 = vst.msk [vmem:[%s3 + $0x5e8] sm:$0xff] %vm2779, %v2766
  %2970 = vst.msk [vmem:[%s3 + $0x5f0] sm:$0xff] %vm2779, %v2768
  %2971 = vst.msk [vmem:[%s3 + $0x5f8] sm:$0xff] %vm2779, %v2770
  %2972 = vst.msk [vmem:[%s3 + $0x600] sm:$0xff] %vm2779, %v2772
  %2973 = vst.msk [vmem:[%s3 + $0x608] sm:$0xff] %vm2779, %v2774
  %2974 = vst.msk [vmem:[%s3 + $0x610] sm:$0xff] %vm2779, %v2776
  %2975 = vst.msk [vmem:[%s3 + $0x618] sm:$0xff] %vm2779, %v2778
  // Predicated region
  $region14: #{vae_forward.11} parent=0 // pred_check
    _
  $region15: #{vae_forward.11} parent=0 // pred_check_branch
    %2977 = sbr.rel (0) target = $region17
  $region16: #{vae_forward.11} parent=0 // pred_region
    _
  $region17: #{vae_forward.11} parent=0 // pred_fallthru
    _
  // Predicated region
  $region18: #{vae_forward.11} parent=0 // pred_check
    _
  $region19: #{vae_forward.11} parent=0 // pred_check_branch
    %2979 = sbr.rel (0) target = $region21
  $region20: #{vae_forward.11} parent=0 // pred_region
    _
  $region21: #{vae_forward.11} parent=0 // pred_fallthru
    _

</llo_original>
